<compile_context>
chip_gen: v5e
topology: v5e:2x2
jax: 0.10.0
libtpu: 0.0.40
codegen_flags: <defaults>
</compile_context>

<pallas_src>
import jax
import jax.numpy as jnp
from jax.experimental import pallas as pl
from jax.experimental.pallas import tpu as pltpu

KH = KW = 5  # every conv in the module is 5x5


# ----------------------------- in-kernel helpers ------------------------------
# Activation layout inside the kernel: (H, C, W)
#   H -> major axis (free row selection), C -> sublanes, W -> lanes.
# Helpers use only static slices, concatenates, maximum and 2-D dots.

def _relu(x):
    return jnp.maximum(x, 0.0)


def _conv2d_valid(x, w, b):
    """Valid 5x5 convolution as a single MXU matmul (im2col).

    x: (H, Cin, W) f32
    w: (Cout, KH*KW*Cin) f32, column order (kh, kw, ci)
    b: (Cout, 1) f32
    returns: (Cout, Ho*Wo) f32, column order (ho, wo) — lane dense.
    """
    H, Cin, W = x.shape
    Ho, Wo = H - KH + 1, W - KW + 1
    # Stack the 25 taps along the contraction (sublane) axis.
    taps = [x[kh:kh + Ho, :, kw:kw + Wo]                       # (Ho, Cin, Wo)
            for kh in range(KH) for kw in range(KW)]
    z = jnp.concatenate(taps, axis=1)                          # (Ho, K, Wo)
    # Flatten output positions onto lanes; z[r] is a free major-axis select.
    patches = jnp.concatenate([z[r] for r in range(Ho)], axis=-1)  # (K, Ho*Wo)
    return jnp.dot(w, patches, preferred_element_type=jnp.float32) + b


def _unflatten_rows(y, Ho, Wo):
    """(C, Ho*Wo) -> (Ho, C, Wo)."""
    return jnp.concatenate(
        [y[None, :, r * Wo:(r + 1) * Wo] for r in range(Ho)], axis=0)


def _maxpool2(x):
    """2x2 max pool, stride 2.  x: (H, C, W) with even H, W."""
    H, C, W = x.shape
    rows = []
    for r in range(H // 2):
        rm = jnp.maximum(x[2 * r], x[2 * r + 1])               # (C, W)
        cols = [jnp.maximum(rm[:, 2 * c:2 * c + 1], rm[:, 2 * c + 1:2 * c + 2])
                for c in range(W // 2)]
        rows.append(jnp.concatenate(cols, axis=-1)[None])      # (1, C, W//2)
    return jnp.concatenate(rows, axis=0)


def _upsample2(x):
    """Nearest-neighbour upsample by 2 along H and W.  x: (H, C, W)."""
    H, C, W = x.shape
    rows = []
    for r in range(H):
        xr = x[r]                                              # (C, W)
        wide = jnp.concatenate(
            [xr[:, c:c + 1] for c in range(W) for _ in range(2)], axis=-1)
        rows.append(wide[None])
        rows.append(wide[None])
    return jnp.concatenate(rows, axis=0)                       # (2H, C, 2W)


def _pad_hw(x, p):
    """Zero-pad H and W by p on each side.  x: (H, C, W)."""
    H, C, W = x.shape
    zc = jnp.zeros((H, C, p), x.dtype)
    x = jnp.concatenate([zc, x, zc], axis=-1)                  # pad W (lanes)
    zr = jnp.zeros((p, C, W + 2 * p), x.dtype)
    return jnp.concatenate([zr, x, zr], axis=0)                # pad H (major)


# --------------------------------- the kernel ---------------------------------

def _autoencoder_kernel(x_ref, w1_ref, b1_ref, w2_ref, b2_ref,
                        w3_ref, b3_ref, w4_ref, b4_ref, o_ref):
    x = x_ref[0]                                               # (H, 1, W)
    H, _, W = x.shape

    # ------------------------------ encoder -------------------------------
    h, w = H - 4, W - 4
    y = _relu(_conv2d_valid(x, w1_ref[...], b1_ref[...]))      # (10, h*w)
    y = _maxpool2(_unflatten_rows(y, h, w))                    # (h/2, 10, w/2)

    h, w = h // 2 - 4, w // 2 - 4
    y = _relu(_conv2d_valid(y, w2_ref[...], b2_ref[...]))      # (20, h*w)
    y = _maxpool2(_unflatten_rows(y, h, w))                    # (h/2, 20, w/2)

    # ------------------------------ decoder -------------------------------
    y = _pad_hw(_upsample2(y), 4)
    h, w = y.shape[0] - 4, y.shape[2] - 4
    y = _relu(_conv2d_valid(y, w3_ref[...], b3_ref[...]))      # (10, h*w)
    y = _unflatten_rows(y, h, w)

    y = _pad_hw(_upsample2(y), 4)
    y = _relu(_conv2d_valid(y, w4_ref[...], b4_ref[...]))      # (1, Ho*Wo)

    o_ref[...] = y[None].astype(o_ref.dtype)                   # lane-dense store


# ---------------------------------- wrapper -----------------------------------

def _out_spatial(s):
    s = (s - 4) // 2           # conv1 (valid) + pool
    s = (s - 4) // 2           # conv2 (valid) + pool
    s = 2 * s + 4              # up + conv3 (pad=4)
    s = 2 * s + 4              # up + conv4 (pad=4)
    return s


def my_auto_encoder(x_nchw, params):
    """x_nchw: (N, 1, H, W) f32 -> (N, 1, H_out, W_out) f32."""
    w1, b1, w2, b2, w3, b3, w4, b4 = params
    N, Cin, H, W = x_nchw.shape
    assert Cin == 1
    for s in (H, W):
        assert (s - 4) % 2 == 0 and ((s - 4) // 2 - 4) >= 2 \
            and ((s - 4) // 2 - 4) % 2 == 0, "unsupported spatial size"
    Ho, Wo = _out_spatial(H), _out_spatial(W)

    # Free reshape (unit-dim move, no transpose): (N, 1, H, W) -> (N, H, 1, W),
    # so each per-image block already has the in-kernel (H, C, W) layout.
    x_hw = x_nchw.reshape(N, H, 1, W)

    param_list = [w1, b1, w2, b2, w3, b3, w4, b4]
    param_specs = [pl.BlockSpec(p.shape, lambda n: (0, 0)) for p in param_list]

    out_flat = pl.pallas_call(
        _autoencoder_kernel,
        out_shape=jax.ShapeDtypeStruct((N, 1, Ho * Wo), jnp.float32),
        grid=(N,),
        in_specs=[pl.BlockSpec((1, H, 1, W), lambda n: (n, 0, 0, 0))] + param_specs,
        out_specs=pl.BlockSpec((1, 1, Ho * Wo), lambda n: (n, 0, 0)),
        compiler_params=pltpu.CompilerParams(
            dimension_semantics=("parallel",)),   # batch sharded across TCs on v7x
    )(x_hw, *param_list)

    return out_flat.reshape(N, 1, Ho, Wo)          # free reshape, no transpose


# ------------------------------- parameter init --------------------------------

def init_params(key):
    """Weights pre-flattened to (Cout, KH*KW*Cin), column order (kh, kw, ci).

    (PyTorch interop: permute torch's (Cout, Cin, KH, KW) -> (Cout, KH, KW, Cin)
    before the reshape below.)
    """
    def conv_init(k, cin, cout):
        kw_, kb_ = jax.random.split(k)
        fan_in = cin * KH * KW
        bound = 1.0 / jnp.sqrt(jnp.float32(fan_in))
        w = jax.random.uniform(kw_, (cout, KH, KW, cin), jnp.float32, -bound, bound)
        w = w.reshape(cout, KH * KW * cin)
        b = jax.random.uniform(kb_, (cout, 1), jnp.float32, -bound, bound)
        return w, b

    k = jax.random.split(key, 4)
    w1, b1 = conv_init(k[0], 1, 10)    # conv1
    w2, b2 = conv_init(k[1], 10, 20)   # conv2
    w3, b3 = conv_init(k[2], 20, 10)   # conv3
    w4, b4 = conv_init(k[3], 10, 1)    # conv4
    return (w1, b1, w2, b2, w3, b3, w4, b4)


# ------------------------------ pure-JAX reference ------------------------------

def _reference_forward(x, params):
    """XLA reference of MyAutoEncoder.forward (for correctness checking)."""
    w1, b1, w2, b2, w3, b3, w4, b4 = params

    def conv(x, w2d, b, cin, cout, pad):
        wt = w2d.reshape(cout, KH, KW, cin).transpose(0, 3, 1, 2)  # OIHW
        y = jax.lax.conv_general_dilated(
            x, wt, window_strides=(1, 1), padding=[(pad, pad), (pad, pad)],
            dimension_numbers=("NCHW", "OIHW", "NCHW"))
        return y + b.reshape(1, cout, 1, 1)

    def pool(x):
        return jax.lax.reduce_window(x, -jnp.inf, jax.lax.max,
                                     (1, 1, 2, 2), (1, 1, 2, 2), "VALID")

    def up(x):
        return jnp.repeat(jnp.repeat(x, 2, axis=2), 2, axis=3)

    r = jax.nn.relu
    y = pool(r(conv(x, w1, b1, 1, 10, 0)))
    y = pool(r(conv(y, w2, b2, 10, 20, 0)))
    y = r(conv(up(y), w3, b3, 20, 10, 4))
    y = r(conv(up(y), w4, b4, 10, 1, 4))
    return y


# ------------------------------------ main --------------------------------------

if __name__ == "__main__":
    key = jax.random.PRNGKey(0)
    kx, kp = jax.random.split(key)

    # Single-channel input; spatial=16 round-trips to a 16x16 output.
    x = jax.random.normal(kx, (2, 1, 16, 16), jnp.float32)
    params = init_params(kp)

    y = jax.block_until_ready(my_auto_encoder(x, params))

    assert y.shape == (2, 1, 16, 16), y.shape
    assert bool(jnp.all(jnp.isfinite(y)))
    assert bool(jnp.all(y >= 0.0))          # final ReLU

    y_ref = _reference_forward(x, params)
    assert jnp.allclose(y, y_ref, rtol=5e-3, atol=5e-3), (
        float(jnp.max(jnp.abs(y - y_ref))))

    print("KERNEL_OK")
</pallas_src>

<mosaic_0001>
module attributes {stable_mosaic.version = 11 : i64} {
  func.func @_autoencoder_kernel(%arg0: i32, %arg1: memref<1x16x1x16xf32, #tpu.memory_space<vmem>>, %arg2: memref<10x25xf32, #tpu.memory_space<vmem>>, %arg3: memref<10x1xf32, #tpu.memory_space<vmem>>, %arg4: memref<20x250xf32, #tpu.memory_space<vmem>>, %arg5: memref<20x1xf32, #tpu.memory_space<vmem>>, %arg6: memref<10x500xf32, #tpu.memory_space<vmem>>, %arg7: memref<10x1xf32, #tpu.memory_space<vmem>>, %arg8: memref<1x250xf32, #tpu.memory_space<vmem>>, %arg9: memref<1x1xf32, #tpu.memory_space<vmem>>, %arg10: memref<1x1x256xf32, #tpu.memory_space<vmem>>) attributes {dimension_semantics = [#tpu.dimension_semantics<parallel>], iteration_bounds = array<i64: 2>, scalar_prefetch = 0 : i64, scratch_operands = 0 : i64, tpu.core_type = #tpu.core_type<tc>, window_params = [{transform_indices = @transform_0, window_bounds = array<i64: 1, 16, 1, 16>}, {pipeline_mode = #tpu.pipeline_mode<synchronous>, transform_indices = @transform_1, window_bounds = array<i64: 10, 25>}, {pipeline_mode = #tpu.pipeline_mode<synchronous>, transform_indices = @transform_2, window_bounds = array<i64: 10, 1>}, {pipeline_mode = #tpu.pipeline_mode<synchronous>, transform_indices = @transform_3, window_bounds = array<i64: 20, 250>}, {pipeline_mode = #tpu.pipeline_mode<synchronous>, transform_indices = @transform_4, window_bounds = array<i64: 20, 1>}, {pipeline_mode = #tpu.pipeline_mode<synchronous>, transform_indices = @transform_5, window_bounds = array<i64: 10, 500>}, {pipeline_mode = #tpu.pipeline_mode<synchronous>, transform_indices = @transform_6, window_bounds = array<i64: 10, 1>}, {pipeline_mode = #tpu.pipeline_mode<synchronous>, transform_indices = @transform_7, window_bounds = array<i64: 1, 250>}, {pipeline_mode = #tpu.pipeline_mode<synchronous>, transform_indices = @transform_8, window_bounds = array<i64: 1, 1>}, {transform_indices = @transform_9, window_bounds = array<i64: 1, 1, 256>}]} {
    %c0 = arith.constant 0 : index
    %c0_0 = arith.constant 0 : index
    %c0_1 = arith.constant 0 : index
    %c0_2 = arith.constant 0 : index
    %0 = vector.load %arg1[%c0, %c0_0, %c0_1, %c0_2] : memref<1x16x1x16xf32, #tpu.memory_space<vmem>>, vector<1x16x1x16xf32>
    %1 = vector.shape_cast %0 : vector<1x16x1x16xf32> to vector<16x1x16xf32>
    %c0_3 = arith.constant 0 : index
    %c0_4 = arith.constant 0 : index
    %2 = vector.load %arg2[%c0_3, %c0_4] : memref<10x25xf32, #tpu.memory_space<vmem>>, vector<10x25xf32>
    %c0_5 = arith.constant 0 : index
    %c0_6 = arith.constant 0 : index
    %3 = vector.load %arg3[%c0_5, %c0_6] : memref<10x1xf32, #tpu.memory_space<vmem>>, vector<10x1xf32>
    %4 = vector.extract_strided_slice %1 {offsets = [0, 0, 0], sizes = [12, 1, 12], strides = [1, 1, 1]} : vector<16x1x16xf32> to vector<12x1x12xf32>
    %5 = vector.extract_strided_slice %1 {offsets = [0, 0, 1], sizes = [12, 1, 12], strides = [1, 1, 1]} : vector<16x1x16xf32> to vector<12x1x12xf32>
    %6 = vector.extract_strided_slice %1 {offsets = [0, 0, 2], sizes = [12, 1, 12], strides = [1, 1, 1]} : vector<16x1x16xf32> to vector<12x1x12xf32>
    %7 = vector.extract_strided_slice %1 {offsets = [0, 0, 3], sizes = [12, 1, 12], strides = [1, 1, 1]} : vector<16x1x16xf32> to vector<12x1x12xf32>
    %8 = vector.extract_strided_slice %1 {offsets = [0, 0, 4], sizes = [12, 1, 12], strides = [1, 1, 1]} : vector<16x1x16xf32> to vector<12x1x12xf32>
    %9 = vector.extract_strided_slice %1 {offsets = [1, 0, 0], sizes = [12, 1, 12], strides = [1, 1, 1]} : vector<16x1x16xf32> to vector<12x1x12xf32>
    %10 = vector.extract_strided_slice %1 {offsets = [1, 0, 1], sizes = [12, 1, 12], strides = [1, 1, 1]} : vector<16x1x16xf32> to vector<12x1x12xf32>
    %11 = vector.extract_strided_slice %1 {offsets = [1, 0, 2], sizes = [12, 1, 12], strides = [1, 1, 1]} : vector<16x1x16xf32> to vector<12x1x12xf32>
    %12 = vector.extract_strided_slice %1 {offsets = [1, 0, 3], sizes = [12, 1, 12], strides = [1, 1, 1]} : vector<16x1x16xf32> to vector<12x1x12xf32>
    %13 = vector.extract_strided_slice %1 {offsets = [1, 0, 4], sizes = [12, 1, 12], strides = [1, 1, 1]} : vector<16x1x16xf32> to vector<12x1x12xf32>
    %14 = vector.extract_strided_slice %1 {offsets = [2, 0, 0], sizes = [12, 1, 12], strides = [1, 1, 1]} : vector<16x1x16xf32> to vector<12x1x12xf32>
    %15 = vector.extract_strided_slice %1 {offsets = [2, 0, 1], sizes = [12, 1, 12], strides = [1, 1, 1]} : vector<16x1x16xf32> to vector<12x1x12xf32>
    %16 = vector.extract_strided_slice %1 {offsets = [2, 0, 2], sizes = [12, 1, 12], strides = [1, 1, 1]} : vector<16x1x16xf32> to vector<12x1x12xf32>
    %17 = vector.extract_strided_slice %1 {offsets = [2, 0, 3], sizes = [12, 1, 12], strides = [1, 1, 1]} : vector<16x1x16xf32> to vector<12x1x12xf32>
    %18 = vector.extract_strided_slice %1 {offsets = [2, 0, 4], sizes = [12, 1, 12], strides = [1, 1, 1]} : vector<16x1x16xf32> to vector<12x1x12xf32>
    %19 = vector.extract_strided_slice %1 {offsets = [3, 0, 0], sizes = [12, 1, 12], strides = [1, 1, 1]} : vector<16x1x16xf32> to vector<12x1x12xf32>
    %20 = vector.extract_strided_slice %1 {offsets = [3, 0, 1], sizes = [12, 1, 12], strides = [1, 1, 1]} : vector<16x1x16xf32> to vector<12x1x12xf32>
    %21 = vector.extract_strided_slice %1 {offsets = [3, 0, 2], sizes = [12, 1, 12], strides = [1, 1, 1]} : vector<16x1x16xf32> to vector<12x1x12xf32>
    %22 = vector.extract_strided_slice %1 {offsets = [3, 0, 3], sizes = [12, 1, 12], strides = [1, 1, 1]} : vector<16x1x16xf32> to vector<12x1x12xf32>
    %23 = vector.extract_strided_slice %1 {offsets = [3, 0, 4], sizes = [12, 1, 12], strides = [1, 1, 1]} : vector<16x1x16xf32> to vector<12x1x12xf32>
    %24 = vector.extract_strided_slice %1 {offsets = [4, 0, 0], sizes = [12, 1, 12], strides = [1, 1, 1]} : vector<16x1x16xf32> to vector<12x1x12xf32>
    %25 = vector.extract_strided_slice %1 {offsets = [4, 0, 1], sizes = [12, 1, 12], strides = [1, 1, 1]} : vector<16x1x16xf32> to vector<12x1x12xf32>
    %26 = vector.extract_strided_slice %1 {offsets = [4, 0, 2], sizes = [12, 1, 12], strides = [1, 1, 1]} : vector<16x1x16xf32> to vector<12x1x12xf32>
    %27 = vector.extract_strided_slice %1 {offsets = [4, 0, 3], sizes = [12, 1, 12], strides = [1, 1, 1]} : vector<16x1x16xf32> to vector<12x1x12xf32>
    %28 = vector.extract_strided_slice %1 {offsets = [4, 0, 4], sizes = [12, 1, 12], strides = [1, 1, 1]} : vector<16x1x16xf32> to vector<12x1x12xf32>
    %29 = tpu.concatenate %4, %5, %6, %7, %8, %9, %10, %11, %12, %13, %14, %15, %16, %17, %18, %19 in 1 : vector<12x1x12xf32>, vector<12x1x12xf32>, vector<12x1x12xf32>, vector<12x1x12xf32>, vector<12x1x12xf32>, vector<12x1x12xf32>, vector<12x1x12xf32>, vector<12x1x12xf32>, vector<12x1x12xf32>, vector<12x1x12xf32>, vector<12x1x12xf32>, vector<12x1x12xf32>, vector<12x1x12xf32>, vector<12x1x12xf32>, vector<12x1x12xf32>, vector<12x1x12xf32> -> vector<12x16x12xf32>
    %30 = tpu.concatenate %20, %21, %22, %23, %24, %25, %26, %27, %28 in 1 : vector<12x1x12xf32>, vector<12x1x12xf32>, vector<12x1x12xf32>, vector<12x1x12xf32>, vector<12x1x12xf32>, vector<12x1x12xf32>, vector<12x1x12xf32>, vector<12x1x12xf32>, vector<12x1x12xf32> -> vector<12x9x12xf32>
    %31 = tpu.concatenate %29, %30 in 1 : vector<12x16x12xf32>, vector<12x9x12xf32> -> vector<12x25x12xf32>
    %32 = vector.extract_strided_slice %31 {offsets = [0, 0, 0], sizes = [1, 25, 12], strides = [1, 1, 1]} : vector<12x25x12xf32> to vector<1x25x12xf32>
    %33 = vector.shape_cast %32 : vector<1x25x12xf32> to vector<25x12xf32>
    %34 = vector.extract_strided_slice %31 {offsets = [1, 0, 0], sizes = [1, 25, 12], strides = [1, 1, 1]} : vector<12x25x12xf32> to vector<1x25x12xf32>
    %35 = vector.shape_cast %34 : vector<1x25x12xf32> to vector<25x12xf32>
    %36 = vector.extract_strided_slice %31 {offsets = [2, 0, 0], sizes = [1, 25, 12], strides = [1, 1, 1]} : vector<12x25x12xf32> to vector<1x25x12xf32>
    %37 = vector.shape_cast %36 : vector<1x25x12xf32> to vector<25x12xf32>
    %38 = vector.extract_strided_slice %31 {offsets = [3, 0, 0], sizes = [1, 25, 12], strides = [1, 1, 1]} : vector<12x25x12xf32> to vector<1x25x12xf32>
    %39 = vector.shape_cast %38 : vector<1x25x12xf32> to vector<25x12xf32>
    %40 = vector.extract_strided_slice %31 {offsets = [4, 0, 0], sizes = [1, 25, 12], strides = [1, 1, 1]} : vector<12x25x12xf32> to vector<1x25x12xf32>
    %41 = vector.shape_cast %40 : vector<1x25x12xf32> to vector<25x12xf32>
    %42 = vector.extract_strided_slice %31 {offsets = [5, 0, 0], sizes = [1, 25, 12], strides = [1, 1, 1]} : vector<12x25x12xf32> to vector<1x25x12xf32>
    %43 = vector.shape_cast %42 : vector<1x25x12xf32> to vector<25x12xf32>
    %44 = vector.extract_strided_slice %31 {offsets = [6, 0, 0], sizes = [1, 25, 12], strides = [1, 1, 1]} : vector<12x25x12xf32> to vector<1x25x12xf32>
    %45 = vector.shape_cast %44 : vector<1x25x12xf32> to vector<25x12xf32>
    %46 = vector.extract_strided_slice %31 {offsets = [7, 0, 0], sizes = [1, 25, 12], strides = [1, 1, 1]} : vector<12x25x12xf32> to vector<1x25x12xf32>
    %47 = vector.shape_cast %46 : vector<1x25x12xf32> to vector<25x12xf32>
    %48 = vector.extract_strided_slice %31 {offsets = [8, 0, 0], sizes = [1, 25, 12], strides = [1, 1, 1]} : vector<12x25x12xf32> to vector<1x25x12xf32>
    %49 = vector.shape_cast %48 : vector<1x25x12xf32> to vector<25x12xf32>
    %50 = vector.extract_strided_slice %31 {offsets = [9, 0, 0], sizes = [1, 25, 12], strides = [1, 1, 1]} : vector<12x25x12xf32> to vector<1x25x12xf32>
    %51 = vector.shape_cast %50 : vector<1x25x12xf32> to vector<25x12xf32>
    %52 = vector.extract_strided_slice %31 {offsets = [10, 0, 0], sizes = [1, 25, 12], strides = [1, 1, 1]} : vector<12x25x12xf32> to vector<1x25x12xf32>
    %53 = vector.shape_cast %52 : vector<1x25x12xf32> to vector<25x12xf32>
    %54 = vector.extract_strided_slice %31 {offsets = [11, 0, 0], sizes = [1, 25, 12], strides = [1, 1, 1]} : vector<12x25x12xf32> to vector<1x25x12xf32>
    %55 = vector.shape_cast %54 : vector<1x25x12xf32> to vector<25x12xf32>
    %56 = tpu.concatenate %33, %35, %37, %39, %41, %43, %45, %47, %49, %51, %53, %55 in 1 : vector<25x12xf32>, vector<25x12xf32>, vector<25x12xf32>, vector<25x12xf32>, vector<25x12xf32>, vector<25x12xf32>, vector<25x12xf32>, vector<25x12xf32>, vector<25x12xf32>, vector<25x12xf32>, vector<25x12xf32>, vector<25x12xf32> -> vector<25x144xf32>
    %cst = arith.constant dense<0.000000e+00> : vector<10x144xf32>
    %57 = tpu.matmul %2, %56, %cst {dimension_numbers = #tpu.dot_dimension_numbers<[1], [0], [0], [1], [0, 0, 1, 1], [], []>} : vector<10x25xf32>, vector<25x144xf32>, vector<10x144xf32> -> vector<10x144xf32>
    %58 = vector.broadcast %3 : vector<10x1xf32> to vector<10x144xf32>
    %59 = arith.addf %57, %58 : vector<10x144xf32>
    %cst_7 = arith.constant 0.000000e+00 : f32
    %60 = vector.broadcast %cst_7 : f32 to vector<10x144xf32>
    %61 = arith.maximumf %59, %60 : vector<10x144xf32>
    %62 = vector.extract_strided_slice %61 {offsets = [0, 0], sizes = [10, 12], strides = [1, 1]} : vector<10x144xf32> to vector<10x12xf32>
    %63 = vector.shape_cast %62 : vector<10x12xf32> to vector<1x10x12xf32>
    %64 = vector.extract_strided_slice %61 {offsets = [0, 12], sizes = [10, 12], strides = [1, 1]} : vector<10x144xf32> to vector<10x12xf32>
    %65 = vector.shape_cast %64 : vector<10x12xf32> to vector<1x10x12xf32>
    %66 = vector.extract_strided_slice %61 {offsets = [0, 24], sizes = [10, 12], strides = [1, 1]} : vector<10x144xf32> to vector<10x12xf32>
    %67 = vector.shape_cast %66 : vector<10x12xf32> to vector<1x10x12xf32>
    %68 = vector.extract_strided_slice %61 {offsets = [0, 36], sizes = [10, 12], strides = [1, 1]} : vector<10x144xf32> to vector<10x12xf32>
    %69 = vector.shape_cast %68 : vector<10x12xf32> to vector<1x10x12xf32>
    %70 = vector.extract_strided_slice %61 {offsets = [0, 48], sizes = [10, 12], strides = [1, 1]} : vector<10x144xf32> to vector<10x12xf32>
    %71 = vector.shape_cast %70 : vector<10x12xf32> to vector<1x10x12xf32>
    %72 = vector.extract_strided_slice %61 {offsets = [0, 60], sizes = [10, 12], strides = [1, 1]} : vector<10x144xf32> to vector<10x12xf32>
    %73 = vector.shape_cast %72 : vector<10x12xf32> to vector<1x10x12xf32>
    %74 = vector.extract_strided_slice %61 {offsets = [0, 72], sizes = [10, 12], strides = [1, 1]} : vector<10x144xf32> to vector<10x12xf32>
    %75 = vector.shape_cast %74 : vector<10x12xf32> to vector<1x10x12xf32>
    %76 = vector.extract_strided_slice %61 {offsets = [0, 84], sizes = [10, 12], strides = [1, 1]} : vector<10x144xf32> to vector<10x12xf32>
    %77 = vector.shape_cast %76 : vector<10x12xf32> to vector<1x10x12xf32>
    %78 = vector.extract_strided_slice %61 {offsets = [0, 96], sizes = [10, 12], strides = [1, 1]} : vector<10x144xf32> to vector<10x12xf32>
    %79 = vector.shape_cast %78 : vector<10x12xf32> to vector<1x10x12xf32>
    %80 = vector.extract_strided_slice %61 {offsets = [0, 108], sizes = [10, 12], strides = [1, 1]} : vector<10x144xf32> to vector<10x12xf32>
    %81 = vector.shape_cast %80 : vector<10x12xf32> to vector<1x10x12xf32>
    %82 = vector.extract_strided_slice %61 {offsets = [0, 120], sizes = [10, 12], strides = [1, 1]} : vector<10x144xf32> to vector<10x12xf32>
    %83 = vector.shape_cast %82 : vector<10x12xf32> to vector<1x10x12xf32>
    %84 = vector.extract_strided_slice %61 {offsets = [0, 132], sizes = [10, 12], strides = [1, 1]} : vector<10x144xf32> to vector<10x12xf32>
    %85 = vector.shape_cast %84 : vector<10x12xf32> to vector<1x10x12xf32>
    %86 = tpu.concatenate %63, %65, %67, %69, %71, %73, %75, %77, %79, %81, %83, %85 in 0 : vector<1x10x12xf32>, vector<1x10x12xf32>, vector<1x10x12xf32>, vector<1x10x12xf32>, vector<1x10x12xf32>, vector<1x10x12xf32>, vector<1x10x12xf32>, vector<1x10x12xf32>, vector<1x10x12xf32>, vector<1x10x12xf32>, vector<1x10x12xf32>, vector<1x10x12xf32> -> vector<12x10x12xf32>
    %87 = vector.extract_strided_slice %86 {offsets = [0, 0, 0], sizes = [1, 10, 12], strides = [1, 1, 1]} : vector<12x10x12xf32> to vector<1x10x12xf32>
    %88 = vector.shape_cast %87 : vector<1x10x12xf32> to vector<10x12xf32>
    %89 = vector.extract_strided_slice %86 {offsets = [1, 0, 0], sizes = [1, 10, 12], strides = [1, 1, 1]} : vector<12x10x12xf32> to vector<1x10x12xf32>
    %90 = vector.shape_cast %89 : vector<1x10x12xf32> to vector<10x12xf32>
    %91 = arith.maximumf %88, %90 : vector<10x12xf32>
    %92 = vector.extract_strided_slice %91 {offsets = [0, 0], sizes = [10, 1], strides = [1, 1]} : vector<10x12xf32> to vector<10x1xf32>
    %93 = vector.extract_strided_slice %91 {offsets = [0, 1], sizes = [10, 1], strides = [1, 1]} : vector<10x12xf32> to vector<10x1xf32>
    %94 = arith.maximumf %92, %93 : vector<10x1xf32>
    %95 = vector.extract_strided_slice %91 {offsets = [0, 2], sizes = [10, 1], strides = [1, 1]} : vector<10x12xf32> to vector<10x1xf32>
    %96 = vector.extract_strided_slice %91 {offsets = [0, 3], sizes = [10, 1], strides = [1, 1]} : vector<10x12xf32> to vector<10x1xf32>
    %97 = arith.maximumf %95, %96 : vector<10x1xf32>
    %98 = vector.extract_strided_slice %91 {offsets = [0, 4], sizes = [10, 1], strides = [1, 1]} : vector<10x12xf32> to vector<10x1xf32>
    %99 = vector.extract_strided_slice %91 {offsets = [0, 5], sizes = [10, 1], strides = [1, 1]} : vector<10x12xf32> to vector<10x1xf32>
    %100 = arith.maximumf %98, %99 : vector<10x1xf32>
    %101 = vector.extract_strided_slice %91 {offsets = [0, 6], sizes = [10, 1], strides = [1, 1]} : vector<10x12xf32> to vector<10x1xf32>
    %102 = vector.extract_strided_slice %91 {offsets = [0, 7], sizes = [10, 1], strides = [1, 1]} : vector<10x12xf32> to vector<10x1xf32>
    %103 = arith.maximumf %101, %102 : vector<10x1xf32>
    %104 = vector.extract_strided_slice %91 {offsets = [0, 8], sizes = [10, 1], strides = [1, 1]} : vector<10x12xf32> to vector<10x1xf32>
    %105 = vector.extract_strided_slice %91 {offsets = [0, 9], sizes = [10, 1], strides = [1, 1]} : vector<10x12xf32> to vector<10x1xf32>
    %106 = arith.maximumf %104, %105 : vector<10x1xf32>
    %107 = vector.extract_strided_slice %91 {offsets = [0, 10], sizes = [10, 1], strides = [1, 1]} : vector<10x12xf32> to vector<10x1xf32>
    %108 = vector.extract_strided_slice %91 {offsets = [0, 11], sizes = [10, 1], strides = [1, 1]} : vector<10x12xf32> to vector<10x1xf32>
    %109 = arith.maximumf %107, %108 : vector<10x1xf32>
    %110 = tpu.concatenate %94, %97, %100, %103, %106, %109 in 1 : vector<10x1xf32>, vector<10x1xf32>, vector<10x1xf32>, vector<10x1xf32>, vector<10x1xf32>, vector<10x1xf32> -> vector<10x6xf32>
    %111 = vector.shape_cast %110 : vector<10x6xf32> to vector<1x10x6xf32>
    %112 = vector.extract_strided_slice %86 {offsets = [2, 0, 0], sizes = [1, 10, 12], strides = [1, 1, 1]} : vector<12x10x12xf32> to vector<1x10x12xf32>
    %113 = vector.shape_cast %112 : vector<1x10x12xf32> to vector<10x12xf32>
    %114 = vector.extract_strided_slice %86 {offsets = [3, 0, 0], sizes = [1, 10, 12], strides = [1, 1, 1]} : vector<12x10x12xf32> to vector<1x10x12xf32>
    %115 = vector.shape_cast %114 : vector<1x10x12xf32> to vector<10x12xf32>
    %116 = arith.maximumf %113, %115 : vector<10x12xf32>
    %117 = vector.extract_strided_slice %116 {offsets = [0, 0], sizes = [10, 1], strides = [1, 1]} : vector<10x12xf32> to vector<10x1xf32>
    %118 = vector.extract_strided_slice %116 {offsets = [0, 1], sizes = [10, 1], strides = [1, 1]} : vector<10x12xf32> to vector<10x1xf32>
    %119 = arith.maximumf %117, %118 : vector<10x1xf32>
    %120 = vector.extract_strided_slice %116 {offsets = [0, 2], sizes = [10, 1], strides = [1, 1]} : vector<10x12xf32> to vector<10x1xf32>
    %121 = vector.extract_strided_slice %116 {offsets = [0, 3], sizes = [10, 1], strides = [1, 1]} : vector<10x12xf32> to vector<10x1xf32>
    %122 = arith.maximumf %120, %121 : vector<10x1xf32>
    %123 = vector.extract_strided_slice %116 {offsets = [0, 4], sizes = [10, 1], strides = [1, 1]} : vector<10x12xf32> to vector<10x1xf32>
    %124 = vector.extract_strided_slice %116 {offsets = [0, 5], sizes = [10, 1], strides = [1, 1]} : vector<10x12xf32> to vector<10x1xf32>
    %125 = arith.maximumf %123, %124 : vector<10x1xf32>
    %126 = vector.extract_strided_slice %116 {offsets = [0, 6], sizes = [10, 1], strides = [1, 1]} : vector<10x12xf32> to vector<10x1xf32>
    %127 = vector.extract_strided_slice %116 {offsets = [0, 7], sizes = [10, 1], strides = [1, 1]} : vector<10x12xf32> to vector<10x1xf32>
    %128 = arith.maximumf %126, %127 : vector<10x1xf32>
    %129 = vector.extract_strided_slice %116 {offsets = [0, 8], sizes = [10, 1], strides = [1, 1]} : vector<10x12xf32> to vector<10x1xf32>
    %130 = vector.extract_strided_slice %116 {offsets = [0, 9], sizes = [10, 1], strides = [1, 1]} : vector<10x12xf32> to vector<10x1xf32>
    %131 = arith.maximumf %129, %130 : vector<10x1xf32>
    %132 = vector.extract_strided_slice %116 {offsets = [0, 10], sizes = [10, 1], strides = [1, 1]} : vector<10x12xf32> to vector<10x1xf32>
    %133 = vector.extract_strided_slice %116 {offsets = [0, 11], sizes = [10, 1], strides = [1, 1]} : vector<10x12xf32> to vector<10x1xf32>
    %134 = arith.maximumf %132, %133 : vector<10x1xf32>
    %135 = tpu.concatenate %119, %122, %125, %128, %131, %134 in 1 : vector<10x1xf32>, vector<10x1xf32>, vector<10x1xf32>, vector<10x1xf32>, vector<10x1xf32>, vector<10x1xf32> -> vector<10x6xf32>
    %136 = vector.shape_cast %135 : vector<10x6xf32> to vector<1x10x6xf32>
    %137 = vector.extract_strided_slice %86 {offsets = [4, 0, 0], sizes = [1, 10, 12], strides = [1, 1, 1]} : vector<12x10x12xf32> to vector<1x10x12xf32>
    %138 = vector.shape_cast %137 : vector<1x10x12xf32> to vector<10x12xf32>
    %139 = vector.extract_strided_slice %86 {offsets = [5, 0, 0], sizes = [1, 10, 12], strides = [1, 1, 1]} : vector<12x10x12xf32> to vector<1x10x12xf32>
    %140 = vector.shape_cast %139 : vector<1x10x12xf32> to vector<10x12xf32>
    %141 = arith.maximumf %138, %140 : vector<10x12xf32>
    %142 = vector.extract_strided_slice %141 {offsets = [0, 0], sizes = [10, 1], strides = [1, 1]} : vector<10x12xf32> to vector<10x1xf32>
    %143 = vector.extract_strided_slice %141 {offsets = [0, 1], sizes = [10, 1], strides = [1, 1]} : vector<10x12xf32> to vector<10x1xf32>
    %144 = arith.maximumf %142, %143 : vector<10x1xf32>
    %145 = vector.extract_strided_slice %141 {offsets = [0, 2], sizes = [10, 1], strides = [1, 1]} : vector<10x12xf32> to vector<10x1xf32>
    %146 = vector.extract_strided_slice %141 {offsets = [0, 3], sizes = [10, 1], strides = [1, 1]} : vector<10x12xf32> to vector<10x1xf32>
    %147 = arith.maximumf %145, %146 : vector<10x1xf32>
    %148 = vector.extract_strided_slice %141 {offsets = [0, 4], sizes = [10, 1], strides = [1, 1]} : vector<10x12xf32> to vector<10x1xf32>
    %149 = vector.extract_strided_slice %141 {offsets = [0, 5], sizes = [10, 1], strides = [1, 1]} : vector<10x12xf32> to vector<10x1xf32>
    %150 = arith.maximumf %148, %149 : vector<10x1xf32>
    %151 = vector.extract_strided_slice %141 {offsets = [0, 6], sizes = [10, 1], strides = [1, 1]} : vector<10x12xf32> to vector<10x1xf32>
    %152 = vector.extract_strided_slice %141 {offsets = [0, 7], sizes = [10, 1], strides = [1, 1]} : vector<10x12xf32> to vector<10x1xf32>
    %153 = arith.maximumf %151, %152 : vector<10x1xf32>
    %154 = vector.extract_strided_slice %141 {offsets = [0, 8], sizes = [10, 1], strides = [1, 1]} : vector<10x12xf32> to vector<10x1xf32>
    %155 = vector.extract_strided_slice %141 {offsets = [0, 9], sizes = [10, 1], strides = [1, 1]} : vector<10x12xf32> to vector<10x1xf32>
    %156 = arith.maximumf %154, %155 : vector<10x1xf32>
    %157 = vector.extract_strided_slice %141 {offsets = [0, 10], sizes = [10, 1], strides = [1, 1]} : vector<10x12xf32> to vector<10x1xf32>
    %158 = vector.extract_strided_slice %141 {offsets = [0, 11], sizes = [10, 1], strides = [1, 1]} : vector<10x12xf32> to vector<10x1xf32>
    %159 = arith.maximumf %157, %158 : vector<10x1xf32>
    %160 = tpu.concatenate %144, %147, %150, %153, %156, %159 in 1 : vector<10x1xf32>, vector<10x1xf32>, vector<10x1xf32>, vector<10x1xf32>, vector<10x1xf32>, vector<10x1xf32> -> vector<10x6xf32>
    %161 = vector.shape_cast %160 : vector<10x6xf32> to vector<1x10x6xf32>
    %162 = vector.extract_strided_slice %86 {offsets = [6, 0, 0], sizes = [1, 10, 12], strides = [1, 1, 1]} : vector<12x10x12xf32> to vector<1x10x12xf32>
    %163 = vector.shape_cast %162 : vector<1x10x12xf32> to vector<10x12xf32>
    %164 = vector.extract_strided_slice %86 {offsets = [7, 0, 0], sizes = [1, 10, 12], strides = [1, 1, 1]} : vector<12x10x12xf32> to vector<1x10x12xf32>
    %165 = vector.shape_cast %164 : vector<1x10x12xf32> to vector<10x12xf32>
    %166 = arith.maximumf %163, %165 : vector<10x12xf32>
    %167 = vector.extract_strided_slice %166 {offsets = [0, 0], sizes = [10, 1], strides = [1, 1]} : vector<10x12xf32> to vector<10x1xf32>
    %168 = vector.extract_strided_slice %166 {offsets = [0, 1], sizes = [10, 1], strides = [1, 1]} : vector<10x12xf32> to vector<10x1xf32>
    %169 = arith.maximumf %167, %168 : vector<10x1xf32>
    %170 = vector.extract_strided_slice %166 {offsets = [0, 2], sizes = [10, 1], strides = [1, 1]} : vector<10x12xf32> to vector<10x1xf32>
    %171 = vector.extract_strided_slice %166 {offsets = [0, 3], sizes = [10, 1], strides = [1, 1]} : vector<10x12xf32> to vector<10x1xf32>
    %172 = arith.maximumf %170, %171 : vector<10x1xf32>
    %173 = vector.extract_strided_slice %166 {offsets = [0, 4], sizes = [10, 1], strides = [1, 1]} : vector<10x12xf32> to vector<10x1xf32>
    %174 = vector.extract_strided_slice %166 {offsets = [0, 5], sizes = [10, 1], strides = [1, 1]} : vector<10x12xf32> to vector<10x1xf32>
    %175 = arith.maximumf %173, %174 : vector<10x1xf32>
    %176 = vector.extract_strided_slice %166 {offsets = [0, 6], sizes = [10, 1], strides = [1, 1]} : vector<10x12xf32> to vector<10x1xf32>
    %177 = vector.extract_strided_slice %166 {offsets = [0, 7], sizes = [10, 1], strides = [1, 1]} : vector<10x12xf32> to vector<10x1xf32>
    %178 = arith.maximumf %176, %177 : vector<10x1xf32>
    %179 = vector.extract_strided_slice %166 {offsets = [0, 8], sizes = [10, 1], strides = [1, 1]} : vector<10x12xf32> to vector<10x1xf32>
    %180 = vector.extract_strided_slice %166 {offsets = [0, 9], sizes = [10, 1], strides = [1, 1]} : vector<10x12xf32> to vector<10x1xf32>
    %181 = arith.maximumf %179, %180 : vector<10x1xf32>
    %182 = vector.extract_strided_slice %166 {offsets = [0, 10], sizes = [10, 1], strides = [1, 1]} : vector<10x12xf32> to vector<10x1xf32>
    %183 = vector.extract_strided_slice %166 {offsets = [0, 11], sizes = [10, 1], strides = [1, 1]} : vector<10x12xf32> to vector<10x1xf32>
    %184 = arith.maximumf %182, %183 : vector<10x1xf32>
    %185 = tpu.concatenate %169, %172, %175, %178, %181, %184 in 1 : vector<10x1xf32>, vector<10x1xf32>, vector<10x1xf32>, vector<10x1xf32>, vector<10x1xf32>, vector<10x1xf32> -> vector<10x6xf32>
    %186 = vector.shape_cast %185 : vector<10x6xf32> to vector<1x10x6xf32>
    %187 = vector.extract_strided_slice %86 {offsets = [8, 0, 0], sizes = [1, 10, 12], strides = [1, 1, 1]} : vector<12x10x12xf32> to vector<1x10x12xf32>
    %188 = vector.shape_cast %187 : vector<1x10x12xf32> to vector<10x12xf32>
    %189 = vector.extract_strided_slice %86 {offsets = [9, 0, 0], sizes = [1, 10, 12], strides = [1, 1, 1]} : vector<12x10x12xf32> to vector<1x10x12xf32>
    %190 = vector.shape_cast %189 : vector<1x10x12xf32> to vector<10x12xf32>
    %191 = arith.maximumf %188, %190 : vector<10x12xf32>
    %192 = vector.extract_strided_slice %191 {offsets = [0, 0], sizes = [10, 1], strides = [1, 1]} : vector<10x12xf32> to vector<10x1xf32>
    %193 = vector.extract_strided_slice %191 {offsets = [0, 1], sizes = [10, 1], strides = [1, 1]} : vector<10x12xf32> to vector<10x1xf32>
    %194 = arith.maximumf %192, %193 : vector<10x1xf32>
    %195 = vector.extract_strided_slice %191 {offsets = [0, 2], sizes = [10, 1], strides = [1, 1]} : vector<10x12xf32> to vector<10x1xf32>
    %196 = vector.extract_strided_slice %191 {offsets = [0, 3], sizes = [10, 1], strides = [1, 1]} : vector<10x12xf32> to vector<10x1xf32>
    %197 = arith.maximumf %195, %196 : vector<10x1xf32>
    %198 = vector.extract_strided_slice %191 {offsets = [0, 4], sizes = [10, 1], strides = [1, 1]} : vector<10x12xf32> to vector<10x1xf32>
    %199 = vector.extract_strided_slice %191 {offsets = [0, 5], sizes = [10, 1], strides = [1, 1]} : vector<10x12xf32> to vector<10x1xf32>
    %200 = arith.maximumf %198, %199 : vector<10x1xf32>
    %201 = vector.extract_strided_slice %191 {offsets = [0, 6], sizes = [10, 1], strides = [1, 1]} : vector<10x12xf32> to vector<10x1xf32>
    %202 = vector.extract_strided_slice %191 {offsets = [0, 7], sizes = [10, 1], strides = [1, 1]} : vector<10x12xf32> to vector<10x1xf32>
    %203 = arith.maximumf %201, %202 : vector<10x1xf32>
    %204 = vector.extract_strided_slice %191 {offsets = [0, 8], sizes = [10, 1], strides = [1, 1]} : vector<10x12xf32> to vector<10x1xf32>
    %205 = vector.extract_strided_slice %191 {offsets = [0, 9], sizes = [10, 1], strides = [1, 1]} : vector<10x12xf32> to vector<10x1xf32>
    %206 = arith.maximumf %204, %205 : vector<10x1xf32>
    %207 = vector.extract_strided_slice %191 {offsets = [0, 10], sizes = [10, 1], strides = [1, 1]} : vector<10x12xf32> to vector<10x1xf32>
    %208 = vector.extract_strided_slice %191 {offsets = [0, 11], sizes = [10, 1], strides = [1, 1]} : vector<10x12xf32> to vector<10x1xf32>
    %209 = arith.maximumf %207, %208 : vector<10x1xf32>
    %210 = tpu.concatenate %194, %197, %200, %203, %206, %209 in 1 : vector<10x1xf32>, vector<10x1xf32>, vector<10x1xf32>, vector<10x1xf32>, vector<10x1xf32>, vector<10x1xf32> -> vector<10x6xf32>
    %211 = vector.shape_cast %210 : vector<10x6xf32> to vector<1x10x6xf32>
    %212 = vector.extract_strided_slice %86 {offsets = [10, 0, 0], sizes = [1, 10, 12], strides = [1, 1, 1]} : vector<12x10x12xf32> to vector<1x10x12xf32>
    %213 = vector.shape_cast %212 : vector<1x10x12xf32> to vector<10x12xf32>
    %214 = vector.extract_strided_slice %86 {offsets = [11, 0, 0], sizes = [1, 10, 12], strides = [1, 1, 1]} : vector<12x10x12xf32> to vector<1x10x12xf32>
    %215 = vector.shape_cast %214 : vector<1x10x12xf32> to vector<10x12xf32>
    %216 = arith.maximumf %213, %215 : vector<10x12xf32>
    %217 = vector.extract_strided_slice %216 {offsets = [0, 0], sizes = [10, 1], strides = [1, 1]} : vector<10x12xf32> to vector<10x1xf32>
    %218 = vector.extract_strided_slice %216 {offsets = [0, 1], sizes = [10, 1], strides = [1, 1]} : vector<10x12xf32> to vector<10x1xf32>
    %219 = arith.maximumf %217, %218 : vector<10x1xf32>
    %220 = vector.extract_strided_slice %216 {offsets = [0, 2], sizes = [10, 1], strides = [1, 1]} : vector<10x12xf32> to vector<10x1xf32>
    %221 = vector.extract_strided_slice %216 {offsets = [0, 3], sizes = [10, 1], strides = [1, 1]} : vector<10x12xf32> to vector<10x1xf32>
    %222 = arith.maximumf %220, %221 : vector<10x1xf32>
    %223 = vector.extract_strided_slice %216 {offsets = [0, 4], sizes = [10, 1], strides = [1, 1]} : vector<10x12xf32> to vector<10x1xf32>
    %224 = vector.extract_strided_slice %216 {offsets = [0, 5], sizes = [10, 1], strides = [1, 1]} : vector<10x12xf32> to vector<10x1xf32>
    %225 = arith.maximumf %223, %224 : vector<10x1xf32>
    %226 = vector.extract_strided_slice %216 {offsets = [0, 6], sizes = [10, 1], strides = [1, 1]} : vector<10x12xf32> to vector<10x1xf32>
    %227 = vector.extract_strided_slice %216 {offsets = [0, 7], sizes = [10, 1], strides = [1, 1]} : vector<10x12xf32> to vector<10x1xf32>
    %228 = arith.maximumf %226, %227 : vector<10x1xf32>
    %229 = vector.extract_strided_slice %216 {offsets = [0, 8], sizes = [10, 1], strides = [1, 1]} : vector<10x12xf32> to vector<10x1xf32>
    %230 = vector.extract_strided_slice %216 {offsets = [0, 9], sizes = [10, 1], strides = [1, 1]} : vector<10x12xf32> to vector<10x1xf32>
    %231 = arith.maximumf %229, %230 : vector<10x1xf32>
    %232 = vector.extract_strided_slice %216 {offsets = [0, 10], sizes = [10, 1], strides = [1, 1]} : vector<10x12xf32> to vector<10x1xf32>
    %233 = vector.extract_strided_slice %216 {offsets = [0, 11], sizes = [10, 1], strides = [1, 1]} : vector<10x12xf32> to vector<10x1xf32>
    %234 = arith.maximumf %232, %233 : vector<10x1xf32>
    %235 = tpu.concatenate %219, %222, %225, %228, %231, %234 in 1 : vector<10x1xf32>, vector<10x1xf32>, vector<10x1xf32>, vector<10x1xf32>, vector<10x1xf32>, vector<10x1xf32> -> vector<10x6xf32>
    %236 = vector.shape_cast %235 : vector<10x6xf32> to vector<1x10x6xf32>
    %237 = tpu.concatenate %111, %136, %161, %186, %211, %236 in 0 : vector<1x10x6xf32>, vector<1x10x6xf32>, vector<1x10x6xf32>, vector<1x10x6xf32>, vector<1x10x6xf32>, vector<1x10x6xf32> -> vector<6x10x6xf32>
    %c0_8 = arith.constant 0 : index
    %c0_9 = arith.constant 0 : index
    %238 = vector.load %arg4[%c0_8, %c0_9] : memref<20x250xf32, #tpu.memory_space<vmem>>, vector<20x250xf32>
    %c0_10 = arith.constant 0 : index
    %c0_11 = arith.constant 0 : index
    %239 = vector.load %arg5[%c0_10, %c0_11] : memref<20x1xf32, #tpu.memory_space<vmem>>, vector<20x1xf32>
    %240 = vector.extract_strided_slice %237 {offsets = [0, 0, 0], sizes = [2, 10, 2], strides = [1, 1, 1]} : vector<6x10x6xf32> to vector<2x10x2xf32>
    %241 = vector.extract_strided_slice %237 {offsets = [0, 0, 1], sizes = [2, 10, 2], strides = [1, 1, 1]} : vector<6x10x6xf32> to vector<2x10x2xf32>
    %242 = vector.extract_strided_slice %237 {offsets = [0, 0, 2], sizes = [2, 10, 2], strides = [1, 1, 1]} : vector<6x10x6xf32> to vector<2x10x2xf32>
    %243 = vector.extract_strided_slice %237 {offsets = [0, 0, 3], sizes = [2, 10, 2], strides = [1, 1, 1]} : vector<6x10x6xf32> to vector<2x10x2xf32>
    %244 = vector.extract_strided_slice %237 {offsets = [0, 0, 4], sizes = [2, 10, 2], strides = [1, 1, 1]} : vector<6x10x6xf32> to vector<2x10x2xf32>
    %245 = vector.extract_strided_slice %237 {offsets = [1, 0, 0], sizes = [2, 10, 2], strides = [1, 1, 1]} : vector<6x10x6xf32> to vector<2x10x2xf32>
    %246 = vector.extract_strided_slice %237 {offsets = [1, 0, 1], sizes = [2, 10, 2], strides = [1, 1, 1]} : vector<6x10x6xf32> to vector<2x10x2xf32>
    %247 = vector.extract_strided_slice %237 {offsets = [1, 0, 2], sizes = [2, 10, 2], strides = [1, 1, 1]} : vector<6x10x6xf32> to vector<2x10x2xf32>
    %248 = vector.extract_strided_slice %237 {offsets = [1, 0, 3], sizes = [2, 10, 2], strides = [1, 1, 1]} : vector<6x10x6xf32> to vector<2x10x2xf32>
    %249 = vector.extract_strided_slice %237 {offsets = [1, 0, 4], sizes = [2, 10, 2], strides = [1, 1, 1]} : vector<6x10x6xf32> to vector<2x10x2xf32>
    %250 = vector.extract_strided_slice %237 {offsets = [2, 0, 0], sizes = [2, 10, 2], strides = [1, 1, 1]} : vector<6x10x6xf32> to vector<2x10x2xf32>
    %251 = vector.extract_strided_slice %237 {offsets = [2, 0, 1], sizes = [2, 10, 2], strides = [1, 1, 1]} : vector<6x10x6xf32> to vector<2x10x2xf32>
    %252 = vector.extract_strided_slice %237 {offsets = [2, 0, 2], sizes = [2, 10, 2], strides = [1, 1, 1]} : vector<6x10x6xf32> to vector<2x10x2xf32>
    %253 = vector.extract_strided_slice %237 {offsets = [2, 0, 3], sizes = [2, 10, 2], strides = [1, 1, 1]} : vector<6x10x6xf32> to vector<2x10x2xf32>
    %254 = vector.extract_strided_slice %237 {offsets = [2, 0, 4], sizes = [2, 10, 2], strides = [1, 1, 1]} : vector<6x10x6xf32> to vector<2x10x2xf32>
    %255 = vector.extract_strided_slice %237 {offsets = [3, 0, 0], sizes = [2, 10, 2], strides = [1, 1, 1]} : vector<6x10x6xf32> to vector<2x10x2xf32>
    %256 = vector.extract_strided_slice %237 {offsets = [3, 0, 1], sizes = [2, 10, 2], strides = [1, 1, 1]} : vector<6x10x6xf32> to vector<2x10x2xf32>
    %257 = vector.extract_strided_slice %237 {offsets = [3, 0, 2], sizes = [2, 10, 2], strides = [1, 1, 1]} : vector<6x10x6xf32> to vector<2x10x2xf32>
    %258 = vector.extract_strided_slice %237 {offsets = [3, 0, 3], sizes = [2, 10, 2], strides = [1, 1, 1]} : vector<6x10x6xf32> to vector<2x10x2xf32>
    %259 = vector.extract_strided_slice %237 {offsets = [3, 0, 4], sizes = [2, 10, 2], strides = [1, 1, 1]} : vector<6x10x6xf32> to vector<2x10x2xf32>
    %260 = vector.extract_strided_slice %237 {offsets = [4, 0, 0], sizes = [2, 10, 2], strides = [1, 1, 1]} : vector<6x10x6xf32> to vector<2x10x2xf32>
    %261 = vector.extract_strided_slice %237 {offsets = [4, 0, 1], sizes = [2, 10, 2], strides = [1, 1, 1]} : vector<6x10x6xf32> to vector<2x10x2xf32>
    %262 = vector.extract_strided_slice %237 {offsets = [4, 0, 2], sizes = [2, 10, 2], strides = [1, 1, 1]} : vector<6x10x6xf32> to vector<2x10x2xf32>
    %263 = vector.extract_strided_slice %237 {offsets = [4, 0, 3], sizes = [2, 10, 2], strides = [1, 1, 1]} : vector<6x10x6xf32> to vector<2x10x2xf32>
    %264 = vector.extract_strided_slice %237 {offsets = [4, 0, 4], sizes = [2, 10, 2], strides = [1, 1, 1]} : vector<6x10x6xf32> to vector<2x10x2xf32>
    %265 = tpu.concatenate %240, %241, %242, %243, %244, %245, %246, %247, %248, %249, %250, %251, %252, %253, %254, %255 in 1 : vector<2x10x2xf32>, vector<2x10x2xf32>, vector<2x10x2xf32>, vector<2x10x2xf32>, vector<2x10x2xf32>, vector<2x10x2xf32>, vector<2x10x2xf32>, vector<2x10x2xf32>, vector<2x10x2xf32>, vector<2x10x2xf32>, vector<2x10x2xf32>, vector<2x10x2xf32>, vector<2x10x2xf32>, vector<2x10x2xf32>, vector<2x10x2xf32>, vector<2x10x2xf32> -> vector<2x160x2xf32>
    %266 = tpu.concatenate %256, %257, %258, %259, %260, %261, %262, %263, %264 in 1 : vector<2x10x2xf32>, vector<2x10x2xf32>, vector<2x10x2xf32>, vector<2x10x2xf32>, vector<2x10x2xf32>, vector<2x10x2xf32>, vector<2x10x2xf32>, vector<2x10x2xf32>, vector<2x10x2xf32> -> vector<2x90x2xf32>
    %267 = tpu.concatenate %265, %266 in 1 : vector<2x160x2xf32>, vector<2x90x2xf32> -> vector<2x250x2xf32>
    %268 = vector.extract_strided_slice %267 {offsets = [0, 0, 0], sizes = [1, 250, 2], strides = [1, 1, 1]} : vector<2x250x2xf32> to vector<1x250x2xf32>
    %269 = vector.shape_cast %268 : vector<1x250x2xf32> to vector<250x2xf32>
    %270 = vector.extract_strided_slice %267 {offsets = [1, 0, 0], sizes = [1, 250, 2], strides = [1, 1, 1]} : vector<2x250x2xf32> to vector<1x250x2xf32>
    %271 = vector.shape_cast %270 : vector<1x250x2xf32> to vector<250x2xf32>
    %272 = tpu.concatenate %269, %271 in 1 : vector<250x2xf32>, vector<250x2xf32> -> vector<250x4xf32>
    %cst_12 = arith.constant dense<0.000000e+00> : vector<20x4xf32>
    %273 = tpu.matmul %238, %272, %cst_12 {dimension_numbers = #tpu.dot_dimension_numbers<[1], [0], [0], [1], [0, 0, 1, 1], [], []>} : vector<20x250xf32>, vector<250x4xf32>, vector<20x4xf32> -> vector<20x4xf32>
    %274 = vector.broadcast %239 : vector<20x1xf32> to vector<20x4xf32>
    %275 = arith.addf %273, %274 : vector<20x4xf32>
    %cst_13 = arith.constant 0.000000e+00 : f32
    %276 = vector.broadcast %cst_13 : f32 to vector<20x4xf32>
    %277 = arith.maximumf %275, %276 : vector<20x4xf32>
    %278 = vector.extract_strided_slice %277 {offsets = [0, 0], sizes = [20, 2], strides = [1, 1]} : vector<20x4xf32> to vector<20x2xf32>
    %279 = vector.shape_cast %278 : vector<20x2xf32> to vector<1x20x2xf32>
    %280 = vector.extract_strided_slice %277 {offsets = [0, 2], sizes = [20, 2], strides = [1, 1]} : vector<20x4xf32> to vector<20x2xf32>
    %281 = vector.shape_cast %280 : vector<20x2xf32> to vector<1x20x2xf32>
    %282 = tpu.concatenate %279, %281 in 0 : vector<1x20x2xf32>, vector<1x20x2xf32> -> vector<2x20x2xf32>
    %283 = vector.extract_strided_slice %282 {offsets = [0, 0, 0], sizes = [1, 20, 2], strides = [1, 1, 1]} : vector<2x20x2xf32> to vector<1x20x2xf32>
    %284 = vector.shape_cast %283 : vector<1x20x2xf32> to vector<20x2xf32>
    %285 = vector.extract_strided_slice %282 {offsets = [1, 0, 0], sizes = [1, 20, 2], strides = [1, 1, 1]} : vector<2x20x2xf32> to vector<1x20x2xf32>
    %286 = vector.shape_cast %285 : vector<1x20x2xf32> to vector<20x2xf32>
    %287 = arith.maximumf %284, %286 : vector<20x2xf32>
    %288 = vector.extract_strided_slice %287 {offsets = [0, 0], sizes = [20, 1], strides = [1, 1]} : vector<20x2xf32> to vector<20x1xf32>
    %289 = vector.extract_strided_slice %287 {offsets = [0, 1], sizes = [20, 1], strides = [1, 1]} : vector<20x2xf32> to vector<20x1xf32>
    %290 = arith.maximumf %288, %289 : vector<20x1xf32>
    %291 = vector.shape_cast %290 : vector<20x1xf32> to vector<1x20x1xf32>
    %292 = vector.shape_cast %291 : vector<1x20x1xf32> to vector<20x1xf32>
    %293 = tpu.concatenate %292, %292 in 1 : vector<20x1xf32>, vector<20x1xf32> -> vector<20x2xf32>
    %294 = vector.shape_cast %293 : vector<20x2xf32> to vector<1x20x2xf32>
    %295 = vector.shape_cast %293 : vector<20x2xf32> to vector<1x20x2xf32>
    %296 = tpu.concatenate %294, %295 in 0 : vector<1x20x2xf32>, vector<1x20x2xf32> -> vector<2x20x2xf32>
    %cst_14 = arith.constant 0.000000e+00 : f32
    %297 = vector.broadcast %cst_14 : f32 to vector<2x20x4xf32>
    %298 = tpu.concatenate %297, %296, %297 in 2 : vector<2x20x4xf32>, vector<2x20x2xf32>, vector<2x20x4xf32> -> vector<2x20x10xf32>
    %cst_15 = arith.constant 0.000000e+00 : f32
    %299 = vector.broadcast %cst_15 : f32 to vector<4x20x10xf32>
    %300 = tpu.concatenate %299, %298, %299 in 0 : vector<4x20x10xf32>, vector<2x20x10xf32>, vector<4x20x10xf32> -> vector<10x20x10xf32>
    %c0_16 = arith.constant 0 : index
    %c0_17 = arith.constant 0 : index
    %301 = vector.load %arg6[%c0_16, %c0_17] : memref<10x500xf32, #tpu.memory_space<vmem>>, vector<10x500xf32>
    %c0_18 = arith.constant 0 : index
    %c0_19 = arith.constant 0 : index
    %302 = vector.load %arg7[%c0_18, %c0_19] : memref<10x1xf32, #tpu.memory_space<vmem>>, vector<10x1xf32>
    %303 = vector.extract_strided_slice %300 {offsets = [0, 0, 0], sizes = [6, 20, 6], strides = [1, 1, 1]} : vector<10x20x10xf32> to vector<6x20x6xf32>
    %304 = vector.extract_strided_slice %300 {offsets = [0, 0, 1], sizes = [6, 20, 6], strides = [1, 1, 1]} : vector<10x20x10xf32> to vector<6x20x6xf32>
    %305 = vector.extract_strided_slice %300 {offsets = [0, 0, 2], sizes = [6, 20, 6], strides = [1, 1, 1]} : vector<10x20x10xf32> to vector<6x20x6xf32>
    %306 = vector.extract_strided_slice %300 {offsets = [0, 0, 3], sizes = [6, 20, 6], strides = [1, 1, 1]} : vector<10x20x10xf32> to vector<6x20x6xf32>
    %307 = vector.extract_strided_slice %300 {offsets = [0, 0, 4], sizes = [6, 20, 6], strides = [1, 1, 1]} : vector<10x20x10xf32> to vector<6x20x6xf32>
    %308 = vector.extract_strided_slice %300 {offsets = [1, 0, 0], sizes = [6, 20, 6], strides = [1, 1, 1]} : vector<10x20x10xf32> to vector<6x20x6xf32>
    %309 = vector.extract_strided_slice %300 {offsets = [1, 0, 1], sizes = [6, 20, 6], strides = [1, 1, 1]} : vector<10x20x10xf32> to vector<6x20x6xf32>
    %310 = vector.extract_strided_slice %300 {offsets = [1, 0, 2], sizes = [6, 20, 6], strides = [1, 1, 1]} : vector<10x20x10xf32> to vector<6x20x6xf32>
    %311 = vector.extract_strided_slice %300 {offsets = [1, 0, 3], sizes = [6, 20, 6], strides = [1, 1, 1]} : vector<10x20x10xf32> to vector<6x20x6xf32>
    %312 = vector.extract_strided_slice %300 {offsets = [1, 0, 4], sizes = [6, 20, 6], strides = [1, 1, 1]} : vector<10x20x10xf32> to vector<6x20x6xf32>
    %313 = vector.extract_strided_slice %300 {offsets = [2, 0, 0], sizes = [6, 20, 6], strides = [1, 1, 1]} : vector<10x20x10xf32> to vector<6x20x6xf32>
    %314 = vector.extract_strided_slice %300 {offsets = [2, 0, 1], sizes = [6, 20, 6], strides = [1, 1, 1]} : vector<10x20x10xf32> to vector<6x20x6xf32>
    %315 = vector.extract_strided_slice %300 {offsets = [2, 0, 2], sizes = [6, 20, 6], strides = [1, 1, 1]} : vector<10x20x10xf32> to vector<6x20x6xf32>
    %316 = vector.extract_strided_slice %300 {offsets = [2, 0, 3], sizes = [6, 20, 6], strides = [1, 1, 1]} : vector<10x20x10xf32> to vector<6x20x6xf32>
    %317 = vector.extract_strided_slice %300 {offsets = [2, 0, 4], sizes = [6, 20, 6], strides = [1, 1, 1]} : vector<10x20x10xf32> to vector<6x20x6xf32>
    %318 = vector.extract_strided_slice %300 {offsets = [3, 0, 0], sizes = [6, 20, 6], strides = [1, 1, 1]} : vector<10x20x10xf32> to vector<6x20x6xf32>
    %319 = vector.extract_strided_slice %300 {offsets = [3, 0, 1], sizes = [6, 20, 6], strides = [1, 1, 1]} : vector<10x20x10xf32> to vector<6x20x6xf32>
    %320 = vector.extract_strided_slice %300 {offsets = [3, 0, 2], sizes = [6, 20, 6], strides = [1, 1, 1]} : vector<10x20x10xf32> to vector<6x20x6xf32>
    %321 = vector.extract_strided_slice %300 {offsets = [3, 0, 3], sizes = [6, 20, 6], strides = [1, 1, 1]} : vector<10x20x10xf32> to vector<6x20x6xf32>
    %322 = vector.extract_strided_slice %300 {offsets = [3, 0, 4], sizes = [6, 20, 6], strides = [1, 1, 1]} : vector<10x20x10xf32> to vector<6x20x6xf32>
    %323 = vector.extract_strided_slice %300 {offsets = [4, 0, 0], sizes = [6, 20, 6], strides = [1, 1, 1]} : vector<10x20x10xf32> to vector<6x20x6xf32>
    %324 = vector.extract_strided_slice %300 {offsets = [4, 0, 1], sizes = [6, 20, 6], strides = [1, 1, 1]} : vector<10x20x10xf32> to vector<6x20x6xf32>
    %325 = vector.extract_strided_slice %300 {offsets = [4, 0, 2], sizes = [6, 20, 6], strides = [1, 1, 1]} : vector<10x20x10xf32> to vector<6x20x6xf32>
    %326 = vector.extract_strided_slice %300 {offsets = [4, 0, 3], sizes = [6, 20, 6], strides = [1, 1, 1]} : vector<10x20x10xf32> to vector<6x20x6xf32>
    %327 = vector.extract_strided_slice %300 {offsets = [4, 0, 4], sizes = [6, 20, 6], strides = [1, 1, 1]} : vector<10x20x10xf32> to vector<6x20x6xf32>
    %328 = tpu.concatenate %303, %304, %305, %306, %307, %308, %309, %310, %311, %312, %313, %314, %315, %316, %317, %318 in 1 : vector<6x20x6xf32>, vector<6x20x6xf32>, vector<6x20x6xf32>, vector<6x20x6xf32>, vector<6x20x6xf32>, vector<6x20x6xf32>, vector<6x20x6xf32>, vector<6x20x6xf32>, vector<6x20x6xf32>, vector<6x20x6xf32>, vector<6x20x6xf32>, vector<6x20x6xf32>, vector<6x20x6xf32>, vector<6x20x6xf32>, vector<6x20x6xf32>, vector<6x20x6xf32> -> vector<6x320x6xf32>
    %329 = tpu.concatenate %319, %320, %321, %322, %323, %324, %325, %326, %327 in 1 : vector<6x20x6xf32>, vector<6x20x6xf32>, vector<6x20x6xf32>, vector<6x20x6xf32>, vector<6x20x6xf32>, vector<6x20x6xf32>, vector<6x20x6xf32>, vector<6x20x6xf32>, vector<6x20x6xf32> -> vector<6x180x6xf32>
    %330 = tpu.concatenate %328, %329 in 1 : vector<6x320x6xf32>, vector<6x180x6xf32> -> vector<6x500x6xf32>
    %331 = vector.extract_strided_slice %330 {offsets = [0, 0, 0], sizes = [1, 500, 6], strides = [1, 1, 1]} : vector<6x500x6xf32> to vector<1x500x6xf32>
    %332 = vector.shape_cast %331 : vector<1x500x6xf32> to vector<500x6xf32>
    %333 = vector.extract_strided_slice %330 {offsets = [1, 0, 0], sizes = [1, 500, 6], strides = [1, 1, 1]} : vector<6x500x6xf32> to vector<1x500x6xf32>
    %334 = vector.shape_cast %333 : vector<1x500x6xf32> to vector<500x6xf32>
    %335 = vector.extract_strided_slice %330 {offsets = [2, 0, 0], sizes = [1, 500, 6], strides = [1, 1, 1]} : vector<6x500x6xf32> to vector<1x500x6xf32>
    %336 = vector.shape_cast %335 : vector<1x500x6xf32> to vector<500x6xf32>
    %337 = vector.extract_strided_slice %330 {offsets = [3, 0, 0], sizes = [1, 500, 6], strides = [1, 1, 1]} : vector<6x500x6xf32> to vector<1x500x6xf32>
    %338 = vector.shape_cast %337 : vector<1x500x6xf32> to vector<500x6xf32>
    %339 = vector.extract_strided_slice %330 {offsets = [4, 0, 0], sizes = [1, 500, 6], strides = [1, 1, 1]} : vector<6x500x6xf32> to vector<1x500x6xf32>
    %340 = vector.shape_cast %339 : vector<1x500x6xf32> to vector<500x6xf32>
    %341 = vector.extract_strided_slice %330 {offsets = [5, 0, 0], sizes = [1, 500, 6], strides = [1, 1, 1]} : vector<6x500x6xf32> to vector<1x500x6xf32>
    %342 = vector.shape_cast %341 : vector<1x500x6xf32> to vector<500x6xf32>
    %343 = tpu.concatenate %332, %334, %336, %338, %340, %342 in 1 : vector<500x6xf32>, vector<500x6xf32>, vector<500x6xf32>, vector<500x6xf32>, vector<500x6xf32>, vector<500x6xf32> -> vector<500x36xf32>
    %cst_20 = arith.constant dense<0.000000e+00> : vector<10x36xf32>
    %344 = tpu.matmul %301, %343, %cst_20 {dimension_numbers = #tpu.dot_dimension_numbers<[1], [0], [0], [1], [0, 0, 1, 1], [], []>} : vector<10x500xf32>, vector<500x36xf32>, vector<10x36xf32> -> vector<10x36xf32>
    %345 = vector.broadcast %302 : vector<10x1xf32> to vector<10x36xf32>
    %346 = arith.addf %344, %345 : vector<10x36xf32>
    %cst_21 = arith.constant 0.000000e+00 : f32
    %347 = vector.broadcast %cst_21 : f32 to vector<10x36xf32>
    %348 = arith.maximumf %346, %347 : vector<10x36xf32>
    %349 = vector.extract_strided_slice %348 {offsets = [0, 0], sizes = [10, 6], strides = [1, 1]} : vector<10x36xf32> to vector<10x6xf32>
    %350 = vector.shape_cast %349 : vector<10x6xf32> to vector<1x10x6xf32>
    %351 = vector.extract_strided_slice %348 {offsets = [0, 6], sizes = [10, 6], strides = [1, 1]} : vector<10x36xf32> to vector<10x6xf32>
    %352 = vector.shape_cast %351 : vector<10x6xf32> to vector<1x10x6xf32>
    %353 = vector.extract_strided_slice %348 {offsets = [0, 12], sizes = [10, 6], strides = [1, 1]} : vector<10x36xf32> to vector<10x6xf32>
    %354 = vector.shape_cast %353 : vector<10x6xf32> to vector<1x10x6xf32>
    %355 = vector.extract_strided_slice %348 {offsets = [0, 18], sizes = [10, 6], strides = [1, 1]} : vector<10x36xf32> to vector<10x6xf32>
    %356 = vector.shape_cast %355 : vector<10x6xf32> to vector<1x10x6xf32>
    %357 = vector.extract_strided_slice %348 {offsets = [0, 24], sizes = [10, 6], strides = [1, 1]} : vector<10x36xf32> to vector<10x6xf32>
    %358 = vector.shape_cast %357 : vector<10x6xf32> to vector<1x10x6xf32>
    %359 = vector.extract_strided_slice %348 {offsets = [0, 30], sizes = [10, 6], strides = [1, 1]} : vector<10x36xf32> to vector<10x6xf32>
    %360 = vector.shape_cast %359 : vector<10x6xf32> to vector<1x10x6xf32>
    %361 = tpu.concatenate %350, %352, %354, %356, %358, %360 in 0 : vector<1x10x6xf32>, vector<1x10x6xf32>, vector<1x10x6xf32>, vector<1x10x6xf32>, vector<1x10x6xf32>, vector<1x10x6xf32> -> vector<6x10x6xf32>
    %362 = vector.extract_strided_slice %361 {offsets = [0, 0, 0], sizes = [1, 10, 6], strides = [1, 1, 1]} : vector<6x10x6xf32> to vector<1x10x6xf32>
    %363 = vector.shape_cast %362 : vector<1x10x6xf32> to vector<10x6xf32>
    %364 = vector.extract_strided_slice %363 {offsets = [0, 0], sizes = [10, 1], strides = [1, 1]} : vector<10x6xf32> to vector<10x1xf32>
    %365 = vector.extract_strided_slice %363 {offsets = [0, 0], sizes = [10, 1], strides = [1, 1]} : vector<10x6xf32> to vector<10x1xf32>
    %366 = vector.extract_strided_slice %363 {offsets = [0, 1], sizes = [10, 1], strides = [1, 1]} : vector<10x6xf32> to vector<10x1xf32>
    %367 = vector.extract_strided_slice %363 {offsets = [0, 1], sizes = [10, 1], strides = [1, 1]} : vector<10x6xf32> to vector<10x1xf32>
    %368 = vector.extract_strided_slice %363 {offsets = [0, 2], sizes = [10, 1], strides = [1, 1]} : vector<10x6xf32> to vector<10x1xf32>
    %369 = vector.extract_strided_slice %363 {offsets = [0, 2], sizes = [10, 1], strides = [1, 1]} : vector<10x6xf32> to vector<10x1xf32>
    %370 = vector.extract_strided_slice %363 {offsets = [0, 3], sizes = [10, 1], strides = [1, 1]} : vector<10x6xf32> to vector<10x1xf32>
    %371 = vector.extract_strided_slice %363 {offsets = [0, 3], sizes = [10, 1], strides = [1, 1]} : vector<10x6xf32> to vector<10x1xf32>
    %372 = vector.extract_strided_slice %363 {offsets = [0, 4], sizes = [10, 1], strides = [1, 1]} : vector<10x6xf32> to vector<10x1xf32>
    %373 = vector.extract_strided_slice %363 {offsets = [0, 4], sizes = [10, 1], strides = [1, 1]} : vector<10x6xf32> to vector<10x1xf32>
    %374 = vector.extract_strided_slice %363 {offsets = [0, 5], sizes = [10, 1], strides = [1, 1]} : vector<10x6xf32> to vector<10x1xf32>
    %375 = vector.extract_strided_slice %363 {offsets = [0, 5], sizes = [10, 1], strides = [1, 1]} : vector<10x6xf32> to vector<10x1xf32>
    %376 = tpu.concatenate %364, %365, %366, %367, %368, %369, %370, %371, %372, %373, %374, %375 in 1 : vector<10x1xf32>, vector<10x1xf32>, vector<10x1xf32>, vector<10x1xf32>, vector<10x1xf32>, vector<10x1xf32>, vector<10x1xf32>, vector<10x1xf32>, vector<10x1xf32>, vector<10x1xf32>, vector<10x1xf32>, vector<10x1xf32> -> vector<10x12xf32>
    %377 = vector.shape_cast %376 : vector<10x12xf32> to vector<1x10x12xf32>
    %378 = vector.shape_cast %376 : vector<10x12xf32> to vector<1x10x12xf32>
    %379 = vector.extract_strided_slice %361 {offsets = [1, 0, 0], sizes = [1, 10, 6], strides = [1, 1, 1]} : vector<6x10x6xf32> to vector<1x10x6xf32>
    %380 = vector.shape_cast %379 : vector<1x10x6xf32> to vector<10x6xf32>
    %381 = vector.extract_strided_slice %380 {offsets = [0, 0], sizes = [10, 1], strides = [1, 1]} : vector<10x6xf32> to vector<10x1xf32>
    %382 = vector.extract_strided_slice %380 {offsets = [0, 0], sizes = [10, 1], strides = [1, 1]} : vector<10x6xf32> to vector<10x1xf32>
    %383 = vector.extract_strided_slice %380 {offsets = [0, 1], sizes = [10, 1], strides = [1, 1]} : vector<10x6xf32> to vector<10x1xf32>
    %384 = vector.extract_strided_slice %380 {offsets = [0, 1], sizes = [10, 1], strides = [1, 1]} : vector<10x6xf32> to vector<10x1xf32>
    %385 = vector.extract_strided_slice %380 {offsets = [0, 2], sizes = [10, 1], strides = [1, 1]} : vector<10x6xf32> to vector<10x1xf32>
    %386 = vector.extract_strided_slice %380 {offsets = [0, 2], sizes = [10, 1], strides = [1, 1]} : vector<10x6xf32> to vector<10x1xf32>
    %387 = vector.extract_strided_slice %380 {offsets = [0, 3], sizes = [10, 1], strides = [1, 1]} : vector<10x6xf32> to vector<10x1xf32>
    %388 = vector.extract_strided_slice %380 {offsets = [0, 3], sizes = [10, 1], strides = [1, 1]} : vector<10x6xf32> to vector<10x1xf32>
    %389 = vector.extract_strided_slice %380 {offsets = [0, 4], sizes = [10, 1], strides = [1, 1]} : vector<10x6xf32> to vector<10x1xf32>
    %390 = vector.extract_strided_slice %380 {offsets = [0, 4], sizes = [10, 1], strides = [1, 1]} : vector<10x6xf32> to vector<10x1xf32>
    %391 = vector.extract_strided_slice %380 {offsets = [0, 5], sizes = [10, 1], strides = [1, 1]} : vector<10x6xf32> to vector<10x1xf32>
    %392 = vector.extract_strided_slice %380 {offsets = [0, 5], sizes = [10, 1], strides = [1, 1]} : vector<10x6xf32> to vector<10x1xf32>
    %393 = tpu.concatenate %381, %382, %383, %384, %385, %386, %387, %388, %389, %390, %391, %392 in 1 : vector<10x1xf32>, vector<10x1xf32>, vector<10x1xf32>, vector<10x1xf32>, vector<10x1xf32>, vector<10x1xf32>, vector<10x1xf32>, vector<10x1xf32>, vector<10x1xf32>, vector<10x1xf32>, vector<10x1xf32>, vector<10x1xf32> -> vector<10x12xf32>
    %394 = vector.shape_cast %393 : vector<10x12xf32> to vector<1x10x12xf32>
    %395 = vector.shape_cast %393 : vector<10x12xf32> to vector<1x10x12xf32>
    %396 = vector.extract_strided_slice %361 {offsets = [2, 0, 0], sizes = [1, 10, 6], strides = [1, 1, 1]} : vector<6x10x6xf32> to vector<1x10x6xf32>
    %397 = vector.shape_cast %396 : vector<1x10x6xf32> to vector<10x6xf32>
    %398 = vector.extract_strided_slice %397 {offsets = [0, 0], sizes = [10, 1], strides = [1, 1]} : vector<10x6xf32> to vector<10x1xf32>
    %399 = vector.extract_strided_slice %397 {offsets = [0, 0], sizes = [10, 1], strides = [1, 1]} : vector<10x6xf32> to vector<10x1xf32>
    %400 = vector.extract_strided_slice %397 {offsets = [0, 1], sizes = [10, 1], strides = [1, 1]} : vector<10x6xf32> to vector<10x1xf32>
    %401 = vector.extract_strided_slice %397 {offsets = [0, 1], sizes = [10, 1], strides = [1, 1]} : vector<10x6xf32> to vector<10x1xf32>
    %402 = vector.extract_strided_slice %397 {offsets = [0, 2], sizes = [10, 1], strides = [1, 1]} : vector<10x6xf32> to vector<10x1xf32>
    %403 = vector.extract_strided_slice %397 {offsets = [0, 2], sizes = [10, 1], strides = [1, 1]} : vector<10x6xf32> to vector<10x1xf32>
    %404 = vector.extract_strided_slice %397 {offsets = [0, 3], sizes = [10, 1], strides = [1, 1]} : vector<10x6xf32> to vector<10x1xf32>
    %405 = vector.extract_strided_slice %397 {offsets = [0, 3], sizes = [10, 1], strides = [1, 1]} : vector<10x6xf32> to vector<10x1xf32>
    %406 = vector.extract_strided_slice %397 {offsets = [0, 4], sizes = [10, 1], strides = [1, 1]} : vector<10x6xf32> to vector<10x1xf32>
    %407 = vector.extract_strided_slice %397 {offsets = [0, 4], sizes = [10, 1], strides = [1, 1]} : vector<10x6xf32> to vector<10x1xf32>
    %408 = vector.extract_strided_slice %397 {offsets = [0, 5], sizes = [10, 1], strides = [1, 1]} : vector<10x6xf32> to vector<10x1xf32>
    %409 = vector.extract_strided_slice %397 {offsets = [0, 5], sizes = [10, 1], strides = [1, 1]} : vector<10x6xf32> to vector<10x1xf32>
    %410 = tpu.concatenate %398, %399, %400, %401, %402, %403, %404, %405, %406, %407, %408, %409 in 1 : vector<10x1xf32>, vector<10x1xf32>, vector<10x1xf32>, vector<10x1xf32>, vector<10x1xf32>, vector<10x1xf32>, vector<10x1xf32>, vector<10x1xf32>, vector<10x1xf32>, vector<10x1xf32>, vector<10x1xf32>, vector<10x1xf32> -> vector<10x12xf32>
    %411 = vector.shape_cast %410 : vector<10x12xf32> to vector<1x10x12xf32>
    %412 = vector.shape_cast %410 : vector<10x12xf32> to vector<1x10x12xf32>
    %413 = vector.extract_strided_slice %361 {offsets = [3, 0, 0], sizes = [1, 10, 6], strides = [1, 1, 1]} : vector<6x10x6xf32> to vector<1x10x6xf32>
    %414 = vector.shape_cast %413 : vector<1x10x6xf32> to vector<10x6xf32>
    %415 = vector.extract_strided_slice %414 {offsets = [0, 0], sizes = [10, 1], strides = [1, 1]} : vector<10x6xf32> to vector<10x1xf32>
    %416 = vector.extract_strided_slice %414 {offsets = [0, 0], sizes = [10, 1], strides = [1, 1]} : vector<10x6xf32> to vector<10x1xf32>
    %417 = vector.extract_strided_slice %414 {offsets = [0, 1], sizes = [10, 1], strides = [1, 1]} : vector<10x6xf32> to vector<10x1xf32>
    %418 = vector.extract_strided_slice %414 {offsets = [0, 1], sizes = [10, 1], strides = [1, 1]} : vector<10x6xf32> to vector<10x1xf32>
    %419 = vector.extract_strided_slice %414 {offsets = [0, 2], sizes = [10, 1], strides = [1, 1]} : vector<10x6xf32> to vector<10x1xf32>
    %420 = vector.extract_strided_slice %414 {offsets = [0, 2], sizes = [10, 1], strides = [1, 1]} : vector<10x6xf32> to vector<10x1xf32>
    %421 = vector.extract_strided_slice %414 {offsets = [0, 3], sizes = [10, 1], strides = [1, 1]} : vector<10x6xf32> to vector<10x1xf32>
    %422 = vector.extract_strided_slice %414 {offsets = [0, 3], sizes = [10, 1], strides = [1, 1]} : vector<10x6xf32> to vector<10x1xf32>
    %423 = vector.extract_strided_slice %414 {offsets = [0, 4], sizes = [10, 1], strides = [1, 1]} : vector<10x6xf32> to vector<10x1xf32>
    %424 = vector.extract_strided_slice %414 {offsets = [0, 4], sizes = [10, 1], strides = [1, 1]} : vector<10x6xf32> to vector<10x1xf32>
    %425 = vector.extract_strided_slice %414 {offsets = [0, 5], sizes = [10, 1], strides = [1, 1]} : vector<10x6xf32> to vector<10x1xf32>
    %426 = vector.extract_strided_slice %414 {offsets = [0, 5], sizes = [10, 1], strides = [1, 1]} : vector<10x6xf32> to vector<10x1xf32>
    %427 = tpu.concatenate %415, %416, %417, %418, %419, %420, %421, %422, %423, %424, %425, %426 in 1 : vector<10x1xf32>, vector<10x1xf32>, vector<10x1xf32>, vector<10x1xf32>, vector<10x1xf32>, vector<10x1xf32>, vector<10x1xf32>, vector<10x1xf32>, vector<10x1xf32>, vector<10x1xf32>, vector<10x1xf32>, vector<10x1xf32> -> vector<10x12xf32>
    %428 = vector.shape_cast %427 : vector<10x12xf32> to vector<1x10x12xf32>
    %429 = vector.shape_cast %427 : vector<10x12xf32> to vector<1x10x12xf32>
    %430 = vector.extract_strided_slice %361 {offsets = [4, 0, 0], sizes = [1, 10, 6], strides = [1, 1, 1]} : vector<6x10x6xf32> to vector<1x10x6xf32>
    %431 = vector.shape_cast %430 : vector<1x10x6xf32> to vector<10x6xf32>
    %432 = vector.extract_strided_slice %431 {offsets = [0, 0], sizes = [10, 1], strides = [1, 1]} : vector<10x6xf32> to vector<10x1xf32>
    %433 = vector.extract_strided_slice %431 {offsets = [0, 0], sizes = [10, 1], strides = [1, 1]} : vector<10x6xf32> to vector<10x1xf32>
    %434 = vector.extract_strided_slice %431 {offsets = [0, 1], sizes = [10, 1], strides = [1, 1]} : vector<10x6xf32> to vector<10x1xf32>
    %435 = vector.extract_strided_slice %431 {offsets = [0, 1], sizes = [10, 1], strides = [1, 1]} : vector<10x6xf32> to vector<10x1xf32>
    %436 = vector.extract_strided_slice %431 {offsets = [0, 2], sizes = [10, 1], strides = [1, 1]} : vector<10x6xf32> to vector<10x1xf32>
    %437 = vector.extract_strided_slice %431 {offsets = [0, 2], sizes = [10, 1], strides = [1, 1]} : vector<10x6xf32> to vector<10x1xf32>
    %438 = vector.extract_strided_slice %431 {offsets = [0, 3], sizes = [10, 1], strides = [1, 1]} : vector<10x6xf32> to vector<10x1xf32>
    %439 = vector.extract_strided_slice %431 {offsets = [0, 3], sizes = [10, 1], strides = [1, 1]} : vector<10x6xf32> to vector<10x1xf32>
    %440 = vector.extract_strided_slice %431 {offsets = [0, 4], sizes = [10, 1], strides = [1, 1]} : vector<10x6xf32> to vector<10x1xf32>
    %441 = vector.extract_strided_slice %431 {offsets = [0, 4], sizes = [10, 1], strides = [1, 1]} : vector<10x6xf32> to vector<10x1xf32>
    %442 = vector.extract_strided_slice %431 {offsets = [0, 5], sizes = [10, 1], strides = [1, 1]} : vector<10x6xf32> to vector<10x1xf32>
    %443 = vector.extract_strided_slice %431 {offsets = [0, 5], sizes = [10, 1], strides = [1, 1]} : vector<10x6xf32> to vector<10x1xf32>
    %444 = tpu.concatenate %432, %433, %434, %435, %436, %437, %438, %439, %440, %441, %442, %443 in 1 : vector<10x1xf32>, vector<10x1xf32>, vector<10x1xf32>, vector<10x1xf32>, vector<10x1xf32>, vector<10x1xf32>, vector<10x1xf32>, vector<10x1xf32>, vector<10x1xf32>, vector<10x1xf32>, vector<10x1xf32>, vector<10x1xf32> -> vector<10x12xf32>
    %445 = vector.shape_cast %444 : vector<10x12xf32> to vector<1x10x12xf32>
    %446 = vector.shape_cast %444 : vector<10x12xf32> to vector<1x10x12xf32>
    %447 = vector.extract_strided_slice %361 {offsets = [5, 0, 0], sizes = [1, 10, 6], strides = [1, 1, 1]} : vector<6x10x6xf32> to vector<1x10x6xf32>
    %448 = vector.shape_cast %447 : vector<1x10x6xf32> to vector<10x6xf32>
    %449 = vector.extract_strided_slice %448 {offsets = [0, 0], sizes = [10, 1], strides = [1, 1]} : vector<10x6xf32> to vector<10x1xf32>
    %450 = vector.extract_strided_slice %448 {offsets = [0, 0], sizes = [10, 1], strides = [1, 1]} : vector<10x6xf32> to vector<10x1xf32>
    %451 = vector.extract_strided_slice %448 {offsets = [0, 1], sizes = [10, 1], strides = [1, 1]} : vector<10x6xf32> to vector<10x1xf32>
    %452 = vector.extract_strided_slice %448 {offsets = [0, 1], sizes = [10, 1], strides = [1, 1]} : vector<10x6xf32> to vector<10x1xf32>
    %453 = vector.extract_strided_slice %448 {offsets = [0, 2], sizes = [10, 1], strides = [1, 1]} : vector<10x6xf32> to vector<10x1xf32>
    %454 = vector.extract_strided_slice %448 {offsets = [0, 2], sizes = [10, 1], strides = [1, 1]} : vector<10x6xf32> to vector<10x1xf32>
    %455 = vector.extract_strided_slice %448 {offsets = [0, 3], sizes = [10, 1], strides = [1, 1]} : vector<10x6xf32> to vector<10x1xf32>
    %456 = vector.extract_strided_slice %448 {offsets = [0, 3], sizes = [10, 1], strides = [1, 1]} : vector<10x6xf32> to vector<10x1xf32>
    %457 = vector.extract_strided_slice %448 {offsets = [0, 4], sizes = [10, 1], strides = [1, 1]} : vector<10x6xf32> to vector<10x1xf32>
    %458 = vector.extract_strided_slice %448 {offsets = [0, 4], sizes = [10, 1], strides = [1, 1]} : vector<10x6xf32> to vector<10x1xf32>
    %459 = vector.extract_strided_slice %448 {offsets = [0, 5], sizes = [10, 1], strides = [1, 1]} : vector<10x6xf32> to vector<10x1xf32>
    %460 = vector.extract_strided_slice %448 {offsets = [0, 5], sizes = [10, 1], strides = [1, 1]} : vector<10x6xf32> to vector<10x1xf32>
    %461 = tpu.concatenate %449, %450, %451, %452, %453, %454, %455, %456, %457, %458, %459, %460 in 1 : vector<10x1xf32>, vector<10x1xf32>, vector<10x1xf32>, vector<10x1xf32>, vector<10x1xf32>, vector<10x1xf32>, vector<10x1xf32>, vector<10x1xf32>, vector<10x1xf32>, vector<10x1xf32>, vector<10x1xf32>, vector<10x1xf32> -> vector<10x12xf32>
    %462 = vector.shape_cast %461 : vector<10x12xf32> to vector<1x10x12xf32>
    %463 = vector.shape_cast %461 : vector<10x12xf32> to vector<1x10x12xf32>
    %464 = tpu.concatenate %377, %378, %394, %395, %411, %412, %428, %429, %445, %446, %462, %463 in 0 : vector<1x10x12xf32>, vector<1x10x12xf32>, vector<1x10x12xf32>, vector<1x10x12xf32>, vector<1x10x12xf32>, vector<1x10x12xf32>, vector<1x10x12xf32>, vector<1x10x12xf32>, vector<1x10x12xf32>, vector<1x10x12xf32>, vector<1x10x12xf32>, vector<1x10x12xf32> -> vector<12x10x12xf32>
    %cst_22 = arith.constant 0.000000e+00 : f32
    %465 = vector.broadcast %cst_22 : f32 to vector<12x10x4xf32>
    %466 = tpu.concatenate %465, %464, %465 in 2 : vector<12x10x4xf32>, vector<12x10x12xf32>, vector<12x10x4xf32> -> vector<12x10x20xf32>
    %cst_23 = arith.constant 0.000000e+00 : f32
    %467 = vector.broadcast %cst_23 : f32 to vector<4x10x20xf32>
    %468 = tpu.concatenate %467, %466, %467 in 0 : vector<4x10x20xf32>, vector<12x10x20xf32>, vector<4x10x20xf32> -> vector<20x10x20xf32>
    %c0_24 = arith.constant 0 : index
    %c0_25 = arith.constant 0 : index
    %469 = vector.load %arg8[%c0_24, %c0_25] : memref<1x250xf32, #tpu.memory_space<vmem>>, vector<1x250xf32>
    %c0_26 = arith.constant 0 : index
    %c0_27 = arith.constant 0 : index
    %470 = vector.load %arg9[%c0_26, %c0_27] : memref<1x1xf32, #tpu.memory_space<vmem>>, vector<1x1xf32>
    %471 = vector.extract_strided_slice %468 {offsets = [0, 0, 0], sizes = [16, 10, 16], strides = [1, 1, 1]} : vector<20x10x20xf32> to vector<16x10x16xf32>
    %472 = vector.extract_strided_slice %468 {offsets = [0, 0, 1], sizes = [16, 10, 16], strides = [1, 1, 1]} : vector<20x10x20xf32> to vector<16x10x16xf32>
    %473 = vector.extract_strided_slice %468 {offsets = [0, 0, 2], sizes = [16, 10, 16], strides = [1, 1, 1]} : vector<20x10x20xf32> to vector<16x10x16xf32>
    %474 = vector.extract_strided_slice %468 {offsets = [0, 0, 3], sizes = [16, 10, 16], strides = [1, 1, 1]} : vector<20x10x20xf32> to vector<16x10x16xf32>
    %475 = vector.extract_strided_slice %468 {offsets = [0, 0, 4], sizes = [16, 10, 16], strides = [1, 1, 1]} : vector<20x10x20xf32> to vector<16x10x16xf32>
    %476 = vector.extract_strided_slice %468 {offsets = [1, 0, 0], sizes = [16, 10, 16], strides = [1, 1, 1]} : vector<20x10x20xf32> to vector<16x10x16xf32>
    %477 = vector.extract_strided_slice %468 {offsets = [1, 0, 1], sizes = [16, 10, 16], strides = [1, 1, 1]} : vector<20x10x20xf32> to vector<16x10x16xf32>
    %478 = vector.extract_strided_slice %468 {offsets = [1, 0, 2], sizes = [16, 10, 16], strides = [1, 1, 1]} : vector<20x10x20xf32> to vector<16x10x16xf32>
    %479 = vector.extract_strided_slice %468 {offsets = [1, 0, 3], sizes = [16, 10, 16], strides = [1, 1, 1]} : vector<20x10x20xf32> to vector<16x10x16xf32>
    %480 = vector.extract_strided_slice %468 {offsets = [1, 0, 4], sizes = [16, 10, 16], strides = [1, 1, 1]} : vector<20x10x20xf32> to vector<16x10x16xf32>
    %481 = vector.extract_strided_slice %468 {offsets = [2, 0, 0], sizes = [16, 10, 16], strides = [1, 1, 1]} : vector<20x10x20xf32> to vector<16x10x16xf32>
    %482 = vector.extract_strided_slice %468 {offsets = [2, 0, 1], sizes = [16, 10, 16], strides = [1, 1, 1]} : vector<20x10x20xf32> to vector<16x10x16xf32>
    %483 = vector.extract_strided_slice %468 {offsets = [2, 0, 2], sizes = [16, 10, 16], strides = [1, 1, 1]} : vector<20x10x20xf32> to vector<16x10x16xf32>
    %484 = vector.extract_strided_slice %468 {offsets = [2, 0, 3], sizes = [16, 10, 16], strides = [1, 1, 1]} : vector<20x10x20xf32> to vector<16x10x16xf32>
    %485 = vector.extract_strided_slice %468 {offsets = [2, 0, 4], sizes = [16, 10, 16], strides = [1, 1, 1]} : vector<20x10x20xf32> to vector<16x10x16xf32>
    %486 = vector.extract_strided_slice %468 {offsets = [3, 0, 0], sizes = [16, 10, 16], strides = [1, 1, 1]} : vector<20x10x20xf32> to vector<16x10x16xf32>
    %487 = vector.extract_strided_slice %468 {offsets = [3, 0, 1], sizes = [16, 10, 16], strides = [1, 1, 1]} : vector<20x10x20xf32> to vector<16x10x16xf32>
    %488 = vector.extract_strided_slice %468 {offsets = [3, 0, 2], sizes = [16, 10, 16], strides = [1, 1, 1]} : vector<20x10x20xf32> to vector<16x10x16xf32>
    %489 = vector.extract_strided_slice %468 {offsets = [3, 0, 3], sizes = [16, 10, 16], strides = [1, 1, 1]} : vector<20x10x20xf32> to vector<16x10x16xf32>
    %490 = vector.extract_strided_slice %468 {offsets = [3, 0, 4], sizes = [16, 10, 16], strides = [1, 1, 1]} : vector<20x10x20xf32> to vector<16x10x16xf32>
    %491 = vector.extract_strided_slice %468 {offsets = [4, 0, 0], sizes = [16, 10, 16], strides = [1, 1, 1]} : vector<20x10x20xf32> to vector<16x10x16xf32>
    %492 = vector.extract_strided_slice %468 {offsets = [4, 0, 1], sizes = [16, 10, 16], strides = [1, 1, 1]} : vector<20x10x20xf32> to vector<16x10x16xf32>
    %493 = vector.extract_strided_slice %468 {offsets = [4, 0, 2], sizes = [16, 10, 16], strides = [1, 1, 1]} : vector<20x10x20xf32> to vector<16x10x16xf32>
    %494 = vector.extract_strided_slice %468 {offsets = [4, 0, 3], sizes = [16, 10, 16], strides = [1, 1, 1]} : vector<20x10x20xf32> to vector<16x10x16xf32>
    %495 = vector.extract_strided_slice %468 {offsets = [4, 0, 4], sizes = [16, 10, 16], strides = [1, 1, 1]} : vector<20x10x20xf32> to vector<16x10x16xf32>
    %496 = tpu.concatenate %471, %472, %473, %474, %475, %476, %477, %478, %479, %480, %481, %482, %483, %484, %485, %486 in 1 : vector<16x10x16xf32>, vector<16x10x16xf32>, vector<16x10x16xf32>, vector<16x10x16xf32>, vector<16x10x16xf32>, vector<16x10x16xf32>, vector<16x10x16xf32>, vector<16x10x16xf32>, vector<16x10x16xf32>, vector<16x10x16xf32>, vector<16x10x16xf32>, vector<16x10x16xf32>, vector<16x10x16xf32>, vector<16x10x16xf32>, vector<16x10x16xf32>, vector<16x10x16xf32> -> vector<16x160x16xf32>
    %497 = tpu.concatenate %487, %488, %489, %490, %491, %492, %493, %494, %495 in 1 : vector<16x10x16xf32>, vector<16x10x16xf32>, vector<16x10x16xf32>, vector<16x10x16xf32>, vector<16x10x16xf32>, vector<16x10x16xf32>, vector<16x10x16xf32>, vector<16x10x16xf32>, vector<16x10x16xf32> -> vector<16x90x16xf32>
    %498 = tpu.concatenate %496, %497 in 1 : vector<16x160x16xf32>, vector<16x90x16xf32> -> vector<16x250x16xf32>
    %499 = vector.extract_strided_slice %498 {offsets = [0, 0, 0], sizes = [1, 250, 16], strides = [1, 1, 1]} : vector<16x250x16xf32> to vector<1x250x16xf32>
    %500 = vector.shape_cast %499 : vector<1x250x16xf32> to vector<250x16xf32>
    %501 = vector.extract_strided_slice %498 {offsets = [1, 0, 0], sizes = [1, 250, 16], strides = [1, 1, 1]} : vector<16x250x16xf32> to vector<1x250x16xf32>
    %502 = vector.shape_cast %501 : vector<1x250x16xf32> to vector<250x16xf32>
    %503 = vector.extract_strided_slice %498 {offsets = [2, 0, 0], sizes = [1, 250, 16], strides = [1, 1, 1]} : vector<16x250x16xf32> to vector<1x250x16xf32>
    %504 = vector.shape_cast %503 : vector<1x250x16xf32> to vector<250x16xf32>
    %505 = vector.extract_strided_slice %498 {offsets = [3, 0, 0], sizes = [1, 250, 16], strides = [1, 1, 1]} : vector<16x250x16xf32> to vector<1x250x16xf32>
    %506 = vector.shape_cast %505 : vector<1x250x16xf32> to vector<250x16xf32>
    %507 = vector.extract_strided_slice %498 {offsets = [4, 0, 0], sizes = [1, 250, 16], strides = [1, 1, 1]} : vector<16x250x16xf32> to vector<1x250x16xf32>
    %508 = vector.shape_cast %507 : vector<1x250x16xf32> to vector<250x16xf32>
    %509 = vector.extract_strided_slice %498 {offsets = [5, 0, 0], sizes = [1, 250, 16], strides = [1, 1, 1]} : vector<16x250x16xf32> to vector<1x250x16xf32>
    %510 = vector.shape_cast %509 : vector<1x250x16xf32> to vector<250x16xf32>
    %511 = vector.extract_strided_slice %498 {offsets = [6, 0, 0], sizes = [1, 250, 16], strides = [1, 1, 1]} : vector<16x250x16xf32> to vector<1x250x16xf32>
    %512 = vector.shape_cast %511 : vector<1x250x16xf32> to vector<250x16xf32>
    %513 = vector.extract_strided_slice %498 {offsets = [7, 0, 0], sizes = [1, 250, 16], strides = [1, 1, 1]} : vector<16x250x16xf32> to vector<1x250x16xf32>
    %514 = vector.shape_cast %513 : vector<1x250x16xf32> to vector<250x16xf32>
    %515 = vector.extract_strided_slice %498 {offsets = [8, 0, 0], sizes = [1, 250, 16], strides = [1, 1, 1]} : vector<16x250x16xf32> to vector<1x250x16xf32>
    %516 = vector.shape_cast %515 : vector<1x250x16xf32> to vector<250x16xf32>
    %517 = vector.extract_strided_slice %498 {offsets = [9, 0, 0], sizes = [1, 250, 16], strides = [1, 1, 1]} : vector<16x250x16xf32> to vector<1x250x16xf32>
    %518 = vector.shape_cast %517 : vector<1x250x16xf32> to vector<250x16xf32>
    %519 = vector.extract_strided_slice %498 {offsets = [10, 0, 0], sizes = [1, 250, 16], strides = [1, 1, 1]} : vector<16x250x16xf32> to vector<1x250x16xf32>
    %520 = vector.shape_cast %519 : vector<1x250x16xf32> to vector<250x16xf32>
    %521 = vector.extract_strided_slice %498 {offsets = [11, 0, 0], sizes = [1, 250, 16], strides = [1, 1, 1]} : vector<16x250x16xf32> to vector<1x250x16xf32>
    %522 = vector.shape_cast %521 : vector<1x250x16xf32> to vector<250x16xf32>
    %523 = vector.extract_strided_slice %498 {offsets = [12, 0, 0], sizes = [1, 250, 16], strides = [1, 1, 1]} : vector<16x250x16xf32> to vector<1x250x16xf32>
    %524 = vector.shape_cast %523 : vector<1x250x16xf32> to vector<250x16xf32>
    %525 = vector.extract_strided_slice %498 {offsets = [13, 0, 0], sizes = [1, 250, 16], strides = [1, 1, 1]} : vector<16x250x16xf32> to vector<1x250x16xf32>
    %526 = vector.shape_cast %525 : vector<1x250x16xf32> to vector<250x16xf32>
    %527 = vector.extract_strided_slice %498 {offsets = [14, 0, 0], sizes = [1, 250, 16], strides = [1, 1, 1]} : vector<16x250x16xf32> to vector<1x250x16xf32>
    %528 = vector.shape_cast %527 : vector<1x250x16xf32> to vector<250x16xf32>
    %529 = vector.extract_strided_slice %498 {offsets = [15, 0, 0], sizes = [1, 250, 16], strides = [1, 1, 1]} : vector<16x250x16xf32> to vector<1x250x16xf32>
    %530 = vector.shape_cast %529 : vector<1x250x16xf32> to vector<250x16xf32>
    %531 = tpu.concatenate %500, %502, %504, %506, %508, %510, %512, %514, %516, %518, %520, %522, %524, %526, %528, %530 in 1 : vector<250x16xf32>, vector<250x16xf32>, vector<250x16xf32>, vector<250x16xf32>, vector<250x16xf32>, vector<250x16xf32>, vector<250x16xf32>, vector<250x16xf32>, vector<250x16xf32>, vector<250x16xf32>, vector<250x16xf32>, vector<250x16xf32>, vector<250x16xf32>, vector<250x16xf32>, vector<250x16xf32>, vector<250x16xf32> -> vector<250x256xf32>
    %cst_28 = arith.constant dense<0.000000e+00> : vector<1x256xf32>
    %532 = tpu.matmul %469, %531, %cst_28 {dimension_numbers = #tpu.dot_dimension_numbers<[1], [0], [0], [1], [0, 0, 1, 1], [], []>} : vector<1x250xf32>, vector<250x256xf32>, vector<1x256xf32> -> vector<1x256xf32>
    %533 = vector.broadcast %470 : vector<1x1xf32> to vector<1x256xf32>
    %534 = arith.addf %532, %533 : vector<1x256xf32>
    %cst_29 = arith.constant 0.000000e+00 : f32
    %535 = vector.broadcast %cst_29 : f32 to vector<1x256xf32>
    %536 = arith.maximumf %534, %535 : vector<1x256xf32>
    %537 = vector.shape_cast %536 : vector<1x256xf32> to vector<1x1x256xf32>
    %c0_30 = arith.constant 0 : index
    %c0_31 = arith.constant 0 : index
    %c0_32 = arith.constant 0 : index
    %538 = vector.load %arg10[%c0_30, %c0_31, %c0_32] : memref<1x1x256xf32, #tpu.memory_space<vmem>>, vector<1x1x256xf32>
    tpu.vector_store %arg10[%c0_30, %c0_31, %c0_32], %537 {strides = array<i32>} : memref<1x1x256xf32, #tpu.memory_space<vmem>>, vector<1x1x256xf32>,
    return
  }
  func.func @transform_0(%arg0: i32) -> (i32, i32, i32, i32) {
    %c0_i32 = arith.constant 0 : i32
    %c0_i32_0 = arith.constant 0 : i32
    %c0_i32_1 = arith.constant 0 : i32
    %c0_i32_2 = arith.constant 0 : i32
    return %arg0, %c0_i32, %c0_i32_0, %c0_i32_1 : i32, i32, i32, i32
  }
  func.func @transform_1(%arg0: i32) -> (i32, i32) {
    %c0_i32 = arith.constant 0 : i32
    %c0_i32_0 = arith.constant 0 : i32
    %c0_i32_1 = arith.constant 0 : i32
    return %c0_i32, %c0_i32_0 : i32, i32
  }
  func.func @transform_2(%arg0: i32) -> (i32, i32) {
    %c0_i32 = arith.constant 0 : i32
    %c0_i32_0 = arith.constant 0 : i32
    %c0_i32_1 = arith.constant 0 : i32
    return %c0_i32, %c0_i32_0 : i32, i32
  }
  func.func @transform_3(%arg0: i32) -> (i32, i32) {
    %c0_i32 = arith.constant 0 : i32
    %c0_i32_0 = arith.constant 0 : i32
    %c0_i32_1 = arith.constant 0 : i32
    return %c0_i32, %c0_i32_0 : i32, i32
  }
  func.func @transform_4(%arg0: i32) -> (i32, i32) {
    %c0_i32 = arith.constant 0 : i32
    %c0_i32_0 = arith.constant 0 : i32
    %c0_i32_1 = arith.constant 0 : i32
    return %c0_i32, %c0_i32_0 : i32, i32
  }
  func.func @transform_5(%arg0: i32) -> (i32, i32) {
    %c0_i32 = arith.constant 0 : i32
    %c0_i32_0 = arith.constant 0 : i32
    %c0_i32_1 = arith.constant 0 : i32
    return %c0_i32, %c0_i32_0 : i32, i32
  }
  func.func @transform_6(%arg0: i32) -> (i32, i32) {
    %c0_i32 = arith.constant 0 : i32
    %c0_i32_0 = arith.constant 0 : i32
    %c0_i32_1 = arith.constant 0 : i32
    return %c0_i32, %c0_i32_0 : i32, i32
  }
  func.func @transform_7(%arg0: i32) -> (i32, i32) {
    %c0_i32 = arith.constant 0 : i32
    %c0_i32_0 = arith.constant 0 : i32
    %c0_i32_1 = arith.constant 0 : i32
    return %c0_i32, %c0_i32_0 : i32, i32
  }
  func.func @transform_8(%arg0: i32) -> (i32, i32) {
    %c0_i32 = arith.constant 0 : i32
    %c0_i32_0 = arith.constant 0 : i32
    %c0_i32_1 = arith.constant 0 : i32
    return %c0_i32, %c0_i32_0 : i32, i32
  }
  func.func @transform_9(%arg0: i32) -> (i32, i32, i32) {
    %c0_i32 = arith.constant 0 : i32
    %c0_i32_0 = arith.constant 0 : i32
    %c0_i32_1 = arith.constant 0 : i32
    return %arg0, %c0_i32, %c0_i32_0 : i32, i32, i32
  }
}

</mosaic_0001>

<llo_original>
// kernel: tpu_custom_call.1
$region0: #{tpu_custom_call.1}
  #allocation0 [shape = 'u32[]', space=smem, size = 0x4, offset = 0x4, fixed_abs, tag = 'smem constant byte address 0x4 - core index']
  #allocation1 [shape = 'u32[72,128]{1,0:T(1,128)}', space=vmem, size = 0x9000, scoped, tag = 'internal scratch']
  #allocation2 [shape = 'f32[1,1]{1,0:T(1,128)S(1)}', space=vmem, size = 0x200, scoped, tag = 'scoped memory for tpu_custom_call.1']
  %s0 = inlined_call_operand.vmem [shape: f32[2,16,1,16], index: 0, kind: input, shape index: {}]
  %s1 = inlined_call_operand.vmem [shape: f32[10,25], index: 1, kind: input, shape index: {}]
  %s2 = inlined_call_operand.vmem [shape: f32[10,1], index: 2, kind: input, shape index: {}]
  %s3 = inlined_call_operand.hbm [shape: f32[20,250], index: 3, kind: input, shape index: {}]
  %s4 = inlined_call_operand.vmem [shape: f32[20,1], index: 4, kind: input, shape index: {}]
  %s5 = inlined_call_operand.hbm [shape: f32[10,500], index: 5, kind: input, shape index: {}]
  %s6 = inlined_call_operand.vmem [shape: f32[10,1], index: 6, kind: input, shape index: {}]
  %s7 = inlined_call_operand.vmem [shape: f32[1,250], index: 7, kind: input, shape index: {}]
  %s8 = inlined_call_operand.<no memory space> [shape: f32[1,1], index: 8, kind: input, shape index: {}]
  %s9 = inlined_call_operand.hbm [shape: f32[2,1,256], index: 9, kind: output, shape index: {}]
  %s10 = sld [smem:[#allocation0]]
  $region77: #{tpu_custom_call.1} parent=0
    _
  %s12 = ssub.s32 1, %s10
  %s13 = scalar_select 0, %s12, %s10
  %v14 = vstv %s8
  %15 = vst [vmem:[#allocation2] sm:$0x1] %v14
  $region1: #{tpu_custom_call.1} parent=0
    #allocation3 [shape = 'u8[24576]{0}', space=vmem, size = 0x6000, scoped, tag = 'input window, operand 3, single buffered']
    #allocation4 [shape = 's32[2]{0}', space=sflag, size = 0x8, scoped, tag = 'scoped memory for tpu_custom_call.1']
    #allocation5 [shape = 's32[2]{0}', space=sflag, size = 0x8, scoped, tag = 'scoped memory for tpu_custom_call.1']
    #allocation6 [shape = 'u8[32768]{0}', space=vmem, size = 0x8000, scoped, tag = 'input window, operand 5, single buffered']
    #allocation7 [shape = 's32[1]{0}', space=sflag, size = 0x4, scoped, tag = 'scoped memory for tpu_custom_call.1']
    #allocation8 [shape = 'u8[2048]{0}', space=vmem, size = 0x800, scoped, tag = 'output window, operand 0']
    %16 = vsyncpa [#allocation4], 0
    %17 = vsyncpa [#allocation7], 0
    %18 = vsyncpa [#allocation5], 0
    %s19 = scalar_lea.sflag [#allocation5], 1
    %20 = vsyncpa %s19, 0
    loop: start=0, step=1, limit=4
    $region2: #{tpu_custom_call.1} parent=1 // loop_pre_header
      _
    $region3: #{tpu_custom_call.1} parent=1 // loop_header
      %s22 = sphi 0, %s26
      %p23 = scmp.ge.s32.totalorder %s22, 4
      %s32 = sphi 0, %s34
      %s35 = sphi 0, %s32
      %s36 = sphi 0, %s35
      %s52 = sphi 0, %s36
      %s56 = sphi 0, %s56
      %s58 = sphi 0, %s56
      %s59 = sphi 0, %s58
      %s73 = sphi 0, %s59
      %s77 = sphi 0, %s77
      %s79 = sphi 0, %s77
      %s80 = sphi 0, %s79
      %s94 = sphi 0, %s80
      %s98 = sphi 0, %s98
      %s100 = sphi 0, %s98
      %s101 = sphi 0, %s100
      %s115 = sphi 0, %s101
      %s119 = sphi 0, %s119
      %s121 = sphi 0, %s119
      %s122 = sphi 0, %s121
      %s136 = sphi 0, %s122
      %s140 = sphi 0, %s140
      %s142 = sphi 0, %s140
      %s143 = sphi 0, %s142
      %s157 = sphi 0, %s143
      %s161 = sphi 0, %s161
      %s163 = sphi 0, %s161
      %s164 = sphi 0, %s163
      %s178 = sphi 0, %s164
      %s182 = sphi 0, %s182
      %s184 = sphi 0, %s182
      %s185 = sphi 0, %s184
      %s199 = sphi 0, %s185
      %s203 = sphi 0, %s203
      %s205 = sphi 0, %s203
      %s206 = sphi 0, %s205
      %s220 = sphi 0, %s206
      %s226 = sphi 0, %s228
      %s229 = sphi 0, %s226
      %s230 = sphi 0, %s229
      %s246 = sphi 0, %s230
    $region4: #{tpu_custom_call.1} parent=1 // loop_header_branch
      %25 = sbr.rel (%p23) target = $region8
    $region5: #{tpu_custom_call.1} parent=1 // loop_body
      %s27 = ssub.s32 %s22, 1
      %s28 = ssub.s32 %s22, 2
      %s29 = sadd.s32 %s22, 1
      %s30 = ssub.s32 %s22, %s29
      %p31 = scmp.eq.s32.totalorder %s30, 0
      %s33 = sadd.s32 %s32, 1
      %s34 = scalar_select %p31, %s32, %s33
      %p37 = pneg %p31
      %p38 = scmp.eq.s32.totalorder %s22, 1
      %p39 = por %p37, %p38
      %p40 = scmp.ne.s32.totalorder %s32, %s35
      %p41 = scmp.eq.s32.totalorder %s22, 0
      %p42 = por %p40, %p41
      %p43 = scmp.ne.s32.totalorder %s32, %s35
      %p44 = scmp.eq.s32.totalorder %s27, 1
      %p45 = por %p43, %p44
      %p46 = scmp.ne.s32.totalorder %s35, %s36
      %p47 = scmp.eq.s32.totalorder %s27, 0
      %p48 = por %p46, %p47
      %p49 = scmp.ne.s32.totalorder %s35, %s36
      %p50 = scmp.eq.s32.totalorder %s28, 1
      %p51 = por %p49, %p50
      %p53 = scmp.ne.s32.totalorder %s36, %s52
      %p54 = scmp.eq.s32.totalorder %s28, 0
      %p55 = por %p53, %p54
      %s57 = sadd.s32 %s56, 1
      %p60 = scmp.eq.s32.totalorder %s22, 1
      %p61 = scmp.ne.s32.totalorder %s56, %s58
      %p62 = scmp.eq.s32.totalorder %s22, 0
      %p63 = por %p61, %p62
      %p64 = scmp.ne.s32.totalorder %s56, %s58
      %p65 = scmp.eq.s32.totalorder %s27, 1
      %p66 = por %p64, %p65
      %p67 = scmp.ne.s32.totalorder %s58, %s59
      %p68 = scmp.eq.s32.totalorder %s27, 0
      %p69 = por %p67, %p68
      %p70 = scmp.ne.s32.totalorder %s58, %s59
      %p71 = scmp.eq.s32.totalorder %s28, 1
      %p72 = por %p70, %p71
      %p74 = scmp.ne.s32.totalorder %s59, %s73
      %p75 = scmp.eq.s32.totalorder %s28, 0
      %p76 = por %p74, %p75
      %s78 = sadd.s32 %s77, 1
      %p81 = scmp.eq.s32.totalorder %s22, 1
      %p82 = scmp.ne.s32.totalorder %s77, %s79
      %p83 = scmp.eq.s32.totalorder %s22, 0
      %p84 = por %p82, %p83
      %p85 = scmp.ne.s32.totalorder %s77, %s79
      %p86 = scmp.eq.s32.totalorder %s27, 1
      %p87 = por %p85, %p86
      %p88 = scmp.ne.s32.totalorder %s79, %s80
      %p89 = scmp.eq.s32.totalorder %s27, 0
      %p90 = por %p88, %p89
      %p91 = scmp.ne.s32.totalorder %s79, %s80
      %p92 = scmp.eq.s32.totalorder %s28, 1
      %p93 = por %p91, %p92
      %p95 = scmp.ne.s32.totalorder %s80, %s94
      %p96 = scmp.eq.s32.totalorder %s28, 0
      %p97 = por %p95, %p96
      %s99 = sadd.s32 %s98, 1
      %p102 = scmp.eq.s32.totalorder %s22, 1
      %p103 = scmp.ne.s32.totalorder %s98, %s100
      %p104 = scmp.eq.s32.totalorder %s22, 0
      %p105 = por %p103, %p104
      %p106 = scmp.ne.s32.totalorder %s98, %s100
      %p107 = scmp.eq.s32.totalorder %s27, 1
      %p108 = por %p106, %p107
      %p109 = scmp.ne.s32.totalorder %s100, %s101
      %p110 = scmp.eq.s32.totalorder %s27, 0
      %p111 = por %p109, %p110
      %p112 = scmp.ne.s32.totalorder %s100, %s101
      %p113 = scmp.eq.s32.totalorder %s28, 1
      %p114 = por %p112, %p113
      %p116 = scmp.ne.s32.totalorder %s101, %s115
      %p117 = scmp.eq.s32.totalorder %s28, 0
      %p118 = por %p116, %p117
      %s120 = sadd.s32 %s119, 1
      %p123 = scmp.eq.s32.totalorder %s22, 1
      %p124 = scmp.ne.s32.totalorder %s119, %s121
      %p125 = scmp.eq.s32.totalorder %s22, 0
      %p126 = por %p124, %p125
      %p127 = scmp.ne.s32.totalorder %s119, %s121
      %p128 = scmp.eq.s32.totalorder %s27, 1
      %p129 = por %p127, %p128
      %p130 = scmp.ne.s32.totalorder %s121, %s122
      %p131 = scmp.eq.s32.totalorder %s27, 0
      %p132 = por %p130, %p131
      %p133 = scmp.ne.s32.totalorder %s121, %s122
      %p134 = scmp.eq.s32.totalorder %s28, 1
      %p135 = por %p133, %p134
      %p137 = scmp.ne.s32.totalorder %s122, %s136
      %p138 = scmp.eq.s32.totalorder %s28, 0
      %p139 = por %p137, %p138
      %s141 = sadd.s32 %s140, 1
      %p144 = scmp.eq.s32.totalorder %s22, 1
      %p145 = scmp.ne.s32.totalorder %s140, %s142
      %p146 = scmp.eq.s32.totalorder %s22, 0
      %p147 = por %p145, %p146
      %p148 = scmp.ne.s32.totalorder %s140, %s142
      %p149 = scmp.eq.s32.totalorder %s27, 1
      %p150 = por %p148, %p149
      %p151 = scmp.ne.s32.totalorder %s142, %s143
      %p152 = scmp.eq.s32.totalorder %s27, 0
      %p153 = por %p151, %p152
      %p154 = scmp.ne.s32.totalorder %s142, %s143
      %p155 = scmp.eq.s32.totalorder %s28, 1
      %p156 = por %p154, %p155
      %p158 = scmp.ne.s32.totalorder %s143, %s157
      %p159 = scmp.eq.s32.totalorder %s28, 0
      %p160 = por %p158, %p159
      %s162 = sadd.s32 %s161, 1
      %p165 = scmp.eq.s32.totalorder %s22, 1
      %p166 = scmp.ne.s32.totalorder %s161, %s163
      %p167 = scmp.eq.s32.totalorder %s22, 0
      %p168 = por %p166, %p167
      %p169 = scmp.ne.s32.totalorder %s161, %s163
      %p170 = scmp.eq.s32.totalorder %s27, 1
      %p171 = por %p169, %p170
      %p172 = scmp.ne.s32.totalorder %s163, %s164
      %p173 = scmp.eq.s32.totalorder %s27, 0
      %p174 = por %p172, %p173
      %p175 = scmp.ne.s32.totalorder %s163, %s164
      %p176 = scmp.eq.s32.totalorder %s28, 1
      %p177 = por %p175, %p176
      %p179 = scmp.ne.s32.totalorder %s164, %s178
      %p180 = scmp.eq.s32.totalorder %s28, 0
      %p181 = por %p179, %p180
      %s183 = sadd.s32 %s182, 1
      %p186 = scmp.eq.s32.totalorder %s22, 1
      %p187 = scmp.ne.s32.totalorder %s182, %s184
      %p188 = scmp.eq.s32.totalorder %s22, 0
      %p189 = por %p187, %p188
      %p190 = scmp.ne.s32.totalorder %s182, %s184
      %p191 = scmp.eq.s32.totalorder %s27, 1
      %p192 = por %p190, %p191
      %p193 = scmp.ne.s32.totalorder %s184, %s185
      %p194 = scmp.eq.s32.totalorder %s27, 0
      %p195 = por %p193, %p194
      %p196 = scmp.ne.s32.totalorder %s184, %s185
      %p197 = scmp.eq.s32.totalorder %s28, 1
      %p198 = por %p196, %p197
      %p200 = scmp.ne.s32.totalorder %s185, %s199
      %p201 = scmp.eq.s32.totalorder %s28, 0
      %p202 = por %p200, %p201
      %s204 = sadd.s32 %s203, 1
      %p207 = scmp.eq.s32.totalorder %s22, 1
      %p208 = scmp.ne.s32.totalorder %s203, %s205
      %p209 = scmp.eq.s32.totalorder %s22, 0
      %p210 = por %p208, %p209
      %p211 = scmp.ne.s32.totalorder %s203, %s205
      %p212 = scmp.eq.s32.totalorder %s27, 1
      %p213 = por %p211, %p212
      %p214 = scmp.ne.s32.totalorder %s205, %s206
      %p215 = scmp.eq.s32.totalorder %s27, 0
      %p216 = por %p214, %p215
      %p217 = scmp.ne.s32.totalorder %s205, %s206
      %p218 = scmp.eq.s32.totalorder %s28, 1
      %p219 = por %p217, %p218
      %p221 = scmp.ne.s32.totalorder %s206, %s220
      %p222 = scmp.eq.s32.totalorder %s28, 0
      %p223 = por %p221, %p222
      %s224 = ssub.s32 %s22, %s29
      %p225 = scmp.eq.s32.totalorder %s224, 0
      %s227 = sadd.s32 %s226, 1
      %s228 = scalar_select %p225, %s226, %s227
      %p231 = pneg %p225
      %p232 = scmp.eq.s32.totalorder %s22, 1
      %p233 = por %p231, %p232
      %p234 = scmp.ne.s32.totalorder %s226, %s229
      %p235 = scmp.eq.s32.totalorder %s22, 0
      %p236 = por %p234, %p235
      %p237 = scmp.ne.s32.totalorder %s226, %s229
      %p238 = scmp.eq.s32.totalorder %s27, 1
      %p239 = por %p237, %p238
      %p240 = scmp.ne.s32.totalorder %s229, %s230
      %p241 = scmp.eq.s32.totalorder %s27, 0
      %p242 = por %p240, %p241
      %p243 = scmp.ne.s32.totalorder %s229, %s230
      %p244 = scmp.eq.s32.totalorder %s28, 1
      %p245 = por %p243, %p244
      %p247 = scmp.ne.s32.totalorder %s230, %s246
      %p248 = scmp.eq.s32.totalorder %s28, 0
      %p249 = por %p247, %p248
      %p250 = scmp.le.s32.totalorder 1, %s22
      %p251 = scmp.lt.s32.totalorder %s22, 3
      %p252 = pnand %p250, %p251
      %p253 = pneg %p252
      // Predicated region
      $region9: #{tpu_custom_call.1} parent=5 // pred_check
        _
      $region10: #{tpu_custom_call.1} parent=5 // pred_check_branch
        %255 = sbr.rel (%p252) target = $region12
      $region11: #{tpu_custom_call.1} parent=5 // pred_region
        %s256 = ssub.s32 %s22, 1
        // Predicated region
        $region13: #{tpu_custom_call.1} parent=11 // pred_check
          %p257 = pneg %p69
        $region14: #{tpu_custom_call.1} parent=11 // pred_check_branch
          %259 = sbr.rel (%p257) target = $region16
        $region15: #{tpu_custom_call.1} parent=11 // pred_region
          _
        $region16: #{tpu_custom_call.1} parent=11 // pred_fallthru
          _
        // Predicated region
        $region17: #{tpu_custom_call.1} parent=11 // pred_check
          %p260 = pneg %p90
        $region18: #{tpu_custom_call.1} parent=11 // pred_check_branch
          %262 = sbr.rel (%p260) target = $region20
        $region19: #{tpu_custom_call.1} parent=11 // pred_region
          _
        $region20: #{tpu_custom_call.1} parent=11 // pred_fallthru
          _
        // Predicated region
        $region21: #{tpu_custom_call.1} parent=11 // pred_check
          %p263 = pneg %p111
        $region22: #{tpu_custom_call.1} parent=11 // pred_check_branch
          %265 = sbr.rel (%p263) target = $region24
        $region23: #{tpu_custom_call.1} parent=11 // pred_region
          %267 = vsyncadd [#allocation4], 0
          %s268 = sshll.u32 %s3, 4
          %s269 = int_to_ptr.hbm [resolvable:$true] %s268
          %s270 = sshll.u32 [#allocation3], 4
          %s271 = int_to_ptr.vmem [resolvable:$true] %s270
          %276 = dma.hbm_to_vmem [thread:$0]  %s269, 768, %s271, [#allocation4], 256, 256, 16
        $region24: #{tpu_custom_call.1} parent=11 // pred_fallthru
          _
        // Predicated region
        $region25: #{tpu_custom_call.1} parent=11 // pred_check
          %p277 = pneg %p132
        $region26: #{tpu_custom_call.1} parent=11 // pred_check_branch
          %279 = sbr.rel (%p277) target = $region28
        $region27: #{tpu_custom_call.1} parent=11 // pred_region
          _
        $region28: #{tpu_custom_call.1} parent=11 // pred_fallthru
          _
        // Predicated region
        $region29: #{tpu_custom_call.1} parent=11 // pred_check
          %p280 = pneg %p153
        $region30: #{tpu_custom_call.1} parent=11 // pred_check_branch
          %282 = sbr.rel (%p280) target = $region32
        $region31: #{tpu_custom_call.1} parent=11 // pred_region
          %284 = vsyncadd [#allocation7], 0
          %s285 = sshll.u32 %s5, 4
          %s286 = int_to_ptr.hbm [resolvable:$true] %s285
          %s287 = sshll.u32 [#allocation6], 4
          %s288 = int_to_ptr.vmem [resolvable:$true] %s287
          %293 = dma.hbm_to_vmem [thread:$0]  %s286, 1024, %s288, [#allocation7], 512, 512, 32
        $region32: #{tpu_custom_call.1} parent=11 // pred_fallthru
          _
        // Predicated region
        $region33: #{tpu_custom_call.1} parent=11 // pred_check
          %p294 = pneg %p174
        $region34: #{tpu_custom_call.1} parent=11 // pred_check_branch
          %296 = sbr.rel (%p294) target = $region36
        $region35: #{tpu_custom_call.1} parent=11 // pred_region
          _
        $region36: #{tpu_custom_call.1} parent=11 // pred_fallthru
          _
        // Predicated region
        $region37: #{tpu_custom_call.1} parent=11 // pred_check
          %p297 = pneg %p195
        $region38: #{tpu_custom_call.1} parent=11 // pred_check_branch
          %299 = sbr.rel (%p297) target = $region40
        $region39: #{tpu_custom_call.1} parent=11 // pred_region
          _
        $region40: #{tpu_custom_call.1} parent=11 // pred_fallthru
          _
        // Predicated region
        $region41: #{tpu_custom_call.1} parent=11 // pred_check
          %p300 = pneg %p216
        $region42: #{tpu_custom_call.1} parent=11 // pred_check_branch
          %302 = sbr.rel (%p300) target = $region44
        $region43: #{tpu_custom_call.1} parent=11 // pred_region
          _
        $region44: #{tpu_custom_call.1} parent=11 // pred_fallthru
          _
      $region12: #{tpu_custom_call.1} parent=5 // pred_fallthru
        _
      %p303 = scmp.lt.s32.totalorder %s22, 2
      // Predicated region
      $region45: #{tpu_custom_call.1} parent=5 // pred_check
        %p304 = pneg %p303
      $region46: #{tpu_custom_call.1} parent=5 // pred_check_branch
        %306 = sbr.rel (%p304) target = $region48
      $region47: #{tpu_custom_call.1} parent=5 // pred_region
        // Predicated region
        $region49: #{tpu_custom_call.1} parent=47 // pred_check
          %p307 = pneg %p42
        $region50: #{tpu_custom_call.1} parent=47 // pred_check_branch
          %309 = sbr.rel (%p307) target = $region52
        $region51: #{tpu_custom_call.1} parent=47 // pred_region
          %p310 = scmp.lt.s32.totalorder %s22, 1
          %s311 = scalar_select %p310, %s22, 1
          %s312 = smul.addr %s311, 16
          %s313 = scalar_lea.vmem %s0, %s312
        $region52: #{tpu_custom_call.1} parent=47 // pred_fallthru
          _
      $region48: #{tpu_custom_call.1} parent=5 // pred_fallthru
        _
      %p314 = scmp.le.s32.totalorder 1, %s22
      %p315 = scmp.lt.s32.totalorder %s22, 3
      %p316 = pnand %p314, %p315
      %p317 = pneg %p316
      // Predicated region
      $region53: #{tpu_custom_call.1} parent=5 // pred_check
        _
      $region54: #{tpu_custom_call.1} parent=5 // pred_check_branch
        %319 = sbr.rel (%p316) target = $region56
      $region55: #{tpu_custom_call.1} parent=5 // pred_region
        %s320 = ssub.s32 %s22, 1
        // Predicated region
        $region57: #{tpu_custom_call.1} parent=55 // pred_check
          %p321 = pneg %p111
        $region58: #{tpu_custom_call.1} parent=55 // pred_check_branch
          %323 = sbr.rel (%p321) target = $region60
        $region59: #{tpu_custom_call.1} parent=55 // pred_region
          %325 = dma.done [#allocation4], 768
        $region60: #{tpu_custom_call.1} parent=55 // pred_fallthru
          _
        // Predicated region
        $region61: #{tpu_custom_call.1} parent=55 // pred_check
          %p326 = pneg %p153
        $region62: #{tpu_custom_call.1} parent=55 // pred_check_branch
          %328 = sbr.rel (%p326) target = $region64
        $region63: #{tpu_custom_call.1} parent=55 // pred_region
          %330 = dma.done [#allocation7], 1024
        $region64: #{tpu_custom_call.1} parent=55 // pred_fallthru
          _
        %p331 = scmp.lt.s32.totalorder %s27, 1
        %s332 = scalar_select %p331, %s27, 1
        %s333 = smul.addr %s332, 16
        %s334 = scalar_lea.vmem %s0, %s333
        %p335 = pneg %p48
        %p336 = pneg %p45
        %p337 = pneg %p69
        %p338 = pneg %p66
        %p339 = pneg %p90
        %p340 = pneg %p87
        %p341 = pneg %p111
        %p342 = pneg %p108
        %p343 = pneg %p132
        %p344 = pneg %p129
        %p345 = pneg %p153
        %p346 = pneg %p150
        %p347 = pneg %p174
        %p348 = pneg %p171
        %p349 = pneg %p195
        %p350 = pneg %p192
        %p351 = pneg %p216
        %p352 = pneg %p213
        %p353 = pneg %p242
        %p354 = pneg %p239
        %s355 = sand.u32 %s229, 1
        %s356 = scalar_lea.sflag [#allocation5], %s355
        %s357 = sand.u32 %s229, 1
        %s358 = smul.addr %s357, 2
        %s359 = scalar_lea.vmem [#allocation8], %s358
        %p360 = scmp.lt.s32.totalorder %s27, 1
        %s361 = scalar_select %p360, %s27, 1
        %s362 = smul.addr %s361, 16
        %s363 = scalar_lea.vmem %s0, %s362
        %v364 = vld [vmem:[%s363] sm:$0x1]
        %v365 = vld [vmem:[%s363 + $0x1] sm:$0x1]
        %v366 = vld [vmem:[%s363 + $0x2] sm:$0x1]
        %v367 = vld [vmem:[%s363 + $0x3] sm:$0x1]
        %v368 = vld [vmem:[%s363 + $0x4] sm:$0x1]
        %v369 = vld [vmem:[%s363 + $0x5] sm:$0x1]
        %v370 = vld [vmem:[%s363 + $0x6] sm:$0x1]
        %v371 = vld [vmem:[%s363 + $0x7] sm:$0x1]
        %v372 = vld [vmem:[%s363 + $0x8] sm:$0x1]
        %v373 = vld [vmem:[%s363 + $0x9] sm:$0x1]
        %v374 = vld [vmem:[%s363 + $0xa] sm:$0x1]
        %v375 = vld [vmem:[%s363 + $0xb] sm:$0x1]
        %v376 = vld [vmem:[%s363 + $0xc] sm:$0x1]
        %v377 = vld [vmem:[%s363 + $0xd] sm:$0x1]
        %v378 = vld [vmem:[%s363 + $0xe] sm:$0x1]
        %v379 = vld [vmem:[%s363 + $0xf] sm:$0x1]
        %v380 = vld [vmem:[%s1] sm:$0xff]
        %v381 = vld [vmem:[%s1 + $0x8] sm:$0x3]
        %v382 = vld [vmem:[%s2] sm:$0xff]
        %v383 = vld [vmem:[%s2 + $0x8] sm:$0x3]
        %v396 = vperm.slane %v364, 0
        %v397 = vperm.slane %v365, 0
        %v398 = vperm.slane %v366, 0
        %v399 = vperm.slane %v367, 0
        %v400 = vperm.slane %v368, 0
        %v401 = vperm.slane %v369, 0
        %v402 = vperm.slane %v370, 0
        %v403 = vperm.slane %v371, 0
        %v404 = vperm.slane %v372, 0
        %v405 = vperm.slane %v373, 0
        %v406 = vperm.slane %v374, 0
        %v407 = vperm.slane %v375, 0
        %408 = vrot.lane.b32.xlu0 %v396, 127
        %v409 = vpop.permute.xlu0 %408
        %410 = vrot.lane.b32.xlu0 %v397, 127
        %v411 = vpop.permute.xlu0 %410
        %412 = vrot.lane.b32.xlu0 %v398, 127
        %v413 = vpop.permute.xlu0 %412
        %414 = vrot.lane.b32.xlu0 %v399, 127
        %v415 = vpop.permute.xlu0 %414
        %416 = vrot.lane.b32.xlu0 %v400, 127
        %v417 = vpop.permute.xlu0 %416
        %418 = vrot.lane.b32.xlu0 %v401, 127
        %v419 = vpop.permute.xlu0 %418
        %420 = vrot.lane.b32.xlu0 %v402, 127
        %v421 = vpop.permute.xlu0 %420
        %422 = vrot.lane.b32.xlu0 %v403, 127
        %v423 = vpop.permute.xlu0 %422
        %424 = vrot.lane.b32.xlu0 %v404, 127
        %v425 = vpop.permute.xlu0 %424
        %426 = vrot.lane.b32.xlu0 %v405, 127
        %v427 = vpop.permute.xlu0 %426
        %428 = vrot.lane.b32.xlu0 %v406, 127
        %v429 = vpop.permute.xlu0 %428
        %430 = vrot.lane.b32.xlu0 %v407, 127
        %v431 = vpop.permute.xlu0 %430
        %444 = vrot.lane.b32.xlu0 %v396, 126
        %v445 = vpop.permute.xlu0 %444
        %446 = vrot.lane.b32.xlu0 %v397, 126
        %v447 = vpop.permute.xlu0 %446
        %448 = vrot.lane.b32.xlu0 %v398, 126
        %v449 = vpop.permute.xlu0 %448
        %450 = vrot.lane.b32.xlu0 %v399, 126
        %v451 = vpop.permute.xlu0 %450
        %452 = vrot.lane.b32.xlu0 %v400, 126
        %v453 = vpop.permute.xlu0 %452
        %454 = vrot.lane.b32.xlu0 %v401, 126
        %v455 = vpop.permute.xlu0 %454
        %456 = vrot.lane.b32.xlu0 %v402, 126
        %v457 = vpop.permute.xlu0 %456
        %458 = vrot.lane.b32.xlu0 %v403, 126
        %v459 = vpop.permute.xlu0 %458
        %460 = vrot.lane.b32.xlu0 %v404, 126
        %v461 = vpop.permute.xlu0 %460
        %462 = vrot.lane.b32.xlu0 %v405, 126
        %v463 = vpop.permute.xlu0 %462
        %464 = vrot.lane.b32.xlu0 %v406, 126
        %v465 = vpop.permute.xlu0 %464
        %466 = vrot.lane.b32.xlu0 %v407, 126
        %v467 = vpop.permute.xlu0 %466
        %480 = vrot.lane.b32.xlu0 %v396, 125
        %v481 = vpop.permute.xlu0 %480
        %482 = vrot.lane.b32.xlu0 %v397, 125
        %v483 = vpop.permute.xlu0 %482
        %484 = vrot.lane.b32.xlu0 %v398, 125
        %v485 = vpop.permute.xlu0 %484
        %486 = vrot.lane.b32.xlu0 %v399, 125
        %v487 = vpop.permute.xlu0 %486
        %488 = vrot.lane.b32.xlu0 %v400, 125
        %v489 = vpop.permute.xlu0 %488
        %490 = vrot.lane.b32.xlu0 %v401, 125
        %v491 = vpop.permute.xlu0 %490
        %492 = vrot.lane.b32.xlu0 %v402, 125
        %v493 = vpop.permute.xlu0 %492
        %494 = vrot.lane.b32.xlu0 %v403, 125
        %v495 = vpop.permute.xlu0 %494
        %496 = vrot.lane.b32.xlu0 %v404, 125
        %v497 = vpop.permute.xlu0 %496
        %498 = vrot.lane.b32.xlu0 %v405, 125
        %v499 = vpop.permute.xlu0 %498
        %500 = vrot.lane.b32.xlu0 %v406, 125
        %v501 = vpop.permute.xlu0 %500
        %502 = vrot.lane.b32.xlu0 %v407, 125
        %v503 = vpop.permute.xlu0 %502
        %516 = vrot.lane.b32.xlu0 %v396, 124
        %v517 = vpop.permute.xlu0 %516
        %518 = vrot.lane.b32.xlu0 %v397, 124
        %v519 = vpop.permute.xlu0 %518
        %520 = vrot.lane.b32.xlu0 %v398, 124
        %v521 = vpop.permute.xlu0 %520
        %522 = vrot.lane.b32.xlu0 %v399, 124
        %v523 = vpop.permute.xlu0 %522
        %524 = vrot.lane.b32.xlu0 %v400, 124
        %v525 = vpop.permute.xlu0 %524
        %526 = vrot.lane.b32.xlu0 %v401, 124
        %v527 = vpop.permute.xlu0 %526
        %528 = vrot.lane.b32.xlu0 %v402, 124
        %v529 = vpop.permute.xlu0 %528
        %530 = vrot.lane.b32.xlu0 %v403, 124
        %v531 = vpop.permute.xlu0 %530
        %532 = vrot.lane.b32.xlu0 %v404, 124
        %v533 = vpop.permute.xlu0 %532
        %534 = vrot.lane.b32.xlu0 %v405, 124
        %v535 = vpop.permute.xlu0 %534
        %536 = vrot.lane.b32.xlu0 %v406, 124
        %v537 = vpop.permute.xlu0 %536
        %538 = vrot.lane.b32.xlu0 %v407, 124
        %v539 = vpop.permute.xlu0 %538
        %v553 = vperm.slane %v376, 0
        %566 = vrot.lane.b32.xlu0 %v553, 127
        %v567 = vpop.permute.xlu0 %566
        %569 = vrot.lane.b32.xlu0 %v553, 126
        %v570 = vpop.permute.xlu0 %569
        %572 = vrot.lane.b32.xlu0 %v553, 125
        %v573 = vpop.permute.xlu0 %572
        %575 = vrot.lane.b32.xlu0 %v553, 124
        %v576 = vpop.permute.xlu0 %575
        %v579 = vperm.slane %v377, 0
        %581 = vrot.lane.b32.xlu0 %v579, 127
        %v582 = vpop.permute.xlu0 %581
        %584 = vrot.lane.b32.xlu0 %v579, 126
        %v585 = vpop.permute.xlu0 %584
        %587 = vrot.lane.b32.xlu0 %v579, 125
        %v588 = vpop.permute.xlu0 %587
        %590 = vrot.lane.b32.xlu0 %v579, 124
        %v591 = vpop.permute.xlu0 %590
        %v594 = vperm.slane %v378, 0
        %vm596 = vcmask 1040384
        %v597 = vsel %vm596, %v364, %v409
        %v598 = vsel %vm596, %v365, %v411
        %v599 = vsel %vm596, %v366, %v413
        %v600 = vsel %vm596, %v367, %v415
        %v601 = vsel %vm596, %v368, %v417
        %v602 = vsel %vm596, %v369, %v419
        %v603 = vsel %vm596, %v370, %v421
        %v604 = vsel %vm596, %v371, %v423
        %v605 = vsel %vm596, %v372, %v425
        %v606 = vsel %vm596, %v373, %v427
        %v607 = vsel %vm596, %v374, %v429
        %v608 = vsel %vm596, %v375, %v431
        %vm609 = vcmask 1041408
        %v610 = vsel %vm609, %v597, %v445
        %v611 = vsel %vm609, %v598, %v447
        %v612 = vsel %vm609, %v599, %v449
        %v613 = vsel %vm609, %v600, %v451
        %v614 = vsel %vm609, %v601, %v453
        %v615 = vsel %vm609, %v602, %v455
        %v616 = vsel %vm609, %v603, %v457
        %v617 = vsel %vm609, %v604, %v459
        %v618 = vsel %vm609, %v605, %v461
        %v619 = vsel %vm609, %v606, %v463
        %v620 = vsel %vm609, %v607, %v465
        %v621 = vsel %vm609, %v608, %v467
        %vm622 = vcmask 1042432
        %v623 = vsel %vm622, %v610, %v481
        %v624 = vsel %vm622, %v611, %v483
        %v625 = vsel %vm622, %v612, %v485
        %v626 = vsel %vm622, %v613, %v487
        %v627 = vsel %vm622, %v614, %v489
        %v628 = vsel %vm622, %v615, %v491
        %v629 = vsel %vm622, %v616, %v493
        %v630 = vsel %vm622, %v617, %v495
        %v631 = vsel %vm622, %v618, %v497
        %v632 = vsel %vm622, %v619, %v499
        %v633 = vsel %vm622, %v620, %v501
        %v634 = vsel %vm622, %v621, %v503
        %vm635 = vcmask 1043456
        %v636 = vsel %vm635, %v623, %v517
        %v637 = vsel %vm635, %v624, %v519
        %v638 = vsel %vm635, %v625, %v521
        %v639 = vsel %vm635, %v626, %v523
        %v640 = vsel %vm635, %v627, %v525
        %v641 = vsel %vm635, %v628, %v527
        %v642 = vsel %vm635, %v629, %v529
        %v643 = vsel %vm635, %v630, %v531
        %v644 = vsel %vm635, %v631, %v533
        %v645 = vsel %vm635, %v632, %v535
        %v646 = vsel %vm635, %v633, %v537
        %v647 = vsel %vm635, %v634, %v539
        %vm648 = vcmask 1044480
        %v649 = vsel %vm648, %v636, %v397
        %v650 = vsel %vm648, %v637, %v398
        %v651 = vsel %vm648, %v638, %v399
        %v652 = vsel %vm648, %v639, %v400
        %v653 = vsel %vm648, %v640, %v401
        %v654 = vsel %vm648, %v641, %v402
        %v655 = vsel %vm648, %v642, %v403
        %v656 = vsel %vm648, %v643, %v404
        %v657 = vsel %vm648, %v644, %v405
        %v658 = vsel %vm648, %v645, %v406
        %v659 = vsel %vm648, %v646, %v407
        %v660 = vsel %vm648, %v647, %v553
        %vm661 = vcmask 1045504
        %v662 = vsel %vm661, %v649, %v411
        %v663 = vsel %vm661, %v650, %v413
        %v664 = vsel %vm661, %v651, %v415
        %v665 = vsel %vm661, %v652, %v417
        %v666 = vsel %vm661, %v653, %v419
        %v667 = vsel %vm661, %v654, %v421
        %v668 = vsel %vm661, %v655, %v423
        %v669 = vsel %vm661, %v656, %v425
        %v670 = vsel %vm661, %v657, %v427
        %v671 = vsel %vm661, %v658, %v429
        %v672 = vsel %vm661, %v659, %v431
        %v673 = vsel %vm661, %v660, %v567
        %vm674 = vcmask 1046528
        %v675 = vsel %vm674, %v662, %v447
        %v676 = vsel %vm674, %v663, %v449
        %v677 = vsel %vm674, %v664, %v451
        %v678 = vsel %vm674, %v665, %v453
        %v679 = vsel %vm674, %v666, %v455
        %v680 = vsel %vm674, %v667, %v457
        %v681 = vsel %vm674, %v668, %v459
        %v682 = vsel %vm674, %v669, %v461
        %v683 = vsel %vm674, %v670, %v463
        %v684 = vsel %vm674, %v671, %v465
        %v685 = vsel %vm674, %v672, %v467
        %v686 = vsel %vm674, %v673, %v570
        %v687 = vsel %vm596, %v483, %v519
        %v688 = vsel %vm596, %v485, %v521
        %v689 = vsel %vm596, %v487, %v523
        %v690 = vsel %vm596, %v489, %v525
        %v691 = vsel %vm596, %v491, %v527
        %v692 = vsel %vm596, %v493, %v529
        %v693 = vsel %vm596, %v495, %v531
        %v694 = vsel %vm596, %v497, %v533
        %v695 = vsel %vm596, %v499, %v535
        %v696 = vsel %vm596, %v501, %v537
        %v697 = vsel %vm596, %v503, %v539
        %v698 = vsel %vm596, %v573, %v576
        %v699 = vsel %vm609, %v687, %v398
        %v700 = vsel %vm609, %v688, %v399
        %v701 = vsel %vm609, %v689, %v400
        %v702 = vsel %vm609, %v690, %v401
        %v703 = vsel %vm609, %v691, %v402
        %v704 = vsel %vm609, %v692, %v403
        %v705 = vsel %vm609, %v693, %v404
        %v706 = vsel %vm609, %v694, %v405
        %v707 = vsel %vm609, %v695, %v406
        %v708 = vsel %vm609, %v696, %v407
        %v709 = vsel %vm609, %v697, %v553
        %v710 = vsel %vm609, %v698, %v579
        %v711 = vsel %vm622, %v699, %v413
        %v712 = vsel %vm622, %v700, %v415
        %v713 = vsel %vm622, %v701, %v417
        %v714 = vsel %vm622, %v702, %v419
        %v715 = vsel %vm622, %v703, %v421
        %v716 = vsel %vm622, %v704, %v423
        %v717 = vsel %vm622, %v705, %v425
        %v718 = vsel %vm622, %v706, %v427
        %v719 = vsel %vm622, %v707, %v429
        %v720 = vsel %vm622, %v708, %v431
        %v721 = vsel %vm622, %v709, %v567
        %v722 = vsel %vm622, %v710, %v582
        %v723 = vsel %vm635, %v711, %v449
        %v724 = vsel %vm635, %v712, %v451
        %v725 = vsel %vm635, %v713, %v453
        %v726 = vsel %vm635, %v714, %v455
        %v727 = vsel %vm635, %v715, %v457
        %v728 = vsel %vm635, %v716, %v459
        %v729 = vsel %vm635, %v717, %v461
        %v730 = vsel %vm635, %v718, %v463
        %v731 = vsel %vm635, %v719, %v465
        %v732 = vsel %vm635, %v720, %v467
        %v733 = vsel %vm635, %v721, %v570
        %v734 = vsel %vm635, %v722, %v585
        %v735 = vsel %vm648, %v723, %v485
        %v736 = vsel %vm648, %v724, %v487
        %v737 = vsel %vm648, %v725, %v489
        %v738 = vsel %vm648, %v726, %v491
        %v739 = vsel %vm648, %v727, %v493
        %v740 = vsel %vm648, %v728, %v495
        %v741 = vsel %vm648, %v729, %v497
        %v742 = vsel %vm648, %v730, %v499
        %v743 = vsel %vm648, %v731, %v501
        %v744 = vsel %vm648, %v732, %v503
        %v745 = vsel %vm648, %v733, %v573
        %v746 = vsel %vm648, %v734, %v588
        %v747 = vsel %vm661, %v735, %v521
        %v748 = vsel %vm661, %v736, %v523
        %v749 = vsel %vm661, %v737, %v525
        %v750 = vsel %vm661, %v738, %v527
        %v751 = vsel %vm661, %v739, %v529
        %v752 = vsel %vm661, %v740, %v531
        %v753 = vsel %vm661, %v741, %v533
        %v754 = vsel %vm661, %v742, %v535
        %v755 = vsel %vm661, %v743, %v537
        %v756 = vsel %vm661, %v744, %v539
        %v757 = vsel %vm661, %v745, %v576
        %v758 = vsel %vm661, %v746, %v591
        %v759 = vsel %vm674, %v747, %v399
        %v760 = vsel %vm674, %v748, %v400
        %v761 = vsel %vm674, %v749, %v401
        %v762 = vsel %vm674, %v750, %v402
        %v763 = vsel %vm674, %v751, %v403
        %v764 = vsel %vm674, %v752, %v404
        %v765 = vsel %vm674, %v753, %v405
        %v766 = vsel %vm674, %v754, %v406
        %v767 = vsel %vm674, %v755, %v407
        %v768 = vsel %vm674, %v756, %v553
        %v769 = vsel %vm674, %v757, %v579
        %v770 = vsel %vm674, %v758, %v594
        %771 = vrot.lane.b32.xlu0 %v594, 127
        %v772 = vpop.permute.xlu0 %771
        %774 = vrot.lane.b32.xlu0 %v594, 126
        %v775 = vpop.permute.xlu0 %774
        %777 = vrot.lane.b32.xlu0 %v594, 125
        %v778 = vpop.permute.xlu0 %777
        %v781 = vperm.slane %v379, 0
        %782 = vrot.lane.b32.xlu0 %v400, 1
        %v783 = vpop.permute.xlu0 %782
        %784 = vrot.lane.b32.xlu0 %v401, 1
        %v785 = vpop.permute.xlu0 %784
        %786 = vrot.lane.b32.xlu0 %v402, 1
        %v787 = vpop.permute.xlu0 %786
        %788 = vrot.lane.b32.xlu0 %v403, 1
        %v789 = vpop.permute.xlu0 %788
        %790 = vrot.lane.b32.xlu0 %v404, 1
        %v791 = vpop.permute.xlu0 %790
        %792 = vrot.lane.b32.xlu0 %v405, 1
        %v793 = vpop.permute.xlu0 %792
        %794 = vrot.lane.b32.xlu0 %v406, 1
        %v795 = vpop.permute.xlu0 %794
        %796 = vrot.lane.b32.xlu0 %v407, 1
        %v797 = vpop.permute.xlu0 %796
        %798 = vrot.lane.b32.xlu0 %v553, 1
        %v799 = vpop.permute.xlu0 %798
        %800 = vrot.lane.b32.xlu0 %v579, 1
        %v801 = vpop.permute.xlu0 %800
        %802 = vrot.lane.b32.xlu0 %v594, 1
        %v803 = vpop.permute.xlu0 %802
        %804 = vrot.lane.b32.xlu0 %v781, 1
        %v805 = vpop.permute.xlu0 %804
        %819 = vrot.lane.b32.xlu0 %v781, 127
        %v820 = vpop.permute.xlu0 %819
        %822 = vrot.lane.b32.xlu0 %v781, 126
        %v823 = vpop.permute.xlu0 %822
        %825 = vrot.lane.b32.xlu0 %v781, 125
        %v826 = vpop.permute.xlu0 %825
        %v827 = vsel %vm596, %v376, %v567
        %v828 = vsel %vm596, %v377, %v582
        %v829 = vsel %vm596, %v378, %v772
        %v830 = vsel %vm609, %v827, %v570
        %v831 = vsel %vm609, %v828, %v585
        %v832 = vsel %vm609, %v829, %v775
        %v833 = vsel %vm622, %v830, %v573
        %v834 = vsel %vm622, %v831, %v588
        %v835 = vsel %vm622, %v832, %v778
        %v836 = vsel %vm635, %v626, %v783
        %v837 = vsel %vm635, %v627, %v785
        %v838 = vsel %vm635, %v628, %v787
        %v839 = vsel %vm635, %v629, %v789
        %v840 = vsel %vm635, %v630, %v791
        %v841 = vsel %vm635, %v631, %v793
        %v842 = vsel %vm635, %v632, %v795
        %v843 = vsel %vm635, %v633, %v797
        %v844 = vsel %vm635, %v634, %v799
        %v845 = vsel %vm635, %v833, %v801
        %v846 = vsel %vm635, %v834, %v803
        %v847 = vsel %vm635, %v835, %v805
        %v848 = vsel %vm648, %v836, %v400
        %v849 = vsel %vm648, %v837, %v401
        %v850 = vsel %vm648, %v838, %v402
        %v851 = vsel %vm648, %v839, %v403
        %v852 = vsel %vm648, %v840, %v404
        %v853 = vsel %vm648, %v841, %v405
        %v854 = vsel %vm648, %v842, %v406
        %v855 = vsel %vm648, %v843, %v407
        %v856 = vsel %vm648, %v844, %v553
        %v857 = vsel %vm648, %v845, %v579
        %v858 = vsel %vm648, %v846, %v594
        %v859 = vsel %vm648, %v847, %v781
        %v860 = vsel %vm661, %v848, %v417
        %v861 = vsel %vm661, %v849, %v419
        %v862 = vsel %vm661, %v850, %v421
        %v863 = vsel %vm661, %v851, %v423
        %v864 = vsel %vm661, %v852, %v425
        %v865 = vsel %vm661, %v853, %v427
        %v866 = vsel %vm661, %v854, %v429
        %v867 = vsel %vm661, %v855, %v431
        %v868 = vsel %vm661, %v856, %v567
        %v869 = vsel %vm661, %v857, %v582
        %v870 = vsel %vm661, %v858, %v772
        %v871 = vsel %vm661, %v859, %v820
        %v872 = vsel %vm674, %v860, %v453
        %v873 = vsel %vm674, %v861, %v455
        %v874 = vsel %vm674, %v862, %v457
        %v875 = vsel %vm674, %v863, %v459
        %v876 = vsel %vm674, %v864, %v461
        %v877 = vsel %vm674, %v865, %v463
        %v878 = vsel %vm674, %v866, %v465
        %v879 = vsel %vm674, %v867, %v467
        %v880 = vsel %vm674, %v868, %v570
        %v881 = vsel %vm674, %v869, %v585
        %v882 = vsel %vm674, %v870, %v775
        %v883 = vsel %vm674, %v871, %v823
        %896 = vrot.lane.b32.xlu0 %v872, 127
        %v897 = vpop.permute.xlu0 %896
        %898 = vrot.lane.b32.xlu0 %v489, 127
        %v899 = vpop.permute.xlu0 %898
        %900 = vrot.lane.b32.xlu0 %v873, 127
        %v901 = vpop.permute.xlu0 %900
        %902 = vrot.lane.b32.xlu0 %v491, 127
        %v903 = vpop.permute.xlu0 %902
        %904 = vrot.lane.b32.xlu0 %v874, 127
        %v905 = vpop.permute.xlu0 %904
        %906 = vrot.lane.b32.xlu0 %v493, 127
        %v907 = vpop.permute.xlu0 %906
        %908 = vrot.lane.b32.xlu0 %v875, 127
        %v909 = vpop.permute.xlu0 %908
        %910 = vrot.lane.b32.xlu0 %v495, 127
        %v911 = vpop.permute.xlu0 %910
        %912 = vrot.lane.b32.xlu0 %v876, 127
        %v913 = vpop.permute.xlu0 %912
        %914 = vrot.lane.b32.xlu0 %v497, 127
        %v915 = vpop.permute.xlu0 %914
        %916 = vrot.lane.b32.xlu0 %v877, 127
        %v917 = vpop.permute.xlu0 %916
        %918 = vrot.lane.b32.xlu0 %v499, 127
        %v919 = vpop.permute.xlu0 %918
        %920 = vrot.lane.b32.xlu0 %v878, 127
        %v921 = vpop.permute.xlu0 %920
        %922 = vrot.lane.b32.xlu0 %v501, 127
        %v923 = vpop.permute.xlu0 %922
        %924 = vrot.lane.b32.xlu0 %v879, 127
        %v925 = vpop.permute.xlu0 %924
        %926 = vrot.lane.b32.xlu0 %v503, 127
        %v927 = vpop.permute.xlu0 %926
        %928 = vrot.lane.b32.xlu0 %v880, 127
        %v929 = vpop.permute.xlu0 %928
        %930 = vrot.lane.b32.xlu0 %v573, 127
        %v931 = vpop.permute.xlu0 %930
        %932 = vrot.lane.b32.xlu0 %v881, 127
        %v933 = vpop.permute.xlu0 %932
        %934 = vrot.lane.b32.xlu0 %v588, 127
        %v935 = vpop.permute.xlu0 %934
        %936 = vrot.lane.b32.xlu0 %v882, 127
        %v937 = vpop.permute.xlu0 %936
        %938 = vrot.lane.b32.xlu0 %v778, 127
        %v939 = vpop.permute.xlu0 %938
        %940 = vrot.lane.b32.xlu0 %v883, 127
        %v941 = vpop.permute.xlu0 %940
        %942 = vrot.lane.b32.xlu0 %v826, 127
        %v943 = vpop.permute.xlu0 %942
        %948 = vrot.lane.b32.xlu0 %v676, 12
        %v949 = vpop.permute.xlu0 %948
        %950 = vrot.lane.b32.xlu0 %v760, 12
        %v951 = vpop.permute.xlu0 %950
        %952 = vrot.lane.b32.xlu0 %v901, 12
        %v953 = vpop.permute.xlu0 %952
        %954 = vrot.lane.b32.xlu0 %v903, 12
        %v955 = vpop.permute.xlu0 %954
        %962 = vrot.lane.b32.xlu0 %v677, 24
        %v963 = vpop.permute.xlu0 %962
        %964 = vrot.lane.b32.xlu0 %v761, 24
        %v965 = vpop.permute.xlu0 %964
        %966 = vrot.lane.b32.xlu0 %v905, 24
        %v967 = vpop.permute.xlu0 %966
        %968 = vrot.lane.b32.xlu0 %v907, 24
        %v969 = vpop.permute.xlu0 %968
        %976 = vrot.lane.b32.xlu0 %v678, 36
        %v977 = vpop.permute.xlu0 %976
        %978 = vrot.lane.b32.xlu0 %v762, 36
        %v979 = vpop.permute.xlu0 %978
        %980 = vrot.lane.b32.xlu0 %v909, 36
        %v981 = vpop.permute.xlu0 %980
        %982 = vrot.lane.b32.xlu0 %v911, 36
        %v983 = vpop.permute.xlu0 %982
        %990 = vrot.lane.b32.xlu0 %v679, 48
        %v991 = vpop.permute.xlu0 %990
        %992 = vrot.lane.b32.xlu0 %v763, 48
        %v993 = vpop.permute.xlu0 %992
        %994 = vrot.lane.b32.xlu0 %v913, 48
        %v995 = vpop.permute.xlu0 %994
        %996 = vrot.lane.b32.xlu0 %v915, 48
        %v997 = vpop.permute.xlu0 %996
        %1004 = vrot.lane.b32.xlu0 %v680, 60
        %v1005 = vpop.permute.xlu0 %1004
        %1006 = vrot.lane.b32.xlu0 %v764, 60
        %v1007 = vpop.permute.xlu0 %1006
        %1008 = vrot.lane.b32.xlu0 %v917, 60
        %v1009 = vpop.permute.xlu0 %1008
        %1010 = vrot.lane.b32.xlu0 %v919, 60
        %v1011 = vpop.permute.xlu0 %1010
        %1018 = vrot.lane.b32.xlu0 %v681, 72
        %v1019 = vpop.permute.xlu0 %1018
        %1020 = vrot.lane.b32.xlu0 %v765, 72
        %v1021 = vpop.permute.xlu0 %1020
        %1022 = vrot.lane.b32.xlu0 %v921, 72
        %v1023 = vpop.permute.xlu0 %1022
        %1024 = vrot.lane.b32.xlu0 %v923, 72
        %v1025 = vpop.permute.xlu0 %1024
        %1032 = vrot.lane.b32.xlu0 %v682, 84
        %v1033 = vpop.permute.xlu0 %1032
        %1034 = vrot.lane.b32.xlu0 %v766, 84
        %v1035 = vpop.permute.xlu0 %1034
        %1036 = vrot.lane.b32.xlu0 %v925, 84
        %v1037 = vpop.permute.xlu0 %1036
        %1038 = vrot.lane.b32.xlu0 %v927, 84
        %v1039 = vpop.permute.xlu0 %1038
        %1046 = vrot.lane.b32.xlu0 %v683, 96
        %v1047 = vpop.permute.xlu0 %1046
        %1048 = vrot.lane.b32.xlu0 %v767, 96
        %v1049 = vpop.permute.xlu0 %1048
        %1050 = vrot.lane.b32.xlu0 %v929, 96
        %v1051 = vpop.permute.xlu0 %1050
        %1052 = vrot.lane.b32.xlu0 %v931, 96
        %v1053 = vpop.permute.xlu0 %1052
        %1060 = vrot.lane.b32.xlu0 %v684, 108
        %v1061 = vpop.permute.xlu0 %1060
        %1062 = vrot.lane.b32.xlu0 %v768, 108
        %v1063 = vpop.permute.xlu0 %1062
        %1064 = vrot.lane.b32.xlu0 %v933, 108
        %v1065 = vpop.permute.xlu0 %1064
        %1066 = vrot.lane.b32.xlu0 %v935, 108
        %v1067 = vpop.permute.xlu0 %1066
        %1074 = vrot.lane.b32.xlu0 %v685, 120
        %v1075 = vpop.permute.xlu0 %1074
        %1076 = vrot.lane.b32.xlu0 %v769, 120
        %v1077 = vpop.permute.xlu0 %1076
        %1078 = vrot.lane.b32.xlu0 %v937, 120
        %v1079 = vpop.permute.xlu0 %1078
        %1080 = vrot.lane.b32.xlu0 %v939, 120
        %v1081 = vpop.permute.xlu0 %1080
        %1088 = vrot.lane.b32.xlu0 %v686, 4
        %v1089 = vpop.permute.xlu0 %1088
        %1090 = vrot.lane.b32.xlu0 %v770, 4
        %v1091 = vpop.permute.xlu0 %1090
        %1092 = vrot.lane.b32.xlu0 %v941, 4
        %v1093 = vpop.permute.xlu0 %1092
        %1094 = vrot.lane.b32.xlu0 %v943, 4
        %v1095 = vpop.permute.xlu0 %1094
        %vm1100 = vcmask 97280
        %v1101 = vsel %vm1100, %v675, %v949
        %v1102 = vsel %vm1100, %v759, %v951
        %v1103 = vsel %vm1100, %v897, %v953
        %v1104 = vsel %vm1100, %v899, %v955
        %vm1105 = vcmask 195584
        %v1106 = vsel %vm1105, %v1101, %v963
        %v1107 = vsel %vm1105, %v1102, %v965
        %v1108 = vsel %vm1105, %v1103, %v967
        %v1109 = vsel %vm1105, %v1104, %v969
        %vm1110 = vcmask 293888
        %v1111 = vsel %vm1110, %v1106, %v977
        %v1112 = vsel %vm1110, %v1107, %v979
        %v1113 = vsel %vm1110, %v1108, %v981
        %v1114 = vsel %vm1110, %v1109, %v983
        %vm1115 = vcmask 392192
        %v1116 = vsel %vm1115, %v1111, %v991
        %v1117 = vsel %vm1115, %v1112, %v993
        %v1118 = vsel %vm1115, %v1113, %v995
        %v1119 = vsel %vm1115, %v1114, %v997
        %vm1120 = vcmask 490496
        %v1121 = vsel %vm1120, %v1116, %v1005
        %v1122 = vsel %vm1120, %v1117, %v1007
        %v1123 = vsel %vm1120, %v1118, %v1009
        %v1124 = vsel %vm1120, %v1119, %v1011
        %vm1125 = vcmask 588800
        %v1126 = vsel %vm1125, %v1121, %v1019
        %v1127 = vsel %vm1125, %v1122, %v1021
        %v1128 = vsel %vm1125, %v1123, %v1023
        %v1129 = vsel %vm1125, %v1124, %v1025
        %vm1130 = vcmask 687104
        %v1131 = vsel %vm1130, %v1126, %v1033
        %v1132 = vsel %vm1130, %v1127, %v1035
        %v1133 = vsel %vm1130, %v1128, %v1037
        %v1134 = vsel %vm1130, %v1129, %v1039
        %vm1135 = vcmask 785408
        %v1136 = vsel %vm1135, %v1131, %v1047
        %v1137 = vsel %vm1135, %v1132, %v1049
        %v1138 = vsel %vm1135, %v1133, %v1051
        %v1139 = vsel %vm1135, %v1134, %v1053
        %vm1140 = vcmask 883712
        %v1141 = vsel %vm1140, %v1136, %v1061
        %v1142 = vsel %vm1140, %v1137, %v1063
        %v1143 = vsel %vm1140, %v1138, %v1065
        %v1144 = vsel %vm1140, %v1139, %v1067
        %vm1145 = vcmask 982016
        %v1146 = vsel %vm1145, %v1141, %v1075
        %v1147 = vsel %vm1145, %v1142, %v1077
        %v1148 = vsel %vm1145, %v1143, %v1079
        %v1149 = vsel %vm1145, %v1144, %v1081
        %vm1150 = vcmask 31744
        %v1151 = vsel %vm1150, %v1075, %v1089
        %v1152 = vsel %vm1150, %v1077, %v1091
        %v1153 = vsel %vm1150, %v1079, %v1093
        %v1154 = vsel %vm1150, %v1081, %v1095
        %1156 = vset.pattern.permute.xlu0 0
        %1157 = vperm.xlu0 %1156, %v382
        %v1158 = vpop.permute.xlu0 %1157
        %1161 = vset.pattern.permute.xlu0 0
        %1162 = vperm.xlu0 %1161, %v383
        %v1163 = vpop.permute.xlu0 %1162
        %vm1165 = vcmask 203776
        %v1167 = vsel %vm1165, %v380, 0
        %v1170 = vsel %vm1165, %v381, 0
        %v1173 = vsel %vm596, %v1149, 0
        %v1176 = vsel %vm596, %v1154, 0
        %1178 = vmatpush.msra.mxu0 0.0
        %1179 = vmatpush.msra.mxu0 0.0
        %1180 = vmatpush.msra.mxu0 0.0
        %1181 = vmatpush.msra.mxu0 0.0
        %1182 = vmatpush.msra.mxu0 0.0
        %1183 = vmatpush.msra.mxu0 0.0
        %1184 = vmatpush.msra.mxu0 0.0
        %1185 = vmatpush.msra.mxu0 0.0
        %1186 = vmatpush.msra.mxu0 0.0
        %1187 = vmatpush.msra.mxu0 0.0
        %1188 = vmatpush.msra.mxu0 0.0
        %1189 = vmatpush.msra.mxu0 0.0
        %1190 = vmatpush.msra.mxu0 %v1173
        %1191 = vmatpush.msra.mxu0 %v1148
        %1192 = vmatpush.msra.mxu0 %v1147
        %1193 = vmatpush.msra.mxu0 %v1146
        %1194 = vmatmul.f32.gmra.mxu0 %v1167
        %v1195 = vpop.f32.mrf.mxu0
        %v1196 = vadd.f32 %v1158, %v1195
        %1197 = vmatmul.f32.gmra.mxu0 %v1170
        %v1198 = vpop.f32.mrf.mxu0
        %v1199 = vadd.f32 %v1163, %v1198
        %1200 = vdwg.mxu0
        %1201 = vmatpush.msra.mxu0 0.0
        %1202 = vmatpush.msra.mxu0 0.0
        %1203 = vmatpush.msra.mxu0 0.0
        %1204 = vmatpush.msra.mxu0 0.0
        %1205 = vmatpush.msra.mxu0 0.0
        %1206 = vmatpush.msra.mxu0 0.0
        %1207 = vmatpush.msra.mxu0 0.0
        %1208 = vmatpush.msra.mxu0 0.0
        %1209 = vmatpush.msra.mxu0 0.0
        %1210 = vmatpush.msra.mxu0 0.0
        %1211 = vmatpush.msra.mxu0 0.0
        %1212 = vmatpush.msra.mxu0 0.0
        %1213 = vmatpush.msra.mxu0 %v1176
        %1214 = vmatpush.msra.mxu0 %v1153
        %1215 = vmatpush.msra.mxu0 %v1152
        %1216 = vmatpush.msra.mxu0 %v1151
        %1217 = vmatmul.f32.gmra.mxu0 %v1167
        %v1218 = vpop.f32.mrf.mxu0
        %v1219 = vadd.f32 %v1158, %v1218
        %1220 = vmatmul.f32.gmra.mxu0 %v1170
        %v1221 = vpop.f32.mrf.mxu0
        %v1222 = vadd.f32 %v1163, %v1221
        %1223 = vdwg.mxu0
        %v1224 = vmax.f32 %v1196, 0.0
        %v1225 = vmax.f32 %v1219, 0.0
        %v1226 = vmax.f32 %v1199, 0.0
        %v1227 = vmax.f32 %v1222, 0.0
        %1230 = vrot.lane.b32.xlu0 %v1224, 116
        %v1231 = vpop.permute.xlu0 %1230
        %1232 = vrot.lane.b32.xlu0 %v1226, 116
        %v1233 = vpop.permute.xlu0 %1232
        %1236 = vrot.lane.b32.xlu0 %v1224, 104
        %v1237 = vpop.permute.xlu0 %1236
        %1238 = vrot.lane.b32.xlu0 %v1226, 104
        %v1239 = vpop.permute.xlu0 %1238
        %1242 = vrot.lane.b32.xlu0 %v1224, 92
        %v1243 = vpop.permute.xlu0 %1242
        %1244 = vrot.lane.b32.xlu0 %v1226, 92
        %v1245 = vpop.permute.xlu0 %1244
        %1248 = vrot.lane.b32.xlu0 %v1224, 80
        %v1249 = vpop.permute.xlu0 %1248
        %1250 = vrot.lane.b32.xlu0 %v1226, 80
        %v1251 = vpop.permute.xlu0 %1250
        %1254 = vrot.lane.b32.xlu0 %v1224, 68
        %v1255 = vpop.permute.xlu0 %1254
        %1256 = vrot.lane.b32.xlu0 %v1226, 68
        %v1257 = vpop.permute.xlu0 %1256
        %1260 = vrot.lane.b32.xlu0 %v1224, 56
        %v1261 = vpop.permute.xlu0 %1260
        %1262 = vrot.lane.b32.xlu0 %v1226, 56
        %v1263 = vpop.permute.xlu0 %1262
        %1266 = vrot.lane.b32.xlu0 %v1224, 44
        %v1267 = vpop.permute.xlu0 %1266
        %1268 = vrot.lane.b32.xlu0 %v1226, 44
        %v1269 = vpop.permute.xlu0 %1268
        %1272 = vrot.lane.b32.xlu0 %v1224, 32
        %v1273 = vpop.permute.xlu0 %1272
        %1274 = vrot.lane.b32.xlu0 %v1226, 32
        %v1275 = vpop.permute.xlu0 %1274
        %1278 = vrot.lane.b32.xlu0 %v1224, 20
        %v1279 = vpop.permute.xlu0 %1278
        %1280 = vrot.lane.b32.xlu0 %v1226, 20
        %v1281 = vpop.permute.xlu0 %1280
        %1286 = vrot.lane.b32.xlu0 %v1224, 8
        %v1287 = vpop.permute.xlu0 %1286
        %1288 = vrot.lane.b32.xlu0 %v1225, 8
        %v1289 = vpop.permute.xlu0 %1288
        %1290 = vrot.lane.b32.xlu0 %v1226, 8
        %v1291 = vpop.permute.xlu0 %1290
        %1292 = vrot.lane.b32.xlu0 %v1227, 8
        %v1293 = vpop.permute.xlu0 %1292
        %vm1294 = vcmask 64512
        %v1295 = vsel %vm1294, %v1287, %v1289
        %v1296 = vsel %vm1294, %v1291, %v1293
        %1299 = vrot.lane.b32.xlu0 %v1225, 124
        %v1300 = vpop.permute.xlu0 %1299
        %1301 = vrot.lane.b32.xlu0 %v1227, 124
        %v1302 = vpop.permute.xlu0 %1301
        %v1305 = vmax.f32 %v1224, %v1231
        %v1306 = vmax.f32 %v1226, %v1233
        %1309 = vrot.lane.b32.xlu0 %v1305, 127
        %v1310 = vpop.permute.xlu0 %1309
        %1311 = vrot.lane.b32.xlu0 %v1306, 127
        %v1312 = vpop.permute.xlu0 %1311
        %v1315 = vmax.f32 %v1305, %v1310
        %v1316 = vmax.f32 %v1306, %v1312
        %1319 = vrot.lane.b32.xlu0 %v1315, 127
        %v1320 = vpop.permute.xlu0 %1319
        %1321 = vrot.lane.b32.xlu0 %v1316, 127
        %v1322 = vpop.permute.xlu0 %1321
        %1325 = vrot.lane.b32.xlu0 %v1315, 126
        %v1326 = vpop.permute.xlu0 %1325
        %1327 = vrot.lane.b32.xlu0 %v1316, 126
        %v1328 = vpop.permute.xlu0 %1327
        %1331 = vrot.lane.b32.xlu0 %v1315, 125
        %v1332 = vpop.permute.xlu0 %1331
        %1333 = vrot.lane.b32.xlu0 %v1316, 125
        %v1334 = vpop.permute.xlu0 %1333
        %1337 = vrot.lane.b32.xlu0 %v1315, 124
        %v1338 = vpop.permute.xlu0 %1337
        %1339 = vrot.lane.b32.xlu0 %v1316, 124
        %v1340 = vpop.permute.xlu0 %1339
        %1343 = vrot.lane.b32.xlu0 %v1315, 123
        %v1344 = vpop.permute.xlu0 %1343
        %1345 = vrot.lane.b32.xlu0 %v1316, 123
        %v1346 = vpop.permute.xlu0 %1345
        %vm1349 = vcmask 7168
        %v1350 = vsel %vm1349, %v1315, %v1320
        %v1351 = vsel %vm1349, %v1316, %v1322
        %vm1352 = vcmask 15360
        %v1353 = vsel %vm1352, %v1350, %v1326
        %v1354 = vsel %vm1352, %v1351, %v1328
        %vm1355 = vcmask 23552
        %v1356 = vsel %vm1355, %v1353, %v1332
        %v1357 = vsel %vm1355, %v1354, %v1334
        %v1358 = vsel %vm1150, %v1356, %v1338
        %v1359 = vsel %vm1150, %v1357, %v1340
        %vm1360 = vcmask 39936
        %v1361 = vsel %vm1360, %v1358, %v1344
        %v1362 = vsel %vm1360, %v1359, %v1346
        %v1363 = vmax.f32 %v1237, %v1243
        %v1364 = vmax.f32 %v1239, %v1245
        %1367 = vrot.lane.b32.xlu0 %v1363, 127
        %v1368 = vpop.permute.xlu0 %1367
        %1369 = vrot.lane.b32.xlu0 %v1364, 127
        %v1370 = vpop.permute.xlu0 %1369
        %v1373 = vmax.f32 %v1363, %v1368
        %v1374 = vmax.f32 %v1364, %v1370
        %1377 = vrot.lane.b32.xlu0 %v1373, 127
        %v1378 = vpop.permute.xlu0 %1377
        %1379 = vrot.lane.b32.xlu0 %v1374, 127
        %v1380 = vpop.permute.xlu0 %1379
        %1383 = vrot.lane.b32.xlu0 %v1373, 126
        %v1384 = vpop.permute.xlu0 %1383
        %1385 = vrot.lane.b32.xlu0 %v1374, 126
        %v1386 = vpop.permute.xlu0 %1385
        %1389 = vrot.lane.b32.xlu0 %v1373, 125
        %v1390 = vpop.permute.xlu0 %1389
        %1391 = vrot.lane.b32.xlu0 %v1374, 125
        %v1392 = vpop.permute.xlu0 %1391
        %1395 = vrot.lane.b32.xlu0 %v1373, 124
        %v1396 = vpop.permute.xlu0 %1395
        %1397 = vrot.lane.b32.xlu0 %v1374, 124
        %v1398 = vpop.permute.xlu0 %1397
        %1401 = vrot.lane.b32.xlu0 %v1373, 123
        %v1402 = vpop.permute.xlu0 %1401
        %1403 = vrot.lane.b32.xlu0 %v1374, 123
        %v1404 = vpop.permute.xlu0 %1403
        %v1407 = vsel %vm1349, %v1373, %v1378
        %v1408 = vsel %vm1349, %v1374, %v1380
        %v1409 = vsel %vm1352, %v1407, %v1384
        %v1410 = vsel %vm1352, %v1408, %v1386
        %v1411 = vsel %vm1355, %v1409, %v1390
        %v1412 = vsel %vm1355, %v1410, %v1392
        %v1413 = vsel %vm1150, %v1411, %v1396
        %v1414 = vsel %vm1150, %v1412, %v1398
        %v1415 = vsel %vm1360, %v1413, %v1402
        %v1416 = vsel %vm1360, %v1414, %v1404
        %v1417 = vmax.f32 %v1249, %v1255
        %v1418 = vmax.f32 %v1251, %v1257
        %1421 = vrot.lane.b32.xlu0 %v1417, 127
        %v1422 = vpop.permute.xlu0 %1421
        %1423 = vrot.lane.b32.xlu0 %v1418, 127
        %v1424 = vpop.permute.xlu0 %1423
        %v1427 = vmax.f32 %v1417, %v1422
        %v1428 = vmax.f32 %v1418, %v1424
        %1431 = vrot.lane.b32.xlu0 %v1427, 127
        %v1432 = vpop.permute.xlu0 %1431
        %1433 = vrot.lane.b32.xlu0 %v1428, 127
        %v1434 = vpop.permute.xlu0 %1433
        %1437 = vrot.lane.b32.xlu0 %v1427, 126
        %v1438 = vpop.permute.xlu0 %1437
        %1439 = vrot.lane.b32.xlu0 %v1428, 126
        %v1440 = vpop.permute.xlu0 %1439
        %1443 = vrot.lane.b32.xlu0 %v1427, 125
        %v1444 = vpop.permute.xlu0 %1443
        %1445 = vrot.lane.b32.xlu0 %v1428, 125
        %v1446 = vpop.permute.xlu0 %1445
        %1449 = vrot.lane.b32.xlu0 %v1427, 124
        %v1450 = vpop.permute.xlu0 %1449
        %1451 = vrot.lane.b32.xlu0 %v1428, 124
        %v1452 = vpop.permute.xlu0 %1451
        %1455 = vrot.lane.b32.xlu0 %v1427, 123
        %v1456 = vpop.permute.xlu0 %1455
        %1457 = vrot.lane.b32.xlu0 %v1428, 123
        %v1458 = vpop.permute.xlu0 %1457
        %v1461 = vsel %vm1349, %v1427, %v1432
        %v1462 = vsel %vm1349, %v1428, %v1434
        %v1463 = vsel %vm1352, %v1461, %v1438
        %v1464 = vsel %vm1352, %v1462, %v1440
        %v1465 = vsel %vm1355, %v1463, %v1444
        %v1466 = vsel %vm1355, %v1464, %v1446
        %v1467 = vsel %vm1150, %v1465, %v1450
        %v1468 = vsel %vm1150, %v1466, %v1452
        %v1469 = vsel %vm1360, %v1467, %v1456
        %v1470 = vsel %vm1360, %v1468, %v1458
        %v1471 = vmax.f32 %v1261, %v1267
        %v1472 = vmax.f32 %v1263, %v1269
        %1475 = vrot.lane.b32.xlu0 %v1471, 127
        %v1476 = vpop.permute.xlu0 %1475
        %1477 = vrot.lane.b32.xlu0 %v1472, 127
        %v1478 = vpop.permute.xlu0 %1477
        %v1481 = vmax.f32 %v1471, %v1476
        %v1482 = vmax.f32 %v1472, %v1478
        %1485 = vrot.lane.b32.xlu0 %v1481, 127
        %v1486 = vpop.permute.xlu0 %1485
        %1487 = vrot.lane.b32.xlu0 %v1482, 127
        %v1488 = vpop.permute.xlu0 %1487
        %1491 = vrot.lane.b32.xlu0 %v1481, 126
        %v1492 = vpop.permute.xlu0 %1491
        %1493 = vrot.lane.b32.xlu0 %v1482, 126
        %v1494 = vpop.permute.xlu0 %1493
        %1497 = vrot.lane.b32.xlu0 %v1481, 125
        %v1498 = vpop.permute.xlu0 %1497
        %1499 = vrot.lane.b32.xlu0 %v1482, 125
        %v1500 = vpop.permute.xlu0 %1499
        %1503 = vrot.lane.b32.xlu0 %v1481, 124
        %v1504 = vpop.permute.xlu0 %1503
        %1505 = vrot.lane.b32.xlu0 %v1482, 124
        %v1506 = vpop.permute.xlu0 %1505
        %1509 = vrot.lane.b32.xlu0 %v1481, 123
        %v1510 = vpop.permute.xlu0 %1509
        %1511 = vrot.lane.b32.xlu0 %v1482, 123
        %v1512 = vpop.permute.xlu0 %1511
        %v1515 = vsel %vm1349, %v1481, %v1486
        %v1516 = vsel %vm1349, %v1482, %v1488
        %v1517 = vsel %vm1352, %v1515, %v1492
        %v1518 = vsel %vm1352, %v1516, %v1494
        %v1519 = vsel %vm1355, %v1517, %v1498
        %v1520 = vsel %vm1355, %v1518, %v1500
        %v1521 = vsel %vm1150, %v1519, %v1504
        %v1522 = vsel %vm1150, %v1520, %v1506
        %v1523 = vsel %vm1360, %v1521, %v1510
        %v1524 = vsel %vm1360, %v1522, %v1512
        %v1525 = vmax.f32 %v1273, %v1279
        %v1526 = vmax.f32 %v1275, %v1281
        %1529 = vrot.lane.b32.xlu0 %v1525, 127
        %v1530 = vpop.permute.xlu0 %1529
        %1531 = vrot.lane.b32.xlu0 %v1526, 127
        %v1532 = vpop.permute.xlu0 %1531
        %v1535 = vmax.f32 %v1525, %v1530
        %v1536 = vmax.f32 %v1526, %v1532
        %1539 = vrot.lane.b32.xlu0 %v1535, 127
        %v1540 = vpop.permute.xlu0 %1539
        %1541 = vrot.lane.b32.xlu0 %v1536, 127
        %v1542 = vpop.permute.xlu0 %1541
        %1545 = vrot.lane.b32.xlu0 %v1535, 126
        %v1546 = vpop.permute.xlu0 %1545
        %1547 = vrot.lane.b32.xlu0 %v1536, 126
        %v1548 = vpop.permute.xlu0 %1547
        %1551 = vrot.lane.b32.xlu0 %v1535, 125
        %v1552 = vpop.permute.xlu0 %1551
        %1553 = vrot.lane.b32.xlu0 %v1536, 125
        %v1554 = vpop.permute.xlu0 %1553
        %1557 = vrot.lane.b32.xlu0 %v1535, 124
        %v1558 = vpop.permute.xlu0 %1557
        %1559 = vrot.lane.b32.xlu0 %v1536, 124
        %v1560 = vpop.permute.xlu0 %1559
        %1563 = vrot.lane.b32.xlu0 %v1535, 123
        %v1564 = vpop.permute.xlu0 %1563
        %1565 = vrot.lane.b32.xlu0 %v1536, 123
        %v1566 = vpop.permute.xlu0 %1565
        %v1569 = vsel %vm1349, %v1535, %v1540
        %v1570 = vsel %vm1349, %v1536, %v1542
        %v1571 = vsel %vm1352, %v1569, %v1546
        %v1572 = vsel %vm1352, %v1570, %v1548
        %v1573 = vsel %vm1355, %v1571, %v1552
        %v1574 = vsel %vm1355, %v1572, %v1554
        %v1575 = vsel %vm1150, %v1573, %v1558
        %v1576 = vsel %vm1150, %v1574, %v1560
        %v1577 = vsel %vm1360, %v1575, %v1564
        %v1578 = vsel %vm1360, %v1576, %v1566
        %v1579 = vmax.f32 %v1295, %v1300
        %v1580 = vmax.f32 %v1296, %v1302
        %1583 = vrot.lane.b32.xlu0 %v1579, 127
        %v1584 = vpop.permute.xlu0 %1583
        %1585 = vrot.lane.b32.xlu0 %v1580, 127
        %v1586 = vpop.permute.xlu0 %1585
        %v1589 = vmax.f32 %v1579, %v1584
        %v1590 = vmax.f32 %v1580, %v1586
        %1593 = vrot.lane.b32.xlu0 %v1589, 127
        %v1594 = vpop.permute.xlu0 %1593
        %1595 = vrot.lane.b32.xlu0 %v1590, 127
        %v1596 = vpop.permute.xlu0 %1595
        %1599 = vrot.lane.b32.xlu0 %v1589, 126
        %v1600 = vpop.permute.xlu0 %1599
        %1601 = vrot.lane.b32.xlu0 %v1590, 126
        %v1602 = vpop.permute.xlu0 %1601
        %1605 = vrot.lane.b32.xlu0 %v1589, 125
        %v1606 = vpop.permute.xlu0 %1605
        %1607 = vrot.lane.b32.xlu0 %v1590, 125
        %v1608 = vpop.permute.xlu0 %1607
        %1611 = vrot.lane.b32.xlu0 %v1589, 124
        %v1612 = vpop.permute.xlu0 %1611
        %1613 = vrot.lane.b32.xlu0 %v1590, 124
        %v1614 = vpop.permute.xlu0 %1613
        %1617 = vrot.lane.b32.xlu0 %v1589, 123
        %v1618 = vpop.permute.xlu0 %1617
        %1619 = vrot.lane.b32.xlu0 %v1590, 123
        %v1620 = vpop.permute.xlu0 %1619
        %v1623 = vsel %vm1349, %v1589, %v1594
        %v1624 = vsel %vm1349, %v1590, %v1596
        %v1625 = vsel %vm1352, %v1623, %v1600
        %v1626 = vsel %vm1352, %v1624, %v1602
        %v1627 = vsel %vm1355, %v1625, %v1606
        %v1628 = vsel %vm1355, %v1626, %v1608
        %v1629 = vsel %vm1150, %v1627, %v1612
        %v1630 = vsel %vm1150, %v1628, %v1614
        %v1631 = vsel %vm1360, %v1629, %v1618
        %v1632 = vsel %vm1360, %v1630, %v1620
        %v1633 = vld [vmem:[#allocation3] sm:$0xff]
        %v1634 = vld [vmem:[#allocation3 + $0x8] sm:$0xff]
        %v1635 = vld [vmem:[#allocation3 + $0x10] sm:$0xff]
        %v1636 = vld [vmem:[#allocation3 + $0x18] sm:$0xff]
        %v1637 = vld [vmem:[#allocation3 + $0x20] sm:$0xf]
        %v1638 = vld [vmem:[#allocation3 + $0x28] sm:$0xf]
        %v1639 = vld [vmem:[%s4] sm:$0xff]
        %v1640 = vld [vmem:[%s4 + $0x8] sm:$0xff]
        %v1641 = vld [vmem:[%s4 + $0x10] sm:$0xf]
        %v1646 = vrot.slane %v1361, 6
        %v1647 = vrot.slane %v1362, 6
        %v1648 = vsel %vm609, %v1646, %v1647
        %v1649 = vrot.slane %v1415, 6
        %v1650 = vrot.slane %v1416, 6
        %v1651 = vsel %vm609, %v1649, %v1650
        %1652 = vrot.lane.b32.xlu0 %v1646, 127
        %v1653 = vpop.permute.xlu0 %1652
        %1654 = vrot.lane.b32.xlu0 %v1648, 127
        %v1655 = vpop.permute.xlu0 %1654
        %1656 = vrot.lane.b32.xlu0 %v1649, 127
        %v1657 = vpop.permute.xlu0 %1656
        %1658 = vrot.lane.b32.xlu0 %v1651, 127
        %v1659 = vpop.permute.xlu0 %1658
        %v1664 = vrot.slane %v1361, 4
        %v1665 = vrot.slane %v1362, 4
        %v1666 = vsel %vm635, %v1664, %v1665
        %v1667 = vrot.slane %v1415, 4
        %v1668 = vrot.slane %v1416, 4
        %v1669 = vsel %vm635, %v1667, %v1668
        %1670 = vrot.lane.b32.xlu0 %v1664, 126
        %v1671 = vpop.permute.xlu0 %1670
        %1672 = vrot.lane.b32.xlu0 %v1666, 126
        %v1673 = vpop.permute.xlu0 %1672
        %1674 = vrot.lane.b32.xlu0 %v1667, 126
        %v1675 = vpop.permute.xlu0 %1674
        %1676 = vrot.lane.b32.xlu0 %v1669, 126
        %v1677 = vpop.permute.xlu0 %1676
        %v1682 = vrot.slane %v1361, 2
        %v1683 = vrot.slane %v1362, 2
        %v1684 = vsel %vm661, %v1682, %v1683
        %v1685 = vrot.slane %v1415, 2
        %v1686 = vrot.slane %v1416, 2
        %v1687 = vsel %vm661, %v1685, %v1686
        %1688 = vrot.lane.b32.xlu0 %v1682, 125
        %v1689 = vpop.permute.xlu0 %1688
        %1690 = vrot.lane.b32.xlu0 %v1684, 125
        %v1691 = vpop.permute.xlu0 %1690
        %1692 = vrot.lane.b32.xlu0 %v1685, 125
        %v1693 = vpop.permute.xlu0 %1692
        %1694 = vrot.lane.b32.xlu0 %v1687, 125
        %v1695 = vpop.permute.xlu0 %1694
        %1699 = vrot.lane.b32.xlu0 %v1361, 124
        %v1700 = vpop.permute.xlu0 %1699
        %1701 = vrot.lane.b32.xlu0 %v1362, 124
        %v1702 = vpop.permute.xlu0 %1701
        %1703 = vrot.lane.b32.xlu0 %v1415, 124
        %v1704 = vpop.permute.xlu0 %1703
        %1705 = vrot.lane.b32.xlu0 %v1416, 124
        %v1706 = vpop.permute.xlu0 %1705
        %v1712 = vrot.slane %v1469, 6
        %v1713 = vrot.slane %v1470, 6
        %v1714 = vsel %vm609, %v1712, %v1713
        %v1719 = vrot.slane %v1469, 4
        %v1720 = vrot.slane %v1470, 4
        %v1721 = vsel %vm635, %v1719, %v1720
        %1722 = vrot.lane.b32.xlu0 %v1667, 127
        %v1723 = vpop.permute.xlu0 %1722
        %1724 = vrot.lane.b32.xlu0 %v1669, 127
        %v1725 = vpop.permute.xlu0 %1724
        %1726 = vrot.lane.b32.xlu0 %v1719, 127
        %v1727 = vpop.permute.xlu0 %1726
        %1728 = vrot.lane.b32.xlu0 %v1721, 127
        %v1729 = vpop.permute.xlu0 %1728
        %v1734 = vrot.slane %v1469, 2
        %v1735 = vrot.slane %v1470, 2
        %v1736 = vsel %vm661, %v1734, %v1735
        %1737 = vrot.lane.b32.xlu0 %v1685, 126
        %v1738 = vpop.permute.xlu0 %1737
        %1739 = vrot.lane.b32.xlu0 %v1687, 126
        %v1740 = vpop.permute.xlu0 %1739
        %1741 = vrot.lane.b32.xlu0 %v1734, 126
        %v1742 = vpop.permute.xlu0 %1741
        %1743 = vrot.lane.b32.xlu0 %v1736, 126
        %v1744 = vpop.permute.xlu0 %1743
        %1748 = vrot.lane.b32.xlu0 %v1415, 125
        %v1749 = vpop.permute.xlu0 %1748
        %1750 = vrot.lane.b32.xlu0 %v1416, 125
        %v1751 = vpop.permute.xlu0 %1750
        %1752 = vrot.lane.b32.xlu0 %v1469, 125
        %v1753 = vpop.permute.xlu0 %1752
        %1754 = vrot.lane.b32.xlu0 %v1470, 125
        %v1755 = vpop.permute.xlu0 %1754
        %1759 = vrot.lane.b32.xlu0 %v1649, 124
        %v1760 = vpop.permute.xlu0 %1759
        %1761 = vrot.lane.b32.xlu0 %v1651, 124
        %v1762 = vpop.permute.xlu0 %1761
        %1763 = vrot.lane.b32.xlu0 %v1712, 124
        %v1764 = vpop.permute.xlu0 %1763
        %1765 = vrot.lane.b32.xlu0 %v1714, 124
        %v1766 = vpop.permute.xlu0 %1765
        %v1773 = vrot.slane %v1523, 4
        %v1774 = vrot.slane %v1524, 4
        %v1775 = vsel %vm635, %v1773, %v1774
        %v1780 = vrot.slane %v1523, 2
        %v1781 = vrot.slane %v1524, 2
        %v1782 = vsel %vm661, %v1780, %v1781
        %1783 = vrot.lane.b32.xlu0 %v1734, 127
        %v1784 = vpop.permute.xlu0 %1783
        %1785 = vrot.lane.b32.xlu0 %v1736, 127
        %v1786 = vpop.permute.xlu0 %1785
        %1787 = vrot.lane.b32.xlu0 %v1780, 127
        %v1788 = vpop.permute.xlu0 %1787
        %1789 = vrot.lane.b32.xlu0 %v1782, 127
        %v1790 = vpop.permute.xlu0 %1789
        %1794 = vrot.lane.b32.xlu0 %v1469, 126
        %v1795 = vpop.permute.xlu0 %1794
        %1796 = vrot.lane.b32.xlu0 %v1470, 126
        %v1797 = vpop.permute.xlu0 %1796
        %1798 = vrot.lane.b32.xlu0 %v1523, 126
        %v1799 = vpop.permute.xlu0 %1798
        %1800 = vrot.lane.b32.xlu0 %v1524, 126
        %v1801 = vpop.permute.xlu0 %1800
        %v1805 = vrot.slane %v1523, 6
        %v1806 = vrot.slane %v1524, 6
        %v1807 = vsel %vm609, %v1805, %v1806
        %1808 = vrot.lane.b32.xlu0 %v1712, 125
        %v1809 = vpop.permute.xlu0 %1808
        %1810 = vrot.lane.b32.xlu0 %v1714, 125
        %v1811 = vpop.permute.xlu0 %1810
        %1812 = vrot.lane.b32.xlu0 %v1805, 125
        %v1813 = vpop.permute.xlu0 %1812
        %1814 = vrot.lane.b32.xlu0 %v1807, 125
        %v1815 = vpop.permute.xlu0 %1814
        %1820 = vrot.lane.b32.xlu0 %v1719, 124
        %v1821 = vpop.permute.xlu0 %1820
        %1822 = vrot.lane.b32.xlu0 %v1721, 124
        %v1823 = vpop.permute.xlu0 %1822
        %1824 = vrot.lane.b32.xlu0 %v1773, 124
        %v1825 = vpop.permute.xlu0 %1824
        %1826 = vrot.lane.b32.xlu0 %v1775, 124
        %v1827 = vpop.permute.xlu0 %1826
        %v1834 = vrot.slane %v1577, 2
        %v1835 = vrot.slane %v1578, 2
        %v1836 = vsel %vm661, %v1834, %v1835
        %v1840 = vsel %vm609, %v1362, %v1653
        %v1841 = vsel %vm609, %v1416, %v1657
        %v1842 = vsel %vm635, %v1655, %v1671
        %v1843 = vsel %vm635, %v1659, %v1675
        %v1844 = vsel %vm661, %v1673, %v1689
        %v1845 = vsel %vm661, %v1677, %v1693
        %v1846 = vsel %vm609, %v1702, %v1649
        %v1847 = vsel %vm609, %v1706, %v1712
        %v1848 = vsel %vm635, %v1651, %v1723
        %v1849 = vsel %vm635, %v1714, %v1727
        %v1850 = vsel %vm661, %v1725, %v1738
        %v1851 = vsel %vm661, %v1729, %v1742
        %v1852 = vsel %vm609, %v1751, %v1760
        %v1853 = vsel %vm609, %v1755, %v1764
        %v1854 = vsel %vm635, %v1762, %v1719
        %v1855 = vsel %vm635, %v1766, %v1773
        %v1856 = vsel %vm661, %v1721, %v1784
        %v1857 = vsel %vm661, %v1775, %v1788
        %v1858 = vsel %vm609, %v1797, %v1809
        %v1859 = vsel %vm609, %v1801, %v1813
        %v1860 = vsel %vm635, %v1811, %v1821
        %v1861 = vsel %vm635, %v1815, %v1825
        %v1862 = vsel %vm661, %v1823, %v1780
        %v1863 = vsel %vm661, %v1827, %v1834
        %v1864 = vrot.slane %v1577, 6
        %v1865 = vrot.slane %v1578, 6
        %v1866 = vsel %vm609, %v1864, %v1865
        %1867 = vrot.lane.b32.xlu0 %v1805, 127
        %v1868 = vpop.permute.xlu0 %1867
        %1869 = vrot.lane.b32.xlu0 %v1807, 127
        %v1870 = vpop.permute.xlu0 %1869
        %1871 = vrot.lane.b32.xlu0 %v1864, 127
        %v1872 = vpop.permute.xlu0 %1871
        %1873 = vrot.lane.b32.xlu0 %v1866, 127
        %v1874 = vpop.permute.xlu0 %1873
        %v1879 = vrot.slane %v1577, 4
        %v1880 = vrot.slane %v1578, 4
        %v1881 = vsel %vm635, %v1879, %v1880
        %1882 = vrot.lane.b32.xlu0 %v1773, 126
        %v1883 = vpop.permute.xlu0 %1882
        %1884 = vrot.lane.b32.xlu0 %v1775, 126
        %v1885 = vpop.permute.xlu0 %1884
        %1886 = vrot.lane.b32.xlu0 %v1879, 126
        %v1887 = vpop.permute.xlu0 %1886
        %1888 = vrot.lane.b32.xlu0 %v1881, 126
        %v1889 = vpop.permute.xlu0 %1888
        %1894 = vrot.lane.b32.xlu0 %v1780, 125
        %v1895 = vpop.permute.xlu0 %1894
        %1896 = vrot.lane.b32.xlu0 %v1782, 125
        %v1897 = vpop.permute.xlu0 %1896
        %1898 = vrot.lane.b32.xlu0 %v1834, 125
        %v1899 = vpop.permute.xlu0 %1898
        %1900 = vrot.lane.b32.xlu0 %v1836, 125
        %v1901 = vpop.permute.xlu0 %1900
        %1906 = vrot.lane.b32.xlu0 %v1577, 1
        %v1907 = vpop.permute.xlu0 %1906
        %1908 = vrot.lane.b32.xlu0 %v1578, 1
        %v1909 = vpop.permute.xlu0 %1908
        %1910 = vrot.lane.b32.xlu0 %v1631, 1
        %v1911 = vpop.permute.xlu0 %1910
        %1912 = vrot.lane.b32.xlu0 %v1632, 1
        %v1913 = vpop.permute.xlu0 %1912
        %v1916 = vrot.slane %v1631, 6
        %v1917 = vrot.slane %v1632, 6
        %v1918 = vsel %vm609, %v1916, %v1917
        %v1923 = vrot.slane %v1631, 4
        %v1924 = vrot.slane %v1632, 4
        %v1925 = vsel %vm635, %v1923, %v1924
        %1926 = vrot.lane.b32.xlu0 %v1879, 127
        %v1927 = vpop.permute.xlu0 %1926
        %1928 = vrot.lane.b32.xlu0 %v1881, 127
        %v1929 = vpop.permute.xlu0 %1928
        %1930 = vrot.lane.b32.xlu0 %v1923, 127
        %v1931 = vpop.permute.xlu0 %1930
        %1932 = vrot.lane.b32.xlu0 %v1925, 127
        %v1933 = vpop.permute.xlu0 %1932
        %v1938 = vrot.slane %v1631, 2
        %v1939 = vrot.slane %v1632, 2
        %v1940 = vsel %vm661, %v1938, %v1939
        %1941 = vrot.lane.b32.xlu0 %v1834, 126
        %v1942 = vpop.permute.xlu0 %1941
        %1943 = vrot.lane.b32.xlu0 %v1836, 126
        %v1944 = vpop.permute.xlu0 %1943
        %1945 = vrot.lane.b32.xlu0 %v1938, 126
        %v1946 = vpop.permute.xlu0 %1945
        %1947 = vrot.lane.b32.xlu0 %v1940, 126
        %v1948 = vpop.permute.xlu0 %1947
        %1951 = vrot.lane.b32.xlu0 %v1577, 125
        %v1952 = vpop.permute.xlu0 %1951
        %1953 = vrot.lane.b32.xlu0 %v1578, 125
        %v1954 = vpop.permute.xlu0 %1953
        %1955 = vrot.lane.b32.xlu0 %v1631, 125
        %v1956 = vpop.permute.xlu0 %1955
        %1957 = vrot.lane.b32.xlu0 %v1632, 125
        %v1958 = vpop.permute.xlu0 %1957
        %v1959 = vsel %vm609, %v1524, %v1868
        %v1960 = vsel %vm609, %v1578, %v1872
        %v1961 = vsel %vm635, %v1870, %v1883
        %v1962 = vsel %vm635, %v1874, %v1887
        %v1963 = vsel %vm661, %v1885, %v1895
        %v1964 = vsel %vm661, %v1889, %v1899
        %v1965 = vsel %vm609, %v1909, %v1864
        %v1966 = vsel %vm609, %v1913, %v1916
        %v1967 = vsel %vm635, %v1866, %v1927
        %v1968 = vsel %vm635, %v1918, %v1931
        %v1969 = vsel %vm661, %v1929, %v1942
        %v1970 = vsel %vm661, %v1933, %v1946
        %1983 = vrot.lane.b32.xlu0 %v1523, 127
        %v1984 = vpop.permute.xlu0 %1983
        %1985 = vrot.lane.b32.xlu0 %v1959, 127
        %v1986 = vpop.permute.xlu0 %1985
        %1987 = vrot.lane.b32.xlu0 %v1961, 127
        %v1988 = vpop.permute.xlu0 %1987
        %1989 = vrot.lane.b32.xlu0 %v1963, 127
        %v1990 = vpop.permute.xlu0 %1989
        %1991 = vrot.lane.b32.xlu0 %v1897, 127
        %v1992 = vpop.permute.xlu0 %1991
        %1993 = vrot.lane.b32.xlu0 %v1907, 127
        %v1994 = vpop.permute.xlu0 %1993
        %1995 = vrot.lane.b32.xlu0 %v1965, 127
        %v1996 = vpop.permute.xlu0 %1995
        %1997 = vrot.lane.b32.xlu0 %v1967, 127
        %v1998 = vpop.permute.xlu0 %1997
        %1999 = vrot.lane.b32.xlu0 %v1969, 127
        %v2000 = vpop.permute.xlu0 %1999
        %2001 = vrot.lane.b32.xlu0 %v1944, 127
        %v2002 = vpop.permute.xlu0 %2001
        %2003 = vrot.lane.b32.xlu0 %v1952, 127
        %v2004 = vpop.permute.xlu0 %2003
        %2005 = vrot.lane.b32.xlu0 %v1954, 127
        %v2006 = vpop.permute.xlu0 %2005
        %2007 = vrot.lane.b32.xlu0 %v1577, 127
        %v2008 = vpop.permute.xlu0 %2007
        %2009 = vrot.lane.b32.xlu0 %v1960, 127
        %v2010 = vpop.permute.xlu0 %2009
        %2011 = vrot.lane.b32.xlu0 %v1962, 127
        %v2012 = vpop.permute.xlu0 %2011
        %2013 = vrot.lane.b32.xlu0 %v1964, 127
        %v2014 = vpop.permute.xlu0 %2013
        %2015 = vrot.lane.b32.xlu0 %v1901, 127
        %v2016 = vpop.permute.xlu0 %2015
        %2017 = vrot.lane.b32.xlu0 %v1911, 127
        %v2018 = vpop.permute.xlu0 %2017
        %2019 = vrot.lane.b32.xlu0 %v1966, 127
        %v2020 = vpop.permute.xlu0 %2019
        %2021 = vrot.lane.b32.xlu0 %v1968, 127
        %v2022 = vpop.permute.xlu0 %2021
        %2023 = vrot.lane.b32.xlu0 %v1970, 127
        %v2024 = vpop.permute.xlu0 %2023
        %2025 = vrot.lane.b32.xlu0 %v1948, 127
        %v2026 = vpop.permute.xlu0 %2025
        %2027 = vrot.lane.b32.xlu0 %v1956, 127
        %v2028 = vpop.permute.xlu0 %2027
        %2029 = vrot.lane.b32.xlu0 %v1958, 127
        %v2030 = vpop.permute.xlu0 %2029
        %2055 = vrot.lane.b32.xlu0 %v1415, 2
        %v2056 = vpop.permute.xlu0 %2055
        %2057 = vrot.lane.b32.xlu0 %v1841, 2
        %v2058 = vpop.permute.xlu0 %2057
        %2059 = vrot.lane.b32.xlu0 %v1843, 2
        %v2060 = vpop.permute.xlu0 %2059
        %2061 = vrot.lane.b32.xlu0 %v1845, 2
        %v2062 = vpop.permute.xlu0 %2061
        %2063 = vrot.lane.b32.xlu0 %v1695, 2
        %v2064 = vpop.permute.xlu0 %2063
        %2065 = vrot.lane.b32.xlu0 %v1704, 2
        %v2066 = vpop.permute.xlu0 %2065
        %2067 = vrot.lane.b32.xlu0 %v1847, 2
        %v2068 = vpop.permute.xlu0 %2067
        %2069 = vrot.lane.b32.xlu0 %v1849, 2
        %v2070 = vpop.permute.xlu0 %2069
        %2071 = vrot.lane.b32.xlu0 %v1851, 2
        %v2072 = vpop.permute.xlu0 %2071
        %2073 = vrot.lane.b32.xlu0 %v1744, 2
        %v2074 = vpop.permute.xlu0 %2073
        %2075 = vrot.lane.b32.xlu0 %v1753, 2
        %v2076 = vpop.permute.xlu0 %2075
        %2077 = vrot.lane.b32.xlu0 %v1853, 2
        %v2078 = vpop.permute.xlu0 %2077
        %2079 = vrot.lane.b32.xlu0 %v1855, 2
        %v2080 = vpop.permute.xlu0 %2079
        %2081 = vrot.lane.b32.xlu0 %v1857, 2
        %v2082 = vpop.permute.xlu0 %2081
        %2083 = vrot.lane.b32.xlu0 %v1790, 2
        %v2084 = vpop.permute.xlu0 %2083
        %2085 = vrot.lane.b32.xlu0 %v1799, 2
        %v2086 = vpop.permute.xlu0 %2085
        %2087 = vrot.lane.b32.xlu0 %v1859, 2
        %v2088 = vpop.permute.xlu0 %2087
        %2089 = vrot.lane.b32.xlu0 %v1861, 2
        %v2090 = vpop.permute.xlu0 %2089
        %2091 = vrot.lane.b32.xlu0 %v1863, 2
        %v2092 = vpop.permute.xlu0 %2091
        %2093 = vrot.lane.b32.xlu0 %v1836, 2
        %v2094 = vpop.permute.xlu0 %2093
        %2095 = vrot.lane.b32.xlu0 %v2008, 2
        %v2096 = vpop.permute.xlu0 %2095
        %2097 = vrot.lane.b32.xlu0 %v2010, 2
        %v2098 = vpop.permute.xlu0 %2097
        %2099 = vrot.lane.b32.xlu0 %v2012, 2
        %v2100 = vpop.permute.xlu0 %2099
        %2101 = vrot.lane.b32.xlu0 %v2014, 2
        %v2102 = vpop.permute.xlu0 %2101
        %2103 = vrot.lane.b32.xlu0 %v2016, 2
        %v2104 = vpop.permute.xlu0 %2103
        %2105 = vrot.lane.b32.xlu0 %v2018, 2
        %v2106 = vpop.permute.xlu0 %2105
        %2107 = vrot.lane.b32.xlu0 %v2020, 2
        %v2108 = vpop.permute.xlu0 %2107
        %2109 = vrot.lane.b32.xlu0 %v2022, 2
        %v2110 = vpop.permute.xlu0 %2109
        %2111 = vrot.lane.b32.xlu0 %v2024, 2
        %v2112 = vpop.permute.xlu0 %2111
        %2113 = vrot.lane.b32.xlu0 %v2026, 2
        %v2114 = vpop.permute.xlu0 %2113
        %2115 = vrot.lane.b32.xlu0 %v2028, 2
        %v2116 = vpop.permute.xlu0 %2115
        %2117 = vrot.lane.b32.xlu0 %v2030, 2
        %v2118 = vpop.permute.xlu0 %2117
        %v2151 = vsel %vm1352, %v1361, %v2056
        %v2152 = vsel %vm1352, %v1840, %v2058
        %v2153 = vsel %vm1352, %v1842, %v2060
        %v2154 = vsel %vm1352, %v1844, %v2062
        %v2155 = vsel %vm1352, %v1691, %v2064
        %v2156 = vsel %vm1352, %v1700, %v2066
        %v2157 = vsel %vm1352, %v1846, %v2068
        %v2158 = vsel %vm1352, %v1848, %v2070
        %v2159 = vsel %vm1352, %v1850, %v2072
        %v2160 = vsel %vm1352, %v1740, %v2074
        %v2161 = vsel %vm1352, %v1749, %v2076
        %v2162 = vsel %vm1352, %v1852, %v2078
        %v2163 = vsel %vm1352, %v1854, %v2080
        %v2164 = vsel %vm1352, %v1856, %v2082
        %v2165 = vsel %vm1352, %v1786, %v2084
        %v2166 = vsel %vm1352, %v1795, %v2086
        %v2167 = vsel %vm1352, %v1858, %v2088
        %v2168 = vsel %vm1352, %v1860, %v2090
        %v2169 = vsel %vm1352, %v1862, %v2092
        %v2170 = vsel %vm1352, %v1782, %v2094
        %v2171 = vsel %vm1352, %v1984, %v2096
        %v2172 = vsel %vm1352, %v1986, %v2098
        %v2173 = vsel %vm1352, %v1988, %v2100
        %v2174 = vsel %vm1352, %v1990, %v2102
        %v2175 = vsel %vm1352, %v1992, %v2104
        %v2176 = vsel %vm1352, %v1994, %v2106
        %v2177 = vsel %vm1352, %v1996, %v2108
        %v2178 = vsel %vm1352, %v1998, %v2110
        %v2179 = vsel %vm1352, %v2000, %v2112
        %v2180 = vsel %vm1352, %v2002, %v2114
        %v2181 = vsel %vm1352, %v2004, %v2116
        %v2182 = vsel %vm1352, %v2006, %v2118
        %2184 = vset.pattern.permute.xlu0 0
        %2185 = vperm.xlu0 %2184, %v1639
        %v2186 = vpop.permute.xlu0 %2185
        %2189 = vset.pattern.permute.xlu0 0
        %2190 = vperm.xlu0 %2189, %v1640
        %v2191 = vpop.permute.xlu0 %2190
        %2194 = vset.pattern.permute.xlu0 0
        %2195 = vperm.xlu0 %2194, %v1641
        %v2196 = vpop.permute.xlu0 %2195
        %vm2198 = vcmask 998400
        %v2200 = vsel %vm2198, %v1634, 0
        %v2203 = vsel %vm2198, %v1636, 0
        %v2206 = vsel %vm2198, %v1638, 0
        %v2209 = vsel %vm609, %v2182, 0
        %2211 = vmatpush.msra.mxu0 %v2166
        %2212 = vmatpush.msra.mxu0 %v2165
        %2213 = vmatpush.msra.mxu0 %v2164
        %2214 = vmatpush.msra.mxu0 %v2163
        %2215 = vmatpush.msra.mxu0 %v2162
        %2216 = vmatpush.msra.mxu0 %v2161
        %2217 = vmatpush.msra.mxu0 %v2160
        %2218 = vmatpush.msra.mxu0 %v2159
        %2219 = vmatpush.msra.mxu0 %v2158
        %2220 = vmatpush.msra.mxu0 %v2157
        %2221 = vmatpush.msra.mxu0 %v2156
        %2222 = vmatpush.msra.mxu0 %v2155
        %2223 = vmatpush.msra.mxu0 %v2154
        %2224 = vmatpush.msra.mxu0 %v2153
        %2225 = vmatpush.msra.mxu0 %v2152
        %2226 = vmatpush.msra.mxu0 %v2151
        %2227 = vmatmul.f32.gmra.mxu0 %v1633
        %v2228 = vpop.f32.mrf.mxu0
        %v2229 = vadd.f32 %v2186, %v2228
        %2230 = vmatmul.f32.gmra.mxu0 %v1635
        %v2231 = vpop.f32.mrf.mxu0
        %v2232 = vadd.f32 %v2191, %v2231
        %2233 = vmatmul.f32.gmra.mxu0 %v1637
        %v2234 = vpop.f32.mrf.mxu0
        %v2235 = vadd.f32 %v2196, %v2234
        %2236 = vdwg.mxu0
        %2237 = vmatpush.msra.mxu0 %v2209
        %2238 = vmatpush.msra.mxu0 %v2181
        %2239 = vmatpush.msra.mxu0 %v2180
        %2240 = vmatpush.msra.mxu0 %v2179
        %2241 = vmatpush.msra.mxu0 %v2178
        %2242 = vmatpush.msra.mxu0 %v2177
        %2243 = vmatpush.msra.mxu0 %v2176
        %2244 = vmatpush.msra.mxu0 %v2175
        %2245 = vmatpush.msra.mxu0 %v2174
        %2246 = vmatpush.msra.mxu0 %v2173
        %2247 = vmatpush.msra.mxu0 %v2172
        %2248 = vmatpush.msra.mxu0 %v2171
        %2249 = vmatpush.msra.mxu0 %v2170
        %2250 = vmatpush.msra.mxu0 %v2169
        %2251 = vmatpush.msra.mxu0 %v2168
        %2252 = vmatpush.msra.mxu0 %v2167
        %2253 = vmatmul.f32.gmra.mxu0 %v2200
        %v2254 = vpop.f32.mrf.mxu0
        %v2255 = vadd.f32 %v2229, %v2254
        %2256 = vmatmul.f32.gmra.mxu0 %v2203
        %v2257 = vpop.f32.mrf.mxu0
        %v2258 = vadd.f32 %v2232, %v2257
        %2259 = vmatmul.f32.gmra.mxu0 %v2206
        %v2260 = vpop.f32.mrf.mxu0
        %v2261 = vadd.f32 %v2235, %v2260
        %2262 = vdwg.mxu0
        %v2263 = vmax.f32 %v2255, 0.0
        %v2264 = vmax.f32 %v2258, 0.0
        %v2265 = vmax.f32 %v2261, 0.0
        %2269 = vrot.lane.b32.xlu0 %v2263, 126
        %v2270 = vpop.permute.xlu0 %2269
        %2271 = vrot.lane.b32.xlu0 %v2264, 126
        %v2272 = vpop.permute.xlu0 %2271
        %2273 = vrot.lane.b32.xlu0 %v2265, 126
        %v2274 = vpop.permute.xlu0 %2273
        %v2278 = vmax.f32 %v2263, %v2270
        %v2279 = vmax.f32 %v2264, %v2272
        %v2280 = vmax.f32 %v2265, %v2274
        %2284 = vrot.lane.b32.xlu0 %v2278, 127
        %v2285 = vpop.permute.xlu0 %2284
        %2286 = vrot.lane.b32.xlu0 %v2279, 127
        %v2287 = vpop.permute.xlu0 %2286
        %2288 = vrot.lane.b32.xlu0 %v2280, 127
        %v2289 = vpop.permute.xlu0 %2288
        %v2293 = vmax.f32 %v2278, %v2285
        %v2294 = vmax.f32 %v2279, %v2287
        %v2295 = vmax.f32 %v2280, %v2289
        %2299 = vrot.lane.b32.xlu0 %v2293, 1
        %v2300 = vpop.permute.xlu0 %2299
        %2301 = vrot.lane.b32.xlu0 %v2294, 1
        %v2302 = vpop.permute.xlu0 %2301
        %2303 = vrot.lane.b32.xlu0 %v2295, 1
        %v2304 = vpop.permute.xlu0 %2303
        %v2308 = vsel %vm1349, %v2293, %v2300
        %v2309 = vsel %vm1349, %v2294, %v2302
        %v2310 = vsel %vm1349, %v2295, %v2304
        %2314 = vrot.lane.b32.xlu0 %v2308, 4
        %v2315 = vpop.permute.xlu0 %2314
        %2316 = vrot.lane.b32.xlu0 %v2309, 4
        %v2317 = vpop.permute.xlu0 %2316
        %2318 = vrot.lane.b32.xlu0 %v2310, 4
        %v2319 = vpop.permute.xlu0 %2318
        %v2323 = vsel %vm1150, 0.0, %v2315
        %v2324 = vsel %vm1150, 0.0, %v2317
        %v2325 = vsel %vm1150, 0.0, %v2319
        %vm2326 = vcmask 48128
        %v2327 = vsel %vm2326, %v2323, 0.0
        %v2328 = vsel %vm2326, %v2324, 0.0
        %v2329 = vsel %vm2326, %v2325, 0.0
        %v2330 = vld [vmem:[#allocation6] sm:$0xff]
        %v2331 = vld [vmem:[#allocation6 + $0x8] sm:$0xff]
        %v2332 = vld [vmem:[#allocation6 + $0x10] sm:$0xff]
        %v2333 = vld [vmem:[#allocation6 + $0x18] sm:$0xff]
        %v2334 = vld [vmem:[#allocation6 + $0x20] sm:$0x3]
        %v2335 = vld [vmem:[#allocation6 + $0x28] sm:$0x3]
        %v2336 = vld [vmem:[#allocation6 + $0x30] sm:$0x3]
        %v2337 = vld [vmem:[#allocation6 + $0x38] sm:$0x3]
        %v2338 = vld [vmem:[%s6] sm:$0xff]
        %v2339 = vld [vmem:[%s6 + $0x8] sm:$0x3]
        %v2344 = vrot.slane 0.0, 4
        %v2345 = vsel %vm635, %v2344, %v2344
        %v2346 = vrot.slane %v2327, 4
        %v2347 = vrot.slane %v2328, 4
        %v2348 = vsel %vm635, %v2346, %v2347
        %v2349 = vrot.slane %v2329, 4
        %v2350 = vsel %vm635, %v2347, %v2349
        %2351 = vrot.lane.b32.xlu0 %v2344, 127
        %v2352 = vpop.permute.xlu0 %2351
        %2353 = vrot.lane.b32.xlu0 %v2345, 127
        %v2354 = vpop.permute.xlu0 %2353
        %2355 = vrot.lane.b32.xlu0 %v2346, 127
        %v2356 = vpop.permute.xlu0 %2355
        %2357 = vrot.lane.b32.xlu0 %v2348, 127
        %v2358 = vpop.permute.xlu0 %2357
        %2359 = vrot.lane.b32.xlu0 %v2350, 127
        %v2360 = vpop.permute.xlu0 %2359
        %2364 = vrot.lane.b32.xlu0 0.0, 126
        %v2365 = vpop.permute.xlu0 %2364
        %2366 = vrot.lane.b32.xlu0 %v2327, 126
        %v2367 = vpop.permute.xlu0 %2366
        %2368 = vrot.lane.b32.xlu0 %v2328, 126
        %v2369 = vpop.permute.xlu0 %2368
        %2370 = vrot.lane.b32.xlu0 %v2329, 126
        %v2371 = vpop.permute.xlu0 %2370
        %2374 = vrot.lane.b32.xlu0 %v2344, 125
        %v2375 = vpop.permute.xlu0 %2374
        %2376 = vrot.lane.b32.xlu0 %v2345, 125
        %v2377 = vpop.permute.xlu0 %2376
        %2378 = vrot.lane.b32.xlu0 %v2346, 125
        %v2379 = vpop.permute.xlu0 %2378
        %2380 = vrot.lane.b32.xlu0 %v2348, 125
        %v2381 = vpop.permute.xlu0 %2380
        %2382 = vrot.lane.b32.xlu0 %v2350, 125
        %v2383 = vpop.permute.xlu0 %2382
        %2387 = vrot.lane.b32.xlu0 0.0, 124
        %v2388 = vpop.permute.xlu0 %2387
        %2389 = vrot.lane.b32.xlu0 %v2327, 124
        %v2390 = vpop.permute.xlu0 %2389
        %2391 = vrot.lane.b32.xlu0 %v2328, 124
        %v2392 = vpop.permute.xlu0 %2391
        %2393 = vrot.lane.b32.xlu0 %v2329, 124
        %v2394 = vpop.permute.xlu0 %2393
        %2400 = vrot.lane.b32.xlu0 0.0, 127
        %v2401 = vpop.permute.xlu0 %2400
        %2402 = vrot.lane.b32.xlu0 %v2327, 127
        %v2403 = vpop.permute.xlu0 %2402
        %2404 = vrot.lane.b32.xlu0 %v2328, 127
        %v2405 = vpop.permute.xlu0 %2404
        %2406 = vrot.lane.b32.xlu0 %v2329, 127
        %v2407 = vpop.permute.xlu0 %2406
        %2410 = vrot.lane.b32.xlu0 %v2344, 126
        %v2411 = vpop.permute.xlu0 %2410
        %2412 = vrot.lane.b32.xlu0 %v2345, 126
        %v2413 = vpop.permute.xlu0 %2412
        %2414 = vrot.lane.b32.xlu0 %v2346, 126
        %v2415 = vpop.permute.xlu0 %2414
        %2416 = vrot.lane.b32.xlu0 %v2348, 126
        %v2417 = vpop.permute.xlu0 %2416
        %2418 = vrot.lane.b32.xlu0 %v2350, 126
        %v2419 = vpop.permute.xlu0 %2418
        %2423 = vrot.lane.b32.xlu0 0.0, 125
        %v2424 = vpop.permute.xlu0 %2423
        %2425 = vrot.lane.b32.xlu0 %v2327, 125
        %v2426 = vpop.permute.xlu0 %2425
        %2427 = vrot.lane.b32.xlu0 %v2328, 125
        %v2428 = vpop.permute.xlu0 %2427
        %2429 = vrot.lane.b32.xlu0 %v2329, 125
        %v2430 = vpop.permute.xlu0 %2429
        %2433 = vrot.lane.b32.xlu0 %v2344, 124
        %v2434 = vpop.permute.xlu0 %2433
        %2435 = vrot.lane.b32.xlu0 %v2345, 124
        %v2436 = vpop.permute.xlu0 %2435
        %2437 = vrot.lane.b32.xlu0 %v2346, 124
        %v2438 = vpop.permute.xlu0 %2437
        %2439 = vrot.lane.b32.xlu0 %v2348, 124
        %v2440 = vpop.permute.xlu0 %2439
        %2441 = vrot.lane.b32.xlu0 %v2350, 124
        %v2442 = vpop.permute.xlu0 %2441
        %v2446 = vsel %vm635, 0.0, %v2352
        %v2447 = vsel %vm635, %v2329, %v2356
        %v2448 = vsel %vm635, %v2365, %v2375
        %v2449 = vsel %vm635, %v2371, %v2379
        %v2450 = vsel %vm635, %v2388, %v2344
        %v2451 = vsel %vm635, %v2388, %v2346
        %v2452 = vsel %vm635, %v2394, %v2346
        %v2453 = vsel %vm635, %v2394, %v2344
        %v2454 = vsel %vm635, %v2401, %v2411
        %v2455 = vsel %vm635, %v2407, %v2415
        %v2456 = vsel %vm635, %v2424, %v2434
        %v2457 = vsel %vm635, %v2430, %v2438
        %2458 = vrot.lane.b32.xlu0 %v2327, 1
        %v2459 = vpop.permute.xlu0 %2458
        %2460 = vrot.lane.b32.xlu0 %v2328, 1
        %v2461 = vpop.permute.xlu0 %2460
        %2462 = vrot.lane.b32.xlu0 %v2329, 1
        %v2463 = vpop.permute.xlu0 %2462
        %2464 = vrot.lane.b32.xlu0 0.0, 1
        %v2465 = vpop.permute.xlu0 %2464
        %v2468 = vsel %vm635, %v2463, %v2346
        %v2469 = vsel %vm635, %v2465, %v2344
        %2478 = vrot.lane.b32.xlu0 %v2446, 127
        %v2479 = vpop.permute.xlu0 %2478
        %2480 = vrot.lane.b32.xlu0 %v2354, 127
        %v2481 = vpop.permute.xlu0 %2480
        %2482 = vrot.lane.b32.xlu0 %v2365, 127
        %v2483 = vpop.permute.xlu0 %2482
        %2484 = vrot.lane.b32.xlu0 %v2448, 127
        %v2485 = vpop.permute.xlu0 %2484
        %2486 = vrot.lane.b32.xlu0 %v2377, 127
        %v2487 = vpop.permute.xlu0 %2486
        %2488 = vrot.lane.b32.xlu0 %v2459, 127
        %v2489 = vpop.permute.xlu0 %2488
        %2490 = vrot.lane.b32.xlu0 %v2461, 127
        %v2491 = vpop.permute.xlu0 %2490
        %2492 = vrot.lane.b32.xlu0 %v2468, 127
        %v2493 = vpop.permute.xlu0 %2492
        %2494 = vrot.lane.b32.xlu0 %v2403, 127
        %v2495 = vpop.permute.xlu0 %2494
        %2496 = vrot.lane.b32.xlu0 %v2405, 127
        %v2497 = vpop.permute.xlu0 %2496
        %2498 = vrot.lane.b32.xlu0 %v2455, 127
        %v2499 = vpop.permute.xlu0 %2498
        %2500 = vrot.lane.b32.xlu0 %v2417, 127
        %v2501 = vpop.permute.xlu0 %2500
        %2502 = vrot.lane.b32.xlu0 %v2419, 127
        %v2503 = vpop.permute.xlu0 %2502
        %2504 = vrot.lane.b32.xlu0 %v2426, 127
        %v2505 = vpop.permute.xlu0 %2504
        %2506 = vrot.lane.b32.xlu0 %v2428, 127
        %v2507 = vpop.permute.xlu0 %2506
        %2508 = vrot.lane.b32.xlu0 %v2430, 127
        %v2509 = vpop.permute.xlu0 %2508
        %2510 = vrot.lane.b32.xlu0 %v2447, 127
        %v2511 = vpop.permute.xlu0 %2510
        %2512 = vrot.lane.b32.xlu0 %v2358, 127
        %v2513 = vpop.permute.xlu0 %2512
        %2514 = vrot.lane.b32.xlu0 %v2360, 127
        %v2515 = vpop.permute.xlu0 %2514
        %2516 = vrot.lane.b32.xlu0 %v2367, 127
        %v2517 = vpop.permute.xlu0 %2516
        %2518 = vrot.lane.b32.xlu0 %v2369, 127
        %v2519 = vpop.permute.xlu0 %2518
        %2520 = vrot.lane.b32.xlu0 %v2449, 127
        %v2521 = vpop.permute.xlu0 %2520
        %2522 = vrot.lane.b32.xlu0 %v2381, 127
        %v2523 = vpop.permute.xlu0 %2522
        %2524 = vrot.lane.b32.xlu0 %v2383, 127
        %v2525 = vpop.permute.xlu0 %2524
        %2526 = vrot.lane.b32.xlu0 %v2465, 127
        %v2527 = vpop.permute.xlu0 %2526
        %2528 = vrot.lane.b32.xlu0 %v2469, 127
        %v2529 = vpop.permute.xlu0 %2528
        %2530 = vrot.lane.b32.xlu0 %v2401, 127
        %v2531 = vpop.permute.xlu0 %2530
        %2532 = vrot.lane.b32.xlu0 %v2454, 127
        %v2533 = vpop.permute.xlu0 %2532
        %2534 = vrot.lane.b32.xlu0 %v2413, 127
        %v2535 = vpop.permute.xlu0 %2534
        %2536 = vrot.lane.b32.xlu0 %v2424, 127
        %v2537 = vpop.permute.xlu0 %2536
        %2559 = vrot.lane.b32.xlu0 0.0, 6
        %v2560 = vpop.permute.xlu0 %2559
        %2561 = vrot.lane.b32.xlu0 %v2446, 6
        %v2562 = vpop.permute.xlu0 %2561
        %2563 = vrot.lane.b32.xlu0 %v2354, 6
        %v2564 = vpop.permute.xlu0 %2563
        %2565 = vrot.lane.b32.xlu0 %v2365, 6
        %v2566 = vpop.permute.xlu0 %2565
        %2567 = vrot.lane.b32.xlu0 %v2448, 6
        %v2568 = vpop.permute.xlu0 %2567
        %2569 = vrot.lane.b32.xlu0 %v2377, 6
        %v2570 = vpop.permute.xlu0 %2569
        %2571 = vrot.lane.b32.xlu0 %v2388, 6
        %v2572 = vpop.permute.xlu0 %2571
        %2573 = vrot.lane.b32.xlu0 %v2450, 6
        %v2574 = vpop.permute.xlu0 %2573
        %2575 = vrot.lane.b32.xlu0 %v2345, 6
        %v2576 = vpop.permute.xlu0 %2575
        %2577 = vrot.lane.b32.xlu0 %v2401, 6
        %v2578 = vpop.permute.xlu0 %2577
        %2579 = vrot.lane.b32.xlu0 %v2454, 6
        %v2580 = vpop.permute.xlu0 %2579
        %2581 = vrot.lane.b32.xlu0 %v2413, 6
        %v2582 = vpop.permute.xlu0 %2581
        %2583 = vrot.lane.b32.xlu0 %v2424, 6
        %v2584 = vpop.permute.xlu0 %2583
        %2585 = vrot.lane.b32.xlu0 %v2456, 6
        %v2586 = vpop.permute.xlu0 %2585
        %2587 = vrot.lane.b32.xlu0 %v2436, 6
        %v2588 = vpop.permute.xlu0 %2587
        %2589 = vrot.lane.b32.xlu0 %v2451, 6
        %v2590 = vpop.permute.xlu0 %2589
        %2591 = vrot.lane.b32.xlu0 %v2348, 6
        %v2592 = vpop.permute.xlu0 %2591
        %2593 = vrot.lane.b32.xlu0 %v2350, 6
        %v2594 = vpop.permute.xlu0 %2593
        %2595 = vrot.lane.b32.xlu0 %v2403, 6
        %v2596 = vpop.permute.xlu0 %2595
        %2597 = vrot.lane.b32.xlu0 %v2405, 6
        %v2598 = vpop.permute.xlu0 %2597
        %2599 = vrot.lane.b32.xlu0 %v2511, 6
        %v2600 = vpop.permute.xlu0 %2599
        %2601 = vrot.lane.b32.xlu0 %v2513, 6
        %v2602 = vpop.permute.xlu0 %2601
        %2603 = vrot.lane.b32.xlu0 %v2515, 6
        %v2604 = vpop.permute.xlu0 %2603
        %2605 = vrot.lane.b32.xlu0 %v2517, 6
        %v2606 = vpop.permute.xlu0 %2605
        %2607 = vrot.lane.b32.xlu0 %v2519, 6
        %v2608 = vpop.permute.xlu0 %2607
        %2609 = vrot.lane.b32.xlu0 %v2521, 6
        %v2610 = vpop.permute.xlu0 %2609
        %2611 = vrot.lane.b32.xlu0 %v2523, 6
        %v2612 = vpop.permute.xlu0 %2611
        %2613 = vrot.lane.b32.xlu0 %v2525, 6
        %v2614 = vpop.permute.xlu0 %2613
        %2615 = vrot.lane.b32.xlu0 %v2489, 6
        %v2616 = vpop.permute.xlu0 %2615
        %2617 = vrot.lane.b32.xlu0 %v2491, 6
        %v2618 = vpop.permute.xlu0 %2617
        %2619 = vrot.lane.b32.xlu0 %v2493, 6
        %v2620 = vpop.permute.xlu0 %2619
        %2621 = vrot.lane.b32.xlu0 %v2358, 6
        %v2622 = vpop.permute.xlu0 %2621
        %2623 = vrot.lane.b32.xlu0 %v2360, 6
        %v2624 = vpop.permute.xlu0 %2623
        %2625 = vrot.lane.b32.xlu0 %v2495, 6
        %v2626 = vpop.permute.xlu0 %2625
        %2627 = vrot.lane.b32.xlu0 %v2497, 6
        %v2628 = vpop.permute.xlu0 %2627
        %2629 = vrot.lane.b32.xlu0 %v2499, 6
        %v2630 = vpop.permute.xlu0 %2629
        %2631 = vrot.lane.b32.xlu0 %v2501, 6
        %v2632 = vpop.permute.xlu0 %2631
        %2633 = vrot.lane.b32.xlu0 %v2503, 6
        %v2634 = vpop.permute.xlu0 %2633
        %2635 = vrot.lane.b32.xlu0 %v2505, 6
        %v2636 = vpop.permute.xlu0 %2635
        %2637 = vrot.lane.b32.xlu0 %v2507, 6
        %v2638 = vpop.permute.xlu0 %2637
        %2639 = vrot.lane.b32.xlu0 %v2509, 6
        %v2640 = vpop.permute.xlu0 %2639
        %2683 = vrot.lane.b32.xlu0 0.0, 12
        %v2684 = vpop.permute.xlu0 %2683
        %2685 = vrot.lane.b32.xlu0 %v2446, 12
        %v2686 = vpop.permute.xlu0 %2685
        %2687 = vrot.lane.b32.xlu0 %v2354, 12
        %v2688 = vpop.permute.xlu0 %2687
        %2689 = vrot.lane.b32.xlu0 %v2365, 12
        %v2690 = vpop.permute.xlu0 %2689
        %2691 = vrot.lane.b32.xlu0 %v2448, 12
        %v2692 = vpop.permute.xlu0 %2691
        %2693 = vrot.lane.b32.xlu0 %v2377, 12
        %v2694 = vpop.permute.xlu0 %2693
        %2695 = vrot.lane.b32.xlu0 %v2388, 12
        %v2696 = vpop.permute.xlu0 %2695
        %2697 = vrot.lane.b32.xlu0 %v2450, 12
        %v2698 = vpop.permute.xlu0 %2697
        %2699 = vrot.lane.b32.xlu0 %v2345, 12
        %v2700 = vpop.permute.xlu0 %2699
        %2701 = vrot.lane.b32.xlu0 %v2401, 12
        %v2702 = vpop.permute.xlu0 %2701
        %2703 = vrot.lane.b32.xlu0 %v2454, 12
        %v2704 = vpop.permute.xlu0 %2703
        %2705 = vrot.lane.b32.xlu0 %v2413, 12
        %v2706 = vpop.permute.xlu0 %2705
        %2707 = vrot.lane.b32.xlu0 %v2424, 12
        %v2708 = vpop.permute.xlu0 %2707
        %2709 = vrot.lane.b32.xlu0 %v2456, 12
        %v2710 = vpop.permute.xlu0 %2709
        %2711 = vrot.lane.b32.xlu0 %v2436, 12
        %v2712 = vpop.permute.xlu0 %2711
        %2713 = vrot.lane.b32.xlu0 %v2327, 12
        %v2714 = vpop.permute.xlu0 %2713
        %2715 = vrot.lane.b32.xlu0 %v2328, 12
        %v2716 = vpop.permute.xlu0 %2715
        %2717 = vrot.lane.b32.xlu0 %v2447, 12
        %v2718 = vpop.permute.xlu0 %2717
        %2719 = vrot.lane.b32.xlu0 %v2358, 12
        %v2720 = vpop.permute.xlu0 %2719
        %2721 = vrot.lane.b32.xlu0 %v2360, 12
        %v2722 = vpop.permute.xlu0 %2721
        %2723 = vrot.lane.b32.xlu0 %v2367, 12
        %v2724 = vpop.permute.xlu0 %2723
        %2725 = vrot.lane.b32.xlu0 %v2369, 12
        %v2726 = vpop.permute.xlu0 %2725
        %2727 = vrot.lane.b32.xlu0 %v2449, 12
        %v2728 = vpop.permute.xlu0 %2727
        %2729 = vrot.lane.b32.xlu0 %v2381, 12
        %v2730 = vpop.permute.xlu0 %2729
        %2731 = vrot.lane.b32.xlu0 %v2383, 12
        %v2732 = vpop.permute.xlu0 %2731
        %2733 = vrot.lane.b32.xlu0 %v2390, 12
        %v2734 = vpop.permute.xlu0 %2733
        %2735 = vrot.lane.b32.xlu0 %v2392, 12
        %v2736 = vpop.permute.xlu0 %2735
        %2737 = vrot.lane.b32.xlu0 %v2452, 12
        %v2738 = vpop.permute.xlu0 %2737
        %2739 = vrot.lane.b32.xlu0 %v2348, 12
        %v2740 = vpop.permute.xlu0 %2739
        %2741 = vrot.lane.b32.xlu0 %v2350, 12
        %v2742 = vpop.permute.xlu0 %2741
        %2743 = vrot.lane.b32.xlu0 %v2403, 12
        %v2744 = vpop.permute.xlu0 %2743
        %2745 = vrot.lane.b32.xlu0 %v2405, 12
        %v2746 = vpop.permute.xlu0 %2745
        %2747 = vrot.lane.b32.xlu0 %v2511, 12
        %v2748 = vpop.permute.xlu0 %2747
        %2749 = vrot.lane.b32.xlu0 %v2513, 12
        %v2750 = vpop.permute.xlu0 %2749
        %2751 = vrot.lane.b32.xlu0 %v2515, 12
        %v2752 = vpop.permute.xlu0 %2751
        %2753 = vrot.lane.b32.xlu0 %v2517, 12
        %v2754 = vpop.permute.xlu0 %2753
        %2755 = vrot.lane.b32.xlu0 %v2519, 12
        %v2756 = vpop.permute.xlu0 %2755
        %2757 = vrot.lane.b32.xlu0 %v2521, 12
        %v2758 = vpop.permute.xlu0 %2757
        %2759 = vrot.lane.b32.xlu0 %v2523, 12
        %v2760 = vpop.permute.xlu0 %2759
        %2761 = vrot.lane.b32.xlu0 %v2525, 12
        %v2762 = vpop.permute.xlu0 %2761
        %2763 = vrot.lane.b32.xlu0 %v2527, 12
        %v2764 = vpop.permute.xlu0 %2763
        %2765 = vrot.lane.b32.xlu0 %v2529, 12
        %v2766 = vpop.permute.xlu0 %2765
        %2767 = vrot.lane.b32.xlu0 %v2531, 12
        %v2768 = vpop.permute.xlu0 %2767
        %2769 = vrot.lane.b32.xlu0 %v2533, 12
        %v2770 = vpop.permute.xlu0 %2769
        %2771 = vrot.lane.b32.xlu0 %v2535, 12
        %v2772 = vpop.permute.xlu0 %2771
        %2773 = vrot.lane.b32.xlu0 %v2537, 12
        %v2774 = vpop.permute.xlu0 %2773
        %2823 = vrot.lane.b32.xlu0 0.0, 18
        %v2824 = vpop.permute.xlu0 %2823
        %2825 = vrot.lane.b32.xlu0 %v2446, 18
        %v2826 = vpop.permute.xlu0 %2825
        %2827 = vrot.lane.b32.xlu0 %v2354, 18
        %v2828 = vpop.permute.xlu0 %2827
        %2829 = vrot.lane.b32.xlu0 %v2365, 18
        %v2830 = vpop.permute.xlu0 %2829
        %2831 = vrot.lane.b32.xlu0 %v2448, 18
        %v2832 = vpop.permute.xlu0 %2831
        %2833 = vrot.lane.b32.xlu0 %v2377, 18
        %v2834 = vpop.permute.xlu0 %2833
        %2835 = vrot.lane.b32.xlu0 %v2388, 18
        %v2836 = vpop.permute.xlu0 %2835
        %2837 = vrot.lane.b32.xlu0 %v2451, 18
        %v2838 = vpop.permute.xlu0 %2837
        %2839 = vrot.lane.b32.xlu0 %v2348, 18
        %v2840 = vpop.permute.xlu0 %2839
        %2841 = vrot.lane.b32.xlu0 %v2350, 18
        %v2842 = vpop.permute.xlu0 %2841
        %2843 = vrot.lane.b32.xlu0 %v2403, 18
        %v2844 = vpop.permute.xlu0 %2843
        %2845 = vrot.lane.b32.xlu0 %v2405, 18
        %v2846 = vpop.permute.xlu0 %2845
        %2847 = vrot.lane.b32.xlu0 %v2455, 18
        %v2848 = vpop.permute.xlu0 %2847
        %2849 = vrot.lane.b32.xlu0 %v2417, 18
        %v2850 = vpop.permute.xlu0 %2849
        %2851 = vrot.lane.b32.xlu0 %v2419, 18
        %v2852 = vpop.permute.xlu0 %2851
        %2853 = vrot.lane.b32.xlu0 %v2426, 18
        %v2854 = vpop.permute.xlu0 %2853
        %2855 = vrot.lane.b32.xlu0 %v2428, 18
        %v2856 = vpop.permute.xlu0 %2855
        %2857 = vrot.lane.b32.xlu0 %v2457, 18
        %v2858 = vpop.permute.xlu0 %2857
        %2859 = vrot.lane.b32.xlu0 %v2440, 18
        %v2860 = vpop.permute.xlu0 %2859
        %2861 = vrot.lane.b32.xlu0 %v2442, 18
        %v2862 = vpop.permute.xlu0 %2861
        %2863 = vrot.lane.b32.xlu0 %v2327, 18
        %v2864 = vpop.permute.xlu0 %2863
        %2865 = vrot.lane.b32.xlu0 %v2328, 18
        %v2866 = vpop.permute.xlu0 %2865
        %2867 = vrot.lane.b32.xlu0 %v2447, 18
        %v2868 = vpop.permute.xlu0 %2867
        %2869 = vrot.lane.b32.xlu0 %v2358, 18
        %v2870 = vpop.permute.xlu0 %2869
        %2871 = vrot.lane.b32.xlu0 %v2360, 18
        %v2872 = vpop.permute.xlu0 %2871
        %2873 = vrot.lane.b32.xlu0 %v2367, 18
        %v2874 = vpop.permute.xlu0 %2873
        %2875 = vrot.lane.b32.xlu0 %v2369, 18
        %v2876 = vpop.permute.xlu0 %2875
        %2877 = vrot.lane.b32.xlu0 %v2449, 18
        %v2878 = vpop.permute.xlu0 %2877
        %2879 = vrot.lane.b32.xlu0 %v2381, 18
        %v2880 = vpop.permute.xlu0 %2879
        %2881 = vrot.lane.b32.xlu0 %v2383, 18
        %v2882 = vpop.permute.xlu0 %2881
        %2883 = vrot.lane.b32.xlu0 %v2390, 18
        %v2884 = vpop.permute.xlu0 %2883
        %2885 = vrot.lane.b32.xlu0 %v2392, 18
        %v2886 = vpop.permute.xlu0 %2885
        %2887 = vrot.lane.b32.xlu0 %v2453, 18
        %v2888 = vpop.permute.xlu0 %2887
        %2889 = vrot.lane.b32.xlu0 %v2345, 18
        %v2890 = vpop.permute.xlu0 %2889
        %2891 = vrot.lane.b32.xlu0 %v2401, 18
        %v2892 = vpop.permute.xlu0 %2891
        %2893 = vrot.lane.b32.xlu0 %v2479, 18
        %v2894 = vpop.permute.xlu0 %2893
        %2895 = vrot.lane.b32.xlu0 %v2481, 18
        %v2896 = vpop.permute.xlu0 %2895
        %2897 = vrot.lane.b32.xlu0 %v2483, 18
        %v2898 = vpop.permute.xlu0 %2897
        %2899 = vrot.lane.b32.xlu0 %v2485, 18
        %v2900 = vpop.permute.xlu0 %2899
        %2901 = vrot.lane.b32.xlu0 %v2487, 18
        %v2902 = vpop.permute.xlu0 %2901
        %2903 = vrot.lane.b32.xlu0 %v2527, 18
        %v2904 = vpop.permute.xlu0 %2903
        %2905 = vrot.lane.b32.xlu0 %v2529, 18
        %v2906 = vpop.permute.xlu0 %2905
        %2907 = vrot.lane.b32.xlu0 %v2531, 18
        %v2908 = vpop.permute.xlu0 %2907
        %2909 = vrot.lane.b32.xlu0 %v2533, 18
        %v2910 = vpop.permute.xlu0 %2909
        %2911 = vrot.lane.b32.xlu0 %v2535, 18
        %v2912 = vpop.permute.xlu0 %2911
        %2913 = vrot.lane.b32.xlu0 %v2537, 18
        %v2914 = vpop.permute.xlu0 %2913
        %2961 = vrot.lane.b32.xlu0 %v2327, 24
        %v2962 = vpop.permute.xlu0 %2961
        %2963 = vrot.lane.b32.xlu0 %v2328, 24
        %v2964 = vpop.permute.xlu0 %2963
        %2965 = vrot.lane.b32.xlu0 %v2447, 24
        %v2966 = vpop.permute.xlu0 %2965
        %2967 = vrot.lane.b32.xlu0 %v2358, 24
        %v2968 = vpop.permute.xlu0 %2967
        %2969 = vrot.lane.b32.xlu0 %v2360, 24
        %v2970 = vpop.permute.xlu0 %2969
        %2971 = vrot.lane.b32.xlu0 %v2367, 24
        %v2972 = vpop.permute.xlu0 %2971
        %2973 = vrot.lane.b32.xlu0 %v2369, 24
        %v2974 = vpop.permute.xlu0 %2973
        %2975 = vrot.lane.b32.xlu0 %v2449, 24
        %v2976 = vpop.permute.xlu0 %2975
        %2977 = vrot.lane.b32.xlu0 %v2381, 24
        %v2978 = vpop.permute.xlu0 %2977
        %2979 = vrot.lane.b32.xlu0 %v2383, 24
        %v2980 = vpop.permute.xlu0 %2979
        %2981 = vrot.lane.b32.xlu0 %v2390, 24
        %v2982 = vpop.permute.xlu0 %2981
        %2983 = vrot.lane.b32.xlu0 %v2392, 24
        %v2984 = vpop.permute.xlu0 %2983
        %2985 = vrot.lane.b32.xlu0 %v2452, 24
        %v2986 = vpop.permute.xlu0 %2985
        %2987 = vrot.lane.b32.xlu0 %v2348, 24
        %v2988 = vpop.permute.xlu0 %2987
        %2989 = vrot.lane.b32.xlu0 %v2350, 24
        %v2990 = vpop.permute.xlu0 %2989
        %2991 = vrot.lane.b32.xlu0 %v2403, 24
        %v2992 = vpop.permute.xlu0 %2991
        %2993 = vrot.lane.b32.xlu0 %v2405, 24
        %v2994 = vpop.permute.xlu0 %2993
        %2995 = vrot.lane.b32.xlu0 %v2455, 24
        %v2996 = vpop.permute.xlu0 %2995
        %2997 = vrot.lane.b32.xlu0 %v2417, 24
        %v2998 = vpop.permute.xlu0 %2997
        %2999 = vrot.lane.b32.xlu0 %v2419, 24
        %v3000 = vpop.permute.xlu0 %2999
        %3001 = vrot.lane.b32.xlu0 %v2426, 24
        %v3002 = vpop.permute.xlu0 %3001
        %3003 = vrot.lane.b32.xlu0 %v2428, 24
        %v3004 = vpop.permute.xlu0 %3003
        %3005 = vrot.lane.b32.xlu0 %v2457, 24
        %v3006 = vpop.permute.xlu0 %3005
        %3007 = vrot.lane.b32.xlu0 %v2440, 24
        %v3008 = vpop.permute.xlu0 %3007
        %3009 = vrot.lane.b32.xlu0 %v2442, 24
        %v3010 = vpop.permute.xlu0 %3009
        %3011 = vrot.lane.b32.xlu0 0.0, 24
        %v3012 = vpop.permute.xlu0 %3011
        %3013 = vrot.lane.b32.xlu0 %v2446, 24
        %v3014 = vpop.permute.xlu0 %3013
        %3015 = vrot.lane.b32.xlu0 %v2354, 24
        %v3016 = vpop.permute.xlu0 %3015
        %3017 = vrot.lane.b32.xlu0 %v2365, 24
        %v3018 = vpop.permute.xlu0 %3017
        %3019 = vrot.lane.b32.xlu0 %v2448, 24
        %v3020 = vpop.permute.xlu0 %3019
        %3021 = vrot.lane.b32.xlu0 %v2377, 24
        %v3022 = vpop.permute.xlu0 %3021
        %3023 = vrot.lane.b32.xlu0 %v2388, 24
        %v3024 = vpop.permute.xlu0 %3023
        %3025 = vrot.lane.b32.xlu0 %v2450, 24
        %v3026 = vpop.permute.xlu0 %3025
        %3027 = vrot.lane.b32.xlu0 %v2345, 24
        %v3028 = vpop.permute.xlu0 %3027
        %3029 = vrot.lane.b32.xlu0 %v2401, 24
        %v3030 = vpop.permute.xlu0 %3029
        %3031 = vrot.lane.b32.xlu0 %v2479, 24
        %v3032 = vpop.permute.xlu0 %3031
        %3033 = vrot.lane.b32.xlu0 %v2481, 24
        %v3034 = vpop.permute.xlu0 %3033
        %3035 = vrot.lane.b32.xlu0 %v2483, 24
        %v3036 = vpop.permute.xlu0 %3035
        %3037 = vrot.lane.b32.xlu0 %v2485, 24
        %v3038 = vpop.permute.xlu0 %3037
        %3039 = vrot.lane.b32.xlu0 %v2487, 24
        %v3040 = vpop.permute.xlu0 %3039
        %3041 = vrot.lane.b32.xlu0 %v2527, 24
        %v3042 = vpop.permute.xlu0 %3041
        %3043 = vrot.lane.b32.xlu0 %v2529, 24
        %v3044 = vpop.permute.xlu0 %3043
        %3045 = vrot.lane.b32.xlu0 %v2531, 24
        %v3046 = vpop.permute.xlu0 %3045
        %3047 = vrot.lane.b32.xlu0 %v2533, 24
        %v3048 = vpop.permute.xlu0 %3047
        %3049 = vrot.lane.b32.xlu0 %v2535, 24
        %v3050 = vpop.permute.xlu0 %3049
        %3051 = vrot.lane.b32.xlu0 %v2537, 24
        %v3052 = vpop.permute.xlu0 %3051
        %3099 = vrot.lane.b32.xlu0 %v2327, 30
        %v3100 = vpop.permute.xlu0 %3099
        %3101 = vrot.lane.b32.xlu0 %v2328, 30
        %v3102 = vpop.permute.xlu0 %3101
        %3103 = vrot.lane.b32.xlu0 %v2447, 30
        %v3104 = vpop.permute.xlu0 %3103
        %3105 = vrot.lane.b32.xlu0 %v2358, 30
        %v3106 = vpop.permute.xlu0 %3105
        %3107 = vrot.lane.b32.xlu0 %v2360, 30
        %v3108 = vpop.permute.xlu0 %3107
        %3109 = vrot.lane.b32.xlu0 %v2367, 30
        %v3110 = vpop.permute.xlu0 %3109
        %3111 = vrot.lane.b32.xlu0 %v2369, 30
        %v3112 = vpop.permute.xlu0 %3111
        %3113 = vrot.lane.b32.xlu0 %v2449, 30
        %v3114 = vpop.permute.xlu0 %3113
        %3115 = vrot.lane.b32.xlu0 %v2381, 30
        %v3116 = vpop.permute.xlu0 %3115
        %3117 = vrot.lane.b32.xlu0 %v2383, 30
        %v3118 = vpop.permute.xlu0 %3117
        %3119 = vrot.lane.b32.xlu0 %v2390, 30
        %v3120 = vpop.permute.xlu0 %3119
        %3121 = vrot.lane.b32.xlu0 %v2392, 30
        %v3122 = vpop.permute.xlu0 %3121
        %3123 = vrot.lane.b32.xlu0 %v2453, 30
        %v3124 = vpop.permute.xlu0 %3123
        %3125 = vrot.lane.b32.xlu0 %v2345, 30
        %v3126 = vpop.permute.xlu0 %3125
        %3127 = vrot.lane.b32.xlu0 %v2401, 30
        %v3128 = vpop.permute.xlu0 %3127
        %3129 = vrot.lane.b32.xlu0 %v2454, 30
        %v3130 = vpop.permute.xlu0 %3129
        %3131 = vrot.lane.b32.xlu0 %v2413, 30
        %v3132 = vpop.permute.xlu0 %3131
        %3133 = vrot.lane.b32.xlu0 %v2424, 30
        %v3134 = vpop.permute.xlu0 %3133
        %3135 = vrot.lane.b32.xlu0 %v2456, 30
        %v3136 = vpop.permute.xlu0 %3135
        %3137 = vrot.lane.b32.xlu0 %v2436, 30
        %v3138 = vpop.permute.xlu0 %3137
        %3139 = vrot.lane.b32.xlu0 0.0, 30
        %v3140 = vpop.permute.xlu0 %3139
        %3141 = vrot.lane.b32.xlu0 %v2446, 30
        %v3142 = vpop.permute.xlu0 %3141
        %3143 = vrot.lane.b32.xlu0 %v2354, 30
        %v3144 = vpop.permute.xlu0 %3143
        %3145 = vrot.lane.b32.xlu0 %v2365, 30
        %v3146 = vpop.permute.xlu0 %3145
        %3147 = vrot.lane.b32.xlu0 %v2448, 30
        %v3148 = vpop.permute.xlu0 %3147
        %3149 = vrot.lane.b32.xlu0 %v2377, 30
        %v3150 = vpop.permute.xlu0 %3149
        %3151 = vrot.lane.b32.xlu0 %v2388, 30
        %v3152 = vpop.permute.xlu0 %3151
        %3153 = vrot.lane.b32.xlu0 %v2450, 30
        %v3154 = vpop.permute.xlu0 %3153
        %3155 = vrot.lane.b32.xlu0 %v2479, 30
        %v3156 = vpop.permute.xlu0 %3155
        %3157 = vrot.lane.b32.xlu0 %v2481, 30
        %v3158 = vpop.permute.xlu0 %3157
        %3159 = vrot.lane.b32.xlu0 %v2483, 30
        %v3160 = vpop.permute.xlu0 %3159
        %3161 = vrot.lane.b32.xlu0 %v2485, 30
        %v3162 = vpop.permute.xlu0 %3161
        %3163 = vrot.lane.b32.xlu0 %v2487, 30
        %v3164 = vpop.permute.xlu0 %3163
        %3165 = vrot.lane.b32.xlu0 %v2527, 30
        %v3166 = vpop.permute.xlu0 %3165
        %3167 = vrot.lane.b32.xlu0 %v2529, 30
        %v3168 = vpop.permute.xlu0 %3167
        %3169 = vrot.lane.b32.xlu0 %v2531, 30
        %v3170 = vpop.permute.xlu0 %3169
        %3171 = vrot.lane.b32.xlu0 %v2533, 30
        %v3172 = vpop.permute.xlu0 %3171
        %3173 = vrot.lane.b32.xlu0 %v2535, 30
        %v3174 = vpop.permute.xlu0 %3173
        %3175 = vrot.lane.b32.xlu0 %v2537, 30
        %v3176 = vpop.permute.xlu0 %3175
        %v3216 = vsel %vm2326, 0.0, %v2560
        %v3217 = vsel %vm2326, %v2446, %v2562
        %v3218 = vsel %vm2326, %v2354, %v2564
        %v3219 = vsel %vm2326, %v2365, %v2566
        %v3220 = vsel %vm2326, %v2448, %v2568
        %v3221 = vsel %vm2326, %v2377, %v2570
        %v3222 = vsel %vm2326, %v2388, %v2572
        %v3223 = vsel %vm2326, %v2450, %v2574
        %v3224 = vsel %vm2326, %v2345, %v2576
        %v3225 = vsel %vm2326, %v2401, %v2578
        %v3226 = vsel %vm2326, %v2454, %v2580
        %v3227 = vsel %vm2326, %v2413, %v2582
        %v3228 = vsel %vm2326, %v2424, %v2584
        %v3229 = vsel %vm2326, %v2456, %v2586
        %v3230 = vsel %vm2326, %v2436, %v2588
        %v3231 = vsel %vm2326, %v2450, %v2590
        %v3232 = vsel %vm2326, %v2345, %v2592
        %v3233 = vsel %vm2326, %v2345, %v2594
        %v3234 = vsel %vm2326, %v2401, %v2596
        %v3235 = vsel %vm2326, %v2401, %v2598
        %v3236 = vsel %vm2326, %v2479, %v2600
        %v3237 = vsel %vm2326, %v2481, %v2602
        %v3238 = vsel %vm2326, %v2481, %v2604
        %v3239 = vsel %vm2326, %v2483, %v2606
        %v3240 = vsel %vm2326, %v2483, %v2608
        %v3241 = vsel %vm2326, %v2485, %v2610
        %v3242 = vsel %vm2326, %v2487, %v2612
        %v3243 = vsel %vm2326, %v2487, %v2614
        %v3244 = vsel %vm2326, %v2489, %v2616
        %v3245 = vsel %vm2326, %v2491, %v2618
        %v3246 = vsel %vm2326, %v2493, %v2620
        %v3247 = vsel %vm2326, %v2358, %v2622
        %v3248 = vsel %vm2326, %v2360, %v2624
        %v3249 = vsel %vm2326, %v2495, %v2626
        %v3250 = vsel %vm2326, %v2497, %v2628
        %v3251 = vsel %vm2326, %v2499, %v2630
        %v3252 = vsel %vm2326, %v2501, %v2632
        %v3253 = vsel %vm2326, %v2503, %v2634
        %v3254 = vsel %vm2326, %v2505, %v2636
        %v3255 = vsel %vm2326, %v2507, %v2638
        %v3256 = vsel %vm2326, %v2509, %v2640
        %v3257 = vsel %vm1100, %v3216, %v2684
        %v3258 = vsel %vm1100, %v3217, %v2686
        %v3259 = vsel %vm1100, %v3218, %v2688
        %v3260 = vsel %vm1100, %v3219, %v2690
        %v3261 = vsel %vm1100, %v3220, %v2692
        %v3262 = vsel %vm1100, %v3221, %v2694
        %v3263 = vsel %vm1100, %v3222, %v2696
        %v3264 = vsel %vm1100, %v3223, %v2698
        %v3265 = vsel %vm1100, %v3224, %v2700
        %v3266 = vsel %vm1100, %v3225, %v2702
        %v3267 = vsel %vm1100, %v3226, %v2704
        %v3268 = vsel %vm1100, %v3227, %v2706
        %v3269 = vsel %vm1100, %v3228, %v2708
        %v3270 = vsel %vm1100, %v3229, %v2710
        %v3271 = vsel %vm1100, %v3230, %v2712
        %v3272 = vsel %vm1100, %v3216, %v2714
        %v3273 = vsel %vm1100, %v3216, %v2716
        %v3274 = vsel %vm1100, %v3217, %v2718
        %v3275 = vsel %vm1100, %v3218, %v2720
        %v3276 = vsel %vm1100, %v3218, %v2722
        %v3277 = vsel %vm1100, %v3219, %v2724
        %v3278 = vsel %vm1100, %v3219, %v2726
        %v3279 = vsel %vm1100, %v3220, %v2728
        %v3280 = vsel %vm1100, %v3221, %v2730
        %v3281 = vsel %vm1100, %v3221, %v2732
        %v3282 = vsel %vm1100, %v3222, %v2734
        %v3283 = vsel %vm1100, %v3222, %v2736
        %v3284 = vsel %vm1100, %v3231, %v2738
        %v3285 = vsel %vm1100, %v3232, %v2740
        %v3286 = vsel %vm1100, %v3233, %v2742
        %v3287 = vsel %vm1100, %v3234, %v2744
        %v3288 = vsel %vm1100, %v3235, %v2746
        %v3289 = vsel %vm1100, %v3236, %v2748
        %v3290 = vsel %vm1100, %v3237, %v2750
        %v3291 = vsel %vm1100, %v3238, %v2752
        %v3292 = vsel %vm1100, %v3239, %v2754
        %v3293 = vsel %vm1100, %v3240, %v2756
        %v3294 = vsel %vm1100, %v3241, %v2758
        %v3295 = vsel %vm1100, %v3242, %v2760
        %v3296 = vsel %vm1100, %v3243, %v2762
        %v3297 = vsel %vm1100, %v3244, %v2764
        %v3298 = vsel %vm1100, %v3245, %v2764
        %v3299 = vsel %vm1100, %v3246, %v2766
        %v3300 = vsel %vm1100, %v3247, %v2688
        %v3301 = vsel %vm1100, %v3248, %v2688
        %v3302 = vsel %vm1100, %v3249, %v2768
        %v3303 = vsel %vm1100, %v3250, %v2768
        %v3304 = vsel %vm1100, %v3251, %v2770
        %v3305 = vsel %vm1100, %v3252, %v2772
        %v3306 = vsel %vm1100, %v3253, %v2772
        %v3307 = vsel %vm1100, %v3254, %v2774
        %v3308 = vsel %vm1100, %v3255, %v2774
        %v3309 = vsel %vm1100, %v3256, %v2774
        %vm3310 = vcmask 146432
        %v3311 = vsel %vm3310, %v3257, %v2824
        %v3312 = vsel %vm3310, %v3258, %v2826
        %v3313 = vsel %vm3310, %v3259, %v2828
        %v3314 = vsel %vm3310, %v3260, %v2830
        %v3315 = vsel %vm3310, %v3261, %v2832
        %v3316 = vsel %vm3310, %v3262, %v2834
        %v3317 = vsel %vm3310, %v3263, %v2836
        %v3318 = vsel %vm3310, %v3264, %v2838
        %v3319 = vsel %vm3310, %v3265, %v2840
        %v3320 = vsel %vm3310, %v3265, %v2842
        %v3321 = vsel %vm3310, %v3266, %v2844
        %v3322 = vsel %vm3310, %v3266, %v2846
        %v3323 = vsel %vm3310, %v3267, %v2848
        %v3324 = vsel %vm3310, %v3268, %v2850
        %v3325 = vsel %vm3310, %v3268, %v2852
        %v3326 = vsel %vm3310, %v3269, %v2854
        %v3327 = vsel %vm3310, %v3269, %v2856
        %v3328 = vsel %vm3310, %v3270, %v2858
        %v3329 = vsel %vm3310, %v3271, %v2860
        %v3330 = vsel %vm3310, %v3271, %v2862
        %v3331 = vsel %vm3310, %v3272, %v2864
        %v3332 = vsel %vm3310, %v3273, %v2866
        %v3333 = vsel %vm3310, %v3274, %v2868
        %v3334 = vsel %vm3310, %v3275, %v2870
        %v3335 = vsel %vm3310, %v3276, %v2872
        %v3336 = vsel %vm3310, %v3277, %v2874
        %v3337 = vsel %vm3310, %v3278, %v2876
        %v3338 = vsel %vm3310, %v3279, %v2878
        %v3339 = vsel %vm3310, %v3280, %v2880
        %v3340 = vsel %vm3310, %v3281, %v2882
        %v3341 = vsel %vm3310, %v3282, %v2884
        %v3342 = vsel %vm3310, %v3283, %v2886
        %v3343 = vsel %vm3310, %v3284, %v2888
        %v3344 = vsel %vm3310, %v3285, %v2890
        %v3345 = vsel %vm3310, %v3286, %v2890
        %v3346 = vsel %vm3310, %v3287, %v2892
        %v3347 = vsel %vm3310, %v3288, %v2892
        %v3348 = vsel %vm3310, %v3289, %v2894
        %v3349 = vsel %vm3310, %v3290, %v2896
        %v3350 = vsel %vm3310, %v3291, %v2896
        %v3351 = vsel %vm3310, %v3292, %v2898
        %v3352 = vsel %vm3310, %v3293, %v2898
        %v3353 = vsel %vm3310, %v3294, %v2900
        %v3354 = vsel %vm3310, %v3295, %v2902
        %v3355 = vsel %vm3310, %v3296, %v2902
        %v3356 = vsel %vm3310, %v3297, %v2904
        %v3357 = vsel %vm3310, %v3298, %v2904
        %v3358 = vsel %vm3310, %v3299, %v2906
        %v3359 = vsel %vm3310, %v3300, %v2828
        %v3360 = vsel %vm3310, %v3301, %v2828
        %v3361 = vsel %vm3310, %v3302, %v2908
        %v3362 = vsel %vm3310, %v3303, %v2908
        %v3363 = vsel %vm3310, %v3304, %v2910
        %v3364 = vsel %vm3310, %v3305, %v2912
        %v3365 = vsel %vm3310, %v3306, %v2912
        %v3366 = vsel %vm3310, %v3307, %v2914
        %v3367 = vsel %vm3310, %v3308, %v2914
        %v3368 = vsel %vm3310, %v3309, %v2914
        %v3369 = vsel %vm1105, %v3311, %v2962
        %v3370 = vsel %vm1105, %v3311, %v2964
        %v3371 = vsel %vm1105, %v3312, %v2966
        %v3372 = vsel %vm1105, %v3313, %v2968
        %v3373 = vsel %vm1105, %v3313, %v2970
        %v3374 = vsel %vm1105, %v3314, %v2972
        %v3375 = vsel %vm1105, %v3314, %v2974
        %v3376 = vsel %vm1105, %v3315, %v2976
        %v3377 = vsel %vm1105, %v3316, %v2978
        %v3378 = vsel %vm1105, %v3316, %v2980
        %v3379 = vsel %vm1105, %v3317, %v2982
        %v3380 = vsel %vm1105, %v3317, %v2984
        %v3381 = vsel %vm1105, %v3318, %v2986
        %v3382 = vsel %vm1105, %v3319, %v2988
        %v3383 = vsel %vm1105, %v3320, %v2990
        %v3384 = vsel %vm1105, %v3321, %v2992
        %v3385 = vsel %vm1105, %v3322, %v2994
        %v3386 = vsel %vm1105, %v3323, %v2996
        %v3387 = vsel %vm1105, %v3324, %v2998
        %v3388 = vsel %vm1105, %v3325, %v3000
        %v3389 = vsel %vm1105, %v3326, %v3002
        %v3390 = vsel %vm1105, %v3327, %v3004
        %v3391 = vsel %vm1105, %v3328, %v3006
        %v3392 = vsel %vm1105, %v3329, %v3008
        %v3393 = vsel %vm1105, %v3330, %v3010
        %v3394 = vsel %vm1105, %v3331, %v3012
        %v3395 = vsel %vm1105, %v3332, %v3012
        %v3396 = vsel %vm1105, %v3333, %v3014
        %v3397 = vsel %vm1105, %v3334, %v3016
        %v3398 = vsel %vm1105, %v3335, %v3016
        %v3399 = vsel %vm1105, %v3336, %v3018
        %v3400 = vsel %vm1105, %v3337, %v3018
        %v3401 = vsel %vm1105, %v3338, %v3020
        %v3402 = vsel %vm1105, %v3339, %v3022
        %v3403 = vsel %vm1105, %v3340, %v3022
        %v3404 = vsel %vm1105, %v3341, %v3024
        %v3405 = vsel %vm1105, %v3342, %v3024
        %v3406 = vsel %vm1105, %v3343, %v3026
        %v3407 = vsel %vm1105, %v3344, %v3028
        %v3408 = vsel %vm1105, %v3345, %v3028
        %v3409 = vsel %vm1105, %v3346, %v3030
        %v3410 = vsel %vm1105, %v3347, %v3030
        %v3411 = vsel %vm1105, %v3348, %v3032
        %v3412 = vsel %vm1105, %v3349, %v3034
        %v3413 = vsel %vm1105, %v3350, %v3034
        %v3414 = vsel %vm1105, %v3351, %v3036
        %v3415 = vsel %vm1105, %v3352, %v3036
        %v3416 = vsel %vm1105, %v3353, %v3038
        %v3417 = vsel %vm1105, %v3354, %v3040
        %v3418 = vsel %vm1105, %v3355, %v3040
        %v3419 = vsel %vm1105, %v3356, %v3042
        %v3420 = vsel %vm1105, %v3357, %v3042
        %v3421 = vsel %vm1105, %v3358, %v3044
        %v3422 = vsel %vm1105, %v3359, %v3016
        %v3423 = vsel %vm1105, %v3360, %v3016
        %v3424 = vsel %vm1105, %v3361, %v3046
        %v3425 = vsel %vm1105, %v3362, %v3046
        %v3426 = vsel %vm1105, %v3363, %v3048
        %v3427 = vsel %vm1105, %v3364, %v3050
        %v3428 = vsel %vm1105, %v3365, %v3050
        %v3429 = vsel %vm1105, %v3366, %v3052
        %v3430 = vsel %vm1105, %v3367, %v3052
        %v3431 = vsel %vm1105, %v3368, %v3052
        %vm3432 = vcmask 244736
        %v3433 = vsel %vm3432, %v3369, %v3100
        %v3434 = vsel %vm3432, %v3370, %v3102
        %v3435 = vsel %vm3432, %v3371, %v3104
        %v3436 = vsel %vm3432, %v3372, %v3106
        %v3437 = vsel %vm3432, %v3373, %v3108
        %v3438 = vsel %vm3432, %v3374, %v3110
        %v3439 = vsel %vm3432, %v3375, %v3112
        %v3440 = vsel %vm3432, %v3376, %v3114
        %v3441 = vsel %vm3432, %v3377, %v3116
        %v3442 = vsel %vm3432, %v3378, %v3118
        %v3443 = vsel %vm3432, %v3379, %v3120
        %v3444 = vsel %vm3432, %v3380, %v3122
        %v3445 = vsel %vm3432, %v3381, %v3124
        %v3446 = vsel %vm3432, %v3382, %v3126
        %v3447 = vsel %vm3432, %v3383, %v3126
        %v3448 = vsel %vm3432, %v3384, %v3128
        %v3449 = vsel %vm3432, %v3385, %v3128
        %v3450 = vsel %vm3432, %v3386, %v3130
        %v3451 = vsel %vm3432, %v3387, %v3132
        %v3452 = vsel %vm3432, %v3388, %v3132
        %v3453 = vsel %vm3432, %v3389, %v3134
        %v3454 = vsel %vm3432, %v3390, %v3134
        %v3455 = vsel %vm3432, %v3391, %v3136
        %v3456 = vsel %vm3432, %v3392, %v3138
        %v3457 = vsel %vm3432, %v3393, %v3138
        %v3458 = vsel %vm3432, %v3394, %v3140
        %v3459 = vsel %vm3432, %v3395, %v3140
        %v3460 = vsel %vm3432, %v3396, %v3142
        %v3461 = vsel %vm3432, %v3397, %v3144
        %v3462 = vsel %vm3432, %v3398, %v3144
        %v3463 = vsel %vm3432, %v3399, %v3146
        %v3464 = vsel %vm3432, %v3400, %v3146
        %v3465 = vsel %vm3432, %v3401, %v3148
        %v3466 = vsel %vm3432, %v3402, %v3150
        %v3467 = vsel %vm3432, %v3403, %v3150
        %v3468 = vsel %vm3432, %v3404, %v3152
        %v3469 = vsel %vm3432, %v3405, %v3152
        %v3470 = vsel %vm3432, %v3406, %v3154
        %v3471 = vsel %vm3432, %v3407, %v3126
        %v3472 = vsel %vm3432, %v3408, %v3126
        %v3473 = vsel %vm3432, %v3409, %v3128
        %v3474 = vsel %vm3432, %v3410, %v3128
        %v3475 = vsel %vm3432, %v3411, %v3156
        %v3476 = vsel %vm3432, %v3412, %v3158
        %v3477 = vsel %vm3432, %v3413, %v3158
        %v3478 = vsel %vm3432, %v3414, %v3160
        %v3479 = vsel %vm3432, %v3415, %v3160
        %v3480 = vsel %vm3432, %v3416, %v3162
        %v3481 = vsel %vm3432, %v3417, %v3164
        %v3482 = vsel %vm3432, %v3418, %v3164
        %v3483 = vsel %vm3432, %v3419, %v3166
        %v3484 = vsel %vm3432, %v3420, %v3166
        %v3485 = vsel %vm3432, %v3421, %v3168
        %v3486 = vsel %vm3432, %v3422, %v3144
        %v3487 = vsel %vm3432, %v3423, %v3144
        %v3488 = vsel %vm3432, %v3424, %v3170
        %v3489 = vsel %vm3432, %v3425, %v3170
        %v3490 = vsel %vm3432, %v3426, %v3172
        %v3491 = vsel %vm3432, %v3427, %v3174
        %v3492 = vsel %vm3432, %v3428, %v3174
        %v3493 = vsel %vm3432, %v3429, %v3176
        %v3494 = vsel %vm3432, %v3430, %v3176
        %v3495 = vsel %vm3432, %v3431, %v3176
        %3497 = vset.pattern.permute.xlu0 0
        %3498 = vperm.xlu0 %3497, %v2338
        %v3499 = vpop.permute.xlu0 %3498
        %3502 = vset.pattern.permute.xlu0 0
        %3503 = vperm.xlu0 %3502, %v2339
        %v3504 = vpop.permute.xlu0 %3503
        %vm3506 = vcmask 949248
        %v3508 = vsel %vm3506, %v2333, 0
        %v3511 = vsel %vm3506, %v2337, 0
        %v3514 = vsel %vm635, %v3495, 0
        %3516 = vmatpush.msra.mxu0 %v3448
        %3517 = vmatpush.msra.mxu0 %v3447
        %3518 = vmatpush.msra.mxu0 %v3446
        %3519 = vmatpush.msra.mxu0 %v3445
        %3520 = vmatpush.msra.mxu0 %v3444
        %3521 = vmatpush.msra.mxu0 %v3443
        %3522 = vmatpush.msra.mxu0 %v3442
        %3523 = vmatpush.msra.mxu0 %v3441
        %3524 = vmatpush.msra.mxu0 %v3440
        %3525 = vmatpush.msra.mxu0 %v3439
        %3526 = vmatpush.msra.mxu0 %v3438
        %3527 = vmatpush.msra.mxu0 %v3437
        %3528 = vmatpush.msra.mxu0 %v3436
        %3529 = vmatpush.msra.mxu0 %v3435
        %3530 = vmatpush.msra.mxu0 %v3434
        %3531 = vmatpush.msra.mxu0 %v3433
        %3532 = vmatmul.f32.gmra.mxu0 %v2330
        %v3533 = vpop.f32.mrf.mxu0
        %v3534 = vadd.f32 %v3499, %v3533
        %3535 = vmatmul.f32.gmra.mxu0 %v2334
        %v3536 = vpop.f32.mrf.mxu0
        %v3537 = vadd.f32 %v3504, %v3536
        %3538 = vdwg.mxu0
        %3539 = vmatpush.msra.mxu0 %v3464
        %3540 = vmatpush.msra.mxu0 %v3463
        %3541 = vmatpush.msra.mxu0 %v3462
        %3542 = vmatpush.msra.mxu0 %v3461
        %3543 = vmatpush.msra.mxu0 %v3460
        %3544 = vmatpush.msra.mxu0 %v3459
        %3545 = vmatpush.msra.mxu0 %v3458
        %3546 = vmatpush.msra.mxu0 %v3457
        %3547 = vmatpush.msra.mxu0 %v3456
        %3548 = vmatpush.msra.mxu0 %v3455
        %3549 = vmatpush.msra.mxu0 %v3454
        %3550 = vmatpush.msra.mxu0 %v3453
        %3551 = vmatpush.msra.mxu0 %v3452
        %3552 = vmatpush.msra.mxu0 %v3451
        %3553 = vmatpush.msra.mxu0 %v3450
        %3554 = vmatpush.msra.mxu0 %v3449
        %3555 = vmatmul.f32.gmra.mxu0 %v2331
        %v3556 = vpop.f32.mrf.mxu0
        %v3557 = vadd.f32 %v3534, %v3556
        %3558 = vmatmul.f32.gmra.mxu0 %v2335
        %v3559 = vpop.f32.mrf.mxu0
        %v3560 = vadd.f32 %v3537, %v3559
        %3561 = vdwg.mxu0
        %3562 = vmatpush.msra.mxu0 %v3480
        %3563 = vmatpush.msra.mxu0 %v3479
        %3564 = vmatpush.msra.mxu0 %v3478
        %3565 = vmatpush.msra.mxu0 %v3477
        %3566 = vmatpush.msra.mxu0 %v3476
        %3567 = vmatpush.msra.mxu0 %v3475
        %3568 = vmatpush.msra.mxu0 %v3474
        %3569 = vmatpush.msra.mxu0 %v3473
        %3570 = vmatpush.msra.mxu0 %v3472
        %3571 = vmatpush.msra.mxu0 %v3471
        %3572 = vmatpush.msra.mxu0 %v3470
        %3573 = vmatpush.msra.mxu0 %v3469
        %3574 = vmatpush.msra.mxu0 %v3468
        %3575 = vmatpush.msra.mxu0 %v3467
        %3576 = vmatpush.msra.mxu0 %v3466
        %3577 = vmatpush.msra.mxu0 %v3465
        %3578 = vmatmul.f32.gmra.mxu0 %v2332
        %v3579 = vpop.f32.mrf.mxu0
        %v3580 = vadd.f32 %v3557, %v3579
        %3581 = vmatmul.f32.gmra.mxu0 %v2336
        %v3582 = vpop.f32.mrf.mxu0
        %v3583 = vadd.f32 %v3560, %v3582
        %3584 = vdwg.mxu0
        %3585 = vmatpush.msra.mxu0 0.0
        %3586 = vmatpush.msra.mxu0 %v3514
        %3587 = vmatpush.msra.mxu0 %v3494
        %3588 = vmatpush.msra.mxu0 %v3493
        %3589 = vmatpush.msra.mxu0 %v3492
        %3590 = vmatpush.msra.mxu0 %v3491
        %3591 = vmatpush.msra.mxu0 %v3490
        %3592 = vmatpush.msra.mxu0 %v3489
        %3593 = vmatpush.msra.mxu0 %v3488
        %3594 = vmatpush.msra.mxu0 %v3487
        %3595 = vmatpush.msra.mxu0 %v3486
        %3596 = vmatpush.msra.mxu0 %v3485
        %3597 = vmatpush.msra.mxu0 %v3484
        %3598 = vmatpush.msra.mxu0 %v3483
        %3599 = vmatpush.msra.mxu0 %v3482
        %3600 = vmatpush.msra.mxu0 %v3481
        %3601 = vmatmul.f32.gmra.mxu0 %v3508
        %v3602 = vpop.f32.mrf.mxu0
        %v3603 = vadd.f32 %v3580, %v3602
        %3604 = vmatmul.f32.gmra.mxu0 %v3511
        %v3605 = vpop.f32.mrf.mxu0
        %v3606 = vadd.f32 %v3583, %v3605
        %3607 = vdwg.mxu0
        %v3608 = vmax.f32 %v3603, 0.0
        %v3609 = vmax.f32 %v3606, 0.0
        %3612 = vrot.lane.b32.xlu0 %v3608, 122
        %v3613 = vpop.permute.xlu0 %3612
        %3614 = vrot.lane.b32.xlu0 %v3609, 122
        %v3615 = vpop.permute.xlu0 %3614
        %3618 = vrot.lane.b32.xlu0 %v3608, 116
        %v3619 = vpop.permute.xlu0 %3618
        %3620 = vrot.lane.b32.xlu0 %v3609, 116
        %v3621 = vpop.permute.xlu0 %3620
        %3624 = vrot.lane.b32.xlu0 %v3608, 110
        %v3625 = vpop.permute.xlu0 %3624
        %3626 = vrot.lane.b32.xlu0 %v3609, 110
        %v3627 = vpop.permute.xlu0 %3626
        %3630 = vrot.lane.b32.xlu0 %v3608, 104
        %v3631 = vpop.permute.xlu0 %3630
        %3632 = vrot.lane.b32.xlu0 %v3609, 104
        %v3633 = vpop.permute.xlu0 %3632
        %3636 = vrot.lane.b32.xlu0 %v3608, 98
        %v3637 = vpop.permute.xlu0 %3636
        %3638 = vrot.lane.b32.xlu0 %v3609, 98
        %v3639 = vpop.permute.xlu0 %3638
        %3642 = vrot.lane.b32.xlu0 %v3608, 1
        %v3643 = vpop.permute.xlu0 %3642
        %3644 = vrot.lane.b32.xlu0 %v3609, 1
        %v3645 = vpop.permute.xlu0 %3644
        %3648 = vrot.lane.b32.xlu0 %v3608, 2
        %v3649 = vpop.permute.xlu0 %3648
        %3650 = vrot.lane.b32.xlu0 %v3609, 2
        %v3651 = vpop.permute.xlu0 %3650
        %3654 = vrot.lane.b32.xlu0 %v3608, 3
        %v3655 = vpop.permute.xlu0 %3654
        %3656 = vrot.lane.b32.xlu0 %v3609, 3
        %v3657 = vpop.permute.xlu0 %3656
        %3660 = vrot.lane.b32.xlu0 %v3608, 4
        %v3661 = vpop.permute.xlu0 %3660
        %3662 = vrot.lane.b32.xlu0 %v3609, 4
        %v3663 = vpop.permute.xlu0 %3662
        %3666 = vrot.lane.b32.xlu0 %v3608, 5
        %v3667 = vpop.permute.xlu0 %3666
        %3668 = vrot.lane.b32.xlu0 %v3609, 5
        %v3669 = vpop.permute.xlu0 %3668
        %3672 = vrot.lane.b32.xlu0 %v3608, 6
        %v3673 = vpop.permute.xlu0 %3672
        %3674 = vrot.lane.b32.xlu0 %v3609, 6
        %v3675 = vpop.permute.xlu0 %3674
        %v3678 = vsel %vm1349, %v3608, %v3643
        %v3679 = vsel %vm1349, %v3609, %v3645
        %v3680 = vsel %vm1352, %v3678, %v3643
        %v3681 = vsel %vm1352, %v3679, %v3645
        %v3682 = vsel %vm1355, %v3680, %v3649
        %v3683 = vsel %vm1355, %v3681, %v3651
        %v3684 = vsel %vm1150, %v3682, %v3649
        %v3685 = vsel %vm1150, %v3683, %v3651
        %v3686 = vsel %vm1360, %v3684, %v3655
        %v3687 = vsel %vm1360, %v3685, %v3657
        %v3688 = vsel %vm2326, %v3686, %v3655
        %v3689 = vsel %vm2326, %v3687, %v3657
        %vm3690 = vcmask 56320
        %v3691 = vsel %vm3690, %v3688, %v3661
        %v3692 = vsel %vm3690, %v3689, %v3663
        %v3693 = vsel %vm1294, %v3691, %v3661
        %v3694 = vsel %vm1294, %v3692, %v3663
        %vm3695 = vcmask 72704
        %v3696 = vsel %vm3695, %v3693, %v3667
        %v3697 = vsel %vm3695, %v3694, %v3669
        %vm3698 = vcmask 80896
        %v3699 = vsel %vm3698, %v3696, %v3667
        %v3700 = vsel %vm3698, %v3697, %v3669
        %vm3701 = vcmask 89088
        %v3702 = vsel %vm3701, %v3699, %v3673
        %v3703 = vsel %vm3701, %v3700, %v3675
        %3704 = vrot.lane.b32.xlu0 %v3613, 1
        %v3705 = vpop.permute.xlu0 %3704
        %3706 = vrot.lane.b32.xlu0 %v3615, 1
        %v3707 = vpop.permute.xlu0 %3706
        %3710 = vrot.lane.b32.xlu0 %v3613, 2
        %v3711 = vpop.permute.xlu0 %3710
        %3712 = vrot.lane.b32.xlu0 %v3615, 2
        %v3713 = vpop.permute.xlu0 %3712
        %3716 = vrot.lane.b32.xlu0 %v3613, 3
        %v3717 = vpop.permute.xlu0 %3716
        %3718 = vrot.lane.b32.xlu0 %v3615, 3
        %v3719 = vpop.permute.xlu0 %3718
        %3722 = vrot.lane.b32.xlu0 %v3613, 4
        %v3723 = vpop.permute.xlu0 %3722
        %3724 = vrot.lane.b32.xlu0 %v3615, 4
        %v3725 = vpop.permute.xlu0 %3724
        %3728 = vrot.lane.b32.xlu0 %v3613, 5
        %v3729 = vpop.permute.xlu0 %3728
        %3730 = vrot.lane.b32.xlu0 %v3615, 5
        %v3731 = vpop.permute.xlu0 %3730
        %3734 = vrot.lane.b32.xlu0 %v3613, 6
        %v3735 = vpop.permute.xlu0 %3734
        %3736 = vrot.lane.b32.xlu0 %v3615, 6
        %v3737 = vpop.permute.xlu0 %3736
        %v3740 = vsel %vm1349, %v3613, %v3705
        %v3741 = vsel %vm1349, %v3615, %v3707
        %v3742 = vsel %vm1352, %v3740, %v3705
        %v3743 = vsel %vm1352, %v3741, %v3707
        %v3744 = vsel %vm1355, %v3742, %v3711
        %v3745 = vsel %vm1355, %v3743, %v3713
        %v3746 = vsel %vm1150, %v3744, %v3711
        %v3747 = vsel %vm1150, %v3745, %v3713
        %v3748 = vsel %vm1360, %v3746, %v3717
        %v3749 = vsel %vm1360, %v3747, %v3719
        %v3750 = vsel %vm2326, %v3748, %v3717
        %v3751 = vsel %vm2326, %v3749, %v3719
        %v3752 = vsel %vm3690, %v3750, %v3723
        %v3753 = vsel %vm3690, %v3751, %v3725
        %v3754 = vsel %vm1294, %v3752, %v3723
        %v3755 = vsel %vm1294, %v3753, %v3725
        %v3756 = vsel %vm3695, %v3754, %v3729
        %v3757 = vsel %vm3695, %v3755, %v3731
        %v3758 = vsel %vm3698, %v3756, %v3729
        %v3759 = vsel %vm3698, %v3757, %v3731
        %v3760 = vsel %vm3701, %v3758, %v3735
        %v3761 = vsel %vm3701, %v3759, %v3737
        %3762 = vrot.lane.b32.xlu0 %v3619, 1
        %v3763 = vpop.permute.xlu0 %3762
        %3764 = vrot.lane.b32.xlu0 %v3621, 1
        %v3765 = vpop.permute.xlu0 %3764
        %3768 = vrot.lane.b32.xlu0 %v3619, 2
        %v3769 = vpop.permute.xlu0 %3768
        %3770 = vrot.lane.b32.xlu0 %v3621, 2
        %v3771 = vpop.permute.xlu0 %3770
        %3774 = vrot.lane.b32.xlu0 %v3619, 3
        %v3775 = vpop.permute.xlu0 %3774
        %3776 = vrot.lane.b32.xlu0 %v3621, 3
        %v3777 = vpop.permute.xlu0 %3776
        %3780 = vrot.lane.b32.xlu0 %v3619, 4
        %v3781 = vpop.permute.xlu0 %3780
        %3782 = vrot.lane.b32.xlu0 %v3621, 4
        %v3783 = vpop.permute.xlu0 %3782
        %3786 = vrot.lane.b32.xlu0 %v3619, 5
        %v3787 = vpop.permute.xlu0 %3786
        %3788 = vrot.lane.b32.xlu0 %v3621, 5
        %v3789 = vpop.permute.xlu0 %3788
        %3792 = vrot.lane.b32.xlu0 %v3619, 6
        %v3793 = vpop.permute.xlu0 %3792
        %3794 = vrot.lane.b32.xlu0 %v3621, 6
        %v3795 = vpop.permute.xlu0 %3794
        %v3798 = vsel %vm1349, %v3619, %v3763
        %v3799 = vsel %vm1349, %v3621, %v3765
        %v3800 = vsel %vm1352, %v3798, %v3763
        %v3801 = vsel %vm1352, %v3799, %v3765
        %v3802 = vsel %vm1355, %v3800, %v3769
        %v3803 = vsel %vm1355, %v3801, %v3771
        %v3804 = vsel %vm1150, %v3802, %v3769
        %v3805 = vsel %vm1150, %v3803, %v3771
        %v3806 = vsel %vm1360, %v3804, %v3775
        %v3807 = vsel %vm1360, %v3805, %v3777
        %v3808 = vsel %vm2326, %v3806, %v3775
        %v3809 = vsel %vm2326, %v3807, %v3777
        %v3810 = vsel %vm3690, %v3808, %v3781
        %v3811 = vsel %vm3690, %v3809, %v3783
        %v3812 = vsel %vm1294, %v3810, %v3781
        %v3813 = vsel %vm1294, %v3811, %v3783
        %v3814 = vsel %vm3695, %v3812, %v3787
        %v3815 = vsel %vm3695, %v3813, %v3789
        %v3816 = vsel %vm3698, %v3814, %v3787
        %v3817 = vsel %vm3698, %v3815, %v3789
        %v3818 = vsel %vm3701, %v3816, %v3793
        %v3819 = vsel %vm3701, %v3817, %v3795
        %3820 = vrot.lane.b32.xlu0 %v3625, 1
        %v3821 = vpop.permute.xlu0 %3820
        %3822 = vrot.lane.b32.xlu0 %v3627, 1
        %v3823 = vpop.permute.xlu0 %3822
        %3826 = vrot.lane.b32.xlu0 %v3625, 2
        %v3827 = vpop.permute.xlu0 %3826
        %3828 = vrot.lane.b32.xlu0 %v3627, 2
        %v3829 = vpop.permute.xlu0 %3828
        %3832 = vrot.lane.b32.xlu0 %v3625, 3
        %v3833 = vpop.permute.xlu0 %3832
        %3834 = vrot.lane.b32.xlu0 %v3627, 3
        %v3835 = vpop.permute.xlu0 %3834
        %3838 = vrot.lane.b32.xlu0 %v3625, 4
        %v3839 = vpop.permute.xlu0 %3838
        %3840 = vrot.lane.b32.xlu0 %v3627, 4
        %v3841 = vpop.permute.xlu0 %3840
        %3844 = vrot.lane.b32.xlu0 %v3625, 5
        %v3845 = vpop.permute.xlu0 %3844
        %3846 = vrot.lane.b32.xlu0 %v3627, 5
        %v3847 = vpop.permute.xlu0 %3846
        %3850 = vrot.lane.b32.xlu0 %v3625, 6
        %v3851 = vpop.permute.xlu0 %3850
        %3852 = vrot.lane.b32.xlu0 %v3627, 6
        %v3853 = vpop.permute.xlu0 %3852
        %v3856 = vsel %vm1349, %v3625, %v3821
        %v3857 = vsel %vm1349, %v3627, %v3823
        %v3858 = vsel %vm1352, %v3856, %v3821
        %v3859 = vsel %vm1352, %v3857, %v3823
        %v3860 = vsel %vm1355, %v3858, %v3827
        %v3861 = vsel %vm1355, %v3859, %v3829
        %v3862 = vsel %vm1150, %v3860, %v3827
        %v3863 = vsel %vm1150, %v3861, %v3829
        %v3864 = vsel %vm1360, %v3862, %v3833
        %v3865 = vsel %vm1360, %v3863, %v3835
        %v3866 = vsel %vm2326, %v3864, %v3833
        %v3867 = vsel %vm2326, %v3865, %v3835
        %v3868 = vsel %vm3690, %v3866, %v3839
        %v3869 = vsel %vm3690, %v3867, %v3841
        %v3870 = vsel %vm1294, %v3868, %v3839
        %v3871 = vsel %vm1294, %v3869, %v3841
        %v3872 = vsel %vm3695, %v3870, %v3845
        %v3873 = vsel %vm3695, %v3871, %v3847
        %v3874 = vsel %vm3698, %v3872, %v3845
        %v3875 = vsel %vm3698, %v3873, %v3847
        %v3876 = vsel %vm3701, %v3874, %v3851
        %v3877 = vsel %vm3701, %v3875, %v3853
        %3878 = vrot.lane.b32.xlu0 %v3631, 1
        %v3879 = vpop.permute.xlu0 %3878
        %3880 = vrot.lane.b32.xlu0 %v3633, 1
        %v3881 = vpop.permute.xlu0 %3880
        %3884 = vrot.lane.b32.xlu0 %v3631, 2
        %v3885 = vpop.permute.xlu0 %3884
        %3886 = vrot.lane.b32.xlu0 %v3633, 2
        %v3887 = vpop.permute.xlu0 %3886
        %3890 = vrot.lane.b32.xlu0 %v3631, 3
        %v3891 = vpop.permute.xlu0 %3890
        %3892 = vrot.lane.b32.xlu0 %v3633, 3
        %v3893 = vpop.permute.xlu0 %3892
        %3896 = vrot.lane.b32.xlu0 %v3631, 4
        %v3897 = vpop.permute.xlu0 %3896
        %3898 = vrot.lane.b32.xlu0 %v3633, 4
        %v3899 = vpop.permute.xlu0 %3898
        %3902 = vrot.lane.b32.xlu0 %v3631, 5
        %v3903 = vpop.permute.xlu0 %3902
        %3904 = vrot.lane.b32.xlu0 %v3633, 5
        %v3905 = vpop.permute.xlu0 %3904
        %3908 = vrot.lane.b32.xlu0 %v3631, 6
        %v3909 = vpop.permute.xlu0 %3908
        %3910 = vrot.lane.b32.xlu0 %v3633, 6
        %v3911 = vpop.permute.xlu0 %3910
        %v3914 = vsel %vm1349, %v3631, %v3879
        %v3915 = vsel %vm1349, %v3633, %v3881
        %v3916 = vsel %vm1352, %v3914, %v3879
        %v3917 = vsel %vm1352, %v3915, %v3881
        %v3918 = vsel %vm1355, %v3916, %v3885
        %v3919 = vsel %vm1355, %v3917, %v3887
        %v3920 = vsel %vm1150, %v3918, %v3885
        %v3921 = vsel %vm1150, %v3919, %v3887
        %v3922 = vsel %vm1360, %v3920, %v3891
        %v3923 = vsel %vm1360, %v3921, %v3893
        %v3924 = vsel %vm2326, %v3922, %v3891
        %v3925 = vsel %vm2326, %v3923, %v3893
        %v3926 = vsel %vm3690, %v3924, %v3897
        %v3927 = vsel %vm3690, %v3925, %v3899
        %v3928 = vsel %vm1294, %v3926, %v3897
        %v3929 = vsel %vm1294, %v3927, %v3899
        %v3930 = vsel %vm3695, %v3928, %v3903
        %v3931 = vsel %vm3695, %v3929, %v3905
        %v3932 = vsel %vm3698, %v3930, %v3903
        %v3933 = vsel %vm3698, %v3931, %v3905
        %v3934 = vsel %vm3701, %v3932, %v3909
        %v3935 = vsel %vm3701, %v3933, %v3911
        %3936 = vrot.lane.b32.xlu0 %v3637, 1
        %v3937 = vpop.permute.xlu0 %3936
        %3938 = vrot.lane.b32.xlu0 %v3639, 1
        %v3939 = vpop.permute.xlu0 %3938
        %3942 = vrot.lane.b32.xlu0 %v3637, 2
        %v3943 = vpop.permute.xlu0 %3942
        %3944 = vrot.lane.b32.xlu0 %v3639, 2
        %v3945 = vpop.permute.xlu0 %3944
        %3948 = vrot.lane.b32.xlu0 %v3637, 3
        %v3949 = vpop.permute.xlu0 %3948
        %3950 = vrot.lane.b32.xlu0 %v3639, 3
        %v3951 = vpop.permute.xlu0 %3950
        %3954 = vrot.lane.b32.xlu0 %v3637, 4
        %v3955 = vpop.permute.xlu0 %3954
        %3956 = vrot.lane.b32.xlu0 %v3639, 4
        %v3957 = vpop.permute.xlu0 %3956
        %3960 = vrot.lane.b32.xlu0 %v3637, 5
        %v3961 = vpop.permute.xlu0 %3960
        %3962 = vrot.lane.b32.xlu0 %v3639, 5
        %v3963 = vpop.permute.xlu0 %3962
        %3966 = vrot.lane.b32.xlu0 %v3637, 6
        %v3967 = vpop.permute.xlu0 %3966
        %3968 = vrot.lane.b32.xlu0 %v3639, 6
        %v3969 = vpop.permute.xlu0 %3968
        %v3972 = vsel %vm1349, %v3637, %v3937
        %v3973 = vsel %vm1349, %v3639, %v3939
        %v3974 = vsel %vm1352, %v3972, %v3937
        %v3975 = vsel %vm1352, %v3973, %v3939
        %v3976 = vsel %vm1355, %v3974, %v3943
        %v3977 = vsel %vm1355, %v3975, %v3945
        %v3978 = vsel %vm1150, %v3976, %v3943
        %v3979 = vsel %vm1150, %v3977, %v3945
        %v3980 = vsel %vm1360, %v3978, %v3949
        %v3981 = vsel %vm1360, %v3979, %v3951
        %v3982 = vsel %vm2326, %v3980, %v3949
        %v3983 = vsel %vm2326, %v3981, %v3951
        %v3984 = vsel %vm3690, %v3982, %v3955
        %v3985 = vsel %vm3690, %v3983, %v3957
        %v3986 = vsel %vm1294, %v3984, %v3955
        %v3987 = vsel %vm1294, %v3985, %v3957
        %v3988 = vsel %vm3695, %v3986, %v3961
        %v3989 = vsel %vm3695, %v3987, %v3963
        %v3990 = vsel %vm3698, %v3988, %v3961
        %v3991 = vsel %vm3698, %v3989, %v3963
        %v3992 = vsel %vm3701, %v3990, %v3967
        %v3993 = vsel %vm3701, %v3991, %v3969
        %4006 = vrot.lane.b32.xlu0 %v3702, 4
        %v4007 = vpop.permute.xlu0 %4006
        %4008 = vrot.lane.b32.xlu0 %v3703, 4
        %v4009 = vpop.permute.xlu0 %4008
        %4010 = vrot.lane.b32.xlu0 %v3760, 4
        %v4011 = vpop.permute.xlu0 %4010
        %4012 = vrot.lane.b32.xlu0 %v3761, 4
        %v4013 = vpop.permute.xlu0 %4012
        %4014 = vrot.lane.b32.xlu0 %v3818, 4
        %v4015 = vpop.permute.xlu0 %4014
        %4016 = vrot.lane.b32.xlu0 %v3819, 4
        %v4017 = vpop.permute.xlu0 %4016
        %4018 = vrot.lane.b32.xlu0 %v3876, 4
        %v4019 = vpop.permute.xlu0 %4018
        %4020 = vrot.lane.b32.xlu0 %v3877, 4
        %v4021 = vpop.permute.xlu0 %4020
        %4022 = vrot.lane.b32.xlu0 %v3934, 4
        %v4023 = vpop.permute.xlu0 %4022
        %4024 = vrot.lane.b32.xlu0 %v3935, 4
        %v4025 = vpop.permute.xlu0 %4024
        %4026 = vrot.lane.b32.xlu0 %v3992, 4
        %v4027 = vpop.permute.xlu0 %4026
        %4028 = vrot.lane.b32.xlu0 %v3993, 4
        %v4029 = vpop.permute.xlu0 %4028
        %v4042 = vsel %vm1150, 0.0, %v4007
        %v4043 = vsel %vm1150, 0.0, %v4009
        %v4044 = vsel %vm1150, 0.0, %v4011
        %v4045 = vsel %vm1150, 0.0, %v4013
        %v4046 = vsel %vm1150, 0.0, %v4015
        %v4047 = vsel %vm1150, 0.0, %v4017
        %v4048 = vsel %vm1150, 0.0, %v4019
        %v4049 = vsel %vm1150, 0.0, %v4021
        %v4050 = vsel %vm1150, 0.0, %v4023
        %v4051 = vsel %vm1150, 0.0, %v4025
        %v4052 = vsel %vm1150, 0.0, %v4027
        %v4053 = vsel %vm1150, 0.0, %v4029
        %vm4054 = vcmask 130048
        %v4055 = vsel %vm4054, %v4042, 0.0
        %v4056 = vsel %vm4054, %v4043, 0.0
        %v4057 = vsel %vm4054, %v4044, 0.0
        %v4058 = vsel %vm4054, %v4045, 0.0
        %v4059 = vsel %vm4054, %v4046, 0.0
        %v4060 = vsel %vm4054, %v4047, 0.0
        %v4061 = vsel %vm4054, %v4048, 0.0
        %v4062 = vsel %vm4054, %v4049, 0.0
        %v4063 = vsel %vm4054, %v4050, 0.0
        %v4064 = vsel %vm4054, %v4051, 0.0
        %v4065 = vsel %vm4054, %v4052, 0.0
        %v4066 = vsel %vm4054, %v4053, 0.0
        %v4067 = vld [vmem:[%s7] sm:$0x3]
        %v4068 = vld [vmem:[#allocation2] sm:$0x1]
        %v4081 = vrot.slane 0.0, 6
        %v4082 = vsel %vm609, %v4081, %v4081
        %v4083 = vrot.slane %v4055, 6
        %v4084 = vrot.slane %v4056, 6
        %v4085 = vsel %vm609, %v4083, %v4084
        %v4086 = vrot.slane %v4057, 6
        %v4087 = vrot.slane %v4058, 6
        %v4088 = vsel %vm609, %v4086, %v4087
        %v4089 = vrot.slane %v4059, 6
        %v4090 = vrot.slane %v4060, 6
        %v4091 = vsel %vm609, %v4089, %v4090
        %v4092 = vrot.slane %v4061, 6
        %v4093 = vrot.slane %v4062, 6
        %v4094 = vsel %vm609, %v4092, %v4093
        %v4095 = vrot.slane %v4063, 6
        %v4096 = vrot.slane %v4064, 6
        %v4097 = vsel %vm609, %v4095, %v4096
        %v4098 = vrot.slane %v4065, 6
        %v4099 = vrot.slane %v4066, 6
        %v4100 = vsel %vm609, %v4098, %v4099
        %4101 = vrot.lane.b32.xlu0 %v4081, 127
        %v4102 = vpop.permute.xlu0 %4101
        %4103 = vrot.lane.b32.xlu0 %v4082, 127
        %v4104 = vpop.permute.xlu0 %4103
        %4105 = vrot.lane.b32.xlu0 %v4083, 127
        %v4106 = vpop.permute.xlu0 %4105
        %4107 = vrot.lane.b32.xlu0 %v4085, 127
        %v4108 = vpop.permute.xlu0 %4107
        %4109 = vrot.lane.b32.xlu0 %v4086, 127
        %v4110 = vpop.permute.xlu0 %4109
        %4111 = vrot.lane.b32.xlu0 %v4088, 127
        %v4112 = vpop.permute.xlu0 %4111
        %4113 = vrot.lane.b32.xlu0 %v4089, 127
        %v4114 = vpop.permute.xlu0 %4113
        %4115 = vrot.lane.b32.xlu0 %v4091, 127
        %v4116 = vpop.permute.xlu0 %4115
        %4117 = vrot.lane.b32.xlu0 %v4092, 127
        %v4118 = vpop.permute.xlu0 %4117
        %4119 = vrot.lane.b32.xlu0 %v4094, 127
        %v4120 = vpop.permute.xlu0 %4119
        %4121 = vrot.lane.b32.xlu0 %v4095, 127
        %v4122 = vpop.permute.xlu0 %4121
        %4123 = vrot.lane.b32.xlu0 %v4097, 127
        %v4124 = vpop.permute.xlu0 %4123
        %4125 = vrot.lane.b32.xlu0 %v4098, 127
        %v4126 = vpop.permute.xlu0 %4125
        %4127 = vrot.lane.b32.xlu0 %v4100, 127
        %v4128 = vpop.permute.xlu0 %4127
        %v4143 = vrot.slane %v4055, 4
        %v4144 = vrot.slane %v4056, 4
        %v4145 = vsel %vm635, %v4143, %v4144
        %v4146 = vrot.slane %v4057, 4
        %v4147 = vrot.slane %v4058, 4
        %v4148 = vsel %vm635, %v4146, %v4147
        %v4149 = vrot.slane %v4059, 4
        %v4150 = vrot.slane %v4060, 4
        %v4151 = vsel %vm635, %v4149, %v4150
        %v4152 = vrot.slane %v4061, 4
        %v4153 = vrot.slane %v4062, 4
        %v4154 = vsel %vm635, %v4152, %v4153
        %v4155 = vrot.slane %v4063, 4
        %v4156 = vrot.slane %v4064, 4
        %v4157 = vsel %vm635, %v4155, %v4156
        %v4158 = vrot.slane %v4065, 4
        %v4159 = vrot.slane %v4066, 4
        %v4160 = vsel %vm635, %v4158, %v4159
        %4161 = vrot.lane.b32.xlu0 %v4143, 126
        %v4162 = vpop.permute.xlu0 %4161
        %4163 = vrot.lane.b32.xlu0 %v4145, 126
        %v4164 = vpop.permute.xlu0 %4163
        %4165 = vrot.lane.b32.xlu0 %v4146, 126
        %v4166 = vpop.permute.xlu0 %4165
        %4167 = vrot.lane.b32.xlu0 %v4148, 126
        %v4168 = vpop.permute.xlu0 %4167
        %4169 = vrot.lane.b32.xlu0 %v4149, 126
        %v4170 = vpop.permute.xlu0 %4169
        %4171 = vrot.lane.b32.xlu0 %v4151, 126
        %v4172 = vpop.permute.xlu0 %4171
        %4173 = vrot.lane.b32.xlu0 %v4152, 126
        %v4174 = vpop.permute.xlu0 %4173
        %4175 = vrot.lane.b32.xlu0 %v4154, 126
        %v4176 = vpop.permute.xlu0 %4175
        %4177 = vrot.lane.b32.xlu0 %v4155, 126
        %v4178 = vpop.permute.xlu0 %4177
        %4179 = vrot.lane.b32.xlu0 %v4157, 126
        %v4180 = vpop.permute.xlu0 %4179
        %4181 = vrot.lane.b32.xlu0 %v4158, 126
        %v4182 = vpop.permute.xlu0 %4181
        %4183 = vrot.lane.b32.xlu0 %v4160, 126
        %v4184 = vpop.permute.xlu0 %4183
        %v4197 = vrot.slane 0.0, 2
        %v4198 = vsel %vm661, %v4197, %v4197
        %v4199 = vrot.slane %v4055, 2
        %v4200 = vrot.slane %v4056, 2
        %v4201 = vsel %vm661, %v4199, %v4200
        %v4202 = vrot.slane %v4057, 2
        %v4203 = vrot.slane %v4058, 2
        %v4204 = vsel %vm661, %v4202, %v4203
        %v4205 = vrot.slane %v4059, 2
        %v4206 = vrot.slane %v4060, 2
        %v4207 = vsel %vm661, %v4205, %v4206
        %v4208 = vrot.slane %v4061, 2
        %v4209 = vrot.slane %v4062, 2
        %v4210 = vsel %vm661, %v4208, %v4209
        %v4211 = vrot.slane %v4063, 2
        %v4212 = vrot.slane %v4064, 2
        %v4213 = vsel %vm661, %v4211, %v4212
        %v4214 = vrot.slane %v4065, 2
        %v4215 = vrot.slane %v4066, 2
        %v4216 = vsel %vm661, %v4214, %v4215
        %4217 = vrot.lane.b32.xlu0 %v4197, 125
        %v4218 = vpop.permute.xlu0 %4217
        %4219 = vrot.lane.b32.xlu0 %v4198, 125
        %v4220 = vpop.permute.xlu0 %4219
        %4221 = vrot.lane.b32.xlu0 %v4199, 125
        %v4222 = vpop.permute.xlu0 %4221
        %4223 = vrot.lane.b32.xlu0 %v4201, 125
        %v4224 = vpop.permute.xlu0 %4223
        %4225 = vrot.lane.b32.xlu0 %v4202, 125
        %v4226 = vpop.permute.xlu0 %4225
        %4227 = vrot.lane.b32.xlu0 %v4204, 125
        %v4228 = vpop.permute.xlu0 %4227
        %4229 = vrot.lane.b32.xlu0 %v4205, 125
        %v4230 = vpop.permute.xlu0 %4229
        %4231 = vrot.lane.b32.xlu0 %v4207, 125
        %v4232 = vpop.permute.xlu0 %4231
        %4233 = vrot.lane.b32.xlu0 %v4208, 125
        %v4234 = vpop.permute.xlu0 %4233
        %4235 = vrot.lane.b32.xlu0 %v4210, 125
        %v4236 = vpop.permute.xlu0 %4235
        %4237 = vrot.lane.b32.xlu0 %v4211, 125
        %v4238 = vpop.permute.xlu0 %4237
        %4239 = vrot.lane.b32.xlu0 %v4213, 125
        %v4240 = vpop.permute.xlu0 %4239
        %4241 = vrot.lane.b32.xlu0 %v4214, 125
        %v4242 = vpop.permute.xlu0 %4241
        %4243 = vrot.lane.b32.xlu0 %v4216, 125
        %v4244 = vpop.permute.xlu0 %4243
        %4254 = vrot.lane.b32.xlu0 %v4055, 124
        %v4255 = vpop.permute.xlu0 %4254
        %4256 = vrot.lane.b32.xlu0 %v4056, 124
        %v4257 = vpop.permute.xlu0 %4256
        %4258 = vrot.lane.b32.xlu0 %v4057, 124
        %v4259 = vpop.permute.xlu0 %4258
        %4260 = vrot.lane.b32.xlu0 %v4058, 124
        %v4261 = vpop.permute.xlu0 %4260
        %4262 = vrot.lane.b32.xlu0 %v4059, 124
        %v4263 = vpop.permute.xlu0 %4262
        %4264 = vrot.lane.b32.xlu0 %v4060, 124
        %v4265 = vpop.permute.xlu0 %4264
        %4266 = vrot.lane.b32.xlu0 %v4061, 124
        %v4267 = vpop.permute.xlu0 %4266
        %4268 = vrot.lane.b32.xlu0 %v4062, 124
        %v4269 = vpop.permute.xlu0 %4268
        %4270 = vrot.lane.b32.xlu0 %v4063, 124
        %v4271 = vpop.permute.xlu0 %4270
        %4272 = vrot.lane.b32.xlu0 %v4064, 124
        %v4273 = vpop.permute.xlu0 %4272
        %4274 = vrot.lane.b32.xlu0 %v4065, 124
        %v4275 = vpop.permute.xlu0 %4274
        %4276 = vrot.lane.b32.xlu0 %v4066, 124
        %v4277 = vpop.permute.xlu0 %4276
        %4299 = vrot.lane.b32.xlu0 %v4143, 127
        %v4300 = vpop.permute.xlu0 %4299
        %4301 = vrot.lane.b32.xlu0 %v4145, 127
        %v4302 = vpop.permute.xlu0 %4301
        %4303 = vrot.lane.b32.xlu0 %v4146, 127
        %v4304 = vpop.permute.xlu0 %4303
        %4305 = vrot.lane.b32.xlu0 %v4148, 127
        %v4306 = vpop.permute.xlu0 %4305
        %4307 = vrot.lane.b32.xlu0 %v4149, 127
        %v4308 = vpop.permute.xlu0 %4307
        %4309 = vrot.lane.b32.xlu0 %v4151, 127
        %v4310 = vpop.permute.xlu0 %4309
        %4311 = vrot.lane.b32.xlu0 %v4152, 127
        %v4312 = vpop.permute.xlu0 %4311
        %4313 = vrot.lane.b32.xlu0 %v4154, 127
        %v4314 = vpop.permute.xlu0 %4313
        %4315 = vrot.lane.b32.xlu0 %v4155, 127
        %v4316 = vpop.permute.xlu0 %4315
        %4317 = vrot.lane.b32.xlu0 %v4157, 127
        %v4318 = vpop.permute.xlu0 %4317
        %4319 = vrot.lane.b32.xlu0 %v4158, 127
        %v4320 = vpop.permute.xlu0 %4319
        %4321 = vrot.lane.b32.xlu0 %v4160, 127
        %v4322 = vpop.permute.xlu0 %4321
        %4335 = vrot.lane.b32.xlu0 %v4197, 126
        %v4336 = vpop.permute.xlu0 %4335
        %4337 = vrot.lane.b32.xlu0 %v4198, 126
        %v4338 = vpop.permute.xlu0 %4337
        %4339 = vrot.lane.b32.xlu0 %v4199, 126
        %v4340 = vpop.permute.xlu0 %4339
        %4341 = vrot.lane.b32.xlu0 %v4201, 126
        %v4342 = vpop.permute.xlu0 %4341
        %4343 = vrot.lane.b32.xlu0 %v4202, 126
        %v4344 = vpop.permute.xlu0 %4343
        %4345 = vrot.lane.b32.xlu0 %v4204, 126
        %v4346 = vpop.permute.xlu0 %4345
        %4347 = vrot.lane.b32.xlu0 %v4205, 126
        %v4348 = vpop.permute.xlu0 %4347
        %4349 = vrot.lane.b32.xlu0 %v4207, 126
        %v4350 = vpop.permute.xlu0 %4349
        %4351 = vrot.lane.b32.xlu0 %v4208, 126
        %v4352 = vpop.permute.xlu0 %4351
        %4353 = vrot.lane.b32.xlu0 %v4210, 126
        %v4354 = vpop.permute.xlu0 %4353
        %4355 = vrot.lane.b32.xlu0 %v4211, 126
        %v4356 = vpop.permute.xlu0 %4355
        %4357 = vrot.lane.b32.xlu0 %v4213, 126
        %v4358 = vpop.permute.xlu0 %4357
        %4359 = vrot.lane.b32.xlu0 %v4214, 126
        %v4360 = vpop.permute.xlu0 %4359
        %4361 = vrot.lane.b32.xlu0 %v4216, 126
        %v4362 = vpop.permute.xlu0 %4361
        %4372 = vrot.lane.b32.xlu0 %v4055, 125
        %v4373 = vpop.permute.xlu0 %4372
        %4374 = vrot.lane.b32.xlu0 %v4056, 125
        %v4375 = vpop.permute.xlu0 %4374
        %4376 = vrot.lane.b32.xlu0 %v4057, 125
        %v4377 = vpop.permute.xlu0 %4376
        %4378 = vrot.lane.b32.xlu0 %v4058, 125
        %v4379 = vpop.permute.xlu0 %4378
        %4380 = vrot.lane.b32.xlu0 %v4059, 125
        %v4381 = vpop.permute.xlu0 %4380
        %4382 = vrot.lane.b32.xlu0 %v4060, 125
        %v4383 = vpop.permute.xlu0 %4382
        %4384 = vrot.lane.b32.xlu0 %v4061, 125
        %v4385 = vpop.permute.xlu0 %4384
        %4386 = vrot.lane.b32.xlu0 %v4062, 125
        %v4387 = vpop.permute.xlu0 %4386
        %4388 = vrot.lane.b32.xlu0 %v4063, 125
        %v4389 = vpop.permute.xlu0 %4388
        %4390 = vrot.lane.b32.xlu0 %v4064, 125
        %v4391 = vpop.permute.xlu0 %4390
        %4392 = vrot.lane.b32.xlu0 %v4065, 125
        %v4393 = vpop.permute.xlu0 %4392
        %4394 = vrot.lane.b32.xlu0 %v4066, 125
        %v4395 = vpop.permute.xlu0 %4394
        %4403 = vrot.lane.b32.xlu0 %v4081, 124
        %v4404 = vpop.permute.xlu0 %4403
        %4405 = vrot.lane.b32.xlu0 %v4082, 124
        %v4406 = vpop.permute.xlu0 %4405
        %4407 = vrot.lane.b32.xlu0 %v4083, 124
        %v4408 = vpop.permute.xlu0 %4407
        %4409 = vrot.lane.b32.xlu0 %v4085, 124
        %v4410 = vpop.permute.xlu0 %4409
        %4411 = vrot.lane.b32.xlu0 %v4086, 124
        %v4412 = vpop.permute.xlu0 %4411
        %4413 = vrot.lane.b32.xlu0 %v4088, 124
        %v4414 = vpop.permute.xlu0 %4413
        %4415 = vrot.lane.b32.xlu0 %v4089, 124
        %v4416 = vpop.permute.xlu0 %4415
        %4417 = vrot.lane.b32.xlu0 %v4091, 124
        %v4418 = vpop.permute.xlu0 %4417
        %4419 = vrot.lane.b32.xlu0 %v4092, 124
        %v4420 = vpop.permute.xlu0 %4419
        %4421 = vrot.lane.b32.xlu0 %v4094, 124
        %v4422 = vpop.permute.xlu0 %4421
        %4423 = vrot.lane.b32.xlu0 %v4095, 124
        %v4424 = vpop.permute.xlu0 %4423
        %4425 = vrot.lane.b32.xlu0 %v4097, 124
        %v4426 = vpop.permute.xlu0 %4425
        %4427 = vrot.lane.b32.xlu0 %v4098, 124
        %v4428 = vpop.permute.xlu0 %4427
        %4429 = vrot.lane.b32.xlu0 %v4100, 124
        %v4430 = vpop.permute.xlu0 %4429
        %4457 = vrot.lane.b32.xlu0 %v4197, 127
        %v4458 = vpop.permute.xlu0 %4457
        %4459 = vrot.lane.b32.xlu0 %v4198, 127
        %v4460 = vpop.permute.xlu0 %4459
        %4461 = vrot.lane.b32.xlu0 %v4199, 127
        %v4462 = vpop.permute.xlu0 %4461
        %4463 = vrot.lane.b32.xlu0 %v4201, 127
        %v4464 = vpop.permute.xlu0 %4463
        %4465 = vrot.lane.b32.xlu0 %v4202, 127
        %v4466 = vpop.permute.xlu0 %4465
        %4467 = vrot.lane.b32.xlu0 %v4204, 127
        %v4468 = vpop.permute.xlu0 %4467
        %4469 = vrot.lane.b32.xlu0 %v4205, 127
        %v4470 = vpop.permute.xlu0 %4469
        %4471 = vrot.lane.b32.xlu0 %v4207, 127
        %v4472 = vpop.permute.xlu0 %4471
        %4473 = vrot.lane.b32.xlu0 %v4208, 127
        %v4474 = vpop.permute.xlu0 %4473
        %4475 = vrot.lane.b32.xlu0 %v4210, 127
        %v4476 = vpop.permute.xlu0 %4475
        %4477 = vrot.lane.b32.xlu0 %v4211, 127
        %v4478 = vpop.permute.xlu0 %4477
        %4479 = vrot.lane.b32.xlu0 %v4213, 127
        %v4480 = vpop.permute.xlu0 %4479
        %4481 = vrot.lane.b32.xlu0 %v4214, 127
        %v4482 = vpop.permute.xlu0 %4481
        %4483 = vrot.lane.b32.xlu0 %v4216, 127
        %v4484 = vpop.permute.xlu0 %4483
        %4494 = vrot.lane.b32.xlu0 %v4055, 126
        %v4495 = vpop.permute.xlu0 %4494
        %4496 = vrot.lane.b32.xlu0 %v4056, 126
        %v4497 = vpop.permute.xlu0 %4496
        %4498 = vrot.lane.b32.xlu0 %v4057, 126
        %v4499 = vpop.permute.xlu0 %4498
        %4500 = vrot.lane.b32.xlu0 %v4058, 126
        %v4501 = vpop.permute.xlu0 %4500
        %4502 = vrot.lane.b32.xlu0 %v4059, 126
        %v4503 = vpop.permute.xlu0 %4502
        %4504 = vrot.lane.b32.xlu0 %v4060, 126
        %v4505 = vpop.permute.xlu0 %4504
        %4506 = vrot.lane.b32.xlu0 %v4061, 126
        %v4507 = vpop.permute.xlu0 %4506
        %4508 = vrot.lane.b32.xlu0 %v4062, 126
        %v4509 = vpop.permute.xlu0 %4508
        %4510 = vrot.lane.b32.xlu0 %v4063, 126
        %v4511 = vpop.permute.xlu0 %4510
        %4512 = vrot.lane.b32.xlu0 %v4064, 126
        %v4513 = vpop.permute.xlu0 %4512
        %4514 = vrot.lane.b32.xlu0 %v4065, 126
        %v4515 = vpop.permute.xlu0 %4514
        %4516 = vrot.lane.b32.xlu0 %v4066, 126
        %v4517 = vpop.permute.xlu0 %4516
        %4525 = vrot.lane.b32.xlu0 %v4081, 125
        %v4526 = vpop.permute.xlu0 %4525
        %4527 = vrot.lane.b32.xlu0 %v4082, 125
        %v4528 = vpop.permute.xlu0 %4527
        %4529 = vrot.lane.b32.xlu0 %v4083, 125
        %v4530 = vpop.permute.xlu0 %4529
        %4531 = vrot.lane.b32.xlu0 %v4085, 125
        %v4532 = vpop.permute.xlu0 %4531
        %4533 = vrot.lane.b32.xlu0 %v4086, 125
        %v4534 = vpop.permute.xlu0 %4533
        %4535 = vrot.lane.b32.xlu0 %v4088, 125
        %v4536 = vpop.permute.xlu0 %4535
        %4537 = vrot.lane.b32.xlu0 %v4089, 125
        %v4538 = vpop.permute.xlu0 %4537
        %4539 = vrot.lane.b32.xlu0 %v4091, 125
        %v4540 = vpop.permute.xlu0 %4539
        %4541 = vrot.lane.b32.xlu0 %v4092, 125
        %v4542 = vpop.permute.xlu0 %4541
        %4543 = vrot.lane.b32.xlu0 %v4094, 125
        %v4544 = vpop.permute.xlu0 %4543
        %4545 = vrot.lane.b32.xlu0 %v4095, 125
        %v4546 = vpop.permute.xlu0 %4545
        %4547 = vrot.lane.b32.xlu0 %v4097, 125
        %v4548 = vpop.permute.xlu0 %4547
        %4549 = vrot.lane.b32.xlu0 %v4098, 125
        %v4550 = vpop.permute.xlu0 %4549
        %4551 = vrot.lane.b32.xlu0 %v4100, 125
        %v4552 = vpop.permute.xlu0 %4551
        %4567 = vrot.lane.b32.xlu0 %v4143, 124
        %v4568 = vpop.permute.xlu0 %4567
        %4569 = vrot.lane.b32.xlu0 %v4145, 124
        %v4570 = vpop.permute.xlu0 %4569
        %4571 = vrot.lane.b32.xlu0 %v4146, 124
        %v4572 = vpop.permute.xlu0 %4571
        %4573 = vrot.lane.b32.xlu0 %v4148, 124
        %v4574 = vpop.permute.xlu0 %4573
        %4575 = vrot.lane.b32.xlu0 %v4149, 124
        %v4576 = vpop.permute.xlu0 %4575
        %4577 = vrot.lane.b32.xlu0 %v4151, 124
        %v4578 = vpop.permute.xlu0 %4577
        %4579 = vrot.lane.b32.xlu0 %v4152, 124
        %v4580 = vpop.permute.xlu0 %4579
        %4581 = vrot.lane.b32.xlu0 %v4154, 124
        %v4582 = vpop.permute.xlu0 %4581
        %4583 = vrot.lane.b32.xlu0 %v4155, 124
        %v4584 = vpop.permute.xlu0 %4583
        %4585 = vrot.lane.b32.xlu0 %v4157, 124
        %v4586 = vpop.permute.xlu0 %4585
        %4587 = vrot.lane.b32.xlu0 %v4158, 124
        %v4588 = vpop.permute.xlu0 %4587
        %4589 = vrot.lane.b32.xlu0 %v4160, 124
        %v4590 = vpop.permute.xlu0 %4589
        %v4612 = vsel %vm609, 0.0, %v4102
        %v4613 = vsel %vm609, %v4056, %v4106
        %v4614 = vsel %vm609, %v4058, %v4110
        %v4615 = vsel %vm609, %v4060, %v4114
        %v4616 = vsel %vm609, %v4062, %v4118
        %v4617 = vsel %vm609, %v4064, %v4122
        %v4618 = vsel %vm609, %v4066, %v4126
        %v4619 = vsel %vm635, %v4104, %v2411
        %v4620 = vsel %vm635, %v4108, %v4162
        %v4621 = vsel %vm635, %v4112, %v4166
        %v4622 = vsel %vm635, %v4116, %v4170
        %v4623 = vsel %vm635, %v4120, %v4174
        %v4624 = vsel %vm635, %v4124, %v4178
        %v4625 = vsel %vm635, %v4128, %v4182
        %v4626 = vsel %vm661, %v2413, %v4218
        %v4627 = vsel %vm661, %v4164, %v4222
        %v4628 = vsel %vm661, %v4168, %v4226
        %v4629 = vsel %vm661, %v4172, %v4230
        %v4630 = vsel %vm661, %v4176, %v4234
        %v4631 = vsel %vm661, %v4180, %v4238
        %v4632 = vsel %vm661, %v4184, %v4242
        %v4633 = vsel %vm609, %v2388, %v4081
        %v4634 = vsel %vm609, %v2388, %v4083
        %v4635 = vsel %vm609, %v4257, %v4083
        %v4636 = vsel %vm609, %v4257, %v4086
        %v4637 = vsel %vm609, %v4261, %v4086
        %v4638 = vsel %vm609, %v4261, %v4089
        %v4639 = vsel %vm609, %v4265, %v4089
        %v4640 = vsel %vm609, %v4265, %v4092
        %v4641 = vsel %vm609, %v4269, %v4092
        %v4642 = vsel %vm609, %v4269, %v4095
        %v4643 = vsel %vm609, %v4273, %v4095
        %v4644 = vsel %vm609, %v4273, %v4098
        %v4645 = vsel %vm609, %v4277, %v4098
        %v4646 = vsel %vm609, %v4277, %v4081
        %v4647 = vsel %vm635, %v4082, %v2352
        %v4648 = vsel %vm635, %v4085, %v4300
        %v4649 = vsel %vm635, %v4088, %v4304
        %v4650 = vsel %vm635, %v4091, %v4308
        %v4651 = vsel %vm635, %v4094, %v4312
        %v4652 = vsel %vm635, %v4097, %v4316
        %v4653 = vsel %vm635, %v4100, %v4320
        %v4654 = vsel %vm661, %v2354, %v4336
        %v4655 = vsel %vm661, %v4302, %v4340
        %v4656 = vsel %vm661, %v4306, %v4344
        %v4657 = vsel %vm661, %v4310, %v4348
        %v4658 = vsel %vm661, %v4314, %v4352
        %v4659 = vsel %vm661, %v4318, %v4356
        %v4660 = vsel %vm661, %v4322, %v4360
        %v4661 = vsel %vm609, %v2424, %v4404
        %v4662 = vsel %vm609, %v4375, %v4408
        %v4663 = vsel %vm609, %v4379, %v4412
        %v4664 = vsel %vm609, %v4383, %v4416
        %v4665 = vsel %vm609, %v4387, %v4420
        %v4666 = vsel %vm609, %v4391, %v4424
        %v4667 = vsel %vm609, %v4395, %v4428
        %v4668 = vsel %vm635, %v4406, %v2344
        %v4669 = vsel %vm635, %v4406, %v4143
        %v4670 = vsel %vm635, %v4410, %v4143
        %v4671 = vsel %vm635, %v4410, %v4146
        %v4672 = vsel %vm635, %v4414, %v4146
        %v4673 = vsel %vm635, %v4414, %v4149
        %v4674 = vsel %vm635, %v4418, %v4149
        %v4675 = vsel %vm635, %v4418, %v4152
        %v4676 = vsel %vm635, %v4422, %v4152
        %v4677 = vsel %vm635, %v4422, %v4155
        %v4678 = vsel %vm635, %v4426, %v4155
        %v4679 = vsel %vm635, %v4426, %v4158
        %v4680 = vsel %vm635, %v4430, %v4158
        %v4681 = vsel %vm635, %v4430, %v2344
        %v4682 = vsel %vm661, %v2345, %v4458
        %v4683 = vsel %vm661, %v4145, %v4462
        %v4684 = vsel %vm661, %v4148, %v4466
        %v4685 = vsel %vm661, %v4151, %v4470
        %v4686 = vsel %vm661, %v4154, %v4474
        %v4687 = vsel %vm661, %v4157, %v4478
        %v4688 = vsel %vm661, %v4160, %v4482
        %v4689 = vsel %vm609, %v2365, %v4526
        %v4690 = vsel %vm609, %v4497, %v4530
        %v4691 = vsel %vm609, %v4501, %v4534
        %v4692 = vsel %vm609, %v4505, %v4538
        %v4693 = vsel %vm609, %v4509, %v4542
        %v4694 = vsel %vm609, %v4513, %v4546
        %v4695 = vsel %vm609, %v4517, %v4550
        %v4696 = vsel %vm635, %v4528, %v2434
        %v4697 = vsel %vm635, %v4532, %v4568
        %v4698 = vsel %vm635, %v4536, %v4572
        %v4699 = vsel %vm635, %v4540, %v4576
        %v4700 = vsel %vm635, %v4544, %v4580
        %v4701 = vsel %vm635, %v4548, %v4584
        %v4702 = vsel %vm635, %v4552, %v4588
        %v4703 = vsel %vm661, %v2436, %v4197
        %v4704 = vsel %vm661, %v2436, %v4199
        %v4705 = vsel %vm661, %v4570, %v4199
        %v4706 = vsel %vm661, %v4570, %v4202
        %v4707 = vsel %vm661, %v4574, %v4202
        %v4708 = vsel %vm661, %v4574, %v4205
        %v4709 = vsel %vm661, %v4578, %v4205
        %v4710 = vsel %vm661, %v4578, %v4208
        %v4711 = vsel %vm661, %v4582, %v4208
        %v4712 = vsel %vm661, %v4582, %v4211
        %v4713 = vsel %vm661, %v4586, %v4211
        %v4714 = vsel %vm661, %v4586, %v4214
        %v4715 = vsel %vm661, %v4590, %v4214
        %v4716 = vsel %vm661, %v4590, %v4197
        %4717 = vrot.lane.b32.xlu0 %v4055, 1
        %v4718 = vpop.permute.xlu0 %4717
        %4719 = vrot.lane.b32.xlu0 %v4056, 1
        %v4720 = vpop.permute.xlu0 %4719
        %4721 = vrot.lane.b32.xlu0 %v4057, 1
        %v4722 = vpop.permute.xlu0 %4721
        %4723 = vrot.lane.b32.xlu0 %v4058, 1
        %v4724 = vpop.permute.xlu0 %4723
        %4725 = vrot.lane.b32.xlu0 %v4059, 1
        %v4726 = vpop.permute.xlu0 %4725
        %4727 = vrot.lane.b32.xlu0 %v4060, 1
        %v4728 = vpop.permute.xlu0 %4727
        %4729 = vrot.lane.b32.xlu0 %v4061, 1
        %v4730 = vpop.permute.xlu0 %4729
        %4731 = vrot.lane.b32.xlu0 %v4062, 1
        %v4732 = vpop.permute.xlu0 %4731
        %4733 = vrot.lane.b32.xlu0 %v4063, 1
        %v4734 = vpop.permute.xlu0 %4733
        %4735 = vrot.lane.b32.xlu0 %v4064, 1
        %v4736 = vpop.permute.xlu0 %4735
        %4737 = vrot.lane.b32.xlu0 %v4065, 1
        %v4738 = vpop.permute.xlu0 %4737
        %4739 = vrot.lane.b32.xlu0 %v4066, 1
        %v4740 = vpop.permute.xlu0 %4739
        %v4747 = vsel %vm609, %v4720, %v4083
        %v4748 = vsel %vm609, %v4724, %v4086
        %v4749 = vsel %vm609, %v4728, %v4089
        %v4750 = vsel %vm609, %v4732, %v4092
        %v4751 = vsel %vm609, %v4736, %v4095
        %v4752 = vsel %vm609, %v4740, %v4098
        %v4753 = vsel %vm609, %v2465, %v4081
        %4796 = vrot.lane.b32.xlu0 %v4612, 127
        %v4797 = vpop.permute.xlu0 %4796
        %4798 = vrot.lane.b32.xlu0 %v4619, 127
        %v4799 = vpop.permute.xlu0 %4798
        %4800 = vrot.lane.b32.xlu0 %v4626, 127
        %v4801 = vpop.permute.xlu0 %4800
        %4802 = vrot.lane.b32.xlu0 %v4220, 127
        %v4803 = vpop.permute.xlu0 %4802
        %4804 = vrot.lane.b32.xlu0 %v4718, 127
        %v4805 = vpop.permute.xlu0 %4804
        %4806 = vrot.lane.b32.xlu0 %v4747, 127
        %v4807 = vpop.permute.xlu0 %4806
        %4808 = vrot.lane.b32.xlu0 %v4648, 127
        %v4809 = vpop.permute.xlu0 %4808
        %4810 = vrot.lane.b32.xlu0 %v4655, 127
        %v4811 = vpop.permute.xlu0 %4810
        %4812 = vrot.lane.b32.xlu0 %v4342, 127
        %v4813 = vpop.permute.xlu0 %4812
        %4814 = vrot.lane.b32.xlu0 %v4373, 127
        %v4815 = vpop.permute.xlu0 %4814
        %4816 = vrot.lane.b32.xlu0 %v4375, 127
        %v4817 = vpop.permute.xlu0 %4816
        %4818 = vrot.lane.b32.xlu0 %v4055, 127
        %v4819 = vpop.permute.xlu0 %4818
        %4820 = vrot.lane.b32.xlu0 %v4613, 127
        %v4821 = vpop.permute.xlu0 %4820
        %4822 = vrot.lane.b32.xlu0 %v4620, 127
        %v4823 = vpop.permute.xlu0 %4822
        %4824 = vrot.lane.b32.xlu0 %v4627, 127
        %v4825 = vpop.permute.xlu0 %4824
        %4826 = vrot.lane.b32.xlu0 %v4224, 127
        %v4827 = vpop.permute.xlu0 %4826
        %4828 = vrot.lane.b32.xlu0 %v4722, 127
        %v4829 = vpop.permute.xlu0 %4828
        %4830 = vrot.lane.b32.xlu0 %v4748, 127
        %v4831 = vpop.permute.xlu0 %4830
        %4832 = vrot.lane.b32.xlu0 %v4649, 127
        %v4833 = vpop.permute.xlu0 %4832
        %4834 = vrot.lane.b32.xlu0 %v4656, 127
        %v4835 = vpop.permute.xlu0 %4834
        %4836 = vrot.lane.b32.xlu0 %v4346, 127
        %v4837 = vpop.permute.xlu0 %4836
        %4838 = vrot.lane.b32.xlu0 %v4377, 127
        %v4839 = vpop.permute.xlu0 %4838
        %4840 = vrot.lane.b32.xlu0 %v4379, 127
        %v4841 = vpop.permute.xlu0 %4840
        %4842 = vrot.lane.b32.xlu0 %v4057, 127
        %v4843 = vpop.permute.xlu0 %4842
        %4844 = vrot.lane.b32.xlu0 %v4614, 127
        %v4845 = vpop.permute.xlu0 %4844
        %4846 = vrot.lane.b32.xlu0 %v4621, 127
        %v4847 = vpop.permute.xlu0 %4846
        %4848 = vrot.lane.b32.xlu0 %v4628, 127
        %v4849 = vpop.permute.xlu0 %4848
        %4850 = vrot.lane.b32.xlu0 %v4228, 127
        %v4851 = vpop.permute.xlu0 %4850
        %4852 = vrot.lane.b32.xlu0 %v4726, 127
        %v4853 = vpop.permute.xlu0 %4852
        %4854 = vrot.lane.b32.xlu0 %v4749, 127
        %v4855 = vpop.permute.xlu0 %4854
        %4856 = vrot.lane.b32.xlu0 %v4650, 127
        %v4857 = vpop.permute.xlu0 %4856
        %4858 = vrot.lane.b32.xlu0 %v4657, 127
        %v4859 = vpop.permute.xlu0 %4858
        %4860 = vrot.lane.b32.xlu0 %v4350, 127
        %v4861 = vpop.permute.xlu0 %4860
        %4862 = vrot.lane.b32.xlu0 %v4381, 127
        %v4863 = vpop.permute.xlu0 %4862
        %4864 = vrot.lane.b32.xlu0 %v4383, 127
        %v4865 = vpop.permute.xlu0 %4864
        %4866 = vrot.lane.b32.xlu0 %v4059, 127
        %v4867 = vpop.permute.xlu0 %4866
        %4868 = vrot.lane.b32.xlu0 %v4615, 127
        %v4869 = vpop.permute.xlu0 %4868
        %4870 = vrot.lane.b32.xlu0 %v4622, 127
        %v4871 = vpop.permute.xlu0 %4870
        %4872 = vrot.lane.b32.xlu0 %v4629, 127
        %v4873 = vpop.permute.xlu0 %4872
        %4874 = vrot.lane.b32.xlu0 %v4232, 127
        %v4875 = vpop.permute.xlu0 %4874
        %4876 = vrot.lane.b32.xlu0 %v4730, 127
        %v4877 = vpop.permute.xlu0 %4876
        %4878 = vrot.lane.b32.xlu0 %v4750, 127
        %v4879 = vpop.permute.xlu0 %4878
        %4880 = vrot.lane.b32.xlu0 %v4651, 127
        %v4881 = vpop.permute.xlu0 %4880
        %4882 = vrot.lane.b32.xlu0 %v4658, 127
        %v4883 = vpop.permute.xlu0 %4882
        %4884 = vrot.lane.b32.xlu0 %v4354, 127
        %v4885 = vpop.permute.xlu0 %4884
        %4886 = vrot.lane.b32.xlu0 %v4385, 127
        %v4887 = vpop.permute.xlu0 %4886
        %4888 = vrot.lane.b32.xlu0 %v4387, 127
        %v4889 = vpop.permute.xlu0 %4888
        %4890 = vrot.lane.b32.xlu0 %v4061, 127
        %v4891 = vpop.permute.xlu0 %4890
        %4892 = vrot.lane.b32.xlu0 %v4616, 127
        %v4893 = vpop.permute.xlu0 %4892
        %4894 = vrot.lane.b32.xlu0 %v4623, 127
        %v4895 = vpop.permute.xlu0 %4894
        %4896 = vrot.lane.b32.xlu0 %v4630, 127
        %v4897 = vpop.permute.xlu0 %4896
        %4898 = vrot.lane.b32.xlu0 %v4236, 127
        %v4899 = vpop.permute.xlu0 %4898
        %4900 = vrot.lane.b32.xlu0 %v4734, 127
        %v4901 = vpop.permute.xlu0 %4900
        %4902 = vrot.lane.b32.xlu0 %v4751, 127
        %v4903 = vpop.permute.xlu0 %4902
        %4904 = vrot.lane.b32.xlu0 %v4652, 127
        %v4905 = vpop.permute.xlu0 %4904
        %4906 = vrot.lane.b32.xlu0 %v4659, 127
        %v4907 = vpop.permute.xlu0 %4906
        %4908 = vrot.lane.b32.xlu0 %v4358, 127
        %v4909 = vpop.permute.xlu0 %4908
        %4910 = vrot.lane.b32.xlu0 %v4389, 127
        %v4911 = vpop.permute.xlu0 %4910
        %4912 = vrot.lane.b32.xlu0 %v4391, 127
        %v4913 = vpop.permute.xlu0 %4912
        %4914 = vrot.lane.b32.xlu0 %v4063, 127
        %v4915 = vpop.permute.xlu0 %4914
        %4916 = vrot.lane.b32.xlu0 %v4617, 127
        %v4917 = vpop.permute.xlu0 %4916
        %4918 = vrot.lane.b32.xlu0 %v4624, 127
        %v4919 = vpop.permute.xlu0 %4918
        %4920 = vrot.lane.b32.xlu0 %v4631, 127
        %v4921 = vpop.permute.xlu0 %4920
        %4922 = vrot.lane.b32.xlu0 %v4240, 127
        %v4923 = vpop.permute.xlu0 %4922
        %4924 = vrot.lane.b32.xlu0 %v4738, 127
        %v4925 = vpop.permute.xlu0 %4924
        %4926 = vrot.lane.b32.xlu0 %v4752, 127
        %v4927 = vpop.permute.xlu0 %4926
        %4928 = vrot.lane.b32.xlu0 %v4653, 127
        %v4929 = vpop.permute.xlu0 %4928
        %4930 = vrot.lane.b32.xlu0 %v4660, 127
        %v4931 = vpop.permute.xlu0 %4930
        %4932 = vrot.lane.b32.xlu0 %v4362, 127
        %v4933 = vpop.permute.xlu0 %4932
        %4934 = vrot.lane.b32.xlu0 %v4393, 127
        %v4935 = vpop.permute.xlu0 %4934
        %4936 = vrot.lane.b32.xlu0 %v4395, 127
        %v4937 = vpop.permute.xlu0 %4936
        %4938 = vrot.lane.b32.xlu0 %v4065, 127
        %v4939 = vpop.permute.xlu0 %4938
        %4940 = vrot.lane.b32.xlu0 %v4618, 127
        %v4941 = vpop.permute.xlu0 %4940
        %4942 = vrot.lane.b32.xlu0 %v4625, 127
        %v4943 = vpop.permute.xlu0 %4942
        %4944 = vrot.lane.b32.xlu0 %v4632, 127
        %v4945 = vpop.permute.xlu0 %4944
        %4946 = vrot.lane.b32.xlu0 %v4244, 127
        %v4947 = vpop.permute.xlu0 %4946
        %4948 = vrot.lane.b32.xlu0 %v4753, 127
        %v4949 = vpop.permute.xlu0 %4948
        %4950 = vrot.lane.b32.xlu0 %v4647, 127
        %v4951 = vpop.permute.xlu0 %4950
        %4952 = vrot.lane.b32.xlu0 %v4654, 127
        %v4953 = vpop.permute.xlu0 %4952
        %4954 = vrot.lane.b32.xlu0 %v4338, 127
        %v4955 = vpop.permute.xlu0 %4954
        %4986 = vrot.lane.b32.xlu0 0.0, 16
        %v4987 = vpop.permute.xlu0 %4986
        %4988 = vrot.lane.b32.xlu0 %v4612, 16
        %v4989 = vpop.permute.xlu0 %4988
        %4990 = vrot.lane.b32.xlu0 %v4619, 16
        %v4991 = vpop.permute.xlu0 %4990
        %4992 = vrot.lane.b32.xlu0 %v4626, 16
        %v4993 = vpop.permute.xlu0 %4992
        %4994 = vrot.lane.b32.xlu0 %v4220, 16
        %v4995 = vpop.permute.xlu0 %4994
        %4996 = vrot.lane.b32.xlu0 %v2388, 16
        %v4997 = vpop.permute.xlu0 %4996
        %4998 = vrot.lane.b32.xlu0 %v4633, 16
        %v4999 = vpop.permute.xlu0 %4998
        %5000 = vrot.lane.b32.xlu0 %v4647, 16
        %v5001 = vpop.permute.xlu0 %5000
        %5002 = vrot.lane.b32.xlu0 %v4654, 16
        %v5003 = vpop.permute.xlu0 %5002
        %5004 = vrot.lane.b32.xlu0 %v4338, 16
        %v5005 = vpop.permute.xlu0 %5004
        %5006 = vrot.lane.b32.xlu0 %v2424, 16
        %v5007 = vpop.permute.xlu0 %5006
        %5008 = vrot.lane.b32.xlu0 %v4661, 16
        %v5009 = vpop.permute.xlu0 %5008
        %5010 = vrot.lane.b32.xlu0 %v4668, 16
        %v5011 = vpop.permute.xlu0 %5010
        %5012 = vrot.lane.b32.xlu0 %v4682, 16
        %v5013 = vpop.permute.xlu0 %5012
        %5014 = vrot.lane.b32.xlu0 %v4460, 16
        %v5015 = vpop.permute.xlu0 %5014
        %5016 = vrot.lane.b32.xlu0 %v2365, 16
        %v5017 = vpop.permute.xlu0 %5016
        %5018 = vrot.lane.b32.xlu0 %v4689, 16
        %v5019 = vpop.permute.xlu0 %5018
        %5020 = vrot.lane.b32.xlu0 %v4696, 16
        %v5021 = vpop.permute.xlu0 %5020
        %5022 = vrot.lane.b32.xlu0 %v4704, 16
        %v5023 = vpop.permute.xlu0 %5022
        %5024 = vrot.lane.b32.xlu0 %v4201, 16
        %v5025 = vpop.permute.xlu0 %5024
        %5026 = vrot.lane.b32.xlu0 %v4819, 16
        %v5027 = vpop.permute.xlu0 %5026
        %5028 = vrot.lane.b32.xlu0 %v4821, 16
        %v5029 = vpop.permute.xlu0 %5028
        %5030 = vrot.lane.b32.xlu0 %v4823, 16
        %v5031 = vpop.permute.xlu0 %5030
        %5032 = vrot.lane.b32.xlu0 %v4825, 16
        %v5033 = vpop.permute.xlu0 %5032
        %5034 = vrot.lane.b32.xlu0 %v4827, 16
        %v5035 = vpop.permute.xlu0 %5034
        %5036 = vrot.lane.b32.xlu0 %v4805, 16
        %v5037 = vpop.permute.xlu0 %5036
        %5038 = vrot.lane.b32.xlu0 %v4807, 16
        %v5039 = vpop.permute.xlu0 %5038
        %5040 = vrot.lane.b32.xlu0 %v4809, 16
        %v5041 = vpop.permute.xlu0 %5040
        %5042 = vrot.lane.b32.xlu0 %v4811, 16
        %v5043 = vpop.permute.xlu0 %5042
        %5044 = vrot.lane.b32.xlu0 %v4813, 16
        %v5045 = vpop.permute.xlu0 %5044
        %5046 = vrot.lane.b32.xlu0 %v4815, 16
        %v5047 = vpop.permute.xlu0 %5046
        %5048 = vrot.lane.b32.xlu0 %v4817, 16
        %v5049 = vpop.permute.xlu0 %5048
        %5087 = vrot.lane.b32.xlu0 0.0, 32
        %v5088 = vpop.permute.xlu0 %5087
        %5089 = vrot.lane.b32.xlu0 %v4612, 32
        %v5090 = vpop.permute.xlu0 %5089
        %5091 = vrot.lane.b32.xlu0 %v4619, 32
        %v5092 = vpop.permute.xlu0 %5091
        %5093 = vrot.lane.b32.xlu0 %v4626, 32
        %v5094 = vpop.permute.xlu0 %5093
        %5095 = vrot.lane.b32.xlu0 %v4220, 32
        %v5096 = vpop.permute.xlu0 %5095
        %5097 = vrot.lane.b32.xlu0 %v2388, 32
        %v5098 = vpop.permute.xlu0 %5097
        %5099 = vrot.lane.b32.xlu0 %v4633, 32
        %v5100 = vpop.permute.xlu0 %5099
        %5101 = vrot.lane.b32.xlu0 %v4647, 32
        %v5102 = vpop.permute.xlu0 %5101
        %5103 = vrot.lane.b32.xlu0 %v4654, 32
        %v5104 = vpop.permute.xlu0 %5103
        %5105 = vrot.lane.b32.xlu0 %v4338, 32
        %v5106 = vpop.permute.xlu0 %5105
        %5107 = vrot.lane.b32.xlu0 %v2424, 32
        %v5108 = vpop.permute.xlu0 %5107
        %5109 = vrot.lane.b32.xlu0 %v4661, 32
        %v5110 = vpop.permute.xlu0 %5109
        %5111 = vrot.lane.b32.xlu0 %v4669, 32
        %v5112 = vpop.permute.xlu0 %5111
        %5113 = vrot.lane.b32.xlu0 %v4683, 32
        %v5114 = vpop.permute.xlu0 %5113
        %5115 = vrot.lane.b32.xlu0 %v4464, 32
        %v5116 = vpop.permute.xlu0 %5115
        %5117 = vrot.lane.b32.xlu0 %v4495, 32
        %v5118 = vpop.permute.xlu0 %5117
        %5119 = vrot.lane.b32.xlu0 %v4690, 32
        %v5120 = vpop.permute.xlu0 %5119
        %5121 = vrot.lane.b32.xlu0 %v4697, 32
        %v5122 = vpop.permute.xlu0 %5121
        %5123 = vrot.lane.b32.xlu0 %v4705, 32
        %v5124 = vpop.permute.xlu0 %5123
        %5125 = vrot.lane.b32.xlu0 %v4201, 32
        %v5126 = vpop.permute.xlu0 %5125
        %5127 = vrot.lane.b32.xlu0 %v4819, 32
        %v5128 = vpop.permute.xlu0 %5127
        %5129 = vrot.lane.b32.xlu0 %v4821, 32
        %v5130 = vpop.permute.xlu0 %5129
        %5131 = vrot.lane.b32.xlu0 %v4823, 32
        %v5132 = vpop.permute.xlu0 %5131
        %5133 = vrot.lane.b32.xlu0 %v4825, 32
        %v5134 = vpop.permute.xlu0 %5133
        %5135 = vrot.lane.b32.xlu0 %v4827, 32
        %v5136 = vpop.permute.xlu0 %5135
        %5137 = vrot.lane.b32.xlu0 %v4829, 32
        %v5138 = vpop.permute.xlu0 %5137
        %5139 = vrot.lane.b32.xlu0 %v4831, 32
        %v5140 = vpop.permute.xlu0 %5139
        %5141 = vrot.lane.b32.xlu0 %v4833, 32
        %v5142 = vpop.permute.xlu0 %5141
        %5143 = vrot.lane.b32.xlu0 %v4835, 32
        %v5144 = vpop.permute.xlu0 %5143
        %5145 = vrot.lane.b32.xlu0 %v4837, 32
        %v5146 = vpop.permute.xlu0 %5145
        %5147 = vrot.lane.b32.xlu0 %v4839, 32
        %v5148 = vpop.permute.xlu0 %5147
        %5149 = vrot.lane.b32.xlu0 %v4841, 32
        %v5150 = vpop.permute.xlu0 %5149
        %5187 = vrot.lane.b32.xlu0 0.0, 48
        %v5188 = vpop.permute.xlu0 %5187
        %5189 = vrot.lane.b32.xlu0 %v4612, 48
        %v5190 = vpop.permute.xlu0 %5189
        %5191 = vrot.lane.b32.xlu0 %v4619, 48
        %v5192 = vpop.permute.xlu0 %5191
        %5193 = vrot.lane.b32.xlu0 %v4626, 48
        %v5194 = vpop.permute.xlu0 %5193
        %5195 = vrot.lane.b32.xlu0 %v4220, 48
        %v5196 = vpop.permute.xlu0 %5195
        %5197 = vrot.lane.b32.xlu0 %v2388, 48
        %v5198 = vpop.permute.xlu0 %5197
        %5199 = vrot.lane.b32.xlu0 %v4634, 48
        %v5200 = vpop.permute.xlu0 %5199
        %5201 = vrot.lane.b32.xlu0 %v4648, 48
        %v5202 = vpop.permute.xlu0 %5201
        %5203 = vrot.lane.b32.xlu0 %v4655, 48
        %v5204 = vpop.permute.xlu0 %5203
        %5205 = vrot.lane.b32.xlu0 %v4342, 48
        %v5206 = vpop.permute.xlu0 %5205
        %5207 = vrot.lane.b32.xlu0 %v4373, 48
        %v5208 = vpop.permute.xlu0 %5207
        %5209 = vrot.lane.b32.xlu0 %v4662, 48
        %v5210 = vpop.permute.xlu0 %5209
        %5211 = vrot.lane.b32.xlu0 %v4670, 48
        %v5212 = vpop.permute.xlu0 %5211
        %5213 = vrot.lane.b32.xlu0 %v4683, 48
        %v5214 = vpop.permute.xlu0 %5213
        %5215 = vrot.lane.b32.xlu0 %v4464, 48
        %v5216 = vpop.permute.xlu0 %5215
        %5217 = vrot.lane.b32.xlu0 %v4495, 48
        %v5218 = vpop.permute.xlu0 %5217
        %5219 = vrot.lane.b32.xlu0 %v4690, 48
        %v5220 = vpop.permute.xlu0 %5219
        %5221 = vrot.lane.b32.xlu0 %v4697, 48
        %v5222 = vpop.permute.xlu0 %5221
        %5223 = vrot.lane.b32.xlu0 %v4706, 48
        %v5224 = vpop.permute.xlu0 %5223
        %5225 = vrot.lane.b32.xlu0 %v4204, 48
        %v5226 = vpop.permute.xlu0 %5225
        %5227 = vrot.lane.b32.xlu0 %v4843, 48
        %v5228 = vpop.permute.xlu0 %5227
        %5229 = vrot.lane.b32.xlu0 %v4845, 48
        %v5230 = vpop.permute.xlu0 %5229
        %5231 = vrot.lane.b32.xlu0 %v4847, 48
        %v5232 = vpop.permute.xlu0 %5231
        %5233 = vrot.lane.b32.xlu0 %v4849, 48
        %v5234 = vpop.permute.xlu0 %5233
        %5235 = vrot.lane.b32.xlu0 %v4851, 48
        %v5236 = vpop.permute.xlu0 %5235
        %5237 = vrot.lane.b32.xlu0 %v4829, 48
        %v5238 = vpop.permute.xlu0 %5237
        %5239 = vrot.lane.b32.xlu0 %v4831, 48
        %v5240 = vpop.permute.xlu0 %5239
        %5241 = vrot.lane.b32.xlu0 %v4833, 48
        %v5242 = vpop.permute.xlu0 %5241
        %5243 = vrot.lane.b32.xlu0 %v4835, 48
        %v5244 = vpop.permute.xlu0 %5243
        %5245 = vrot.lane.b32.xlu0 %v4837, 48
        %v5246 = vpop.permute.xlu0 %5245
        %5247 = vrot.lane.b32.xlu0 %v4839, 48
        %v5248 = vpop.permute.xlu0 %5247
        %5249 = vrot.lane.b32.xlu0 %v4841, 48
        %v5250 = vpop.permute.xlu0 %5249
        %5289 = vrot.lane.b32.xlu0 %v4055, 64
        %v5290 = vpop.permute.xlu0 %5289
        %5291 = vrot.lane.b32.xlu0 %v4613, 64
        %v5292 = vpop.permute.xlu0 %5291
        %5293 = vrot.lane.b32.xlu0 %v4620, 64
        %v5294 = vpop.permute.xlu0 %5293
        %5295 = vrot.lane.b32.xlu0 %v4627, 64
        %v5296 = vpop.permute.xlu0 %5295
        %5297 = vrot.lane.b32.xlu0 %v4224, 64
        %v5298 = vpop.permute.xlu0 %5297
        %5299 = vrot.lane.b32.xlu0 %v4255, 64
        %v5300 = vpop.permute.xlu0 %5299
        %5301 = vrot.lane.b32.xlu0 %v4635, 64
        %v5302 = vpop.permute.xlu0 %5301
        %5303 = vrot.lane.b32.xlu0 %v4648, 64
        %v5304 = vpop.permute.xlu0 %5303
        %5305 = vrot.lane.b32.xlu0 %v4655, 64
        %v5306 = vpop.permute.xlu0 %5305
        %5307 = vrot.lane.b32.xlu0 %v4342, 64
        %v5308 = vpop.permute.xlu0 %5307
        %5309 = vrot.lane.b32.xlu0 %v4373, 64
        %v5310 = vpop.permute.xlu0 %5309
        %5311 = vrot.lane.b32.xlu0 %v4662, 64
        %v5312 = vpop.permute.xlu0 %5311
        %5313 = vrot.lane.b32.xlu0 %v4671, 64
        %v5314 = vpop.permute.xlu0 %5313
        %5315 = vrot.lane.b32.xlu0 %v4684, 64
        %v5316 = vpop.permute.xlu0 %5315
        %5317 = vrot.lane.b32.xlu0 %v4468, 64
        %v5318 = vpop.permute.xlu0 %5317
        %5319 = vrot.lane.b32.xlu0 %v4499, 64
        %v5320 = vpop.permute.xlu0 %5319
        %5321 = vrot.lane.b32.xlu0 %v4691, 64
        %v5322 = vpop.permute.xlu0 %5321
        %5323 = vrot.lane.b32.xlu0 %v4698, 64
        %v5324 = vpop.permute.xlu0 %5323
        %5325 = vrot.lane.b32.xlu0 %v4707, 64
        %v5326 = vpop.permute.xlu0 %5325
        %5327 = vrot.lane.b32.xlu0 %v4204, 64
        %v5328 = vpop.permute.xlu0 %5327
        %5329 = vrot.lane.b32.xlu0 %v4843, 64
        %v5330 = vpop.permute.xlu0 %5329
        %5331 = vrot.lane.b32.xlu0 %v4845, 64
        %v5332 = vpop.permute.xlu0 %5331
        %5333 = vrot.lane.b32.xlu0 %v4847, 64
        %v5334 = vpop.permute.xlu0 %5333
        %5335 = vrot.lane.b32.xlu0 %v4849, 64
        %v5336 = vpop.permute.xlu0 %5335
        %5337 = vrot.lane.b32.xlu0 %v4851, 64
        %v5338 = vpop.permute.xlu0 %5337
        %5339 = vrot.lane.b32.xlu0 %v4853, 64
        %v5340 = vpop.permute.xlu0 %5339
        %5341 = vrot.lane.b32.xlu0 %v4855, 64
        %v5342 = vpop.permute.xlu0 %5341
        %5343 = vrot.lane.b32.xlu0 %v4857, 64
        %v5344 = vpop.permute.xlu0 %5343
        %5345 = vrot.lane.b32.xlu0 %v4859, 64
        %v5346 = vpop.permute.xlu0 %5345
        %5347 = vrot.lane.b32.xlu0 %v4861, 64
        %v5348 = vpop.permute.xlu0 %5347
        %5349 = vrot.lane.b32.xlu0 %v4863, 64
        %v5350 = vpop.permute.xlu0 %5349
        %5351 = vrot.lane.b32.xlu0 %v4865, 64
        %v5352 = vpop.permute.xlu0 %5351
        %5389 = vrot.lane.b32.xlu0 %v4055, 80
        %v5390 = vpop.permute.xlu0 %5389
        %5391 = vrot.lane.b32.xlu0 %v4613, 80
        %v5392 = vpop.permute.xlu0 %5391
        %5393 = vrot.lane.b32.xlu0 %v4620, 80
        %v5394 = vpop.permute.xlu0 %5393
        %5395 = vrot.lane.b32.xlu0 %v4627, 80
        %v5396 = vpop.permute.xlu0 %5395
        %5397 = vrot.lane.b32.xlu0 %v4224, 80
        %v5398 = vpop.permute.xlu0 %5397
        %5399 = vrot.lane.b32.xlu0 %v4255, 80
        %v5400 = vpop.permute.xlu0 %5399
        %5401 = vrot.lane.b32.xlu0 %v4636, 80
        %v5402 = vpop.permute.xlu0 %5401
        %5403 = vrot.lane.b32.xlu0 %v4649, 80
        %v5404 = vpop.permute.xlu0 %5403
        %5405 = vrot.lane.b32.xlu0 %v4656, 80
        %v5406 = vpop.permute.xlu0 %5405
        %5407 = vrot.lane.b32.xlu0 %v4346, 80
        %v5408 = vpop.permute.xlu0 %5407
        %5409 = vrot.lane.b32.xlu0 %v4377, 80
        %v5410 = vpop.permute.xlu0 %5409
        %5411 = vrot.lane.b32.xlu0 %v4663, 80
        %v5412 = vpop.permute.xlu0 %5411
        %5413 = vrot.lane.b32.xlu0 %v4672, 80
        %v5414 = vpop.permute.xlu0 %5413
        %5415 = vrot.lane.b32.xlu0 %v4684, 80
        %v5416 = vpop.permute.xlu0 %5415
        %5417 = vrot.lane.b32.xlu0 %v4468, 80
        %v5418 = vpop.permute.xlu0 %5417
        %5419 = vrot.lane.b32.xlu0 %v4499, 80
        %v5420 = vpop.permute.xlu0 %5419
        %5421 = vrot.lane.b32.xlu0 %v4691, 80
        %v5422 = vpop.permute.xlu0 %5421
        %5423 = vrot.lane.b32.xlu0 %v4698, 80
        %v5424 = vpop.permute.xlu0 %5423
        %5425 = vrot.lane.b32.xlu0 %v4708, 80
        %v5426 = vpop.permute.xlu0 %5425
        %5427 = vrot.lane.b32.xlu0 %v4207, 80
        %v5428 = vpop.permute.xlu0 %5427
        %5429 = vrot.lane.b32.xlu0 %v4867, 80
        %v5430 = vpop.permute.xlu0 %5429
        %5431 = vrot.lane.b32.xlu0 %v4869, 80
        %v5432 = vpop.permute.xlu0 %5431
        %5433 = vrot.lane.b32.xlu0 %v4871, 80
        %v5434 = vpop.permute.xlu0 %5433
        %5435 = vrot.lane.b32.xlu0 %v4873, 80
        %v5436 = vpop.permute.xlu0 %5435
        %5437 = vrot.lane.b32.xlu0 %v4875, 80
        %v5438 = vpop.permute.xlu0 %5437
        %5439 = vrot.lane.b32.xlu0 %v4853, 80
        %v5440 = vpop.permute.xlu0 %5439
        %5441 = vrot.lane.b32.xlu0 %v4855, 80
        %v5442 = vpop.permute.xlu0 %5441
        %5443 = vrot.lane.b32.xlu0 %v4857, 80
        %v5444 = vpop.permute.xlu0 %5443
        %5445 = vrot.lane.b32.xlu0 %v4859, 80
        %v5446 = vpop.permute.xlu0 %5445
        %5447 = vrot.lane.b32.xlu0 %v4861, 80
        %v5448 = vpop.permute.xlu0 %5447
        %5449 = vrot.lane.b32.xlu0 %v4863, 80
        %v5450 = vpop.permute.xlu0 %5449
        %5451 = vrot.lane.b32.xlu0 %v4865, 80
        %v5452 = vpop.permute.xlu0 %5451
        %5491 = vrot.lane.b32.xlu0 %v4057, 96
        %v5492 = vpop.permute.xlu0 %5491
        %5493 = vrot.lane.b32.xlu0 %v4614, 96
        %v5494 = vpop.permute.xlu0 %5493
        %5495 = vrot.lane.b32.xlu0 %v4621, 96
        %v5496 = vpop.permute.xlu0 %5495
        %5497 = vrot.lane.b32.xlu0 %v4628, 96
        %v5498 = vpop.permute.xlu0 %5497
        %5499 = vrot.lane.b32.xlu0 %v4228, 96
        %v5500 = vpop.permute.xlu0 %5499
        %5501 = vrot.lane.b32.xlu0 %v4259, 96
        %v5502 = vpop.permute.xlu0 %5501
        %5503 = vrot.lane.b32.xlu0 %v4637, 96
        %v5504 = vpop.permute.xlu0 %5503
        %5505 = vrot.lane.b32.xlu0 %v4649, 96
        %v5506 = vpop.permute.xlu0 %5505
        %5507 = vrot.lane.b32.xlu0 %v4656, 96
        %v5508 = vpop.permute.xlu0 %5507
        %5509 = vrot.lane.b32.xlu0 %v4346, 96
        %v5510 = vpop.permute.xlu0 %5509
        %5511 = vrot.lane.b32.xlu0 %v4377, 96
        %v5512 = vpop.permute.xlu0 %5511
        %5513 = vrot.lane.b32.xlu0 %v4663, 96
        %v5514 = vpop.permute.xlu0 %5513
        %5515 = vrot.lane.b32.xlu0 %v4673, 96
        %v5516 = vpop.permute.xlu0 %5515
        %5517 = vrot.lane.b32.xlu0 %v4685, 96
        %v5518 = vpop.permute.xlu0 %5517
        %5519 = vrot.lane.b32.xlu0 %v4472, 96
        %v5520 = vpop.permute.xlu0 %5519
        %5521 = vrot.lane.b32.xlu0 %v4503, 96
        %v5522 = vpop.permute.xlu0 %5521
        %5523 = vrot.lane.b32.xlu0 %v4692, 96
        %v5524 = vpop.permute.xlu0 %5523
        %5525 = vrot.lane.b32.xlu0 %v4699, 96
        %v5526 = vpop.permute.xlu0 %5525
        %5527 = vrot.lane.b32.xlu0 %v4709, 96
        %v5528 = vpop.permute.xlu0 %5527
        %5529 = vrot.lane.b32.xlu0 %v4207, 96
        %v5530 = vpop.permute.xlu0 %5529
        %5531 = vrot.lane.b32.xlu0 %v4867, 96
        %v5532 = vpop.permute.xlu0 %5531
        %5533 = vrot.lane.b32.xlu0 %v4869, 96
        %v5534 = vpop.permute.xlu0 %5533
        %5535 = vrot.lane.b32.xlu0 %v4871, 96
        %v5536 = vpop.permute.xlu0 %5535
        %5537 = vrot.lane.b32.xlu0 %v4873, 96
        %v5538 = vpop.permute.xlu0 %5537
        %5539 = vrot.lane.b32.xlu0 %v4875, 96
        %v5540 = vpop.permute.xlu0 %5539
        %5541 = vrot.lane.b32.xlu0 %v4877, 96
        %v5542 = vpop.permute.xlu0 %5541
        %5543 = vrot.lane.b32.xlu0 %v4879, 96
        %v5544 = vpop.permute.xlu0 %5543
        %5545 = vrot.lane.b32.xlu0 %v4881, 96
        %v5546 = vpop.permute.xlu0 %5545
        %5547 = vrot.lane.b32.xlu0 %v4883, 96
        %v5548 = vpop.permute.xlu0 %5547
        %5549 = vrot.lane.b32.xlu0 %v4885, 96
        %v5550 = vpop.permute.xlu0 %5549
        %5551 = vrot.lane.b32.xlu0 %v4887, 96
        %v5552 = vpop.permute.xlu0 %5551
        %5553 = vrot.lane.b32.xlu0 %v4889, 96
        %v5554 = vpop.permute.xlu0 %5553
        %5591 = vrot.lane.b32.xlu0 %v4057, 112
        %v5592 = vpop.permute.xlu0 %5591
        %5593 = vrot.lane.b32.xlu0 %v4614, 112
        %v5594 = vpop.permute.xlu0 %5593
        %5595 = vrot.lane.b32.xlu0 %v4621, 112
        %v5596 = vpop.permute.xlu0 %5595
        %5597 = vrot.lane.b32.xlu0 %v4628, 112
        %v5598 = vpop.permute.xlu0 %5597
        %5599 = vrot.lane.b32.xlu0 %v4228, 112
        %v5600 = vpop.permute.xlu0 %5599
        %5601 = vrot.lane.b32.xlu0 %v4259, 112
        %v5602 = vpop.permute.xlu0 %5601
        %5603 = vrot.lane.b32.xlu0 %v4638, 112
        %v5604 = vpop.permute.xlu0 %5603
        %5605 = vrot.lane.b32.xlu0 %v4650, 112
        %v5606 = vpop.permute.xlu0 %5605
        %5607 = vrot.lane.b32.xlu0 %v4657, 112
        %v5608 = vpop.permute.xlu0 %5607
        %5609 = vrot.lane.b32.xlu0 %v4350, 112
        %v5610 = vpop.permute.xlu0 %5609
        %5611 = vrot.lane.b32.xlu0 %v4381, 112
        %v5612 = vpop.permute.xlu0 %5611
        %5613 = vrot.lane.b32.xlu0 %v4664, 112
        %v5614 = vpop.permute.xlu0 %5613
        %5615 = vrot.lane.b32.xlu0 %v4674, 112
        %v5616 = vpop.permute.xlu0 %5615
        %5617 = vrot.lane.b32.xlu0 %v4685, 112
        %v5618 = vpop.permute.xlu0 %5617
        %5619 = vrot.lane.b32.xlu0 %v4472, 112
        %v5620 = vpop.permute.xlu0 %5619
        %5621 = vrot.lane.b32.xlu0 %v4503, 112
        %v5622 = vpop.permute.xlu0 %5621
        %5623 = vrot.lane.b32.xlu0 %v4692, 112
        %v5624 = vpop.permute.xlu0 %5623
        %5625 = vrot.lane.b32.xlu0 %v4699, 112
        %v5626 = vpop.permute.xlu0 %5625
        %5627 = vrot.lane.b32.xlu0 %v4710, 112
        %v5628 = vpop.permute.xlu0 %5627
        %5629 = vrot.lane.b32.xlu0 %v4210, 112
        %v5630 = vpop.permute.xlu0 %5629
        %5631 = vrot.lane.b32.xlu0 %v4891, 112
        %v5632 = vpop.permute.xlu0 %5631
        %5633 = vrot.lane.b32.xlu0 %v4893, 112
        %v5634 = vpop.permute.xlu0 %5633
        %5635 = vrot.lane.b32.xlu0 %v4895, 112
        %v5636 = vpop.permute.xlu0 %5635
        %5637 = vrot.lane.b32.xlu0 %v4897, 112
        %v5638 = vpop.permute.xlu0 %5637
        %5639 = vrot.lane.b32.xlu0 %v4899, 112
        %v5640 = vpop.permute.xlu0 %5639
        %5641 = vrot.lane.b32.xlu0 %v4877, 112
        %v5642 = vpop.permute.xlu0 %5641
        %5643 = vrot.lane.b32.xlu0 %v4879, 112
        %v5644 = vpop.permute.xlu0 %5643
        %5645 = vrot.lane.b32.xlu0 %v4881, 112
        %v5646 = vpop.permute.xlu0 %5645
        %5647 = vrot.lane.b32.xlu0 %v4883, 112
        %v5648 = vpop.permute.xlu0 %5647
        %5649 = vrot.lane.b32.xlu0 %v4885, 112
        %v5650 = vpop.permute.xlu0 %5649
        %5651 = vrot.lane.b32.xlu0 %v4887, 112
        %v5652 = vpop.permute.xlu0 %5651
        %5653 = vrot.lane.b32.xlu0 %v4889, 112
        %v5654 = vpop.permute.xlu0 %5653
        %5694 = vrot.lane.b32.xlu0 %v4059, 16
        %v5695 = vpop.permute.xlu0 %5694
        %5696 = vrot.lane.b32.xlu0 %v4615, 16
        %v5697 = vpop.permute.xlu0 %5696
        %5698 = vrot.lane.b32.xlu0 %v4622, 16
        %v5699 = vpop.permute.xlu0 %5698
        %5700 = vrot.lane.b32.xlu0 %v4629, 16
        %v5701 = vpop.permute.xlu0 %5700
        %5702 = vrot.lane.b32.xlu0 %v4232, 16
        %v5703 = vpop.permute.xlu0 %5702
        %5704 = vrot.lane.b32.xlu0 %v4263, 16
        %v5705 = vpop.permute.xlu0 %5704
        %5706 = vrot.lane.b32.xlu0 %v4640, 16
        %v5707 = vpop.permute.xlu0 %5706
        %5708 = vrot.lane.b32.xlu0 %v4651, 16
        %v5709 = vpop.permute.xlu0 %5708
        %5710 = vrot.lane.b32.xlu0 %v4658, 16
        %v5711 = vpop.permute.xlu0 %5710
        %5712 = vrot.lane.b32.xlu0 %v4354, 16
        %v5713 = vpop.permute.xlu0 %5712
        %5714 = vrot.lane.b32.xlu0 %v4385, 16
        %v5715 = vpop.permute.xlu0 %5714
        %5716 = vrot.lane.b32.xlu0 %v4665, 16
        %v5717 = vpop.permute.xlu0 %5716
        %5718 = vrot.lane.b32.xlu0 %v4676, 16
        %v5719 = vpop.permute.xlu0 %5718
        %5720 = vrot.lane.b32.xlu0 %v4686, 16
        %v5721 = vpop.permute.xlu0 %5720
        %5722 = vrot.lane.b32.xlu0 %v4476, 16
        %v5723 = vpop.permute.xlu0 %5722
        %5724 = vrot.lane.b32.xlu0 %v4507, 16
        %v5725 = vpop.permute.xlu0 %5724
        %5726 = vrot.lane.b32.xlu0 %v4693, 16
        %v5727 = vpop.permute.xlu0 %5726
        %5728 = vrot.lane.b32.xlu0 %v4700, 16
        %v5729 = vpop.permute.xlu0 %5728
        %5730 = vrot.lane.b32.xlu0 %v4712, 16
        %v5731 = vpop.permute.xlu0 %5730
        %5732 = vrot.lane.b32.xlu0 %v4213, 16
        %v5733 = vpop.permute.xlu0 %5732
        %5734 = vrot.lane.b32.xlu0 %v4915, 16
        %v5735 = vpop.permute.xlu0 %5734
        %5736 = vrot.lane.b32.xlu0 %v4917, 16
        %v5737 = vpop.permute.xlu0 %5736
        %5738 = vrot.lane.b32.xlu0 %v4919, 16
        %v5739 = vpop.permute.xlu0 %5738
        %5740 = vrot.lane.b32.xlu0 %v4921, 16
        %v5741 = vpop.permute.xlu0 %5740
        %5742 = vrot.lane.b32.xlu0 %v4923, 16
        %v5743 = vpop.permute.xlu0 %5742
        %5744 = vrot.lane.b32.xlu0 %v4901, 16
        %v5745 = vpop.permute.xlu0 %5744
        %5746 = vrot.lane.b32.xlu0 %v4903, 16
        %v5747 = vpop.permute.xlu0 %5746
        %5748 = vrot.lane.b32.xlu0 %v4905, 16
        %v5749 = vpop.permute.xlu0 %5748
        %5750 = vrot.lane.b32.xlu0 %v4907, 16
        %v5751 = vpop.permute.xlu0 %5750
        %5752 = vrot.lane.b32.xlu0 %v4909, 16
        %v5753 = vpop.permute.xlu0 %5752
        %5754 = vrot.lane.b32.xlu0 %v4911, 16
        %v5755 = vpop.permute.xlu0 %5754
        %5756 = vrot.lane.b32.xlu0 %v4913, 16
        %v5757 = vpop.permute.xlu0 %5756
        %5796 = vrot.lane.b32.xlu0 %v4061, 32
        %v5797 = vpop.permute.xlu0 %5796
        %5798 = vrot.lane.b32.xlu0 %v4616, 32
        %v5799 = vpop.permute.xlu0 %5798
        %5800 = vrot.lane.b32.xlu0 %v4623, 32
        %v5801 = vpop.permute.xlu0 %5800
        %5802 = vrot.lane.b32.xlu0 %v4630, 32
        %v5803 = vpop.permute.xlu0 %5802
        %5804 = vrot.lane.b32.xlu0 %v4236, 32
        %v5805 = vpop.permute.xlu0 %5804
        %5806 = vrot.lane.b32.xlu0 %v4267, 32
        %v5807 = vpop.permute.xlu0 %5806
        %5808 = vrot.lane.b32.xlu0 %v4641, 32
        %v5809 = vpop.permute.xlu0 %5808
        %5810 = vrot.lane.b32.xlu0 %v4651, 32
        %v5811 = vpop.permute.xlu0 %5810
        %5812 = vrot.lane.b32.xlu0 %v4658, 32
        %v5813 = vpop.permute.xlu0 %5812
        %5814 = vrot.lane.b32.xlu0 %v4354, 32
        %v5815 = vpop.permute.xlu0 %5814
        %5816 = vrot.lane.b32.xlu0 %v4385, 32
        %v5817 = vpop.permute.xlu0 %5816
        %5818 = vrot.lane.b32.xlu0 %v4665, 32
        %v5819 = vpop.permute.xlu0 %5818
        %5820 = vrot.lane.b32.xlu0 %v4677, 32
        %v5821 = vpop.permute.xlu0 %5820
        %5822 = vrot.lane.b32.xlu0 %v4687, 32
        %v5823 = vpop.permute.xlu0 %5822
        %5824 = vrot.lane.b32.xlu0 %v4480, 32
        %v5825 = vpop.permute.xlu0 %5824
        %5826 = vrot.lane.b32.xlu0 %v4511, 32
        %v5827 = vpop.permute.xlu0 %5826
        %5828 = vrot.lane.b32.xlu0 %v4694, 32
        %v5829 = vpop.permute.xlu0 %5828
        %5830 = vrot.lane.b32.xlu0 %v4701, 32
        %v5831 = vpop.permute.xlu0 %5830
        %5832 = vrot.lane.b32.xlu0 %v4713, 32
        %v5833 = vpop.permute.xlu0 %5832
        %5834 = vrot.lane.b32.xlu0 %v4213, 32
        %v5835 = vpop.permute.xlu0 %5834
        %5836 = vrot.lane.b32.xlu0 %v4915, 32
        %v5837 = vpop.permute.xlu0 %5836
        %5838 = vrot.lane.b32.xlu0 %v4917, 32
        %v5839 = vpop.permute.xlu0 %5838
        %5840 = vrot.lane.b32.xlu0 %v4919, 32
        %v5841 = vpop.permute.xlu0 %5840
        %5842 = vrot.lane.b32.xlu0 %v4921, 32
        %v5843 = vpop.permute.xlu0 %5842
        %5844 = vrot.lane.b32.xlu0 %v4923, 32
        %v5845 = vpop.permute.xlu0 %5844
        %5846 = vrot.lane.b32.xlu0 %v4925, 32
        %v5847 = vpop.permute.xlu0 %5846
        %5848 = vrot.lane.b32.xlu0 %v4927, 32
        %v5849 = vpop.permute.xlu0 %5848
        %5850 = vrot.lane.b32.xlu0 %v4929, 32
        %v5851 = vpop.permute.xlu0 %5850
        %5852 = vrot.lane.b32.xlu0 %v4931, 32
        %v5853 = vpop.permute.xlu0 %5852
        %5854 = vrot.lane.b32.xlu0 %v4933, 32
        %v5855 = vpop.permute.xlu0 %5854
        %5856 = vrot.lane.b32.xlu0 %v4935, 32
        %v5857 = vpop.permute.xlu0 %5856
        %5858 = vrot.lane.b32.xlu0 %v4937, 32
        %v5859 = vpop.permute.xlu0 %5858
        %5896 = vrot.lane.b32.xlu0 %v4061, 48
        %v5897 = vpop.permute.xlu0 %5896
        %5898 = vrot.lane.b32.xlu0 %v4616, 48
        %v5899 = vpop.permute.xlu0 %5898
        %5900 = vrot.lane.b32.xlu0 %v4623, 48
        %v5901 = vpop.permute.xlu0 %5900
        %5902 = vrot.lane.b32.xlu0 %v4630, 48
        %v5903 = vpop.permute.xlu0 %5902
        %5904 = vrot.lane.b32.xlu0 %v4236, 48
        %v5905 = vpop.permute.xlu0 %5904
        %5906 = vrot.lane.b32.xlu0 %v4267, 48
        %v5907 = vpop.permute.xlu0 %5906
        %5908 = vrot.lane.b32.xlu0 %v4642, 48
        %v5909 = vpop.permute.xlu0 %5908
        %5910 = vrot.lane.b32.xlu0 %v4652, 48
        %v5911 = vpop.permute.xlu0 %5910
        %5912 = vrot.lane.b32.xlu0 %v4659, 48
        %v5913 = vpop.permute.xlu0 %5912
        %5914 = vrot.lane.b32.xlu0 %v4358, 48
        %v5915 = vpop.permute.xlu0 %5914
        %5916 = vrot.lane.b32.xlu0 %v4389, 48
        %v5917 = vpop.permute.xlu0 %5916
        %5918 = vrot.lane.b32.xlu0 %v4666, 48
        %v5919 = vpop.permute.xlu0 %5918
        %5920 = vrot.lane.b32.xlu0 %v4678, 48
        %v5921 = vpop.permute.xlu0 %5920
        %5922 = vrot.lane.b32.xlu0 %v4687, 48
        %v5923 = vpop.permute.xlu0 %5922
        %5924 = vrot.lane.b32.xlu0 %v4480, 48
        %v5925 = vpop.permute.xlu0 %5924
        %5926 = vrot.lane.b32.xlu0 %v4511, 48
        %v5927 = vpop.permute.xlu0 %5926
        %5928 = vrot.lane.b32.xlu0 %v4694, 48
        %v5929 = vpop.permute.xlu0 %5928
        %5930 = vrot.lane.b32.xlu0 %v4701, 48
        %v5931 = vpop.permute.xlu0 %5930
        %5932 = vrot.lane.b32.xlu0 %v4714, 48
        %v5933 = vpop.permute.xlu0 %5932
        %5934 = vrot.lane.b32.xlu0 %v4216, 48
        %v5935 = vpop.permute.xlu0 %5934
        %5936 = vrot.lane.b32.xlu0 %v4939, 48
        %v5937 = vpop.permute.xlu0 %5936
        %5938 = vrot.lane.b32.xlu0 %v4941, 48
        %v5939 = vpop.permute.xlu0 %5938
        %5940 = vrot.lane.b32.xlu0 %v4943, 48
        %v5941 = vpop.permute.xlu0 %5940
        %5942 = vrot.lane.b32.xlu0 %v4945, 48
        %v5943 = vpop.permute.xlu0 %5942
        %5944 = vrot.lane.b32.xlu0 %v4947, 48
        %v5945 = vpop.permute.xlu0 %5944
        %5946 = vrot.lane.b32.xlu0 %v4925, 48
        %v5947 = vpop.permute.xlu0 %5946
        %5948 = vrot.lane.b32.xlu0 %v4927, 48
        %v5949 = vpop.permute.xlu0 %5948
        %5950 = vrot.lane.b32.xlu0 %v4929, 48
        %v5951 = vpop.permute.xlu0 %5950
        %5952 = vrot.lane.b32.xlu0 %v4931, 48
        %v5953 = vpop.permute.xlu0 %5952
        %5954 = vrot.lane.b32.xlu0 %v4933, 48
        %v5955 = vpop.permute.xlu0 %5954
        %5956 = vrot.lane.b32.xlu0 %v4935, 48
        %v5957 = vpop.permute.xlu0 %5956
        %5958 = vrot.lane.b32.xlu0 %v4937, 48
        %v5959 = vpop.permute.xlu0 %5958
        %5998 = vrot.lane.b32.xlu0 %v4063, 64
        %v5999 = vpop.permute.xlu0 %5998
        %6000 = vrot.lane.b32.xlu0 %v4617, 64
        %v6001 = vpop.permute.xlu0 %6000
        %6002 = vrot.lane.b32.xlu0 %v4624, 64
        %v6003 = vpop.permute.xlu0 %6002
        %6004 = vrot.lane.b32.xlu0 %v4631, 64
        %v6005 = vpop.permute.xlu0 %6004
        %6006 = vrot.lane.b32.xlu0 %v4240, 64
        %v6007 = vpop.permute.xlu0 %6006
        %6008 = vrot.lane.b32.xlu0 %v4271, 64
        %v6009 = vpop.permute.xlu0 %6008
        %6010 = vrot.lane.b32.xlu0 %v4643, 64
        %v6011 = vpop.permute.xlu0 %6010
        %6012 = vrot.lane.b32.xlu0 %v4652, 64
        %v6013 = vpop.permute.xlu0 %6012
        %6014 = vrot.lane.b32.xlu0 %v4659, 64
        %v6015 = vpop.permute.xlu0 %6014
        %6016 = vrot.lane.b32.xlu0 %v4358, 64
        %v6017 = vpop.permute.xlu0 %6016
        %6018 = vrot.lane.b32.xlu0 %v4389, 64
        %v6019 = vpop.permute.xlu0 %6018
        %6020 = vrot.lane.b32.xlu0 %v4666, 64
        %v6021 = vpop.permute.xlu0 %6020
        %6022 = vrot.lane.b32.xlu0 %v4679, 64
        %v6023 = vpop.permute.xlu0 %6022
        %6024 = vrot.lane.b32.xlu0 %v4688, 64
        %v6025 = vpop.permute.xlu0 %6024
        %6026 = vrot.lane.b32.xlu0 %v4484, 64
        %v6027 = vpop.permute.xlu0 %6026
        %6028 = vrot.lane.b32.xlu0 %v4515, 64
        %v6029 = vpop.permute.xlu0 %6028
        %6030 = vrot.lane.b32.xlu0 %v4695, 64
        %v6031 = vpop.permute.xlu0 %6030
        %6032 = vrot.lane.b32.xlu0 %v4702, 64
        %v6033 = vpop.permute.xlu0 %6032
        %6034 = vrot.lane.b32.xlu0 %v4715, 64
        %v6035 = vpop.permute.xlu0 %6034
        %6036 = vrot.lane.b32.xlu0 %v4216, 64
        %v6037 = vpop.permute.xlu0 %6036
        %6038 = vrot.lane.b32.xlu0 %v4939, 64
        %v6039 = vpop.permute.xlu0 %6038
        %6040 = vrot.lane.b32.xlu0 %v4941, 64
        %v6041 = vpop.permute.xlu0 %6040
        %6042 = vrot.lane.b32.xlu0 %v4943, 64
        %v6043 = vpop.permute.xlu0 %6042
        %6044 = vrot.lane.b32.xlu0 %v4945, 64
        %v6045 = vpop.permute.xlu0 %6044
        %6046 = vrot.lane.b32.xlu0 %v4947, 64
        %v6047 = vpop.permute.xlu0 %6046
        %6048 = vrot.lane.b32.xlu0 %v2527, 64
        %v6049 = vpop.permute.xlu0 %6048
        %6050 = vrot.lane.b32.xlu0 %v4949, 64
        %v6051 = vpop.permute.xlu0 %6050
        %6052 = vrot.lane.b32.xlu0 %v4951, 64
        %v6053 = vpop.permute.xlu0 %6052
        %6054 = vrot.lane.b32.xlu0 %v4953, 64
        %v6055 = vpop.permute.xlu0 %6054
        %6056 = vrot.lane.b32.xlu0 %v4955, 64
        %v6057 = vpop.permute.xlu0 %6056
        %6058 = vrot.lane.b32.xlu0 %v2537, 64
        %v6059 = vpop.permute.xlu0 %6058
        %6095 = vrot.lane.b32.xlu0 %v4063, 80
        %v6096 = vpop.permute.xlu0 %6095
        %6097 = vrot.lane.b32.xlu0 %v4617, 80
        %v6098 = vpop.permute.xlu0 %6097
        %6099 = vrot.lane.b32.xlu0 %v4624, 80
        %v6100 = vpop.permute.xlu0 %6099
        %6101 = vrot.lane.b32.xlu0 %v4631, 80
        %v6102 = vpop.permute.xlu0 %6101
        %6103 = vrot.lane.b32.xlu0 %v4240, 80
        %v6104 = vpop.permute.xlu0 %6103
        %6105 = vrot.lane.b32.xlu0 %v4271, 80
        %v6106 = vpop.permute.xlu0 %6105
        %6107 = vrot.lane.b32.xlu0 %v4644, 80
        %v6108 = vpop.permute.xlu0 %6107
        %6109 = vrot.lane.b32.xlu0 %v4653, 80
        %v6110 = vpop.permute.xlu0 %6109
        %6111 = vrot.lane.b32.xlu0 %v4660, 80
        %v6112 = vpop.permute.xlu0 %6111
        %6113 = vrot.lane.b32.xlu0 %v4362, 80
        %v6114 = vpop.permute.xlu0 %6113
        %6115 = vrot.lane.b32.xlu0 %v4393, 80
        %v6116 = vpop.permute.xlu0 %6115
        %6117 = vrot.lane.b32.xlu0 %v4667, 80
        %v6118 = vpop.permute.xlu0 %6117
        %6119 = vrot.lane.b32.xlu0 %v4680, 80
        %v6120 = vpop.permute.xlu0 %6119
        %6121 = vrot.lane.b32.xlu0 %v4688, 80
        %v6122 = vpop.permute.xlu0 %6121
        %6123 = vrot.lane.b32.xlu0 %v4484, 80
        %v6124 = vpop.permute.xlu0 %6123
        %6125 = vrot.lane.b32.xlu0 %v4515, 80
        %v6126 = vpop.permute.xlu0 %6125
        %6127 = vrot.lane.b32.xlu0 %v4695, 80
        %v6128 = vpop.permute.xlu0 %6127
        %6129 = vrot.lane.b32.xlu0 %v4702, 80
        %v6130 = vpop.permute.xlu0 %6129
        %6131 = vrot.lane.b32.xlu0 %v4716, 80
        %v6132 = vpop.permute.xlu0 %6131
        %6133 = vrot.lane.b32.xlu0 %v4198, 80
        %v6134 = vpop.permute.xlu0 %6133
        %6135 = vrot.lane.b32.xlu0 %v2401, 80
        %v6136 = vpop.permute.xlu0 %6135
        %6137 = vrot.lane.b32.xlu0 %v4797, 80
        %v6138 = vpop.permute.xlu0 %6137
        %6139 = vrot.lane.b32.xlu0 %v4799, 80
        %v6140 = vpop.permute.xlu0 %6139
        %6141 = vrot.lane.b32.xlu0 %v4801, 80
        %v6142 = vpop.permute.xlu0 %6141
        %6143 = vrot.lane.b32.xlu0 %v4803, 80
        %v6144 = vpop.permute.xlu0 %6143
        %6145 = vrot.lane.b32.xlu0 %v2527, 80
        %v6146 = vpop.permute.xlu0 %6145
        %6147 = vrot.lane.b32.xlu0 %v4949, 80
        %v6148 = vpop.permute.xlu0 %6147
        %6149 = vrot.lane.b32.xlu0 %v4951, 80
        %v6150 = vpop.permute.xlu0 %6149
        %6151 = vrot.lane.b32.xlu0 %v4953, 80
        %v6152 = vpop.permute.xlu0 %6151
        %6153 = vrot.lane.b32.xlu0 %v4955, 80
        %v6154 = vpop.permute.xlu0 %6153
        %6155 = vrot.lane.b32.xlu0 %v2537, 80
        %v6156 = vpop.permute.xlu0 %6155
        %6191 = vrot.lane.b32.xlu0 %v4065, 96
        %v6192 = vpop.permute.xlu0 %6191
        %6193 = vrot.lane.b32.xlu0 %v4618, 96
        %v6194 = vpop.permute.xlu0 %6193
        %6195 = vrot.lane.b32.xlu0 %v4625, 96
        %v6196 = vpop.permute.xlu0 %6195
        %6197 = vrot.lane.b32.xlu0 %v4632, 96
        %v6198 = vpop.permute.xlu0 %6197
        %6199 = vrot.lane.b32.xlu0 %v4244, 96
        %v6200 = vpop.permute.xlu0 %6199
        %6201 = vrot.lane.b32.xlu0 %v4275, 96
        %v6202 = vpop.permute.xlu0 %6201
        %6203 = vrot.lane.b32.xlu0 %v4645, 96
        %v6204 = vpop.permute.xlu0 %6203
        %6205 = vrot.lane.b32.xlu0 %v4653, 96
        %v6206 = vpop.permute.xlu0 %6205
        %6207 = vrot.lane.b32.xlu0 %v4660, 96
        %v6208 = vpop.permute.xlu0 %6207
        %6209 = vrot.lane.b32.xlu0 %v4362, 96
        %v6210 = vpop.permute.xlu0 %6209
        %6211 = vrot.lane.b32.xlu0 %v4393, 96
        %v6212 = vpop.permute.xlu0 %6211
        %6213 = vrot.lane.b32.xlu0 %v4667, 96
        %v6214 = vpop.permute.xlu0 %6213
        %6215 = vrot.lane.b32.xlu0 %v4681, 96
        %v6216 = vpop.permute.xlu0 %6215
        %6217 = vrot.lane.b32.xlu0 %v4682, 96
        %v6218 = vpop.permute.xlu0 %6217
        %6219 = vrot.lane.b32.xlu0 %v4460, 96
        %v6220 = vpop.permute.xlu0 %6219
        %6221 = vrot.lane.b32.xlu0 %v2365, 96
        %v6222 = vpop.permute.xlu0 %6221
        %6223 = vrot.lane.b32.xlu0 %v4689, 96
        %v6224 = vpop.permute.xlu0 %6223
        %6225 = vrot.lane.b32.xlu0 %v4696, 96
        %v6226 = vpop.permute.xlu0 %6225
        %6227 = vrot.lane.b32.xlu0 %v4703, 96
        %v6228 = vpop.permute.xlu0 %6227
        %6229 = vrot.lane.b32.xlu0 %v4198, 96
        %v6230 = vpop.permute.xlu0 %6229
        %6231 = vrot.lane.b32.xlu0 %v2401, 96
        %v6232 = vpop.permute.xlu0 %6231
        %6233 = vrot.lane.b32.xlu0 %v4797, 96
        %v6234 = vpop.permute.xlu0 %6233
        %6235 = vrot.lane.b32.xlu0 %v4799, 96
        %v6236 = vpop.permute.xlu0 %6235
        %6237 = vrot.lane.b32.xlu0 %v4801, 96
        %v6238 = vpop.permute.xlu0 %6237
        %6239 = vrot.lane.b32.xlu0 %v4803, 96
        %v6240 = vpop.permute.xlu0 %6239
        %6241 = vrot.lane.b32.xlu0 %v2527, 96
        %v6242 = vpop.permute.xlu0 %6241
        %6243 = vrot.lane.b32.xlu0 %v4949, 96
        %v6244 = vpop.permute.xlu0 %6243
        %6245 = vrot.lane.b32.xlu0 %v4951, 96
        %v6246 = vpop.permute.xlu0 %6245
        %6247 = vrot.lane.b32.xlu0 %v4953, 96
        %v6248 = vpop.permute.xlu0 %6247
        %6249 = vrot.lane.b32.xlu0 %v4955, 96
        %v6250 = vpop.permute.xlu0 %6249
        %6251 = vrot.lane.b32.xlu0 %v2537, 96
        %v6252 = vpop.permute.xlu0 %6251
        %6285 = vrot.lane.b32.xlu0 %v4065, 112
        %v6286 = vpop.permute.xlu0 %6285
        %6287 = vrot.lane.b32.xlu0 %v4618, 112
        %v6288 = vpop.permute.xlu0 %6287
        %6289 = vrot.lane.b32.xlu0 %v4625, 112
        %v6290 = vpop.permute.xlu0 %6289
        %6291 = vrot.lane.b32.xlu0 %v4632, 112
        %v6292 = vpop.permute.xlu0 %6291
        %6293 = vrot.lane.b32.xlu0 %v4244, 112
        %v6294 = vpop.permute.xlu0 %6293
        %6295 = vrot.lane.b32.xlu0 %v4275, 112
        %v6296 = vpop.permute.xlu0 %6295
        %6297 = vrot.lane.b32.xlu0 %v4646, 112
        %v6298 = vpop.permute.xlu0 %6297
        %6299 = vrot.lane.b32.xlu0 %v4647, 112
        %v6300 = vpop.permute.xlu0 %6299
        %6301 = vrot.lane.b32.xlu0 %v4654, 112
        %v6302 = vpop.permute.xlu0 %6301
        %6303 = vrot.lane.b32.xlu0 %v4338, 112
        %v6304 = vpop.permute.xlu0 %6303
        %6305 = vrot.lane.b32.xlu0 %v2424, 112
        %v6306 = vpop.permute.xlu0 %6305
        %6307 = vrot.lane.b32.xlu0 %v4661, 112
        %v6308 = vpop.permute.xlu0 %6307
        %6309 = vrot.lane.b32.xlu0 %v4668, 112
        %v6310 = vpop.permute.xlu0 %6309
        %6311 = vrot.lane.b32.xlu0 %v4682, 112
        %v6312 = vpop.permute.xlu0 %6311
        %6313 = vrot.lane.b32.xlu0 %v4460, 112
        %v6314 = vpop.permute.xlu0 %6313
        %6315 = vrot.lane.b32.xlu0 %v2365, 112
        %v6316 = vpop.permute.xlu0 %6315
        %6317 = vrot.lane.b32.xlu0 %v4689, 112
        %v6318 = vpop.permute.xlu0 %6317
        %6319 = vrot.lane.b32.xlu0 %v4696, 112
        %v6320 = vpop.permute.xlu0 %6319
        %6321 = vrot.lane.b32.xlu0 %v4703, 112
        %v6322 = vpop.permute.xlu0 %6321
        %6323 = vrot.lane.b32.xlu0 %v4198, 112
        %v6324 = vpop.permute.xlu0 %6323
        %6325 = vrot.lane.b32.xlu0 %v2401, 112
        %v6326 = vpop.permute.xlu0 %6325
        %6327 = vrot.lane.b32.xlu0 %v4797, 112
        %v6328 = vpop.permute.xlu0 %6327
        %6329 = vrot.lane.b32.xlu0 %v4799, 112
        %v6330 = vpop.permute.xlu0 %6329
        %6331 = vrot.lane.b32.xlu0 %v4801, 112
        %v6332 = vpop.permute.xlu0 %6331
        %6333 = vrot.lane.b32.xlu0 %v4803, 112
        %v6334 = vpop.permute.xlu0 %6333
        %6335 = vrot.lane.b32.xlu0 %v2527, 112
        %v6336 = vpop.permute.xlu0 %6335
        %6337 = vrot.lane.b32.xlu0 %v4949, 112
        %v6338 = vpop.permute.xlu0 %6337
        %6339 = vrot.lane.b32.xlu0 %v4951, 112
        %v6340 = vpop.permute.xlu0 %6339
        %6341 = vrot.lane.b32.xlu0 %v4953, 112
        %v6342 = vpop.permute.xlu0 %6341
        %6343 = vrot.lane.b32.xlu0 %v4955, 112
        %v6344 = vpop.permute.xlu0 %6343
        %6345 = vrot.lane.b32.xlu0 %v2537, 112
        %v6346 = vpop.permute.xlu0 %6345
        %v6378 = vsel %vm4054, 0.0, %v4987
        %v6379 = vsel %vm4054, %v4612, %v4989
        %v6380 = vsel %vm4054, %v4619, %v4991
        %v6381 = vsel %vm4054, %v4626, %v4993
        %v6382 = vsel %vm4054, %v4220, %v4995
        %v6383 = vsel %vm4054, %v2388, %v4997
        %v6384 = vsel %vm4054, %v4633, %v4999
        %v6385 = vsel %vm4054, %v4647, %v5001
        %v6386 = vsel %vm4054, %v4654, %v5003
        %v6387 = vsel %vm4054, %v4338, %v5005
        %v6388 = vsel %vm4054, %v2424, %v5007
        %v6389 = vsel %vm4054, %v4661, %v5009
        %v6390 = vsel %vm4054, %v4668, %v5011
        %v6391 = vsel %vm4054, %v4682, %v5013
        %v6392 = vsel %vm4054, %v4460, %v5015
        %v6393 = vsel %vm4054, %v2365, %v5017
        %v6394 = vsel %vm4054, %v4689, %v5019
        %v6395 = vsel %vm4054, %v4696, %v5021
        %v6396 = vsel %vm4054, %v4703, %v5023
        %v6397 = vsel %vm4054, %v4198, %v5025
        %v6398 = vsel %vm4054, %v2401, %v5027
        %v6399 = vsel %vm4054, %v4797, %v5029
        %v6400 = vsel %vm4054, %v4799, %v5031
        %v6401 = vsel %vm4054, %v4801, %v5033
        %v6402 = vsel %vm4054, %v4803, %v5035
        %v6403 = vsel %vm4054, %v4805, %v5037
        %v6404 = vsel %vm4054, %v4807, %v5039
        %v6405 = vsel %vm4054, %v4809, %v5041
        %v6406 = vsel %vm4054, %v4811, %v5043
        %v6407 = vsel %vm4054, %v4813, %v5045
        %v6408 = vsel %vm4054, %v4815, %v5047
        %v6409 = vsel %vm4054, %v4817, %v5049
        %vm6410 = vcmask 261120
        %v6411 = vsel %vm6410, %v6378, %v5088
        %v6412 = vsel %vm6410, %v6379, %v5090
        %v6413 = vsel %vm6410, %v6380, %v5092
        %v6414 = vsel %vm6410, %v6381, %v5094
        %v6415 = vsel %vm6410, %v6382, %v5096
        %v6416 = vsel %vm6410, %v6383, %v5098
        %v6417 = vsel %vm6410, %v6384, %v5100
        %v6418 = vsel %vm6410, %v6385, %v5102
        %v6419 = vsel %vm6410, %v6386, %v5104
        %v6420 = vsel %vm6410, %v6387, %v5106
        %v6421 = vsel %vm6410, %v6388, %v5108
        %v6422 = vsel %vm6410, %v6389, %v5110
        %v6423 = vsel %vm6410, %v6390, %v5112
        %v6424 = vsel %vm6410, %v6391, %v5114
        %v6425 = vsel %vm6410, %v6392, %v5116
        %v6426 = vsel %vm6410, %v6393, %v5118
        %v6427 = vsel %vm6410, %v6394, %v5120
        %v6428 = vsel %vm6410, %v6395, %v5122
        %v6429 = vsel %vm6410, %v6396, %v5124
        %v6430 = vsel %vm6410, %v6397, %v5126
        %v6431 = vsel %vm6410, %v6398, %v5128
        %v6432 = vsel %vm6410, %v6399, %v5130
        %v6433 = vsel %vm6410, %v6400, %v5132
        %v6434 = vsel %vm6410, %v6401, %v5134
        %v6435 = vsel %vm6410, %v6402, %v5136
        %v6436 = vsel %vm6410, %v6403, %v5138
        %v6437 = vsel %vm6410, %v6404, %v5140
        %v6438 = vsel %vm6410, %v6405, %v5142
        %v6439 = vsel %vm6410, %v6406, %v5144
        %v6440 = vsel %vm6410, %v6407, %v5146
        %v6441 = vsel %vm6410, %v6408, %v5148
        %v6442 = vsel %vm6410, %v6409, %v5150
        %v6443 = vsel %vm1115, %v6411, %v5188
        %v6444 = vsel %vm1115, %v6412, %v5190
        %v6445 = vsel %vm1115, %v6413, %v5192
        %v6446 = vsel %vm1115, %v6414, %v5194
        %v6447 = vsel %vm1115, %v6415, %v5196
        %v6448 = vsel %vm1115, %v6416, %v5198
        %v6449 = vsel %vm1115, %v6417, %v5200
        %v6450 = vsel %vm1115, %v6418, %v5202
        %v6451 = vsel %vm1115, %v6419, %v5204
        %v6452 = vsel %vm1115, %v6420, %v5206
        %v6453 = vsel %vm1115, %v6421, %v5208
        %v6454 = vsel %vm1115, %v6422, %v5210
        %v6455 = vsel %vm1115, %v6423, %v5212
        %v6456 = vsel %vm1115, %v6424, %v5214
        %v6457 = vsel %vm1115, %v6425, %v5216
        %v6458 = vsel %vm1115, %v6426, %v5218
        %v6459 = vsel %vm1115, %v6427, %v5220
        %v6460 = vsel %vm1115, %v6428, %v5222
        %v6461 = vsel %vm1115, %v6429, %v5224
        %v6462 = vsel %vm1115, %v6430, %v5226
        %v6463 = vsel %vm1115, %v6431, %v5228
        %v6464 = vsel %vm1115, %v6432, %v5230
        %v6465 = vsel %vm1115, %v6433, %v5232
        %v6466 = vsel %vm1115, %v6434, %v5234
        %v6467 = vsel %vm1115, %v6435, %v5236
        %v6468 = vsel %vm1115, %v6436, %v5238
        %v6469 = vsel %vm1115, %v6437, %v5240
        %v6470 = vsel %vm1115, %v6438, %v5242
        %v6471 = vsel %vm1115, %v6439, %v5244
        %v6472 = vsel %vm1115, %v6440, %v5246
        %v6473 = vsel %vm1115, %v6441, %v5248
        %v6474 = vsel %vm1115, %v6442, %v5250
        %vm6475 = vcmask 523264
        %v6476 = vsel %vm6475, %v6443, %v5290
        %v6477 = vsel %vm6475, %v6444, %v5292
        %v6478 = vsel %vm6475, %v6445, %v5294
        %v6479 = vsel %vm6475, %v6446, %v5296
        %v6480 = vsel %vm6475, %v6447, %v5298
        %v6481 = vsel %vm6475, %v6448, %v5300
        %v6482 = vsel %vm6475, %v6449, %v5302
        %v6483 = vsel %vm6475, %v6450, %v5304
        %v6484 = vsel %vm6475, %v6451, %v5306
        %v6485 = vsel %vm6475, %v6452, %v5308
        %v6486 = vsel %vm6475, %v6453, %v5310
        %v6487 = vsel %vm6475, %v6454, %v5312
        %v6488 = vsel %vm6475, %v6455, %v5314
        %v6489 = vsel %vm6475, %v6456, %v5316
        %v6490 = vsel %vm6475, %v6457, %v5318
        %v6491 = vsel %vm6475, %v6458, %v5320
        %v6492 = vsel %vm6475, %v6459, %v5322
        %v6493 = vsel %vm6475, %v6460, %v5324
        %v6494 = vsel %vm6475, %v6461, %v5326
        %v6495 = vsel %vm6475, %v6462, %v5328
        %v6496 = vsel %vm6475, %v6463, %v5330
        %v6497 = vsel %vm6475, %v6464, %v5332
        %v6498 = vsel %vm6475, %v6465, %v5334
        %v6499 = vsel %vm6475, %v6466, %v5336
        %v6500 = vsel %vm6475, %v6467, %v5338
        %v6501 = vsel %vm6475, %v6468, %v5340
        %v6502 = vsel %vm6475, %v6469, %v5342
        %v6503 = vsel %vm6475, %v6470, %v5344
        %v6504 = vsel %vm6475, %v6471, %v5346
        %v6505 = vsel %vm6475, %v6472, %v5348
        %v6506 = vsel %vm6475, %v6473, %v5350
        %v6507 = vsel %vm6475, %v6474, %v5352
        %vm6508 = vcmask 654336
        %v6509 = vsel %vm6508, %v6476, %v5390
        %v6510 = vsel %vm6508, %v6477, %v5392
        %v6511 = vsel %vm6508, %v6478, %v5394
        %v6512 = vsel %vm6508, %v6479, %v5396
        %v6513 = vsel %vm6508, %v6480, %v5398
        %v6514 = vsel %vm6508, %v6481, %v5400
        %v6515 = vsel %vm6508, %v6482, %v5402
        %v6516 = vsel %vm6508, %v6483, %v5404
        %v6517 = vsel %vm6508, %v6484, %v5406
        %v6518 = vsel %vm6508, %v6485, %v5408
        %v6519 = vsel %vm6508, %v6486, %v5410
        %v6520 = vsel %vm6508, %v6487, %v5412
        %v6521 = vsel %vm6508, %v6488, %v5414
        %v6522 = vsel %vm6508, %v6489, %v5416
        %v6523 = vsel %vm6508, %v6490, %v5418
        %v6524 = vsel %vm6508, %v6491, %v5420
        %v6525 = vsel %vm6508, %v6492, %v5422
        %v6526 = vsel %vm6508, %v6493, %v5424
        %v6527 = vsel %vm6508, %v6494, %v5426
        %v6528 = vsel %vm6508, %v6495, %v5428
        %v6529 = vsel %vm6508, %v6496, %v5430
        %v6530 = vsel %vm6508, %v6497, %v5432
        %v6531 = vsel %vm6508, %v6498, %v5434
        %v6532 = vsel %vm6508, %v6499, %v5436
        %v6533 = vsel %vm6508, %v6500, %v5438
        %v6534 = vsel %vm6508, %v6501, %v5440
        %v6535 = vsel %vm6508, %v6502, %v5442
        %v6536 = vsel %vm6508, %v6503, %v5444
        %v6537 = vsel %vm6508, %v6504, %v5446
        %v6538 = vsel %vm6508, %v6505, %v5448
        %v6539 = vsel %vm6508, %v6506, %v5450
        %v6540 = vsel %vm6508, %v6507, %v5452
        %v6541 = vsel %vm1135, %v6509, %v5492
        %v6542 = vsel %vm1135, %v6510, %v5494
        %v6543 = vsel %vm1135, %v6511, %v5496
        %v6544 = vsel %vm1135, %v6512, %v5498
        %v6545 = vsel %vm1135, %v6513, %v5500
        %v6546 = vsel %vm1135, %v6514, %v5502
        %v6547 = vsel %vm1135, %v6515, %v5504
        %v6548 = vsel %vm1135, %v6516, %v5506
        %v6549 = vsel %vm1135, %v6517, %v5508
        %v6550 = vsel %vm1135, %v6518, %v5510
        %v6551 = vsel %vm1135, %v6519, %v5512
        %v6552 = vsel %vm1135, %v6520, %v5514
        %v6553 = vsel %vm1135, %v6521, %v5516
        %v6554 = vsel %vm1135, %v6522, %v5518
        %v6555 = vsel %vm1135, %v6523, %v5520
        %v6556 = vsel %vm1135, %v6524, %v5522
        %v6557 = vsel %vm1135, %v6525, %v5524
        %v6558 = vsel %vm1135, %v6526, %v5526
        %v6559 = vsel %vm1135, %v6527, %v5528
        %v6560 = vsel %vm1135, %v6528, %v5530
        %v6561 = vsel %vm1135, %v6529, %v5532
        %v6562 = vsel %vm1135, %v6530, %v5534
        %v6563 = vsel %vm1135, %v6531, %v5536
        %v6564 = vsel %vm1135, %v6532, %v5538
        %v6565 = vsel %vm1135, %v6533, %v5540
        %v6566 = vsel %vm1135, %v6534, %v5542
        %v6567 = vsel %vm1135, %v6535, %v5544
        %v6568 = vsel %vm1135, %v6536, %v5546
        %v6569 = vsel %vm1135, %v6537, %v5548
        %v6570 = vsel %vm1135, %v6538, %v5550
        %v6571 = vsel %vm1135, %v6539, %v5552
        %v6572 = vsel %vm1135, %v6540, %v5554
        %vm6573 = vcmask 916480
        %v6574 = vsel %vm6573, %v6541, %v5592
        %v6575 = vsel %vm6573, %v6542, %v5594
        %v6576 = vsel %vm6573, %v6543, %v5596
        %v6577 = vsel %vm6573, %v6544, %v5598
        %v6578 = vsel %vm6573, %v6545, %v5600
        %v6579 = vsel %vm6573, %v6546, %v5602
        %v6580 = vsel %vm6573, %v6547, %v5604
        %v6581 = vsel %vm6573, %v6548, %v5606
        %v6582 = vsel %vm6573, %v6549, %v5608
        %v6583 = vsel %vm6573, %v6550, %v5610
        %v6584 = vsel %vm6573, %v6551, %v5612
        %v6585 = vsel %vm6573, %v6552, %v5614
        %v6586 = vsel %vm6573, %v6553, %v5616
        %v6587 = vsel %vm6573, %v6554, %v5618
        %v6588 = vsel %vm6573, %v6555, %v5620
        %v6589 = vsel %vm6573, %v6556, %v5622
        %v6590 = vsel %vm6573, %v6557, %v5624
        %v6591 = vsel %vm6573, %v6558, %v5626
        %v6592 = vsel %vm6573, %v6559, %v5628
        %v6593 = vsel %vm6573, %v6560, %v5630
        %v6594 = vsel %vm6573, %v6561, %v5632
        %v6595 = vsel %vm6573, %v6562, %v5634
        %v6596 = vsel %vm6573, %v6563, %v5636
        %v6597 = vsel %vm6573, %v6564, %v5638
        %v6598 = vsel %vm6573, %v6565, %v5640
        %v6599 = vsel %vm6573, %v6566, %v5642
        %v6600 = vsel %vm6573, %v6567, %v5644
        %v6601 = vsel %vm6573, %v6568, %v5646
        %v6602 = vsel %vm6573, %v6569, %v5648
        %v6603 = vsel %vm6573, %v6570, %v5650
        %v6604 = vsel %vm6573, %v6571, %v5652
        %v6605 = vsel %vm6573, %v6572, %v5654
        %v6606 = vsel %vm4054, %v4059, %v5695
        %v6607 = vsel %vm4054, %v4615, %v5697
        %v6608 = vsel %vm4054, %v4622, %v5699
        %v6609 = vsel %vm4054, %v4629, %v5701
        %v6610 = vsel %vm4054, %v4232, %v5703
        %v6611 = vsel %vm4054, %v4263, %v5705
        %v6612 = vsel %vm4054, %v4639, %v5707
        %v6613 = vsel %vm4054, %v4650, %v5709
        %v6614 = vsel %vm4054, %v4657, %v5711
        %v6615 = vsel %vm4054, %v4350, %v5713
        %v6616 = vsel %vm4054, %v4381, %v5715
        %v6617 = vsel %vm4054, %v4664, %v5717
        %v6618 = vsel %vm4054, %v4675, %v5719
        %v6619 = vsel %vm4054, %v4686, %v5721
        %v6620 = vsel %vm4054, %v4476, %v5723
        %v6621 = vsel %vm4054, %v4507, %v5725
        %v6622 = vsel %vm4054, %v4693, %v5727
        %v6623 = vsel %vm4054, %v4700, %v5729
        %v6624 = vsel %vm4054, %v4711, %v5731
        %v6625 = vsel %vm4054, %v4210, %v5733
        %v6626 = vsel %vm4054, %v4891, %v5735
        %v6627 = vsel %vm4054, %v4893, %v5737
        %v6628 = vsel %vm4054, %v4895, %v5739
        %v6629 = vsel %vm4054, %v4897, %v5741
        %v6630 = vsel %vm4054, %v4899, %v5743
        %v6631 = vsel %vm4054, %v4901, %v5745
        %v6632 = vsel %vm4054, %v4903, %v5747
        %v6633 = vsel %vm4054, %v4905, %v5749
        %v6634 = vsel %vm4054, %v4907, %v5751
        %v6635 = vsel %vm4054, %v4909, %v5753
        %v6636 = vsel %vm4054, %v4911, %v5755
        %v6637 = vsel %vm4054, %v4913, %v5757
        %v6638 = vsel %vm6410, %v6606, %v5797
        %v6639 = vsel %vm6410, %v6607, %v5799
        %v6640 = vsel %vm6410, %v6608, %v5801
        %v6641 = vsel %vm6410, %v6609, %v5803
        %v6642 = vsel %vm6410, %v6610, %v5805
        %v6643 = vsel %vm6410, %v6611, %v5807
        %v6644 = vsel %vm6410, %v6612, %v5809
        %v6645 = vsel %vm6410, %v6613, %v5811
        %v6646 = vsel %vm6410, %v6614, %v5813
        %v6647 = vsel %vm6410, %v6615, %v5815
        %v6648 = vsel %vm6410, %v6616, %v5817
        %v6649 = vsel %vm6410, %v6617, %v5819
        %v6650 = vsel %vm6410, %v6618, %v5821
        %v6651 = vsel %vm6410, %v6619, %v5823
        %v6652 = vsel %vm6410, %v6620, %v5825
        %v6653 = vsel %vm6410, %v6621, %v5827
        %v6654 = vsel %vm6410, %v6622, %v5829
        %v6655 = vsel %vm6410, %v6623, %v5831
        %v6656 = vsel %vm6410, %v6624, %v5833
        %v6657 = vsel %vm6410, %v6625, %v5835
        %v6658 = vsel %vm6410, %v6626, %v5837
        %v6659 = vsel %vm6410, %v6627, %v5839
        %v6660 = vsel %vm6410, %v6628, %v5841
        %v6661 = vsel %vm6410, %v6629, %v5843
        %v6662 = vsel %vm6410, %v6630, %v5845
        %v6663 = vsel %vm6410, %v6631, %v5847
        %v6664 = vsel %vm6410, %v6632, %v5849
        %v6665 = vsel %vm6410, %v6633, %v5851
        %v6666 = vsel %vm6410, %v6634, %v5853
        %v6667 = vsel %vm6410, %v6635, %v5855
        %v6668 = vsel %vm6410, %v6636, %v5857
        %v6669 = vsel %vm6410, %v6637, %v5859
        %v6670 = vsel %vm1115, %v6638, %v5897
        %v6671 = vsel %vm1115, %v6639, %v5899
        %v6672 = vsel %vm1115, %v6640, %v5901
        %v6673 = vsel %vm1115, %v6641, %v5903
        %v6674 = vsel %vm1115, %v6642, %v5905
        %v6675 = vsel %vm1115, %v6643, %v5907
        %v6676 = vsel %vm1115, %v6644, %v5909
        %v6677 = vsel %vm1115, %v6645, %v5911
        %v6678 = vsel %vm1115, %v6646, %v5913
        %v6679 = vsel %vm1115, %v6647, %v5915
        %v6680 = vsel %vm1115, %v6648, %v5917
        %v6681 = vsel %vm1115, %v6649, %v5919
        %v6682 = vsel %vm1115, %v6650, %v5921
        %v6683 = vsel %vm1115, %v6651, %v5923
        %v6684 = vsel %vm1115, %v6652, %v5925
        %v6685 = vsel %vm1115, %v6653, %v5927
        %v6686 = vsel %vm1115, %v6654, %v5929
        %v6687 = vsel %vm1115, %v6655, %v5931
        %v6688 = vsel %vm1115, %v6656, %v5933
        %v6689 = vsel %vm1115, %v6657, %v5935
        %v6690 = vsel %vm1115, %v6658, %v5937
        %v6691 = vsel %vm1115, %v6659, %v5939
        %v6692 = vsel %vm1115, %v6660, %v5941
        %v6693 = vsel %vm1115, %v6661, %v5943
        %v6694 = vsel %vm1115, %v6662, %v5945
        %v6695 = vsel %vm1115, %v6663, %v5947
        %v6696 = vsel %vm1115, %v6664, %v5949
        %v6697 = vsel %vm1115, %v6665, %v5951
        %v6698 = vsel %vm1115, %v6666, %v5953
        %v6699 = vsel %vm1115, %v6667, %v5955
        %v6700 = vsel %vm1115, %v6668, %v5957
        %v6701 = vsel %vm1115, %v6669, %v5959
        %v6702 = vsel %vm6475, %v6670, %v5999
        %v6703 = vsel %vm6475, %v6671, %v6001
        %v6704 = vsel %vm6475, %v6672, %v6003
        %v6705 = vsel %vm6475, %v6673, %v6005
        %v6706 = vsel %vm6475, %v6674, %v6007
        %v6707 = vsel %vm6475, %v6675, %v6009
        %v6708 = vsel %vm6475, %v6676, %v6011
        %v6709 = vsel %vm6475, %v6677, %v6013
        %v6710 = vsel %vm6475, %v6678, %v6015
        %v6711 = vsel %vm6475, %v6679, %v6017
        %v6712 = vsel %vm6475, %v6680, %v6019
        %v6713 = vsel %vm6475, %v6681, %v6021
        %v6714 = vsel %vm6475, %v6682, %v6023
        %v6715 = vsel %vm6475, %v6683, %v6025
        %v6716 = vsel %vm6475, %v6684, %v6027
        %v6717 = vsel %vm6475, %v6685, %v6029
        %v6718 = vsel %vm6475, %v6686, %v6031
        %v6719 = vsel %vm6475, %v6687, %v6033
        %v6720 = vsel %vm6475, %v6688, %v6035
        %v6721 = vsel %vm6475, %v6689, %v6037
        %v6722 = vsel %vm6475, %v6690, %v6039
        %v6723 = vsel %vm6475, %v6691, %v6041
        %v6724 = vsel %vm6475, %v6692, %v6043
        %v6725 = vsel %vm6475, %v6693, %v6045
        %v6726 = vsel %vm6475, %v6694, %v6047
        %v6727 = vsel %vm6475, %v6695, %v6049
        %v6728 = vsel %vm6475, %v6696, %v6051
        %v6729 = vsel %vm6475, %v6697, %v6053
        %v6730 = vsel %vm6475, %v6698, %v6055
        %v6731 = vsel %vm6475, %v6699, %v6057
        %v6732 = vsel %vm6475, %v6700, %v6059
        %v6733 = vsel %vm6475, %v6701, %v6059
        %v6734 = vsel %vm6508, %v6702, %v6096
        %v6735 = vsel %vm6508, %v6703, %v6098
        %v6736 = vsel %vm6508, %v6704, %v6100
        %v6737 = vsel %vm6508, %v6705, %v6102
        %v6738 = vsel %vm6508, %v6706, %v6104
        %v6739 = vsel %vm6508, %v6707, %v6106
        %v6740 = vsel %vm6508, %v6708, %v6108
        %v6741 = vsel %vm6508, %v6709, %v6110
        %v6742 = vsel %vm6508, %v6710, %v6112
        %v6743 = vsel %vm6508, %v6711, %v6114
        %v6744 = vsel %vm6508, %v6712, %v6116
        %v6745 = vsel %vm6508, %v6713, %v6118
        %v6746 = vsel %vm6508, %v6714, %v6120
        %v6747 = vsel %vm6508, %v6715, %v6122
        %v6748 = vsel %vm6508, %v6716, %v6124
        %v6749 = vsel %vm6508, %v6717, %v6126
        %v6750 = vsel %vm6508, %v6718, %v6128
        %v6751 = vsel %vm6508, %v6719, %v6130
        %v6752 = vsel %vm6508, %v6720, %v6132
        %v6753 = vsel %vm6508, %v6721, %v6134
        %v6754 = vsel %vm6508, %v6722, %v6136
        %v6755 = vsel %vm6508, %v6723, %v6138
        %v6756 = vsel %vm6508, %v6724, %v6140
        %v6757 = vsel %vm6508, %v6725, %v6142
        %v6758 = vsel %vm6508, %v6726, %v6144
        %v6759 = vsel %vm6508, %v6727, %v6146
        %v6760 = vsel %vm6508, %v6728, %v6148
        %v6761 = vsel %vm6508, %v6729, %v6150
        %v6762 = vsel %vm6508, %v6730, %v6152
        %v6763 = vsel %vm6508, %v6731, %v6154
        %v6764 = vsel %vm6508, %v6732, %v6156
        %v6765 = vsel %vm6508, %v6733, %v6156
        %v6766 = vsel %vm1135, %v6734, %v6192
        %v6767 = vsel %vm1135, %v6735, %v6194
        %v6768 = vsel %vm1135, %v6736, %v6196
        %v6769 = vsel %vm1135, %v6737, %v6198
        %v6770 = vsel %vm1135, %v6738, %v6200
        %v6771 = vsel %vm1135, %v6739, %v6202
        %v6772 = vsel %vm1135, %v6740, %v6204
        %v6773 = vsel %vm1135, %v6741, %v6206
        %v6774 = vsel %vm1135, %v6742, %v6208
        %v6775 = vsel %vm1135, %v6743, %v6210
        %v6776 = vsel %vm1135, %v6744, %v6212
        %v6777 = vsel %vm1135, %v6745, %v6214
        %v6778 = vsel %vm1135, %v6746, %v6216
        %v6779 = vsel %vm1135, %v6747, %v6218
        %v6780 = vsel %vm1135, %v6748, %v6220
        %v6781 = vsel %vm1135, %v6749, %v6222
        %v6782 = vsel %vm1135, %v6750, %v6224
        %v6783 = vsel %vm1135, %v6751, %v6226
        %v6784 = vsel %vm1135, %v6752, %v6228
        %v6785 = vsel %vm1135, %v6753, %v6230
        %v6786 = vsel %vm1135, %v6754, %v6232
        %v6787 = vsel %vm1135, %v6755, %v6234
        %v6788 = vsel %vm1135, %v6756, %v6236
        %v6789 = vsel %vm1135, %v6757, %v6238
        %v6790 = vsel %vm1135, %v6758, %v6240
        %v6791 = vsel %vm1135, %v6759, %v6242
        %v6792 = vsel %vm1135, %v6760, %v6244
        %v6793 = vsel %vm1135, %v6761, %v6246
        %v6794 = vsel %vm1135, %v6762, %v6248
        %v6795 = vsel %vm1135, %v6763, %v6250
        %v6796 = vsel %vm1135, %v6764, %v6252
        %v6797 = vsel %vm1135, %v6765, %v6252
        %v6798 = vsel %vm6573, %v6766, %v6286
        %v6799 = vsel %vm6573, %v6767, %v6288
        %v6800 = vsel %vm6573, %v6768, %v6290
        %v6801 = vsel %vm6573, %v6769, %v6292
        %v6802 = vsel %vm6573, %v6770, %v6294
        %v6803 = vsel %vm6573, %v6771, %v6296
        %v6804 = vsel %vm6573, %v6772, %v6298
        %v6805 = vsel %vm6573, %v6773, %v6300
        %v6806 = vsel %vm6573, %v6774, %v6302
        %v6807 = vsel %vm6573, %v6775, %v6304
        %v6808 = vsel %vm6573, %v6776, %v6306
        %v6809 = vsel %vm6573, %v6777, %v6308
        %v6810 = vsel %vm6573, %v6778, %v6310
        %v6811 = vsel %vm6573, %v6779, %v6312
        %v6812 = vsel %vm6573, %v6780, %v6314
        %v6813 = vsel %vm6573, %v6781, %v6316
        %v6814 = vsel %vm6573, %v6782, %v6318
        %v6815 = vsel %vm6573, %v6783, %v6320
        %v6816 = vsel %vm6573, %v6784, %v6322
        %v6817 = vsel %vm6573, %v6785, %v6324
        %v6818 = vsel %vm6573, %v6786, %v6326
        %v6819 = vsel %vm6573, %v6787, %v6328
        %v6820 = vsel %vm6573, %v6788, %v6330
        %v6821 = vsel %vm6573, %v6789, %v6332
        %v6822 = vsel %vm6573, %v6790, %v6334
        %v6823 = vsel %vm6573, %v6791, %v6336
        %v6824 = vsel %vm6573, %v6792, %v6338
        %v6825 = vsel %vm6573, %v6793, %v6340
        %v6826 = vsel %vm6573, %v6794, %v6342
        %v6827 = vsel %vm6573, %v6795, %v6344
        %v6828 = vsel %vm6573, %v6796, %v6346
        %v6829 = vsel %vm6573, %v6797, %v6346
        %6831 = vset.pattern.permute.xlu0 0
        %6832 = vperm.xlu0 %6831, %v4068
        %v6833 = vpop.permute.xlu0 %6832
        %v6835 = vperm.slane %v6833, 0
        %v6837 = vperm.slane %v4067, 0
        %v6838 = vperm.slane %v4067, 1
        %v6840 = vsel %vm2198, %v6838, 0
        %v6843 = vsel %vm609, %v6605, 0
        %v6846 = vsel %vm609, %v6829, 0
        %6848 = vmatpush.msra.mxu0 %v6589
        %6849 = vmatpush.msra.mxu0 %v6588
        %6850 = vmatpush.msra.mxu0 %v6587
        %6851 = vmatpush.msra.mxu0 %v6586
        %6852 = vmatpush.msra.mxu0 %v6585
        %6853 = vmatpush.msra.mxu0 %v6584
        %6854 = vmatpush.msra.mxu0 %v6583
        %6855 = vmatpush.msra.mxu0 %v6582
        %6856 = vmatpush.msra.mxu0 %v6581
        %6857 = vmatpush.msra.mxu0 %v6580
        %6858 = vmatpush.msra.mxu0 %v6579
        %6859 = vmatpush.msra.mxu0 %v6578
        %6860 = vmatpush.msra.mxu0 %v6577
        %6861 = vmatpush.msra.mxu0 %v6576
        %6862 = vmatpush.msra.mxu0 %v6575
        %6863 = vmatpush.msra.mxu0 %v6574
        %6864 = vmatmul.f32.gmra.mxu0 %v6837
        %v6865 = vpop.f32.mrf.mxu0
        %v6866 = vadd.f32 %v6835, %v6865
        %6867 = vdwg.mxu0
        %6868 = vmatpush.msra.mxu0 %v6843
        %6869 = vmatpush.msra.mxu0 %v6604
        %6870 = vmatpush.msra.mxu0 %v6603
        %6871 = vmatpush.msra.mxu0 %v6602
        %6872 = vmatpush.msra.mxu0 %v6601
        %6873 = vmatpush.msra.mxu0 %v6600
        %6874 = vmatpush.msra.mxu0 %v6599
        %6875 = vmatpush.msra.mxu0 %v6598
        %6876 = vmatpush.msra.mxu0 %v6597
        %6877 = vmatpush.msra.mxu0 %v6596
        %6878 = vmatpush.msra.mxu0 %v6595
        %6879 = vmatpush.msra.mxu0 %v6594
        %6880 = vmatpush.msra.mxu0 %v6593
        %6881 = vmatpush.msra.mxu0 %v6592
        %6882 = vmatpush.msra.mxu0 %v6591
        %6883 = vmatpush.msra.mxu0 %v6590
        %6884 = vmatmul.f32.gmra.mxu0 %v6840
        %v6885 = vpop.f32.mrf.mxu0
        %v6886 = vadd.f32 %v6866, %v6885
        %6887 = vdwg.mxu0
        %6888 = vmatpush.msra.mxu0 %v6813
        %6889 = vmatpush.msra.mxu0 %v6812
        %6890 = vmatpush.msra.mxu0 %v6811
        %6891 = vmatpush.msra.mxu0 %v6810
        %6892 = vmatpush.msra.mxu0 %v6809
        %6893 = vmatpush.msra.mxu0 %v6808
        %6894 = vmatpush.msra.mxu0 %v6807
        %6895 = vmatpush.msra.mxu0 %v6806
        %6896 = vmatpush.msra.mxu0 %v6805
        %6897 = vmatpush.msra.mxu0 %v6804
        %6898 = vmatpush.msra.mxu0 %v6803
        %6899 = vmatpush.msra.mxu0 %v6802
        %6900 = vmatpush.msra.mxu0 %v6801
        %6901 = vmatpush.msra.mxu0 %v6800
        %6902 = vmatpush.msra.mxu0 %v6799
        %6903 = vmatpush.msra.mxu0 %v6798
        %6904 = vmatmul.f32.gmra.mxu0 %v6837
        %v6905 = vpop.f32.mrf.mxu0
        %v6906 = vadd.f32 %v6835, %v6905
        %6907 = vdwg.mxu0
        %6908 = vmatpush.msra.mxu0 %v6846
        %6909 = vmatpush.msra.mxu0 %v6828
        %6910 = vmatpush.msra.mxu0 %v6827
        %6911 = vmatpush.msra.mxu0 %v6826
        %6912 = vmatpush.msra.mxu0 %v6825
        %6913 = vmatpush.msra.mxu0 %v6824
        %6914 = vmatpush.msra.mxu0 %v6823
        %6915 = vmatpush.msra.mxu0 %v6822
        %6916 = vmatpush.msra.mxu0 %v6821
        %6917 = vmatpush.msra.mxu0 %v6820
        %6918 = vmatpush.msra.mxu0 %v6819
        %6919 = vmatpush.msra.mxu0 %v6818
        %6920 = vmatpush.msra.mxu0 %v6817
        %6921 = vmatpush.msra.mxu0 %v6816
        %6922 = vmatpush.msra.mxu0 %v6815
        %6923 = vmatpush.msra.mxu0 %v6814
        %6924 = vmatmul.f32.gmra.mxu0 %v6840
        %v6925 = vpop.f32.mrf.mxu0
        %v6926 = vadd.f32 %v6906, %v6925
        %6927 = vdwg.mxu0
        %v6928 = vmax.f32 %v6886, 0.0
        %v6929 = vmax.f32 %v6926, 0.0
        %v6932 = vrot.slane %v6929, 7
        %v6933 = vsel %vm596, %v6928, %v6932
        %v6935 = vlaneseq
        %vm6936 = vcmp.ge.s32.totalorder %v6935, 0
        %vm6937 = vcmp.lt.s32.totalorder %v6935, 256
        %vm6938 = vmand %vm6936, %vm6937
        %6939 = vst.msk [vmem:[%s359] sm:$0x3] %vm6938, %v6933
        %s6940 = sand.u32 %s229, 1
        %s6941 = scalar_lea.sflag [#allocation5], %s6940
        %s6942 = sand.u32 %s229, 1
        %s6943 = smul.addr %s6942, 2
        %s6944 = scalar_lea.vmem [#allocation8], %s6943
        // Predicated region
        $region65: #{tpu_custom_call.1} parent=55 // pred_check
          %p6945 = pneg %p239
        $region66: #{tpu_custom_call.1} parent=55 // pred_check_branch
          %6947 = sbr.rel (%p6945) target = $region68
        $region67: #{tpu_custom_call.1} parent=55 // pred_region
          %6949 = vsyncadd %s6941, 0
          %s6950 = smul.addr %s27, 2
          %s6951 = scalar_lea.hbm %s9, %s6950
          %s6953 = sshll.u32 %s6944, 4
          %s6954 = int_to_ptr.vmem [resolvable:$true] %s6953
          %s6955 = sshll.u32 %s6951, 4
          %s6956 = int_to_ptr.hbm [resolvable:$true] %s6955
          %6958 = dma.vmem_to_hbm [thread:$0]  %s6954, 32, %s6956, %s6941
        $region68: #{tpu_custom_call.1} parent=55 // pred_fallthru
          _
      $region56: #{tpu_custom_call.1} parent=5 // pred_fallthru
        _
      %p6959 = scmp.le.s32.totalorder 2, %s22
      // Predicated region
      $region69: #{tpu_custom_call.1} parent=5 // pred_check
        %p6960 = pneg %p6959
      $region70: #{tpu_custom_call.1} parent=5 // pred_check_branch
        %6962 = sbr.rel (%p6960) target = $region72
      $region71: #{tpu_custom_call.1} parent=5 // pred_region
        %s6963 = ssub.s32 %s22, 2
        // Predicated region
        $region73: #{tpu_custom_call.1} parent=71 // pred_check
          %p6964 = pneg %p245
        $region74: #{tpu_custom_call.1} parent=71 // pred_check_branch
          %6966 = sbr.rel (%p6964) target = $region76
        $region75: #{tpu_custom_call.1} parent=71 // pred_region
          %s6967 = sand.u32 %s230, 1
          %s6968 = scalar_lea.sflag [#allocation5], %s6967
          %s6969 = sand.u32 %s230, 1
          %s6970 = smul.addr %s6969, 2
          %s6971 = scalar_lea.vmem [#allocation8], %s6970
          %6973 = dma.done %s6968, 32
        $region76: #{tpu_custom_call.1} parent=71 // pred_fallthru
          _
      $region72: #{tpu_custom_call.1} parent=5 // pred_fallthru
        _
    $region6: #{tpu_custom_call.1} parent=1 // loop_footer
      %s26 = sadd.s32 1, %s22
    $region7: #{tpu_custom_call.1} parent=1 // loop_footer_branch
      %21 = sbr.rel target = $region3
    $region8: #{tpu_custom_call.1} parent=1 // loop_exit
      _
    %6974 = vsyncpa [#allocation4], 1
    %s6975 = scalar_lea.sflag [#allocation4], 1
    %6976 = vsyncpa %s6975, 1
    %6977 = vsyncpa [#allocation7], 1
    %6978 = vsyncpa [#allocation5], 1
    %s6979 = scalar_lea.sflag [#allocation5], 1
    %6980 = vsyncpa %s6979, 1

</llo_original>
